<compile_context>
chip_gen: v7x
topology: tpu7x:2x2x1
jax: 0.10.0
libtpu: 0.0.40
codegen_flags: <defaults>
</compile_context>

<pallas_src>
import functools

import jax
import jax.numpy as jnp
import numpy as np
from jax import lax
from jax.experimental import pallas as pl
from jax.experimental.pallas import tpu as pltpu

_LANES = 128          # lane width of a vreg; output last dim / mining chunk width
_ROW_BLOCK = 8        # rows per grid step == sublane count (fills vregs)


def _smooth_l1(d):
    ad = jnp.abs(d)
    return jnp.where(ad < 1.0, 0.5 * ad * ad, ad - 0.5)


def _block_losses(anc, gt, loc_p, conf_p, thr, v0, v1, ratio):
    """Losses for a block of RB (batch,frame) rows, vectorized over the leading row dim.

    anc   : [8, A]      rows 0-3 point form, rows 4-7 center form
    gt    : [RB, O, 5]  cols 0-3 gt boxes (point form), col 4 raw label
    loc_p : [RB, 4, A]  predicted loc offsets
    conf_p: [RB, C, A]  predicted class scores
    Returns ([RB, 1] loc loss per row, [RB, 1] conf loss per row), both 'sum' reductions.
    """
    RB, O, _ = gt.shape
    C, A = conf_p.shape[1], conf_p.shape[2]
    f32 = jnp.float32

    tr = gt[:, :, 0:4]
    lb = gt[:, :, 4:5]                                                # [RB,O,1]
    txmin, tymin = tr[:, :, 0:1], tr[:, :, 1:2]                       # [RB,O,1]
    txmax, tymax = tr[:, :, 2:3], tr[:, :, 3:4]

    axmin = anc[0:1, :].reshape(1, 1, A)
    aymin = anc[1:2, :].reshape(1, 1, A)
    axmax = anc[2:3, :].reshape(1, 1, A)
    aymax = anc[3:4, :].reshape(1, 1, A)
    acx = anc[4:5, :].reshape(1, 1, A)
    acy = anc[5:6, :].reshape(1, 1, A)
    aw = anc[6:7, :].reshape(1, 1, A)
    ah = anc[7:8, :].reshape(1, 1, A)

    # --- jaccard overlaps [RB, O, A] ---
    iw = jnp.maximum(jnp.minimum(txmax, axmax) - jnp.maximum(txmin, axmin), 0.0)
    ih = jnp.maximum(jnp.minimum(tymax, aymax) - jnp.maximum(tymin, aymin), 0.0)
    inter = iw * ih
    area_t = (txmax - txmin) * (tymax - tymin)
    area_a = (axmax - axmin) * (aymax - aymin)
    ov = inter / (area_t + area_a - inter)                            # [RB,O,A]

    a_iota = lax.broadcasted_iota(jnp.int32, (RB, O, A), 2)
    o_iota = lax.broadcasted_iota(jnp.int32, (RB, O, A), 1)
    # best anchor per truth / best truth per anchor (argmax via masked index min)
    bp_ov = jnp.max(ov, axis=2, keepdims=True)                        # [RB,O,1]
    bpi = jnp.min(jnp.where(ov == bp_ov, a_iota, A), axis=2, keepdims=True)
    bto = jnp.max(ov, axis=1, keepdims=True)                          # [RB,1,A]
    bti = jnp.min(jnp.where(ov == bto, o_iota, O), axis=1, keepdims=True)

    # Vectorized index_fill (replaces the sequential per-truth loop): each truth's best
    # anchor is forced to match that truth; on conflicts the highest truth index wins,
    # matching the original loop order.
    match = a_iota == bpi                                             # [RB,O,A]
    chosen = jnp.max(jnp.where(match, o_iota, -1), axis=1, keepdims=True)  # [RB,1,A]
    any_m = chosen >= 0
    bti = jnp.where(any_m, chosen, bti)
    bto = jnp.where(any_m, 2.0, bto)

    onehot_o = (o_iota == bti).astype(f32)                            # [RB,O,A]
    mxmin = jnp.sum(txmin * onehot_o, axis=1, keepdims=True)          # [RB,1,A]
    mymin = jnp.sum(tymin * onehot_o, axis=1, keepdims=True)
    mxmax = jnp.sum(txmax * onehot_o, axis=1, keepdims=True)
    mymax = jnp.sum(tymax * onehot_o, axis=1, keepdims=True)
    conf_label = jnp.sum(lb * onehot_o, axis=1, keepdims=True) + 1.0  # [RB,1,A]
    conf_t = jnp.where(bto < thr, 0.0, conf_label)                    # [RB,1,A]
    pos = conf_t > 0.0

    # --- encode matched boxes against anchors + smooth L1 on positives ('sum') ---
    g_cx = ((mxmin + mxmax) * 0.5 - acx) / (v0 * aw)
    g_cy = ((mymin + mymax) * 0.5 - acy) / (v0 * ah)
    g_w = jnp.log(jnp.maximum((mxmax - mxmin) / aw, 1e-12)) / v1
    g_h = jnp.log(jnp.maximum((mymax - mymin) / ah, 1e-12)) / v1
    sl1 = (_smooth_l1(loc_p[:, 0:1, :] - g_cx) +
           _smooth_l1(loc_p[:, 1:2, :] - g_cy) +
           _smooth_l1(loc_p[:, 2:3, :] - g_w) +
           _smooth_l1(loc_p[:, 3:4, :] - g_h))                        # [RB,1,A]
    loss_l = jnp.sum(jnp.where(pos, sl1, 0.0), axis=2)                # [RB,1]

    # --- per-anchor cross entropy: logsumexp(conf) - conf[target] ---
    m = jnp.max(conf_p, axis=1, keepdims=True)
    lse = jnp.log(jnp.sum(jnp.exp(conf_p - m), axis=1, keepdims=True)) + m
    c_iota = lax.broadcasted_iota(jnp.int32, (RB, C, A), 1)
    onehot_c = (c_iota == conf_t.astype(jnp.int32)).astype(f32)
    gathered = jnp.sum(conf_p * onehot_c, axis=1, keepdims=True)
    ce = lse - gathered                                               # [RB,1,A]

    # --- hard negative mining: rank by mining loss (positives zeroed) ---
    # Rank is computed in 128-lane j-chunks so peak intermediates stay O(RB*128*A)
    # instead of O(RB*A*A) (needed for realistic anchor counts within VMEM).
    lm = jnp.where(pos, 0.0, ce)                                      # [RB,1,A]
    rank = jnp.zeros_like(lm)
    for c0 in range(0, A, _LANES):
        w = min(_LANES, A - c0)
        lmc_t = jnp.swapaxes(lm[:, :, c0:c0 + w], 1, 2)               # [RB,w,1]
        jj = lax.broadcasted_iota(jnp.int32, (RB, w, A), 1) + c0      # comparand index j
        ii = lax.broadcasted_iota(jnp.int32, (RB, w, A), 2)           # element index i
        g = (lmc_t > lm) | ((lmc_t == lm) & (jj < ii))                # [RB,w,A]
        rank = rank + jnp.sum(g.astype(f32), axis=1, keepdims=True)   # [RB,1,A]
    # TODO(synk): for very large A the j-sum above could be offloaded to the MXU
    # (ones @ greater) to free XLU slots on v6e/v7x.

    num_pos = jnp.sum(pos.astype(f32), axis=2, keepdims=True)         # [RB,1,1]
    num_neg = jnp.minimum(ratio * num_pos, float(A - 1))
    neg = rank < num_neg
    sel = pos | neg
    loss_c = jnp.sum(jnp.where(sel, ce, 0.0), axis=2)                 # [RB,1]
    return loss_l, loss_c


def _kernel(anc_ref, gt_ref, loc_ref, conf_ref, ll_ref, lc_ref, *,
            thr, v0, v1, ratio, num_rows, row_block):
    blk = pl.program_id(0)
    row0 = pl.multiple_of(blk * row_block, row_block)
    gt = gt_ref[pl.ds(row0, row_block)]                               # [RB,O,5] from resident slab

    loss_l, loss_c = _block_losses(anc_ref[...], gt, loc_ref[...], conf_ref[...],
                                   thr, v0, v1, ratio)                # each [RB,1]

    # mask padded rows, write lane-dense [RB,128] partial-loss tiles (loss in lane 0)
    rows = row0 + lax.broadcasted_iota(jnp.int32, (row_block, 1), 0)
    valid = rows < num_rows                                           # [RB,1]
    lane0 = (lax.broadcasted_iota(jnp.int32, (row_block, _LANES), 1) == 0).astype(jnp.float32)
    ll_ref[...] = jnp.where(valid, loss_l, 0.0) * lane0
    lc_ref[...] = jnp.where(valid, loss_c, 0.0) * lane0


def _prepare(loc_data, conf_data, anchors, targets, num_frames, num_classes, row_block):
    B, ND, _ = loc_data.shape
    A = ND // num_frames
    R = B * num_frames
    C = num_classes
    O = targets.shape[2]
    G = (R + row_block - 1) // row_block
    R_pad = G * row_block

    loc_r = (loc_data.astype(jnp.float32)
             .reshape(B, num_frames, A, 4).reshape(R, A, 4).transpose(0, 2, 1))   # [R,4,A]
    conf_r = (conf_data.astype(jnp.float32)
              .reshape(B, num_frames, A, C).reshape(R, A, C).transpose(0, 2, 1))  # [R,C,A]
    gt = targets.astype(jnp.float32).reshape(R, O, 5)                             # [R,O,5]
    if R_pad != R:
        pad = ((0, R_pad - R), (0, 0), (0, 0))
        loc_r = jnp.pad(loc_r, pad)
        conf_r = jnp.pad(conf_r, pad)
        gt = jnp.pad(gt, pad)   # zero-area gt boxes -> zero overlap, rows masked in-kernel

    anchors = anchors.astype(jnp.float32)                # [A,4] center form (cx,cy,w,h)
    half_wh = anchors[:, 2:4] * 0.5
    anc_p = jnp.concatenate([anchors[:, 0:2] - half_wh,
                             anchors[:, 0:2] + half_wh], axis=1)                  # [A,4] point
    anc = jnp.concatenate([anc_p, anchors], axis=1).T                             # [8,A]
    return loc_r, conf_r, gt, anc, R, R_pad, A, C, O, G


def multi_frame_box_loss(loc_data, conf_data, anchors, targets, *, np_ratio=3,
                         overlap_threshold=0.5, variance=(0.1, 0.2),
                         num_frames=2, num_classes=8, row_block=_ROW_BLOCK):
    (loc_r, conf_r, gt, anc, R, R_pad, A, C, O, G) = _prepare(
        loc_data, conf_data, anchors, targets, num_frames, num_classes, row_block)

    kernel = functools.partial(
        _kernel, thr=float(overlap_threshold), v0=float(variance[0]),
        v1=float(variance[1]), ratio=int(np_ratio), num_rows=R, row_block=row_block)

    grid_spec = pltpu.PrefetchScalarGridSpec(
        num_scalar_prefetch=0,
        grid=(G,),
        in_specs=[
            pl.BlockSpec((8, A), lambda b: (0, 0)),                 # anchors: resident
            pl.BlockSpec((R_pad, O, 5), lambda b: (0, 0, 0)),       # gt boxes+labels: resident
            pl.BlockSpec((row_block, 4, A), lambda b: (b, 0, 0)),   # loc preds per row-block
            pl.BlockSpec((row_block, C, A), lambda b: (b, 0, 0)),   # conf preds per row-block
        ],
        out_specs=(pl.BlockSpec((row_block, _LANES), lambda b: (b, 0)),
                   pl.BlockSpec((row_block, _LANES), lambda b: (b, 0))),
    )

    # NOTE: if A or row_block is increased substantially, set
    # pltpu.CompilerParams(vmem_limit_bytes=...) per-generation (v7x has 64 MiB physical).
    ll, lc = pl.pallas_call(
        kernel,
        out_shape=(jax.ShapeDtypeStruct((R_pad, _LANES), jnp.float32),
                   jax.ShapeDtypeStruct((R_pad, _LANES), jnp.float32)),
        grid_spec=grid_spec,
        compiler_params=pltpu.CompilerParams(dimension_semantics=("parallel",)),
    )(anc, gt, loc_r, conf_r)
    return jnp.sum(ll), jnp.sum(lc)


def reference_loss(loc_data, conf_data, anchors, targets, *, np_ratio, overlap_threshold,
                   variance, num_frames, num_classes, row_block=_ROW_BLOCK):
    """Pure-JAX reference (same math, all rows at once)."""
    (loc_r, conf_r, gt, anc, R, R_pad, A, C, O, G) = _prepare(
        loc_data, conf_data, anchors, targets, num_frames, num_classes, row_block)
    ll, lc = _block_losses(anc, gt, loc_r, conf_r,
                           float(overlap_threshold), float(variance[0]),
                           float(variance[1]), int(np_ratio))         # [R_pad,1] each
    valid = (jnp.arange(R_pad) < R)[:, None]
    return (jnp.sum(jnp.where(valid, ll, 0.0)),
            jnp.sum(jnp.where(valid, lc, 0.0)))


if __name__ == "__main__":
    B, F, A, C, O = 5, 2, 256, 8, 4   # R = 10 rows -> padded to 16, grid of 2 row-blocks
    key = jax.random.PRNGKey(0)
    k1, k2, k3, k4, k5, k6, k7 = jax.random.split(key, 7)

    loc_data = 0.1 * jax.random.normal(k1, (B, F * A, 4), jnp.float32)
    conf_data = jax.random.normal(k2, (B, F * A, C), jnp.float32)
    cxcy = jax.random.uniform(k3, (A, 2), jnp.float32, 0.1, 0.9)
    wh = jax.random.uniform(k4, (A, 2), jnp.float32, 0.05, 0.35)
    anchors = jnp.concatenate([cxcy, wh], axis=1)                     # [A,4] center form
    xy1 = jax.random.uniform(k5, (B, F, O, 2), jnp.float32, 0.05, 0.6)
    wh_t = jax.random.uniform(k6, (B, F, O, 2), jnp.float32, 0.1, 0.35)
    labels = jax.random.randint(k7, (B, F, O, 1), 0, C - 1).astype(jnp.float32)
    targets = jnp.concatenate([xy1, xy1 + wh_t, labels], axis=-1)     # [B,F,O,5]

    cfg = dict(np_ratio=3, overlap_threshold=0.5, variance=(0.1, 0.2),
               num_frames=F, num_classes=C)

    loss_l, loss_c = multi_frame_box_loss(loc_data, conf_data, anchors, targets, **cfg)
    loss_l = jax.block_until_ready(loss_l)
    loss_c = jax.block_until_ready(loss_c)

    ref_l, ref_c = reference_loss(loc_data, conf_data, anchors, targets, **cfg)
    np.testing.assert_allclose(np.asarray(loss_l), np.asarray(ref_l), rtol=1e-3, atol=1e-2)
    np.testing.assert_allclose(np.asarray(loss_c), np.asarray(ref_c), rtol=1e-3, atol=1e-2)

    print("KERNEL_OK")
</pallas_src>

<mosaic_0001>
module attributes {stable_mosaic.version = 11 : i64} {
  func.func @_kernel(%arg0: i32, %arg1: memref<8x256xf32, #tpu.memory_space<vmem>>, %arg2: memref<16x4x5xf32, #tpu.memory_space<vmem>>, %arg3: memref<8x4x256xf32, #tpu.memory_space<vmem>>, %arg4: memref<8x8x256xf32, #tpu.memory_space<vmem>>, %arg5: memref<8x128xf32, #tpu.memory_space<vmem>>, %arg6: memref<8x128xf32, #tpu.memory_space<vmem>>) attributes {dimension_semantics = [#tpu.dimension_semantics<parallel>], iteration_bounds = array<i64: 2>, scalar_prefetch = 0 : i64, scratch_operands = 0 : i64, tpu.core_type = #tpu.core_type<tc>, window_params = [{pipeline_mode = #tpu.pipeline_mode<synchronous>, transform_indices = @transform_0, window_bounds = array<i64: 8, 256>}, {pipeline_mode = #tpu.pipeline_mode<synchronous>, transform_indices = @transform_1, window_bounds = array<i64: 16, 4, 5>}, {transform_indices = @transform_2, window_bounds = array<i64: 8, 4, 256>}, {transform_indices = @transform_3, window_bounds = array<i64: 8, 8, 256>}, {transform_indices = @transform_4, window_bounds = array<i64: 8, 128>}, {transform_indices = @transform_5, window_bounds = array<i64: 8, 128>}]} {
    %c8_i32 = arith.constant 8 : i32
    %0 = arith.muli %arg0, %c8_i32 : i32
    %1 = tpu.assume_multiple %0, 8 : i32
    %2 = arith.index_cast %1 : i32 to index
    %c0 = arith.constant 0 : index
    %c0_0 = arith.constant 0 : index
    %3 = vector.load %arg2[%2, %c0, %c0_0] : memref<16x4x5xf32, #tpu.memory_space<vmem>>, vector<8x4x5xf32>
    %c0_1 = arith.constant 0 : index
    %c0_2 = arith.constant 0 : index
    %4 = vector.load %arg1[%c0_1, %c0_2] : memref<8x256xf32, #tpu.memory_space<vmem>>, vector<8x256xf32>
    %c0_3 = arith.constant 0 : index
    %c0_4 = arith.constant 0 : index
    %c0_5 = arith.constant 0 : index
    %5 = vector.load %arg3[%c0_3, %c0_4, %c0_5] : memref<8x4x256xf32, #tpu.memory_space<vmem>>, vector<8x4x256xf32>
    %c0_6 = arith.constant 0 : index
    %c0_7 = arith.constant 0 : index
    %c0_8 = arith.constant 0 : index
    %6 = vector.load %arg4[%c0_6, %c0_7, %c0_8] : memref<8x8x256xf32, #tpu.memory_space<vmem>>, vector<8x8x256xf32>
    %7 = vector.extract_strided_slice %3 {offsets = [0, 0, 0], sizes = [8, 4, 4], strides = [1, 1, 1]} : vector<8x4x5xf32> to vector<8x4x4xf32>
    %8 = vector.extract_strided_slice %3 {offsets = [0, 0, 4], sizes = [8, 4, 1], strides = [1, 1, 1]} : vector<8x4x5xf32> to vector<8x4x1xf32>
    %9 = vector.extract_strided_slice %7 {offsets = [0, 0, 0], sizes = [8, 4, 1], strides = [1, 1, 1]} : vector<8x4x4xf32> to vector<8x4x1xf32>
    %10 = vector.extract_strided_slice %7 {offsets = [0, 0, 1], sizes = [8, 4, 1], strides = [1, 1, 1]} : vector<8x4x4xf32> to vector<8x4x1xf32>
    %11 = vector.extract_strided_slice %7 {offsets = [0, 0, 2], sizes = [8, 4, 1], strides = [1, 1, 1]} : vector<8x4x4xf32> to vector<8x4x1xf32>
    %12 = vector.extract_strided_slice %7 {offsets = [0, 0, 3], sizes = [8, 4, 1], strides = [1, 1, 1]} : vector<8x4x4xf32> to vector<8x4x1xf32>
    %13 = vector.extract_strided_slice %4 {offsets = [0, 0], sizes = [1, 256], strides = [1, 1]} : vector<8x256xf32> to vector<1x256xf32>
    %14 = vector.shape_cast %13 : vector<1x256xf32> to vector<1x1x256xf32>
    %15 = vector.extract_strided_slice %4 {offsets = [1, 0], sizes = [1, 256], strides = [1, 1]} : vector<8x256xf32> to vector<1x256xf32>
    %16 = vector.shape_cast %15 : vector<1x256xf32> to vector<1x1x256xf32>
    %17 = vector.extract_strided_slice %4 {offsets = [2, 0], sizes = [1, 256], strides = [1, 1]} : vector<8x256xf32> to vector<1x256xf32>
    %18 = vector.shape_cast %17 : vector<1x256xf32> to vector<1x1x256xf32>
    %19 = vector.extract_strided_slice %4 {offsets = [3, 0], sizes = [1, 256], strides = [1, 1]} : vector<8x256xf32> to vector<1x256xf32>
    %20 = vector.shape_cast %19 : vector<1x256xf32> to vector<1x1x256xf32>
    %21 = vector.extract_strided_slice %4 {offsets = [4, 0], sizes = [1, 256], strides = [1, 1]} : vector<8x256xf32> to vector<1x256xf32>
    %22 = vector.shape_cast %21 : vector<1x256xf32> to vector<1x1x256xf32>
    %23 = vector.extract_strided_slice %4 {offsets = [5, 0], sizes = [1, 256], strides = [1, 1]} : vector<8x256xf32> to vector<1x256xf32>
    %24 = vector.shape_cast %23 : vector<1x256xf32> to vector<1x1x256xf32>
    %25 = vector.extract_strided_slice %4 {offsets = [6, 0], sizes = [1, 256], strides = [1, 1]} : vector<8x256xf32> to vector<1x256xf32>
    %26 = vector.shape_cast %25 : vector<1x256xf32> to vector<1x1x256xf32>
    %27 = vector.extract_strided_slice %4 {offsets = [7, 0], sizes = [1, 256], strides = [1, 1]} : vector<8x256xf32> to vector<1x256xf32>
    %28 = vector.shape_cast %27 : vector<1x256xf32> to vector<1x1x256xf32>
    %29 = vector.broadcast %11 : vector<8x4x1xf32> to vector<8x4x256xf32>
    %30 = vector.broadcast %18 : vector<1x1x256xf32> to vector<8x4x256xf32>
    %31 = arith.minimumf %29, %30 : vector<8x4x256xf32>
    %32 = vector.broadcast %9 : vector<8x4x1xf32> to vector<8x4x256xf32>
    %33 = vector.broadcast %14 : vector<1x1x256xf32> to vector<8x4x256xf32>
    %34 = arith.maximumf %32, %33 : vector<8x4x256xf32>
    %35 = arith.subf %31, %34 : vector<8x4x256xf32>
    %cst = arith.constant 0.000000e+00 : f32
    %36 = vector.broadcast %cst : f32 to vector<8x4x256xf32>
    %37 = arith.maximumf %35, %36 : vector<8x4x256xf32>
    %38 = vector.broadcast %12 : vector<8x4x1xf32> to vector<8x4x256xf32>
    %39 = vector.broadcast %20 : vector<1x1x256xf32> to vector<8x4x256xf32>
    %40 = arith.minimumf %38, %39 : vector<8x4x256xf32>
    %41 = vector.broadcast %10 : vector<8x4x1xf32> to vector<8x4x256xf32>
    %42 = vector.broadcast %16 : vector<1x1x256xf32> to vector<8x4x256xf32>
    %43 = arith.maximumf %41, %42 : vector<8x4x256xf32>
    %44 = arith.subf %40, %43 : vector<8x4x256xf32>
    %cst_9 = arith.constant 0.000000e+00 : f32
    %45 = vector.broadcast %cst_9 : f32 to vector<8x4x256xf32>
    %46 = arith.maximumf %44, %45 : vector<8x4x256xf32>
    %47 = arith.mulf %37, %46 : vector<8x4x256xf32>
    %48 = arith.subf %11, %9 : vector<8x4x1xf32>
    %49 = arith.subf %12, %10 : vector<8x4x1xf32>
    %50 = arith.mulf %48, %49 : vector<8x4x1xf32>
    %51 = arith.subf %18, %14 : vector<1x1x256xf32>
    %52 = arith.subf %20, %16 : vector<1x1x256xf32>
    %53 = arith.mulf %51, %52 : vector<1x1x256xf32>
    %54 = vector.broadcast %50 : vector<8x4x1xf32> to vector<8x4x256xf32>
    %55 = vector.broadcast %53 : vector<1x1x256xf32> to vector<8x4x256xf32>
    %56 = arith.addf %54, %55 : vector<8x4x256xf32>
    %57 = arith.subf %56, %47 : vector<8x4x256xf32>
    %58 = arith.divf %47, %57 : vector<8x4x256xf32>
    %59 = tpu.iota {dimensions = array<i32: 2>} : vector<8x4x256xi32>
    %60 = tpu.iota {dimensions = array<i32: 1>} : vector<8x4x256xi32>
    %cst_10 = arith.constant dense<0xFF800000> : vector<8x4xf32>
    %61 = vector.multi_reduction <maximumf>, %58, %cst_10 [2] : vector<8x4x256xf32> to vector<8x4xf32>
    %62 = vector.shape_cast %61 : vector<8x4xf32> to vector<8x4x1xf32>
    %63 = vector.broadcast %62 : vector<8x4x1xf32> to vector<8x4x256xf32>
    %64 = arith.cmpf oeq, %58, %63 : vector<8x4x256xf32>
    %c256_i32 = arith.constant 256 : i32
    %65 = vector.broadcast %c256_i32 : i32 to vector<8x4x256xi32>
    %66 = arith.select %64, %59, %65 : vector<8x4x256xi1>, vector<8x4x256xi32>
    %cst_11 = arith.constant dense<2147483647> : vector<8x4xi32>
    %67 = vector.multi_reduction <minsi>, %66, %cst_11 [2] : vector<8x4x256xi32> to vector<8x4xi32>
    %68 = vector.shape_cast %67 : vector<8x4xi32> to vector<8x4x1xi32>
    %cst_12 = arith.constant dense<0xFF800000> : vector<8x256xf32>
    %69 = vector.multi_reduction <maximumf>, %58, %cst_12 [1] : vector<8x4x256xf32> to vector<8x256xf32>
    %70 = vector.shape_cast %69 : vector<8x256xf32> to vector<8x1x256xf32>
    %71 = vector.broadcast %70 : vector<8x1x256xf32> to vector<8x4x256xf32>
    %72 = arith.cmpf oeq, %58, %71 : vector<8x4x256xf32>
    %c4_i32 = arith.constant 4 : i32
    %73 = vector.broadcast %c4_i32 : i32 to vector<8x4x256xi32>
    %74 = arith.select %72, %60, %73 : vector<8x4x256xi1>, vector<8x4x256xi32>
    %cst_13 = arith.constant dense<2147483647> : vector<8x256xi32>
    %75 = vector.multi_reduction <minsi>, %74, %cst_13 [1] : vector<8x4x256xi32> to vector<8x256xi32>
    %76 = vector.shape_cast %75 : vector<8x256xi32> to vector<8x1x256xi32>
    %77 = vector.broadcast %68 : vector<8x4x1xi32> to vector<8x4x256xi32>
    %78 = arith.cmpi eq, %59, %77 : vector<8x4x256xi32>
    %c-1_i32 = arith.constant -1 : i32
    %79 = vector.broadcast %c-1_i32 : i32 to vector<8x4x256xi32>
    %80 = arith.select %78, %60, %79 : vector<8x4x256xi1>, vector<8x4x256xi32>
    %cst_14 = arith.constant dense<-2147483648> : vector<8x256xi32>
    %81 = vector.multi_reduction <maxsi>, %80, %cst_14 [1] : vector<8x4x256xi32> to vector<8x256xi32>
    %82 = vector.shape_cast %81 : vector<8x256xi32> to vector<8x1x256xi32>
    %c0_i32 = arith.constant 0 : i32
    %83 = vector.broadcast %c0_i32 : i32 to vector<8x1x256xi32>
    %84 = arith.cmpi sge, %82, %83 : vector<8x1x256xi32>
    %85 = arith.select %84, %82, %76 : vector<8x1x256xi1>, vector<8x1x256xi32>
    %cst_15 = arith.constant 2.000000e+00 : f32
    %86 = vector.broadcast %cst_15 : f32 to vector<8x1x256xf32>
    %87 = arith.select %84, %86, %70 : vector<8x1x256xi1>, vector<8x1x256xf32>
    %88 = vector.broadcast %85 : vector<8x1x256xi32> to vector<8x4x256xi32>
    %89 = arith.cmpi eq, %60, %88 : vector<8x4x256xi32>
    %90 = arith.extui %89 : vector<8x4x256xi1> to vector<8x4x256xi32>
    %91 = arith.sitofp %90 : vector<8x4x256xi32> to vector<8x4x256xf32>
    %92 = vector.broadcast %9 : vector<8x4x1xf32> to vector<8x4x256xf32>
    %93 = arith.mulf %92, %91 : vector<8x4x256xf32>
    %cst_16 = arith.constant dense<0.000000e+00> : vector<8x256xf32>
    %94 = vector.multi_reduction <add>, %93, %cst_16 [1] : vector<8x4x256xf32> to vector<8x256xf32>
    %95 = vector.shape_cast %94 : vector<8x256xf32> to vector<8x1x256xf32>
    %96 = vector.broadcast %10 : vector<8x4x1xf32> to vector<8x4x256xf32>
    %97 = arith.mulf %96, %91 : vector<8x4x256xf32>
    %cst_17 = arith.constant dense<0.000000e+00> : vector<8x256xf32>
    %98 = vector.multi_reduction <add>, %97, %cst_17 [1] : vector<8x4x256xf32> to vector<8x256xf32>
    %99 = vector.shape_cast %98 : vector<8x256xf32> to vector<8x1x256xf32>
    %100 = vector.broadcast %11 : vector<8x4x1xf32> to vector<8x4x256xf32>
    %101 = arith.mulf %100, %91 : vector<8x4x256xf32>
    %cst_18 = arith.constant dense<0.000000e+00> : vector<8x256xf32>
    %102 = vector.multi_reduction <add>, %101, %cst_18 [1] : vector<8x4x256xf32> to vector<8x256xf32>
    %103 = vector.shape_cast %102 : vector<8x256xf32> to vector<8x1x256xf32>
    %104 = vector.broadcast %12 : vector<8x4x1xf32> to vector<8x4x256xf32>
    %105 = arith.mulf %104, %91 : vector<8x4x256xf32>
    %cst_19 = arith.constant dense<0.000000e+00> : vector<8x256xf32>
    %106 = vector.multi_reduction <add>, %105, %cst_19 [1] : vector<8x4x256xf32> to vector<8x256xf32>
    %107 = vector.shape_cast %106 : vector<8x256xf32> to vector<8x1x256xf32>
    %108 = vector.broadcast %8 : vector<8x4x1xf32> to vector<8x4x256xf32>
    %109 = arith.mulf %108, %91 : vector<8x4x256xf32>
    %cst_20 = arith.constant dense<0.000000e+00> : vector<8x256xf32>
    %110 = vector.multi_reduction <add>, %109, %cst_20 [1] : vector<8x4x256xf32> to vector<8x256xf32>
    %111 = vector.shape_cast %110 : vector<8x256xf32> to vector<8x1x256xf32>
    %cst_21 = arith.constant 1.000000e+00 : f32
    %112 = vector.broadcast %cst_21 : f32 to vector<8x1x256xf32>
    %113 = arith.addf %111, %112 : vector<8x1x256xf32>
    %cst_22 = arith.constant 5.000000e-01 : f32
    %114 = vector.broadcast %cst_22 : f32 to vector<8x1x256xf32>
    %115 = arith.cmpf olt, %87, %114 : vector<8x1x256xf32>
    %cst_23 = arith.constant 0.000000e+00 : f32
    %116 = vector.broadcast %cst_23 : f32 to vector<8x1x256xf32>
    %117 = arith.select %115, %116, %113 : vector<8x1x256xi1>, vector<8x1x256xf32>
    %cst_24 = arith.constant 0.000000e+00 : f32
    %118 = vector.broadcast %cst_24 : f32 to vector<8x1x256xf32>
    %119 = arith.cmpf ogt, %117, %118 : vector<8x1x256xf32>
    %120 = arith.addf %95, %103 : vector<8x1x256xf32>
    %cst_25 = arith.constant 5.000000e-01 : f32
    %121 = vector.broadcast %cst_25 : f32 to vector<8x1x256xf32>
    %122 = arith.mulf %120, %121 : vector<8x1x256xf32>
    %123 = vector.broadcast %22 : vector<1x1x256xf32> to vector<8x1x256xf32>
    %124 = arith.subf %122, %123 : vector<8x1x256xf32>
    %cst_26 = arith.constant 1.000000e-01 : f32
    %125 = vector.broadcast %cst_26 : f32 to vector<1x1x256xf32>
    %126 = arith.mulf %125, %26 : vector<1x1x256xf32>
    %127 = vector.broadcast %126 : vector<1x1x256xf32> to vector<8x1x256xf32>
    %128 = arith.divf %124, %127 : vector<8x1x256xf32>
    %129 = arith.addf %99, %107 : vector<8x1x256xf32>
    %cst_27 = arith.constant 5.000000e-01 : f32
    %130 = vector.broadcast %cst_27 : f32 to vector<8x1x256xf32>
    %131 = arith.mulf %129, %130 : vector<8x1x256xf32>
    %132 = vector.broadcast %24 : vector<1x1x256xf32> to vector<8x1x256xf32>
    %133 = arith.subf %131, %132 : vector<8x1x256xf32>
    %cst_28 = arith.constant 1.000000e-01 : f32
    %134 = vector.broadcast %cst_28 : f32 to vector<1x1x256xf32>
    %135 = arith.mulf %134, %28 : vector<1x1x256xf32>
    %136 = vector.broadcast %135 : vector<1x1x256xf32> to vector<8x1x256xf32>
    %137 = arith.divf %133, %136 : vector<8x1x256xf32>
    %138 = arith.subf %103, %95 : vector<8x1x256xf32>
    %139 = vector.broadcast %26 : vector<1x1x256xf32> to vector<8x1x256xf32>
    %140 = arith.divf %138, %139 : vector<8x1x256xf32>
    %cst_29 = arith.constant 9.99999996E-13 : f32
    %141 = vector.broadcast %cst_29 : f32 to vector<8x1x256xf32>
    %142 = arith.maximumf %140, %141 : vector<8x1x256xf32>
    %143 = math.log %142 : vector<8x1x256xf32>
    %cst_30 = arith.constant 2.000000e-01 : f32
    %144 = vector.broadcast %cst_30 : f32 to vector<8x1x256xf32>
    %145 = arith.divf %143, %144 : vector<8x1x256xf32>
    %146 = arith.subf %107, %99 : vector<8x1x256xf32>
    %147 = vector.broadcast %28 : vector<1x1x256xf32> to vector<8x1x256xf32>
    %148 = arith.divf %146, %147 : vector<8x1x256xf32>
    %cst_31 = arith.constant 9.99999996E-13 : f32
    %149 = vector.broadcast %cst_31 : f32 to vector<8x1x256xf32>
    %150 = arith.maximumf %148, %149 : vector<8x1x256xf32>
    %151 = math.log %150 : vector<8x1x256xf32>
    %cst_32 = arith.constant 2.000000e-01 : f32
    %152 = vector.broadcast %cst_32 : f32 to vector<8x1x256xf32>
    %153 = arith.divf %151, %152 : vector<8x1x256xf32>
    %154 = vector.extract_strided_slice %5 {offsets = [0, 0, 0], sizes = [8, 1, 256], strides = [1, 1, 1]} : vector<8x4x256xf32> to vector<8x1x256xf32>
    %155 = arith.subf %154, %128 : vector<8x1x256xf32>
    %156 = math.absf %155 : vector<8x1x256xf32>
    %cst_33 = arith.constant 1.000000e+00 : f32
    %157 = vector.broadcast %cst_33 : f32 to vector<8x1x256xf32>
    %158 = arith.cmpf olt, %156, %157 : vector<8x1x256xf32>
    %cst_34 = arith.constant 5.000000e-01 : f32
    %159 = vector.broadcast %cst_34 : f32 to vector<8x1x256xf32>
    %160 = arith.mulf %159, %156 : vector<8x1x256xf32>
    %161 = arith.mulf %160, %156 : vector<8x1x256xf32>
    %cst_35 = arith.constant 5.000000e-01 : f32
    %162 = vector.broadcast %cst_35 : f32 to vector<8x1x256xf32>
    %163 = arith.subf %156, %162 : vector<8x1x256xf32>
    %164 = arith.select %158, %161, %163 : vector<8x1x256xi1>, vector<8x1x256xf32>
    %165 = vector.extract_strided_slice %5 {offsets = [0, 1, 0], sizes = [8, 1, 256], strides = [1, 1, 1]} : vector<8x4x256xf32> to vector<8x1x256xf32>
    %166 = arith.subf %165, %137 : vector<8x1x256xf32>
    %167 = math.absf %166 : vector<8x1x256xf32>
    %cst_36 = arith.constant 1.000000e+00 : f32
    %168 = vector.broadcast %cst_36 : f32 to vector<8x1x256xf32>
    %169 = arith.cmpf olt, %167, %168 : vector<8x1x256xf32>
    %cst_37 = arith.constant 5.000000e-01 : f32
    %170 = vector.broadcast %cst_37 : f32 to vector<8x1x256xf32>
    %171 = arith.mulf %170, %167 : vector<8x1x256xf32>
    %172 = arith.mulf %171, %167 : vector<8x1x256xf32>
    %cst_38 = arith.constant 5.000000e-01 : f32
    %173 = vector.broadcast %cst_38 : f32 to vector<8x1x256xf32>
    %174 = arith.subf %167, %173 : vector<8x1x256xf32>
    %175 = arith.select %169, %172, %174 : vector<8x1x256xi1>, vector<8x1x256xf32>
    %176 = arith.addf %164, %175 : vector<8x1x256xf32>
    %177 = vector.extract_strided_slice %5 {offsets = [0, 2, 0], sizes = [8, 1, 256], strides = [1, 1, 1]} : vector<8x4x256xf32> to vector<8x1x256xf32>
    %178 = arith.subf %177, %145 : vector<8x1x256xf32>
    %179 = math.absf %178 : vector<8x1x256xf32>
    %cst_39 = arith.constant 1.000000e+00 : f32
    %180 = vector.broadcast %cst_39 : f32 to vector<8x1x256xf32>
    %181 = arith.cmpf olt, %179, %180 : vector<8x1x256xf32>
    %cst_40 = arith.constant 5.000000e-01 : f32
    %182 = vector.broadcast %cst_40 : f32 to vector<8x1x256xf32>
    %183 = arith.mulf %182, %179 : vector<8x1x256xf32>
    %184 = arith.mulf %183, %179 : vector<8x1x256xf32>
    %cst_41 = arith.constant 5.000000e-01 : f32
    %185 = vector.broadcast %cst_41 : f32 to vector<8x1x256xf32>
    %186 = arith.subf %179, %185 : vector<8x1x256xf32>
    %187 = arith.select %181, %184, %186 : vector<8x1x256xi1>, vector<8x1x256xf32>
    %188 = arith.addf %176, %187 : vector<8x1x256xf32>
    %189 = vector.extract_strided_slice %5 {offsets = [0, 3, 0], sizes = [8, 1, 256], strides = [1, 1, 1]} : vector<8x4x256xf32> to vector<8x1x256xf32>
    %190 = arith.subf %189, %153 : vector<8x1x256xf32>
    %191 = math.absf %190 : vector<8x1x256xf32>
    %cst_42 = arith.constant 1.000000e+00 : f32
    %192 = vector.broadcast %cst_42 : f32 to vector<8x1x256xf32>
    %193 = arith.cmpf olt, %191, %192 : vector<8x1x256xf32>
    %cst_43 = arith.constant 5.000000e-01 : f32
    %194 = vector.broadcast %cst_43 : f32 to vector<8x1x256xf32>
    %195 = arith.mulf %194, %191 : vector<8x1x256xf32>
    %196 = arith.mulf %195, %191 : vector<8x1x256xf32>
    %cst_44 = arith.constant 5.000000e-01 : f32
    %197 = vector.broadcast %cst_44 : f32 to vector<8x1x256xf32>
    %198 = arith.subf %191, %197 : vector<8x1x256xf32>
    %199 = arith.select %193, %196, %198 : vector<8x1x256xi1>, vector<8x1x256xf32>
    %200 = arith.addf %188, %199 : vector<8x1x256xf32>
    %cst_45 = arith.constant 0.000000e+00 : f32
    %201 = vector.broadcast %cst_45 : f32 to vector<8x1x256xf32>
    %202 = arith.select %119, %200, %201 : vector<8x1x256xi1>, vector<8x1x256xf32>
    %cst_46 = arith.constant dense<0.000000e+00> : vector<8x1xf32>
    %203 = vector.multi_reduction <add>, %202, %cst_46 [2] : vector<8x1x256xf32> to vector<8x1xf32>
    %cst_47 = arith.constant dense<0xFF800000> : vector<8x256xf32>
    %204 = vector.multi_reduction <maximumf>, %6, %cst_47 [1] : vector<8x8x256xf32> to vector<8x256xf32>
    %205 = vector.shape_cast %204 : vector<8x256xf32> to vector<8x1x256xf32>
    %206 = vector.broadcast %205 : vector<8x1x256xf32> to vector<8x8x256xf32>
    %207 = arith.subf %6, %206 : vector<8x8x256xf32>
    %208 = math.exp %207 : vector<8x8x256xf32>
    %cst_48 = arith.constant dense<0.000000e+00> : vector<8x256xf32>
    %209 = vector.multi_reduction <add>, %208, %cst_48 [1] : vector<8x8x256xf32> to vector<8x256xf32>
    %210 = vector.shape_cast %209 : vector<8x256xf32> to vector<8x1x256xf32>
    %211 = math.log %210 : vector<8x1x256xf32>
    %212 = arith.addf %211, %205 : vector<8x1x256xf32>
    %213 = tpu.iota {dimensions = array<i32: 1>} : vector<8x8x256xi32>
    %214 = arith.fptosi %117 : vector<8x1x256xf32> to vector<8x1x256xi32>
    %215 = vector.broadcast %214 : vector<8x1x256xi32> to vector<8x8x256xi32>
    %216 = arith.cmpi eq, %213, %215 : vector<8x8x256xi32>
    %217 = arith.extui %216 : vector<8x8x256xi1> to vector<8x8x256xi32>
    %218 = arith.sitofp %217 : vector<8x8x256xi32> to vector<8x8x256xf32>
    %219 = arith.mulf %6, %218 : vector<8x8x256xf32>
    %cst_49 = arith.constant dense<0.000000e+00> : vector<8x256xf32>
    %220 = vector.multi_reduction <add>, %219, %cst_49 [1] : vector<8x8x256xf32> to vector<8x256xf32>
    %221 = vector.shape_cast %220 : vector<8x256xf32> to vector<8x1x256xf32>
    %222 = arith.subf %212, %221 : vector<8x1x256xf32>
    %cst_50 = arith.constant 0.000000e+00 : f32
    %223 = vector.broadcast %cst_50 : f32 to vector<8x1x256xf32>
    %224 = arith.select %119, %223, %222 : vector<8x1x256xi1>, vector<8x1x256xf32>
    %cst_51 = arith.constant 0.000000e+00 : f32
    %225 = vector.broadcast %cst_51 : f32 to vector<8x1x256xf32>
    %226 = vector.extract_strided_slice %224 {offsets = [0, 0, 0], sizes = [8, 1, 128], strides = [1, 1, 1]} : vector<8x1x256xf32> to vector<8x1x128xf32>
    %227 = tpu.transpose %226, [0, 2, 1] : vector<8x1x128xf32> -> vector<8x128x1xf32>
    %228 = tpu.iota {dimensions = array<i32: 1>} : vector<8x128x256xi32>
    %c0_i32_52 = arith.constant 0 : i32
    %229 = vector.broadcast %c0_i32_52 : i32 to vector<8x128x256xi32>
    %230 = arith.addi %228, %229 : vector<8x128x256xi32>
    %231 = tpu.iota {dimensions = array<i32: 2>} : vector<8x128x256xi32>
    %232 = vector.broadcast %227 : vector<8x128x1xf32> to vector<8x128x256xf32>
    %233 = vector.broadcast %224 : vector<8x1x256xf32> to vector<8x128x256xf32>
    %234 = arith.cmpf ogt, %232, %233 : vector<8x128x256xf32>
    %235 = vector.broadcast %227 : vector<8x128x1xf32> to vector<8x128x256xf32>
    %236 = vector.broadcast %224 : vector<8x1x256xf32> to vector<8x128x256xf32>
    %237 = arith.cmpf oeq, %235, %236 : vector<8x128x256xf32>
    %238 = arith.cmpi slt, %230, %231 : vector<8x128x256xi32>
    %239 = arith.andi %237, %238 : vector<8x128x256xi1>
    %240 = arith.ori %234, %239 : vector<8x128x256xi1>
    %241 = arith.extui %240 : vector<8x128x256xi1> to vector<8x128x256xi32>
    %242 = arith.sitofp %241 : vector<8x128x256xi32> to vector<8x128x256xf32>
    %cst_53 = arith.constant dense<0.000000e+00> : vector<8x256xf32>
    %243 = vector.multi_reduction <add>, %242, %cst_53 [1] : vector<8x128x256xf32> to vector<8x256xf32>
    %244 = vector.shape_cast %243 : vector<8x256xf32> to vector<8x1x256xf32>
    %245 = arith.addf %225, %244 : vector<8x1x256xf32>
    %246 = vector.extract_strided_slice %224 {offsets = [0, 0, 128], sizes = [8, 1, 128], strides = [1, 1, 1]} : vector<8x1x256xf32> to vector<8x1x128xf32>
    %247 = tpu.transpose %246, [0, 2, 1] : vector<8x1x128xf32> -> vector<8x128x1xf32>
    %248 = tpu.iota {dimensions = array<i32: 1>} : vector<8x128x256xi32>
    %c128_i32 = arith.constant 128 : i32
    %249 = vector.broadcast %c128_i32 : i32 to vector<8x128x256xi32>
    %250 = arith.addi %248, %249 : vector<8x128x256xi32>
    %251 = tpu.iota {dimensions = array<i32: 2>} : vector<8x128x256xi32>
    %252 = vector.broadcast %247 : vector<8x128x1xf32> to vector<8x128x256xf32>
    %253 = vector.broadcast %224 : vector<8x1x256xf32> to vector<8x128x256xf32>
    %254 = arith.cmpf ogt, %252, %253 : vector<8x128x256xf32>
    %255 = vector.broadcast %247 : vector<8x128x1xf32> to vector<8x128x256xf32>
    %256 = vector.broadcast %224 : vector<8x1x256xf32> to vector<8x128x256xf32>
    %257 = arith.cmpf oeq, %255, %256 : vector<8x128x256xf32>
    %258 = arith.cmpi slt, %250, %251 : vector<8x128x256xi32>
    %259 = arith.andi %257, %258 : vector<8x128x256xi1>
    %260 = arith.ori %254, %259 : vector<8x128x256xi1>
    %261 = arith.extui %260 : vector<8x128x256xi1> to vector<8x128x256xi32>
    %262 = arith.sitofp %261 : vector<8x128x256xi32> to vector<8x128x256xf32>
    %cst_54 = arith.constant dense<0.000000e+00> : vector<8x256xf32>
    %263 = vector.multi_reduction <add>, %262, %cst_54 [1] : vector<8x128x256xf32> to vector<8x256xf32>
    %264 = vector.shape_cast %263 : vector<8x256xf32> to vector<8x1x256xf32>
    %265 = arith.addf %245, %264 : vector<8x1x256xf32>
    %266 = arith.extui %119 : vector<8x1x256xi1> to vector<8x1x256xi32>
    %267 = arith.sitofp %266 : vector<8x1x256xi32> to vector<8x1x256xf32>
    %cst_55 = arith.constant dense<0.000000e+00> : vector<8x1xf32>
    %268 = vector.multi_reduction <add>, %267, %cst_55 [2] : vector<8x1x256xf32> to vector<8x1xf32>
    %269 = vector.shape_cast %268 : vector<8x1xf32> to vector<8x1x1xf32>
    %cst_56 = arith.constant 3.000000e+00 : f32
    %270 = vector.broadcast %cst_56 : f32 to vector<8x1x1xf32>
    %271 = arith.mulf %270, %269 : vector<8x1x1xf32>
    %cst_57 = arith.constant 2.550000e+02 : f32
    %272 = vector.broadcast %cst_57 : f32 to vector<8x1x1xf32>
    %273 = arith.minimumf %271, %272 : vector<8x1x1xf32>
    %274 = vector.broadcast %273 : vector<8x1x1xf32> to vector<8x1x256xf32>
    %275 = arith.cmpf olt, %265, %274 : vector<8x1x256xf32>
    %276 = arith.ori %119, %275 : vector<8x1x256xi1>
    %cst_58 = arith.constant 0.000000e+00 : f32
    %277 = vector.broadcast %cst_58 : f32 to vector<8x1x256xf32>
    %278 = arith.select %276, %222, %277 : vector<8x1x256xi1>, vector<8x1x256xf32>
    %cst_59 = arith.constant dense<0.000000e+00> : vector<8x1xf32>
    %279 = vector.multi_reduction <add>, %278, %cst_59 [2] : vector<8x1x256xf32> to vector<8x1xf32>
    %280 = tpu.iota {dimensions = array<i32: 0>} : vector<8x1xi32>
    %281 = vector.broadcast %1 : i32 to vector<8x1xi32>
    %282 = arith.addi %281, %280 : vector<8x1xi32>
    %c10_i32 = arith.constant 10 : i32
    %283 = vector.broadcast %c10_i32 : i32 to vector<8x1xi32>
    %284 = arith.cmpi slt, %282, %283 : vector<8x1xi32>
    %285 = tpu.iota {dimensions = array<i32: 1>} : vector<8x128xi32>
    %c0_i32_60 = arith.constant 0 : i32
    %286 = vector.broadcast %c0_i32_60 : i32 to vector<8x128xi32>
    %287 = arith.cmpi eq, %285, %286 : vector<8x128xi32>
    %288 = arith.extui %287 : vector<8x128xi1> to vector<8x128xi32>
    %289 = arith.sitofp %288 : vector<8x128xi32> to vector<8x128xf32>
    %cst_61 = arith.constant 0.000000e+00 : f32
    %290 = vector.broadcast %cst_61 : f32 to vector<8x1xf32>
    %291 = arith.select %284, %203, %290 : vector<8x1xi1>, vector<8x1xf32>
    %292 = vector.broadcast %291 : vector<8x1xf32> to vector<8x128xf32>
    %293 = arith.mulf %292, %289 : vector<8x128xf32>
    %c0_62 = arith.constant 0 : index
    %c0_63 = arith.constant 0 : index
    %294 = vector.load %arg5[%c0_62, %c0_63] : memref<8x128xf32, #tpu.memory_space<vmem>>, vector<8x128xf32>
    tpu.vector_store %arg5[%c0_62, %c0_63], %293 {strides = array<i32>} : memref<8x128xf32, #tpu.memory_space<vmem>>, vector<8x128xf32>,
    %cst_64 = arith.constant 0.000000e+00 : f32
    %295 = vector.broadcast %cst_64 : f32 to vector<8x1xf32>
    %296 = arith.select %284, %279, %295 : vector<8x1xi1>, vector<8x1xf32>
    %297 = vector.broadcast %296 : vector<8x1xf32> to vector<8x128xf32>
    %298 = arith.mulf %297, %289 : vector<8x128xf32>
    %c0_65 = arith.constant 0 : index
    %c0_66 = arith.constant 0 : index
    %299 = vector.load %arg6[%c0_65, %c0_66] : memref<8x128xf32, #tpu.memory_space<vmem>>, vector<8x128xf32>
    tpu.vector_store %arg6[%c0_65, %c0_66], %298 {strides = array<i32>} : memref<8x128xf32, #tpu.memory_space<vmem>>, vector<8x128xf32>,
    return
  }
  func.func @transform_0(%arg0: i32) -> (i32, i32) {
    %c0_i32 = arith.constant 0 : i32
    %c0_i32_0 = arith.constant 0 : i32
    %c0_i32_1 = arith.constant 0 : i32
    return %c0_i32, %c0_i32_0 : i32, i32
  }
  func.func @transform_1(%arg0: i32) -> (i32, i32, i32) {
    %c0_i32 = arith.constant 0 : i32
    %c0_i32_0 = arith.constant 0 : i32
    %c0_i32_1 = arith.constant 0 : i32
    %c0_i32_2 = arith.constant 0 : i32
    return %c0_i32, %c0_i32_0, %c0_i32_1 : i32, i32, i32
  }
  func.func @transform_2(%arg0: i32) -> (i32, i32, i32) {
    %c0_i32 = arith.constant 0 : i32
    %c0_i32_0 = arith.constant 0 : i32
    %c0_i32_1 = arith.constant 0 : i32
    return %arg0, %c0_i32, %c0_i32_0 : i32, i32, i32
  }
  func.func @transform_3(%arg0: i32) -> (i32, i32, i32) {
    %c0_i32 = arith.constant 0 : i32
    %c0_i32_0 = arith.constant 0 : i32
    %c0_i32_1 = arith.constant 0 : i32
    return %arg0, %c0_i32, %c0_i32_0 : i32, i32, i32
  }
  func.func @transform_4(%arg0: i32) -> (i32, i32) {
    %c0_i32 = arith.constant 0 : i32
    %c0_i32_0 = arith.constant 0 : i32
    return %arg0, %c0_i32 : i32, i32
  }
  func.func @transform_5(%arg0: i32) -> (i32, i32) {
    %c0_i32 = arith.constant 0 : i32
    %c0_i32_0 = arith.constant 0 : i32
    return %arg0, %c0_i32 : i32, i32
  }
}

</mosaic_0001>

<llo_original>
// kernel: tpu_custom_call.1
$region0: #{tpu_custom_call.1}
  #allocation0 [shape = 'u32[]', space=smem, size = 0x4, offset = 0x4, fixed_abs, tag = 'smem constant byte address 0x4 - core index']
  #allocation1 [shape = 'u32[144,128]{1,0:T(1,128)}', space=vmem, size = 0x12000, scoped, tag = 'internal scratch']
  %s0 = inlined_call_operand.vmem [shape: f32[8,256], index: 0, kind: input, shape index: {}]
  %s1 = inlined_call_operand.vmem [shape: f32[16,4,5], index: 1, kind: input, shape index: {}]
  %s2 = inlined_call_operand.hbm [shape: f32[16,4,256], index: 2, kind: input, shape index: {}]
  %s3 = inlined_call_operand.hbm [shape: f32[16,8,256], index: 3, kind: input, shape index: {}]
  %s4 = inlined_call_operand.hbm [shape: f32[16,128], index: 4, kind: output, shape index: {0}]
  %s5 = inlined_call_operand.hbm [shape: f32[16,128], index: 5, kind: output, shape index: {1}]
  %6 = xla_tuple %s4, %s5
  %s7 = sld [smem:[#allocation0]]
  $region65: #{tpu_custom_call.1} parent=0
    _
  %s9 = ssub.s32 1, %s7
  %s10 = scalar_select 0, %s9, %s7
  $region1: #{tpu_custom_call.1} parent=0
    #allocation2 [shape = 'u8[65536]{0}', space=vmem, size = 0x10000, scoped, tag = 'input window, operand 2']
    #allocation3 [shape = 's32[2]{0}', space=sflag, size = 0x8, scoped, tag = 'scoped memory for tpu_custom_call.1']
    #allocation4 [shape = 's32[2]{0}', space=sflag, size = 0x8, scoped, tag = 'scoped memory for tpu_custom_call.1']
    #allocation5 [shape = 'u8[131072]{0}', space=vmem, size = 0x20000, scoped, tag = 'input window, operand 3']
    #allocation6 [shape = 's32[2]{0}', space=sflag, size = 0x8, scoped, tag = 'scoped memory for tpu_custom_call.1']
    #allocation7 [shape = 'u8[8192]{0}', space=vmem, size = 0x2000, scoped, tag = 'output window, operand 0']
    #allocation8 [shape = 'u8[8192]{0}', space=vmem, size = 0x2000, scoped, tag = 'output window, operand 1']
    #allocation9 [shape = 's32[2]{0}', space=sflag, size = 0x8, scoped, tag = 'scoped memory for tpu_custom_call.1']
    %11 = vsyncpa [#allocation3], 0
    %s12 = scalar_lea.sflag [#allocation3], 1
    %13 = vsyncpa %s12, 0
    %14 = vsyncpa [#allocation6], 0
    %s15 = scalar_lea.sflag [#allocation6], 1
    %16 = vsyncpa %s15, 0
    %17 = vsyncpa [#allocation4], 0
    %s18 = scalar_lea.sflag [#allocation4], 1
    %19 = vsyncpa %s18, 0
    %20 = vsyncpa [#allocation9], 0
    %s21 = scalar_lea.sflag [#allocation9], 1
    %22 = vsyncpa %s21, 0
    loop: start=0, step=1, limit=4
    $region2: #{tpu_custom_call.1} parent=1 // loop_pre_header
      _
    $region3: #{tpu_custom_call.1} parent=1 // loop_header
      %s24 = sphi 0, %s28
      %p25 = scmp.ge.s32.totalorder %s24, 4
      %s32 = sphi 0, %s32
      %s34 = sphi 0, %s32
      %s35 = sphi 0, %s34
      %s49 = sphi 0, %s35
      %s53 = sphi 0, %s53
      %s55 = sphi 0, %s53
      %s56 = sphi 0, %s55
      %s70 = sphi 0, %s56
      %s76 = sphi 0, %s78
      %s79 = sphi 0, %s76
      %s80 = sphi 0, %s79
      %s96 = sphi 0, %s80
      %s102 = sphi 0, %s104
      %s105 = sphi 0, %s102
      %s106 = sphi 0, %s105
      %s122 = sphi 0, %s106
      %s128 = sphi 0, %s130
      %s131 = sphi 0, %s128
      %s132 = sphi 0, %s131
      %s148 = sphi 0, %s132
      %s154 = sphi 0, %s156
      %s157 = sphi 0, %s154
      %s158 = sphi 0, %s157
      %s174 = sphi 0, %s158
    $region4: #{tpu_custom_call.1} parent=1 // loop_header_branch
      %27 = sbr.rel (%p25) target = $region8
    $region5: #{tpu_custom_call.1} parent=1 // loop_body
      %s29 = ssub.s32 %s24, 1
      %s30 = ssub.s32 %s24, 2
      %s31 = sadd.s32 %s24, 1
      %s33 = sadd.s32 %s32, 1
      %p36 = scmp.eq.s32.totalorder %s24, 1
      %p37 = scmp.ne.s32.totalorder %s32, %s34
      %p38 = scmp.eq.s32.totalorder %s24, 0
      %p39 = por %p37, %p38
      %p40 = scmp.ne.s32.totalorder %s32, %s34
      %p41 = scmp.eq.s32.totalorder %s29, 1
      %p42 = por %p40, %p41
      %p43 = scmp.ne.s32.totalorder %s34, %s35
      %p44 = scmp.eq.s32.totalorder %s29, 0
      %p45 = por %p43, %p44
      %p46 = scmp.ne.s32.totalorder %s34, %s35
      %p47 = scmp.eq.s32.totalorder %s30, 1
      %p48 = por %p46, %p47
      %p50 = scmp.ne.s32.totalorder %s35, %s49
      %p51 = scmp.eq.s32.totalorder %s30, 0
      %p52 = por %p50, %p51
      %s54 = sadd.s32 %s53, 1
      %p57 = scmp.eq.s32.totalorder %s24, 1
      %p58 = scmp.ne.s32.totalorder %s53, %s55
      %p59 = scmp.eq.s32.totalorder %s24, 0
      %p60 = por %p58, %p59
      %p61 = scmp.ne.s32.totalorder %s53, %s55
      %p62 = scmp.eq.s32.totalorder %s29, 1
      %p63 = por %p61, %p62
      %p64 = scmp.ne.s32.totalorder %s55, %s56
      %p65 = scmp.eq.s32.totalorder %s29, 0
      %p66 = por %p64, %p65
      %p67 = scmp.ne.s32.totalorder %s55, %s56
      %p68 = scmp.eq.s32.totalorder %s30, 1
      %p69 = por %p67, %p68
      %p71 = scmp.ne.s32.totalorder %s56, %s70
      %p72 = scmp.eq.s32.totalorder %s30, 0
      %p73 = por %p71, %p72
      %s74 = ssub.s32 %s24, %s31
      %p75 = scmp.eq.s32.totalorder %s74, 0
      %s77 = sadd.s32 %s76, 1
      %s78 = scalar_select %p75, %s76, %s77
      %p81 = pneg %p75
      %p82 = scmp.eq.s32.totalorder %s24, 1
      %p83 = por %p81, %p82
      %p84 = scmp.ne.s32.totalorder %s76, %s79
      %p85 = scmp.eq.s32.totalorder %s24, 0
      %p86 = por %p84, %p85
      %p87 = scmp.ne.s32.totalorder %s76, %s79
      %p88 = scmp.eq.s32.totalorder %s29, 1
      %p89 = por %p87, %p88
      %p90 = scmp.ne.s32.totalorder %s79, %s80
      %p91 = scmp.eq.s32.totalorder %s29, 0
      %p92 = por %p90, %p91
      %p93 = scmp.ne.s32.totalorder %s79, %s80
      %p94 = scmp.eq.s32.totalorder %s30, 1
      %p95 = por %p93, %p94
      %p97 = scmp.ne.s32.totalorder %s80, %s96
      %p98 = scmp.eq.s32.totalorder %s30, 0
      %p99 = por %p97, %p98
      %s100 = ssub.s32 %s24, %s31
      %p101 = scmp.eq.s32.totalorder %s100, 0
      %s103 = sadd.s32 %s102, 1
      %s104 = scalar_select %p101, %s102, %s103
      %p107 = pneg %p101
      %p108 = scmp.eq.s32.totalorder %s24, 1
      %p109 = por %p107, %p108
      %p110 = scmp.ne.s32.totalorder %s102, %s105
      %p111 = scmp.eq.s32.totalorder %s24, 0
      %p112 = por %p110, %p111
      %p113 = scmp.ne.s32.totalorder %s102, %s105
      %p114 = scmp.eq.s32.totalorder %s29, 1
      %p115 = por %p113, %p114
      %p116 = scmp.ne.s32.totalorder %s105, %s106
      %p117 = scmp.eq.s32.totalorder %s29, 0
      %p118 = por %p116, %p117
      %p119 = scmp.ne.s32.totalorder %s105, %s106
      %p120 = scmp.eq.s32.totalorder %s30, 1
      %p121 = por %p119, %p120
      %p123 = scmp.ne.s32.totalorder %s106, %s122
      %p124 = scmp.eq.s32.totalorder %s30, 0
      %p125 = por %p123, %p124
      %s126 = ssub.s32 %s24, %s31
      %p127 = scmp.eq.s32.totalorder %s126, 0
      %s129 = sadd.s32 %s128, 1
      %s130 = scalar_select %p127, %s128, %s129
      %p133 = pneg %p127
      %p134 = scmp.eq.s32.totalorder %s24, 1
      %p135 = por %p133, %p134
      %p136 = scmp.ne.s32.totalorder %s128, %s131
      %p137 = scmp.eq.s32.totalorder %s24, 0
      %p138 = por %p136, %p137
      %p139 = scmp.ne.s32.totalorder %s128, %s131
      %p140 = scmp.eq.s32.totalorder %s29, 1
      %p141 = por %p139, %p140
      %p142 = scmp.ne.s32.totalorder %s131, %s132
      %p143 = scmp.eq.s32.totalorder %s29, 0
      %p144 = por %p142, %p143
      %p145 = scmp.ne.s32.totalorder %s131, %s132
      %p146 = scmp.eq.s32.totalorder %s30, 1
      %p147 = por %p145, %p146
      %p149 = scmp.ne.s32.totalorder %s132, %s148
      %p150 = scmp.eq.s32.totalorder %s30, 0
      %p151 = por %p149, %p150
      %s152 = ssub.s32 %s24, %s31
      %p153 = scmp.eq.s32.totalorder %s152, 0
      %s155 = sadd.s32 %s154, 1
      %s156 = scalar_select %p153, %s154, %s155
      %p159 = pneg %p153
      %p160 = scmp.eq.s32.totalorder %s24, 1
      %p161 = por %p159, %p160
      %p162 = scmp.ne.s32.totalorder %s154, %s157
      %p163 = scmp.eq.s32.totalorder %s24, 0
      %p164 = por %p162, %p163
      %p165 = scmp.ne.s32.totalorder %s154, %s157
      %p166 = scmp.eq.s32.totalorder %s29, 1
      %p167 = por %p165, %p166
      %p168 = scmp.ne.s32.totalorder %s157, %s158
      %p169 = scmp.eq.s32.totalorder %s29, 0
      %p170 = por %p168, %p169
      %p171 = scmp.ne.s32.totalorder %s157, %s158
      %p172 = scmp.eq.s32.totalorder %s30, 1
      %p173 = por %p171, %p172
      %p175 = scmp.ne.s32.totalorder %s158, %s174
      %p176 = scmp.eq.s32.totalorder %s30, 0
      %p177 = por %p175, %p176
      %p178 = scmp.le.s32.totalorder 1, %s24
      %p179 = scmp.lt.s32.totalorder %s24, 3
      %p180 = pnand %p178, %p179
      %p181 = pneg %p180
      // Predicated region
      $region9: #{tpu_custom_call.1} parent=5 // pred_check
        _
      $region10: #{tpu_custom_call.1} parent=5 // pred_check_branch
        %183 = sbr.rel (%p180) target = $region12
      $region11: #{tpu_custom_call.1} parent=5 // pred_region
        %s184 = ssub.s32 %s24, 1
        // Predicated region
        $region13: #{tpu_custom_call.1} parent=11 // pred_check
          %p185 = pneg %p45
        $region14: #{tpu_custom_call.1} parent=11 // pred_check_branch
          %187 = sbr.rel (%p185) target = $region16
        $region15: #{tpu_custom_call.1} parent=11 // pred_region
          _
        $region16: #{tpu_custom_call.1} parent=11 // pred_fallthru
          _
        // Predicated region
        $region17: #{tpu_custom_call.1} parent=11 // pred_check
          %p188 = pneg %p66
        $region18: #{tpu_custom_call.1} parent=11 // pred_check_branch
          %190 = sbr.rel (%p188) target = $region20
        $region19: #{tpu_custom_call.1} parent=11 // pred_region
          _
        $region20: #{tpu_custom_call.1} parent=11 // pred_fallthru
          _
      $region12: #{tpu_custom_call.1} parent=5 // pred_fallthru
        _
      %p191 = scmp.lt.s32.totalorder %s24, 2
      // Predicated region
      $region21: #{tpu_custom_call.1} parent=5 // pred_check
        %p192 = pneg %p191
      $region22: #{tpu_custom_call.1} parent=5 // pred_check_branch
        %194 = sbr.rel (%p192) target = $region24
      $region23: #{tpu_custom_call.1} parent=5 // pred_region
        // Predicated region
        $region25: #{tpu_custom_call.1} parent=23 // pred_check
          %p195 = pneg %p86
        $region26: #{tpu_custom_call.1} parent=23 // pred_check_branch
          %197 = sbr.rel (%p195) target = $region28
        $region27: #{tpu_custom_call.1} parent=23 // pred_region
          %s198 = sand.u32 %s76, 1
          %s199 = scalar_lea.sflag [#allocation3], %s198
          %s200 = sand.u32 %s76, 1
          %s201 = smul.addr %s200, 64
          %s202 = scalar_lea.vmem [#allocation2], %s201
          %s203 = smul.u32 8, %s24
          %s205 = ssub.s32 1024, 1024
          %206 = vsyncadd %s199, %s205
          %s207 = smul.addr %s203, 2
          %s208 = smul.addr %s207, 64
          %s209 = scalar_lea.hbm %s2, %s208
          %s210 = sshll.u32 %s202, 4
          %s211 = int_to_ptr.vmem [resolvable:$true] %s210
          %216 = dma.hbm_to_vmem [thread:$0]  %s209, 1024, %s211, %s199, 128, 128, 8
        $region28: #{tpu_custom_call.1} parent=23 // pred_fallthru
          _
        // Predicated region
        $region29: #{tpu_custom_call.1} parent=23 // pred_check
          %p217 = pneg %p112
        $region30: #{tpu_custom_call.1} parent=23 // pred_check_branch
          %219 = sbr.rel (%p217) target = $region32
        $region31: #{tpu_custom_call.1} parent=23 // pred_region
          %s220 = sand.u32 %s102, 1
          %s221 = scalar_lea.sflag [#allocation6], %s220
          %s222 = sand.u32 %s102, 1
          %s223 = smul.addr %s222, 128
          %s224 = scalar_lea.vmem [#allocation5], %s223
          %s225 = smul.u32 8, %s24
          %s227 = ssub.s32 2048, 2048
          %228 = vsyncadd %s221, %s227
          %s229 = smul.addr %s225, 2
          %s230 = smul.addr %s229, 128
          %s231 = scalar_lea.hbm %s3, %s230
          %s232 = sshll.u32 %s224, 4
          %s233 = int_to_ptr.vmem [resolvable:$true] %s232
          %238 = dma.hbm_to_vmem [thread:$0]  %s231, 2048, %s233, %s221, 256, 256, 16
        $region32: #{tpu_custom_call.1} parent=23 // pred_fallthru
          _
      $region24: #{tpu_custom_call.1} parent=5 // pred_fallthru
        _
      %p239 = scmp.le.s32.totalorder 1, %s24
      %p240 = scmp.lt.s32.totalorder %s24, 3
      %p241 = pnand %p239, %p240
      %p242 = pneg %p241
      // Predicated region
      $region33: #{tpu_custom_call.1} parent=5 // pred_check
        _
      $region34: #{tpu_custom_call.1} parent=5 // pred_check_branch
        %244 = sbr.rel (%p241) target = $region36
      $region35: #{tpu_custom_call.1} parent=5 // pred_region
        %s245 = ssub.s32 %s24, 1
        %s246 = sand.u32 %s79, 1
        %s247 = scalar_lea.sflag [#allocation3], %s246
        %s248 = sand.u32 %s79, 1
        %s249 = smul.addr %s248, 64
        %s250 = scalar_lea.vmem [#allocation2], %s249
        // Predicated region
        $region37: #{tpu_custom_call.1} parent=35 // pred_check
          %p251 = pneg %p92
        $region38: #{tpu_custom_call.1} parent=35 // pred_check_branch
          %253 = sbr.rel (%p251) target = $region40
        $region39: #{tpu_custom_call.1} parent=35 // pred_region
          %254 = dma.done %s247, 1024
        $region40: #{tpu_custom_call.1} parent=35 // pred_fallthru
          _
        %s255 = sand.u32 %s105, 1
        %s256 = scalar_lea.sflag [#allocation6], %s255
        %s257 = sand.u32 %s105, 1
        %s258 = smul.addr %s257, 128
        %s259 = scalar_lea.vmem [#allocation5], %s258
        // Predicated region
        $region41: #{tpu_custom_call.1} parent=35 // pred_check
          %p260 = pneg %p118
        $region42: #{tpu_custom_call.1} parent=35 // pred_check_branch
          %262 = sbr.rel (%p260) target = $region44
        $region43: #{tpu_custom_call.1} parent=35 // pred_region
          %263 = dma.done %s256, 2048
        $region44: #{tpu_custom_call.1} parent=35 // pred_fallthru
          _
        %p264 = pneg %p45
        %p265 = pneg %p42
        %p266 = pneg %p66
        %p267 = pneg %p63
        %s268 = sand.u32 %s79, 1
        %s269 = scalar_lea.sflag [#allocation3], %s268
        %s270 = sand.u32 %s79, 1
        %s271 = smul.addr %s270, 64
        %s272 = scalar_lea.vmem [#allocation2], %s271
        %p273 = pneg %p92
        %p274 = pneg %p89
        %s275 = sand.u32 %s105, 1
        %s276 = scalar_lea.sflag [#allocation6], %s275
        %s277 = sand.u32 %s105, 1
        %s278 = smul.addr %s277, 128
        %s279 = scalar_lea.vmem [#allocation5], %s278
        %p280 = pneg %p118
        %p281 = pneg %p115
        %p282 = pneg %p144
        %p283 = pneg %p141
        %s284 = sand.u32 %s131, 1
        %s285 = scalar_lea.sflag [#allocation4], %s284
        %s286 = sand.u32 %s131, 1
        %s287 = smul.addr %s286, 8
        %s288 = scalar_lea.vmem [#allocation7], %s287
        %p289 = pneg %p170
        %p290 = pneg %p167
        %s291 = sand.u32 %s157, 1
        %s292 = scalar_lea.sflag [#allocation9], %s291
        %s293 = sand.u32 %s157, 1
        %s294 = smul.addr %s293, 8
        %s295 = scalar_lea.vmem [#allocation8], %s294
        %s296 = smul.u32 8, %s29
        %s297 = smul.u32 8, %s29
        %s298 = smul.u32 %s29, 8
        %s299 = smul.u32 %s298, 4
        %s300 = scalar_lea.vmem %s1, %s299
        %v301 = vld [vmem:[%s300] sm:$0xf]
        %v302 = vld [vmem:[%s300 + $0x4] sm:$0xf]
        %v303 = vld [vmem:[%s300 + $0x8] sm:$0xf]
        %v304 = vld [vmem:[%s300 + $0xc] sm:$0xf]
        %v305 = vld [vmem:[%s300 + $0x10] sm:$0xf]
        %v306 = vld [vmem:[%s300 + $0x14] sm:$0xf]
        %v307 = vld [vmem:[%s300 + $0x18] sm:$0xf]
        %v308 = vld [vmem:[%s300 + $0x1c] sm:$0xf]
        %v309 = vld [vmem:[%s0] sm:$0xff]
        %v310 = vld [vmem:[%s0 + $0x8] sm:$0xff]
        %v311 = vld [vmem:[%s250] sm:$0xff]
        %v312 = vld [vmem:[%s250 + $0x8] sm:$0xff]
        %v313 = vld [vmem:[%s250 + $0x10] sm:$0xff]
        %v314 = vld [vmem:[%s250 + $0x18] sm:$0xff]
        %v315 = vld [vmem:[%s250 + $0x20] sm:$0xff]
        %v316 = vld [vmem:[%s250 + $0x28] sm:$0xff]
        %v317 = vld [vmem:[%s250 + $0x30] sm:$0xff]
        %v318 = vld [vmem:[%s250 + $0x38] sm:$0xff]
        %v319 = vld [vmem:[%s259] sm:$0xff]
        %v320 = vld [vmem:[%s259 + $0x8] sm:$0xff]
        %v321 = vld [vmem:[%s259 + $0x10] sm:$0xff]
        %v322 = vld [vmem:[%s259 + $0x18] sm:$0xff]
        %v323 = vld [vmem:[%s259 + $0x20] sm:$0xff]
        %v324 = vld [vmem:[%s259 + $0x28] sm:$0xff]
        %v325 = vld [vmem:[%s259 + $0x30] sm:$0xff]
        %v326 = vld [vmem:[%s259 + $0x38] sm:$0xff]
        %v327 = vld [vmem:[%s259 + $0x40] sm:$0xff]
        %v328 = vld [vmem:[%s259 + $0x48] sm:$0xff]
        %v329 = vld [vmem:[%s259 + $0x50] sm:$0xff]
        %v330 = vld [vmem:[%s259 + $0x58] sm:$0xff]
        %v331 = vld [vmem:[%s259 + $0x60] sm:$0xff]
        %v332 = vld [vmem:[%s259 + $0x68] sm:$0xff]
        %v333 = vld [vmem:[%s259 + $0x70] sm:$0xff]
        %v334 = vld [vmem:[%s259 + $0x78] sm:$0xff]
        %336 = vset.pattern.permute.xlu0 2
        %337 = vperm.xlu0 %336, %v301
        %v338 = vpop.permute.xlu0 %337
        %341 = vset.pattern.permute.xlu0 2
        %342 = vperm.xlu0 %341, %v302
        %v343 = vpop.permute.xlu0 %342
        %346 = vset.pattern.permute.xlu0 2
        %347 = vperm.xlu0 %346, %v303
        %v348 = vpop.permute.xlu0 %347
        %351 = vset.pattern.permute.xlu0 2
        %352 = vperm.xlu0 %351, %v304
        %v353 = vpop.permute.xlu0 %352
        %356 = vset.pattern.permute.xlu0 2
        %357 = vperm.xlu0 %356, %v305
        %v358 = vpop.permute.xlu0 %357
        %361 = vset.pattern.permute.xlu0 2
        %362 = vperm.xlu0 %361, %v306
        %v363 = vpop.permute.xlu0 %362
        %366 = vset.pattern.permute.xlu0 2
        %367 = vperm.xlu0 %366, %v307
        %v368 = vpop.permute.xlu0 %367
        %371 = vset.pattern.permute.xlu0 2
        %372 = vperm.xlu0 %371, %v308
        %v373 = vpop.permute.xlu0 %372
        %v375 = vlaneseq
        %v376 = vshrl.u32 %v375, 7
        %v377 = vsub.s32 2, %v376
        %v378 = vrot.slane %v309, %v377
        %v379 = vlaneseq
        %v380 = vshrl.u32 %v379, 7
        %v381 = vsub.s32 2, %v380
        %v382 = vrot.slane %v310, %v381
        %v383 = vmin.f32 %v338, %v378
        %v384 = vmin.f32 %v338, %v382
        %v385 = vmin.f32 %v343, %v378
        %v386 = vmin.f32 %v343, %v382
        %v387 = vmin.f32 %v348, %v378
        %v388 = vmin.f32 %v348, %v382
        %v389 = vmin.f32 %v353, %v378
        %v390 = vmin.f32 %v353, %v382
        %v391 = vmin.f32 %v358, %v378
        %v392 = vmin.f32 %v358, %v382
        %v393 = vmin.f32 %v363, %v378
        %v394 = vmin.f32 %v363, %v382
        %v395 = vmin.f32 %v368, %v378
        %v396 = vmin.f32 %v368, %v382
        %v397 = vmin.f32 %v373, %v378
        %v398 = vmin.f32 %v373, %v382
        %399 = vset.pattern.permute.xlu0 0
        %400 = vperm.xlu0 %399, %v301
        %v401 = vpop.permute.xlu0 %400
        %403 = vset.pattern.permute.xlu0 0
        %404 = vperm.xlu0 %403, %v302
        %v405 = vpop.permute.xlu0 %404
        %407 = vset.pattern.permute.xlu0 0
        %408 = vperm.xlu0 %407, %v303
        %v409 = vpop.permute.xlu0 %408
        %411 = vset.pattern.permute.xlu0 0
        %412 = vperm.xlu0 %411, %v304
        %v413 = vpop.permute.xlu0 %412
        %415 = vset.pattern.permute.xlu0 0
        %416 = vperm.xlu0 %415, %v305
        %v417 = vpop.permute.xlu0 %416
        %419 = vset.pattern.permute.xlu0 0
        %420 = vperm.xlu0 %419, %v306
        %v421 = vpop.permute.xlu0 %420
        %423 = vset.pattern.permute.xlu0 0
        %424 = vperm.xlu0 %423, %v307
        %v425 = vpop.permute.xlu0 %424
        %427 = vset.pattern.permute.xlu0 0
        %428 = vperm.xlu0 %427, %v308
        %v429 = vpop.permute.xlu0 %428
        %v431 = vlaneseq
        %v432 = vshrl.u32 %v431, 7
        %v433 = vsub.s32 0, %v432
        %v434 = vrot.slane %v309, %v433
        %v435 = vlaneseq
        %v436 = vshrl.u32 %v435, 7
        %v437 = vsub.s32 0, %v436
        %v438 = vrot.slane %v310, %v437
        %v439 = vmax.f32 %v401, %v434
        %v440 = vmax.f32 %v401, %v438
        %v441 = vmax.f32 %v405, %v434
        %v442 = vmax.f32 %v405, %v438
        %v443 = vmax.f32 %v409, %v434
        %v444 = vmax.f32 %v409, %v438
        %v445 = vmax.f32 %v413, %v434
        %v446 = vmax.f32 %v413, %v438
        %v447 = vmax.f32 %v417, %v434
        %v448 = vmax.f32 %v417, %v438
        %v449 = vmax.f32 %v421, %v434
        %v450 = vmax.f32 %v421, %v438
        %v451 = vmax.f32 %v425, %v434
        %v452 = vmax.f32 %v425, %v438
        %v453 = vmax.f32 %v429, %v434
        %v454 = vmax.f32 %v429, %v438
        %v455 = vsub.f32 %v383, %v439
        %v456 = vsub.f32 %v384, %v440
        %v457 = vsub.f32 %v385, %v441
        %v458 = vsub.f32 %v386, %v442
        %v459 = vsub.f32 %v387, %v443
        %v460 = vsub.f32 %v388, %v444
        %v461 = vsub.f32 %v389, %v445
        %v462 = vsub.f32 %v390, %v446
        %v463 = vsub.f32 %v391, %v447
        %v464 = vsub.f32 %v392, %v448
        %v465 = vsub.f32 %v393, %v449
        %v466 = vsub.f32 %v394, %v450
        %v467 = vsub.f32 %v395, %v451
        %v468 = vsub.f32 %v396, %v452
        %v469 = vsub.f32 %v397, %v453
        %v470 = vsub.f32 %v398, %v454
        %v471 = vmax.f32 %v455, 0.0
        %v472 = vmax.f32 %v456, 0.0
        %v473 = vmax.f32 %v457, 0.0
        %v474 = vmax.f32 %v458, 0.0
        %v475 = vmax.f32 %v459, 0.0
        %v476 = vmax.f32 %v460, 0.0
        %v477 = vmax.f32 %v461, 0.0
        %v478 = vmax.f32 %v462, 0.0
        %v479 = vmax.f32 %v463, 0.0
        %v480 = vmax.f32 %v464, 0.0
        %v481 = vmax.f32 %v465, 0.0
        %v482 = vmax.f32 %v466, 0.0
        %v483 = vmax.f32 %v467, 0.0
        %v484 = vmax.f32 %v468, 0.0
        %v485 = vmax.f32 %v469, 0.0
        %v486 = vmax.f32 %v470, 0.0
        %487 = vset.pattern.permute.xlu0 3
        %488 = vperm.xlu0 %487, %v301
        %v489 = vpop.permute.xlu0 %488
        %491 = vset.pattern.permute.xlu0 3
        %492 = vperm.xlu0 %491, %v302
        %v493 = vpop.permute.xlu0 %492
        %495 = vset.pattern.permute.xlu0 3
        %496 = vperm.xlu0 %495, %v303
        %v497 = vpop.permute.xlu0 %496
        %499 = vset.pattern.permute.xlu0 3
        %500 = vperm.xlu0 %499, %v304
        %v501 = vpop.permute.xlu0 %500
        %503 = vset.pattern.permute.xlu0 3
        %504 = vperm.xlu0 %503, %v305
        %v505 = vpop.permute.xlu0 %504
        %507 = vset.pattern.permute.xlu0 3
        %508 = vperm.xlu0 %507, %v306
        %v509 = vpop.permute.xlu0 %508
        %511 = vset.pattern.permute.xlu0 3
        %512 = vperm.xlu0 %511, %v307
        %v513 = vpop.permute.xlu0 %512
        %515 = vset.pattern.permute.xlu0 3
        %516 = vperm.xlu0 %515, %v308
        %v517 = vpop.permute.xlu0 %516
        %v519 = vlaneseq
        %v520 = vshrl.u32 %v519, 7
        %v521 = vsub.s32 3, %v520
        %v522 = vrot.slane %v309, %v521
        %v523 = vlaneseq
        %v524 = vshrl.u32 %v523, 7
        %v525 = vsub.s32 3, %v524
        %v526 = vrot.slane %v310, %v525
        %v527 = vmin.f32 %v489, %v522
        %v528 = vmin.f32 %v489, %v526
        %v529 = vmin.f32 %v493, %v522
        %v530 = vmin.f32 %v493, %v526
        %v531 = vmin.f32 %v497, %v522
        %v532 = vmin.f32 %v497, %v526
        %v533 = vmin.f32 %v501, %v522
        %v534 = vmin.f32 %v501, %v526
        %v535 = vmin.f32 %v505, %v522
        %v536 = vmin.f32 %v505, %v526
        %v537 = vmin.f32 %v509, %v522
        %v538 = vmin.f32 %v509, %v526
        %v539 = vmin.f32 %v513, %v522
        %v540 = vmin.f32 %v513, %v526
        %v541 = vmin.f32 %v517, %v522
        %v542 = vmin.f32 %v517, %v526
        %543 = vset.pattern.permute.xlu0 1
        %544 = vperm.xlu0 %543, %v301
        %v545 = vpop.permute.xlu0 %544
        %547 = vset.pattern.permute.xlu0 1
        %548 = vperm.xlu0 %547, %v302
        %v549 = vpop.permute.xlu0 %548
        %551 = vset.pattern.permute.xlu0 1
        %552 = vperm.xlu0 %551, %v303
        %v553 = vpop.permute.xlu0 %552
        %555 = vset.pattern.permute.xlu0 1
        %556 = vperm.xlu0 %555, %v304
        %v557 = vpop.permute.xlu0 %556
        %559 = vset.pattern.permute.xlu0 1
        %560 = vperm.xlu0 %559, %v305
        %v561 = vpop.permute.xlu0 %560
        %563 = vset.pattern.permute.xlu0 1
        %564 = vperm.xlu0 %563, %v306
        %v565 = vpop.permute.xlu0 %564
        %567 = vset.pattern.permute.xlu0 1
        %568 = vperm.xlu0 %567, %v307
        %v569 = vpop.permute.xlu0 %568
        %571 = vset.pattern.permute.xlu0 1
        %572 = vperm.xlu0 %571, %v308
        %v573 = vpop.permute.xlu0 %572
        %v575 = vlaneseq
        %v576 = vshrl.u32 %v575, 7
        %v577 = vsub.s32 1, %v576
        %v578 = vrot.slane %v309, %v577
        %v579 = vlaneseq
        %v580 = vshrl.u32 %v579, 7
        %v581 = vsub.s32 1, %v580
        %v582 = vrot.slane %v310, %v581
        %v583 = vmax.f32 %v545, %v578
        %v584 = vmax.f32 %v545, %v582
        %v585 = vmax.f32 %v549, %v578
        %v586 = vmax.f32 %v549, %v582
        %v587 = vmax.f32 %v553, %v578
        %v588 = vmax.f32 %v553, %v582
        %v589 = vmax.f32 %v557, %v578
        %v590 = vmax.f32 %v557, %v582
        %v591 = vmax.f32 %v561, %v578
        %v592 = vmax.f32 %v561, %v582
        %v593 = vmax.f32 %v565, %v578
        %v594 = vmax.f32 %v565, %v582
        %v595 = vmax.f32 %v569, %v578
        %v596 = vmax.f32 %v569, %v582
        %v597 = vmax.f32 %v573, %v578
        %v598 = vmax.f32 %v573, %v582
        %v599 = vsub.f32 %v527, %v583
        %v600 = vsub.f32 %v528, %v584
        %v601 = vsub.f32 %v529, %v585
        %v602 = vsub.f32 %v530, %v586
        %v603 = vsub.f32 %v531, %v587
        %v604 = vsub.f32 %v532, %v588
        %v605 = vsub.f32 %v533, %v589
        %v606 = vsub.f32 %v534, %v590
        %v607 = vsub.f32 %v535, %v591
        %v608 = vsub.f32 %v536, %v592
        %v609 = vsub.f32 %v537, %v593
        %v610 = vsub.f32 %v538, %v594
        %v611 = vsub.f32 %v539, %v595
        %v612 = vsub.f32 %v540, %v596
        %v613 = vsub.f32 %v541, %v597
        %v614 = vsub.f32 %v542, %v598
        %v615 = vmax.f32 %v599, 0.0
        %v616 = vmax.f32 %v600, 0.0
        %v617 = vmax.f32 %v601, 0.0
        %v618 = vmax.f32 %v602, 0.0
        %v619 = vmax.f32 %v603, 0.0
        %v620 = vmax.f32 %v604, 0.0
        %v621 = vmax.f32 %v605, 0.0
        %v622 = vmax.f32 %v606, 0.0
        %v623 = vmax.f32 %v607, 0.0
        %v624 = vmax.f32 %v608, 0.0
        %v625 = vmax.f32 %v609, 0.0
        %v626 = vmax.f32 %v610, 0.0
        %v627 = vmax.f32 %v611, 0.0
        %v628 = vmax.f32 %v612, 0.0
        %v629 = vmax.f32 %v613, 0.0
        %v630 = vmax.f32 %v614, 0.0
        %v631 = vmul.f32 %v471, %v615
        %v632 = vmul.f32 %v472, %v616
        %v633 = vmul.f32 %v473, %v617
        %v634 = vmul.f32 %v474, %v618
        %v635 = vmul.f32 %v475, %v619
        %v636 = vmul.f32 %v476, %v620
        %v637 = vmul.f32 %v477, %v621
        %v638 = vmul.f32 %v478, %v622
        %v639 = vmul.f32 %v479, %v623
        %v640 = vmul.f32 %v480, %v624
        %v641 = vmul.f32 %v481, %v625
        %v642 = vmul.f32 %v482, %v626
        %v643 = vmul.f32 %v483, %v627
        %v644 = vmul.f32 %v484, %v628
        %v645 = vmul.f32 %v485, %v629
        %v646 = vmul.f32 %v486, %v630
        %647 = vrot.lane.b32.xlu0 %v301, 2
        %v648 = vpop.permute.xlu0 %647
        %649 = vrot.lane.b32.xlu0 %v302, 2
        %v650 = vpop.permute.xlu0 %649
        %651 = vrot.lane.b32.xlu0 %v303, 2
        %v652 = vpop.permute.xlu0 %651
        %653 = vrot.lane.b32.xlu0 %v304, 2
        %v654 = vpop.permute.xlu0 %653
        %655 = vrot.lane.b32.xlu0 %v305, 2
        %v656 = vpop.permute.xlu0 %655
        %657 = vrot.lane.b32.xlu0 %v306, 2
        %v658 = vpop.permute.xlu0 %657
        %659 = vrot.lane.b32.xlu0 %v307, 2
        %v660 = vpop.permute.xlu0 %659
        %661 = vrot.lane.b32.xlu0 %v308, 2
        %v662 = vpop.permute.xlu0 %661
        %v671 = vsub.f32 %v301, %v648
        %v672 = vsub.f32 %v302, %v650
        %v673 = vsub.f32 %v303, %v652
        %v674 = vsub.f32 %v304, %v654
        %v675 = vsub.f32 %v305, %v656
        %v676 = vsub.f32 %v306, %v658
        %v677 = vsub.f32 %v307, %v660
        %v678 = vsub.f32 %v308, %v662
        %687 = vrot.lane.b32.xlu0 %v671, 127
        %v688 = vpop.permute.xlu0 %687
        %689 = vrot.lane.b32.xlu0 %v672, 127
        %v690 = vpop.permute.xlu0 %689
        %691 = vrot.lane.b32.xlu0 %v673, 127
        %v692 = vpop.permute.xlu0 %691
        %693 = vrot.lane.b32.xlu0 %v674, 127
        %v694 = vpop.permute.xlu0 %693
        %695 = vrot.lane.b32.xlu0 %v675, 127
        %v696 = vpop.permute.xlu0 %695
        %697 = vrot.lane.b32.xlu0 %v676, 127
        %v698 = vpop.permute.xlu0 %697
        %699 = vrot.lane.b32.xlu0 %v677, 127
        %v700 = vpop.permute.xlu0 %699
        %701 = vrot.lane.b32.xlu0 %v678, 127
        %v702 = vpop.permute.xlu0 %701
        %v711 = vmul.f32 %v671, %v688
        %v712 = vmul.f32 %v672, %v690
        %v713 = vmul.f32 %v673, %v692
        %v714 = vmul.f32 %v674, %v694
        %v715 = vmul.f32 %v675, %v696
        %v716 = vmul.f32 %v676, %v698
        %v717 = vmul.f32 %v677, %v700
        %v718 = vmul.f32 %v678, %v702
        %v721 = vrot.slane %v309, 6
        %v722 = vrot.slane %v310, 6
        %v725 = vsub.f32 %v309, %v721
        %v726 = vsub.f32 %v310, %v722
        %v729 = vrot.slane %v725, 1
        %v730 = vrot.slane %v726, 1
        %v733 = vmul.f32 %v725, %v729
        %v734 = vmul.f32 %v726, %v730
        %736 = vset.pattern.permute.xlu0 2
        %737 = vperm.xlu0 %736, %v711
        %v738 = vpop.permute.xlu0 %737
        %741 = vset.pattern.permute.xlu0 2
        %742 = vperm.xlu0 %741, %v712
        %v743 = vpop.permute.xlu0 %742
        %746 = vset.pattern.permute.xlu0 2
        %747 = vperm.xlu0 %746, %v713
        %v748 = vpop.permute.xlu0 %747
        %751 = vset.pattern.permute.xlu0 2
        %752 = vperm.xlu0 %751, %v714
        %v753 = vpop.permute.xlu0 %752
        %756 = vset.pattern.permute.xlu0 2
        %757 = vperm.xlu0 %756, %v715
        %v758 = vpop.permute.xlu0 %757
        %761 = vset.pattern.permute.xlu0 2
        %762 = vperm.xlu0 %761, %v716
        %v763 = vpop.permute.xlu0 %762
        %766 = vset.pattern.permute.xlu0 2
        %767 = vperm.xlu0 %766, %v717
        %v768 = vpop.permute.xlu0 %767
        %771 = vset.pattern.permute.xlu0 2
        %772 = vperm.xlu0 %771, %v718
        %v773 = vpop.permute.xlu0 %772
        %v775 = vlaneseq
        %v776 = vshrl.u32 %v775, 7
        %v777 = vsub.s32 2, %v776
        %v778 = vrot.slane %v733, %v777
        %v779 = vlaneseq
        %v780 = vshrl.u32 %v779, 7
        %v781 = vsub.s32 2, %v780
        %v782 = vrot.slane %v734, %v781
        %v783 = vadd.f32 %v738, %v778
        %v784 = vadd.f32 %v738, %v782
        %v785 = vadd.f32 %v743, %v778
        %v786 = vadd.f32 %v743, %v782
        %v787 = vadd.f32 %v748, %v778
        %v788 = vadd.f32 %v748, %v782
        %v789 = vadd.f32 %v753, %v778
        %v790 = vadd.f32 %v753, %v782
        %v791 = vadd.f32 %v758, %v778
        %v792 = vadd.f32 %v758, %v782
        %v793 = vadd.f32 %v763, %v778
        %v794 = vadd.f32 %v763, %v782
        %v795 = vadd.f32 %v768, %v778
        %v796 = vadd.f32 %v768, %v782
        %v797 = vadd.f32 %v773, %v778
        %v798 = vadd.f32 %v773, %v782
        %v799 = vsub.f32 %v783, %v631
        %v800 = vsub.f32 %v784, %v632
        %v801 = vsub.f32 %v785, %v633
        %v802 = vsub.f32 %v786, %v634
        %v803 = vsub.f32 %v787, %v635
        %v804 = vsub.f32 %v788, %v636
        %v805 = vsub.f32 %v789, %v637
        %v806 = vsub.f32 %v790, %v638
        %v807 = vsub.f32 %v791, %v639
        %v808 = vsub.f32 %v792, %v640
        %v809 = vsub.f32 %v793, %v641
        %v810 = vsub.f32 %v794, %v642
        %v811 = vsub.f32 %v795, %v643
        %v812 = vsub.f32 %v796, %v644
        %v813 = vsub.f32 %v797, %v645
        %v814 = vsub.f32 %v798, %v646
        %v815 = vrcp.pop %v799
        %v816 = vmul.f32 %v631, %v815
        %v817 = vrcp.pop %v800
        %v818 = vmul.f32 %v632, %v817
        %v819 = vrcp.pop %v801
        %v820 = vmul.f32 %v633, %v819
        %v821 = vrcp.pop %v802
        %v822 = vmul.f32 %v634, %v821
        %v823 = vrcp.pop %v803
        %v824 = vmul.f32 %v635, %v823
        %v825 = vrcp.pop %v804
        %v826 = vmul.f32 %v636, %v825
        %v827 = vrcp.pop %v805
        %v828 = vmul.f32 %v637, %v827
        %v829 = vrcp.pop %v806
        %v830 = vmul.f32 %v638, %v829
        %v831 = vrcp.pop %v807
        %v832 = vmul.f32 %v639, %v831
        %v833 = vrcp.pop %v808
        %v834 = vmul.f32 %v640, %v833
        %v835 = vrcp.pop %v809
        %v836 = vmul.f32 %v641, %v835
        %v837 = vrcp.pop %v810
        %v838 = vmul.f32 %v642, %v837
        %v839 = vrcp.pop %v811
        %v840 = vmul.f32 %v643, %v839
        %v841 = vrcp.pop %v812
        %v842 = vmul.f32 %v644, %v841
        %v843 = vrcp.pop %v813
        %v844 = vmul.f32 %v645, %v843
        %v845 = vrcp.pop %v814
        %v846 = vmul.f32 %v646, %v845
        %v847 = vlaneseq
        %v848 = vand.u32 %v847, 127
        %v849 = vadd.s32 %v848, 128
        %v850 = vlaneseq
        %v851 = vshrl.u32 %v850, 7
        %vm852 = vcmask 1043456
        %v853 = vsel %vm852, %v816, -inf
        %v854 = vsel %vm852, %v818, -inf
        %v855 = vmax.f32 %v853, %v854
        %856 = vmax.xlane.f32.xlu0 %v855
        %v857 = vpop.xlane.xlu0 %856
        %v858 = vsel %vm852, %v820, -inf
        %v859 = vsel %vm852, %v822, -inf
        %v860 = vmax.f32 %v858, %v859
        %861 = vmax.xlane.f32.xlu0 %v860
        %v862 = vpop.xlane.xlu0 %861
        %v863 = vsel %vm852, %v824, -inf
        %v864 = vsel %vm852, %v826, -inf
        %v865 = vmax.f32 %v863, %v864
        %866 = vmax.xlane.f32.xlu0 %v865
        %v867 = vpop.xlane.xlu0 %866
        %v868 = vsel %vm852, %v828, -inf
        %v869 = vsel %vm852, %v830, -inf
        %v870 = vmax.f32 %v868, %v869
        %871 = vmax.xlane.f32.xlu0 %v870
        %v872 = vpop.xlane.xlu0 %871
        %v873 = vsel %vm852, %v832, -inf
        %v874 = vsel %vm852, %v834, -inf
        %v875 = vmax.f32 %v873, %v874
        %876 = vmax.xlane.f32.xlu0 %v875
        %v877 = vpop.xlane.xlu0 %876
        %v878 = vsel %vm852, %v836, -inf
        %v879 = vsel %vm852, %v838, -inf
        %v880 = vmax.f32 %v878, %v879
        %881 = vmax.xlane.f32.xlu0 %v880
        %v882 = vpop.xlane.xlu0 %881
        %v883 = vsel %vm852, %v840, -inf
        %v884 = vsel %vm852, %v842, -inf
        %v885 = vmax.f32 %v883, %v884
        %886 = vmax.xlane.f32.xlu0 %v885
        %v887 = vpop.xlane.xlu0 %886
        %v888 = vsel %vm852, %v844, -inf
        %v889 = vsel %vm852, %v846, -inf
        %v890 = vmax.f32 %v888, %v889
        %891 = vmax.xlane.f32.xlu0 %v890
        %v892 = vpop.xlane.xlu0 %891
        %vm893 = vcmp.eq.f32.partialorder %v816, %v857
        %vm894 = vcmp.eq.f32.partialorder %v818, %v857
        %vm895 = vcmp.eq.f32.partialorder %v820, %v862
        %vm896 = vcmp.eq.f32.partialorder %v822, %v862
        %vm897 = vcmp.eq.f32.partialorder %v824, %v867
        %vm898 = vcmp.eq.f32.partialorder %v826, %v867
        %vm899 = vcmp.eq.f32.partialorder %v828, %v872
        %vm900 = vcmp.eq.f32.partialorder %v830, %v872
        %vm901 = vcmp.eq.f32.partialorder %v832, %v877
        %vm902 = vcmp.eq.f32.partialorder %v834, %v877
        %vm903 = vcmp.eq.f32.partialorder %v836, %v882
        %vm904 = vcmp.eq.f32.partialorder %v838, %v882
        %vm905 = vcmp.eq.f32.partialorder %v840, %v887
        %vm906 = vcmp.eq.f32.partialorder %v842, %v887
        %vm907 = vcmp.eq.f32.partialorder %v844, %v892
        %vm908 = vcmp.eq.f32.partialorder %v846, %v892
        %v909 = vsel %vm893, %v848, 256
        %v910 = vsel %vm894, %v849, 256
        %v911 = vsel %vm895, %v848, 256
        %v912 = vsel %vm896, %v849, 256
        %v913 = vsel %vm897, %v848, 256
        %v914 = vsel %vm898, %v849, 256
        %v915 = vsel %vm899, %v848, 256
        %v916 = vsel %vm900, %v849, 256
        %v917 = vsel %vm901, %v848, 256
        %v918 = vsel %vm902, %v849, 256
        %v919 = vsel %vm903, %v848, 256
        %v920 = vsel %vm904, %v849, 256
        %v921 = vsel %vm905, %v848, 256
        %v922 = vsel %vm906, %v849, 256
        %v923 = vsel %vm907, %v848, 256
        %v924 = vsel %vm908, %v849, 256
        %v925 = vsel %vm852, %v909, 2147483647
        %v926 = vsel %vm852, %v910, 2147483647
        %vm927 = vcmp.lt.s32.totalorder %v925, %v926
        %v928 = vsel %vm927, %v925, %v926
        %v929 = vand.u32 %v928, 65535
        %v930 = vshra.s32 %v928, 16
        %v931 = vcvt.s32.f32 %v929
        %v932 = vcvt.s32.f32 %v930
        %933 = vmin.xlane.f32.xlu0 %v932
        %v934 = vpop.xlane.xlu0 %933
        %vm935 = vcmp.eq.f32.partialorder %v932, %v934
        %v936 = vsel %vm935, %v931, inf
        %937 = vmin.xlane.f32.xlu0 %v936
        %v938 = vpop.xlane.xlu0 %937
        %v939 = vcvt.f32.s32 %v938
        %v940 = vcvt.f32.s32 %v934
        %v941 = vshll.u32 %v940, 16
        %v942 = vadd.s32 %v941, %v939
        %v943 = vsel %vm852, %v911, 2147483647
        %v944 = vsel %vm852, %v912, 2147483647
        %vm945 = vcmp.lt.s32.totalorder %v943, %v944
        %v946 = vsel %vm945, %v943, %v944
        %v947 = vand.u32 %v946, 65535
        %v948 = vshra.s32 %v946, 16
        %v949 = vcvt.s32.f32 %v947
        %v950 = vcvt.s32.f32 %v948
        %951 = vmin.xlane.f32.xlu0 %v950
        %v952 = vpop.xlane.xlu0 %951
        %vm953 = vcmp.eq.f32.partialorder %v950, %v952
        %v954 = vsel %vm953, %v949, inf
        %955 = vmin.xlane.f32.xlu0 %v954
        %v956 = vpop.xlane.xlu0 %955
        %v957 = vcvt.f32.s32 %v956
        %v958 = vcvt.f32.s32 %v952
        %v959 = vshll.u32 %v958, 16
        %v960 = vadd.s32 %v959, %v957
        %v961 = vsel %vm852, %v913, 2147483647
        %v962 = vsel %vm852, %v914, 2147483647
        %vm963 = vcmp.lt.s32.totalorder %v961, %v962
        %v964 = vsel %vm963, %v961, %v962
        %v965 = vand.u32 %v964, 65535
        %v966 = vshra.s32 %v964, 16
        %v967 = vcvt.s32.f32 %v965
        %v968 = vcvt.s32.f32 %v966
        %969 = vmin.xlane.f32.xlu0 %v968
        %v970 = vpop.xlane.xlu0 %969
        %vm971 = vcmp.eq.f32.partialorder %v968, %v970
        %v972 = vsel %vm971, %v967, inf
        %973 = vmin.xlane.f32.xlu0 %v972
        %v974 = vpop.xlane.xlu0 %973
        %v975 = vcvt.f32.s32 %v974
        %v976 = vcvt.f32.s32 %v970
        %v977 = vshll.u32 %v976, 16
        %v978 = vadd.s32 %v977, %v975
        %v979 = vsel %vm852, %v915, 2147483647
        %v980 = vsel %vm852, %v916, 2147483647
        %vm981 = vcmp.lt.s32.totalorder %v979, %v980
        %v982 = vsel %vm981, %v979, %v980
        %v983 = vand.u32 %v982, 65535
        %v984 = vshra.s32 %v982, 16
        %v985 = vcvt.s32.f32 %v983
        %v986 = vcvt.s32.f32 %v984
        %987 = vmin.xlane.f32.xlu0 %v986
        %v988 = vpop.xlane.xlu0 %987
        %vm989 = vcmp.eq.f32.partialorder %v986, %v988
        %v990 = vsel %vm989, %v985, inf
        %991 = vmin.xlane.f32.xlu0 %v990
        %v992 = vpop.xlane.xlu0 %991
        %v993 = vcvt.f32.s32 %v992
        %v994 = vcvt.f32.s32 %v988
        %v995 = vshll.u32 %v994, 16
        %v996 = vadd.s32 %v995, %v993
        %v997 = vsel %vm852, %v917, 2147483647
        %v998 = vsel %vm852, %v918, 2147483647
        %vm999 = vcmp.lt.s32.totalorder %v997, %v998
        %v1000 = vsel %vm999, %v997, %v998
        %v1001 = vand.u32 %v1000, 65535
        %v1002 = vshra.s32 %v1000, 16
        %v1003 = vcvt.s32.f32 %v1001
        %v1004 = vcvt.s32.f32 %v1002
        %1005 = vmin.xlane.f32.xlu0 %v1004
        %v1006 = vpop.xlane.xlu0 %1005
        %vm1007 = vcmp.eq.f32.partialorder %v1004, %v1006
        %v1008 = vsel %vm1007, %v1003, inf
        %1009 = vmin.xlane.f32.xlu0 %v1008
        %v1010 = vpop.xlane.xlu0 %1009
        %v1011 = vcvt.f32.s32 %v1010
        %v1012 = vcvt.f32.s32 %v1006
        %v1013 = vshll.u32 %v1012, 16
        %v1014 = vadd.s32 %v1013, %v1011
        %v1015 = vsel %vm852, %v919, 2147483647
        %v1016 = vsel %vm852, %v920, 2147483647
        %vm1017 = vcmp.lt.s32.totalorder %v1015, %v1016
        %v1018 = vsel %vm1017, %v1015, %v1016
        %v1019 = vand.u32 %v1018, 65535
        %v1020 = vshra.s32 %v1018, 16
        %v1021 = vcvt.s32.f32 %v1019
        %v1022 = vcvt.s32.f32 %v1020
        %1023 = vmin.xlane.f32.xlu0 %v1022
        %v1024 = vpop.xlane.xlu0 %1023
        %vm1025 = vcmp.eq.f32.partialorder %v1022, %v1024
        %v1026 = vsel %vm1025, %v1021, inf
        %1027 = vmin.xlane.f32.xlu0 %v1026
        %v1028 = vpop.xlane.xlu0 %1027
        %v1029 = vcvt.f32.s32 %v1028
        %v1030 = vcvt.f32.s32 %v1024
        %v1031 = vshll.u32 %v1030, 16
        %v1032 = vadd.s32 %v1031, %v1029
        %v1033 = vsel %vm852, %v921, 2147483647
        %v1034 = vsel %vm852, %v922, 2147483647
        %vm1035 = vcmp.lt.s32.totalorder %v1033, %v1034
        %v1036 = vsel %vm1035, %v1033, %v1034
        %v1037 = vand.u32 %v1036, 65535
        %v1038 = vshra.s32 %v1036, 16
        %v1039 = vcvt.s32.f32 %v1037
        %v1040 = vcvt.s32.f32 %v1038
        %1041 = vmin.xlane.f32.xlu0 %v1040
        %v1042 = vpop.xlane.xlu0 %1041
        %vm1043 = vcmp.eq.f32.partialorder %v1040, %v1042
        %v1044 = vsel %vm1043, %v1039, inf
        %1045 = vmin.xlane.f32.xlu0 %v1044
        %v1046 = vpop.xlane.xlu0 %1045
        %v1047 = vcvt.f32.s32 %v1046
        %v1048 = vcvt.f32.s32 %v1042
        %v1049 = vshll.u32 %v1048, 16
        %v1050 = vadd.s32 %v1049, %v1047
        %v1051 = vsel %vm852, %v923, 2147483647
        %v1052 = vsel %vm852, %v924, 2147483647
        %vm1053 = vcmp.lt.s32.totalorder %v1051, %v1052
        %v1054 = vsel %vm1053, %v1051, %v1052
        %v1055 = vand.u32 %v1054, 65535
        %v1056 = vshra.s32 %v1054, 16
        %v1057 = vcvt.s32.f32 %v1055
        %v1058 = vcvt.s32.f32 %v1056
        %1059 = vmin.xlane.f32.xlu0 %v1058
        %v1060 = vpop.xlane.xlu0 %1059
        %vm1061 = vcmp.eq.f32.partialorder %v1058, %v1060
        %v1062 = vsel %vm1061, %v1057, inf
        %1063 = vmin.xlane.f32.xlu0 %v1062
        %v1064 = vpop.xlane.xlu0 %1063
        %v1065 = vcvt.f32.s32 %v1064
        %v1066 = vcvt.f32.s32 %v1060
        %v1067 = vshll.u32 %v1066, 16
        %v1068 = vadd.s32 %v1067, %v1065
        %v1069 = vrot.slane %v853, 4
        %v1070 = vmax.f32 %v853, %v1069
        %v1071 = vrot.slane %v1070, 2
        %v1072 = vmax.f32 %v1070, %v1071
        %v1073 = vrot.slane %v1072, 1
        %v1074 = vmax.f32 %v1072, %v1073
        %v1075 = vrot.slane %v854, 4
        %v1076 = vmax.f32 %v854, %v1075
        %v1077 = vrot.slane %v1076, 2
        %v1078 = vmax.f32 %v1076, %v1077
        %v1079 = vrot.slane %v1078, 1
        %v1080 = vmax.f32 %v1078, %v1079
        %v1081 = vrot.slane %v858, 4
        %v1082 = vmax.f32 %v858, %v1081
        %v1083 = vrot.slane %v1082, 2
        %v1084 = vmax.f32 %v1082, %v1083
        %v1085 = vrot.slane %v1084, 1
        %v1086 = vmax.f32 %v1084, %v1085
        %v1087 = vrot.slane %v859, 4
        %v1088 = vmax.f32 %v859, %v1087
        %v1089 = vrot.slane %v1088, 2
        %v1090 = vmax.f32 %v1088, %v1089
        %v1091 = vrot.slane %v1090, 1
        %v1092 = vmax.f32 %v1090, %v1091
        %v1093 = vrot.slane %v863, 4
        %v1094 = vmax.f32 %v863, %v1093
        %v1095 = vrot.slane %v1094, 2
        %v1096 = vmax.f32 %v1094, %v1095
        %v1097 = vrot.slane %v1096, 1
        %v1098 = vmax.f32 %v1096, %v1097
        %v1099 = vrot.slane %v864, 4
        %v1100 = vmax.f32 %v864, %v1099
        %v1101 = vrot.slane %v1100, 2
        %v1102 = vmax.f32 %v1100, %v1101
        %v1103 = vrot.slane %v1102, 1
        %v1104 = vmax.f32 %v1102, %v1103
        %v1105 = vrot.slane %v868, 4
        %v1106 = vmax.f32 %v868, %v1105
        %v1107 = vrot.slane %v1106, 2
        %v1108 = vmax.f32 %v1106, %v1107
        %v1109 = vrot.slane %v1108, 1
        %v1110 = vmax.f32 %v1108, %v1109
        %v1111 = vrot.slane %v869, 4
        %v1112 = vmax.f32 %v869, %v1111
        %v1113 = vrot.slane %v1112, 2
        %v1114 = vmax.f32 %v1112, %v1113
        %v1115 = vrot.slane %v1114, 1
        %v1116 = vmax.f32 %v1114, %v1115
        %v1117 = vrot.slane %v873, 4
        %v1118 = vmax.f32 %v873, %v1117
        %v1119 = vrot.slane %v1118, 2
        %v1120 = vmax.f32 %v1118, %v1119
        %v1121 = vrot.slane %v1120, 1
        %v1122 = vmax.f32 %v1120, %v1121
        %v1123 = vrot.slane %v874, 4
        %v1124 = vmax.f32 %v874, %v1123
        %v1125 = vrot.slane %v1124, 2
        %v1126 = vmax.f32 %v1124, %v1125
        %v1127 = vrot.slane %v1126, 1
        %v1128 = vmax.f32 %v1126, %v1127
        %v1129 = vrot.slane %v878, 4
        %v1130 = vmax.f32 %v878, %v1129
        %v1131 = vrot.slane %v1130, 2
        %v1132 = vmax.f32 %v1130, %v1131
        %v1133 = vrot.slane %v1132, 1
        %v1134 = vmax.f32 %v1132, %v1133
        %v1135 = vrot.slane %v879, 4
        %v1136 = vmax.f32 %v879, %v1135
        %v1137 = vrot.slane %v1136, 2
        %v1138 = vmax.f32 %v1136, %v1137
        %v1139 = vrot.slane %v1138, 1
        %v1140 = vmax.f32 %v1138, %v1139
        %v1141 = vrot.slane %v883, 4
        %v1142 = vmax.f32 %v883, %v1141
        %v1143 = vrot.slane %v1142, 2
        %v1144 = vmax.f32 %v1142, %v1143
        %v1145 = vrot.slane %v1144, 1
        %v1146 = vmax.f32 %v1144, %v1145
        %v1147 = vrot.slane %v884, 4
        %v1148 = vmax.f32 %v884, %v1147
        %v1149 = vrot.slane %v1148, 2
        %v1150 = vmax.f32 %v1148, %v1149
        %v1151 = vrot.slane %v1150, 1
        %v1152 = vmax.f32 %v1150, %v1151
        %v1153 = vrot.slane %v888, 4
        %v1154 = vmax.f32 %v888, %v1153
        %v1155 = vrot.slane %v1154, 2
        %v1156 = vmax.f32 %v1154, %v1155
        %v1157 = vrot.slane %v1156, 1
        %v1158 = vmax.f32 %v1156, %v1157
        %v1159 = vrot.slane %v889, 4
        %v1160 = vmax.f32 %v889, %v1159
        %v1161 = vrot.slane %v1160, 2
        %v1162 = vmax.f32 %v1160, %v1161
        %v1163 = vrot.slane %v1162, 1
        %v1164 = vmax.f32 %v1162, %v1163
        %vm1165 = vcmp.eq.f32.partialorder %v816, %v1074
        %vm1166 = vcmp.eq.f32.partialorder %v818, %v1080
        %vm1167 = vcmp.eq.f32.partialorder %v820, %v1086
        %vm1168 = vcmp.eq.f32.partialorder %v822, %v1092
        %vm1169 = vcmp.eq.f32.partialorder %v824, %v1098
        %vm1170 = vcmp.eq.f32.partialorder %v826, %v1104
        %vm1171 = vcmp.eq.f32.partialorder %v828, %v1110
        %vm1172 = vcmp.eq.f32.partialorder %v830, %v1116
        %vm1173 = vcmp.eq.f32.partialorder %v832, %v1122
        %vm1174 = vcmp.eq.f32.partialorder %v834, %v1128
        %vm1175 = vcmp.eq.f32.partialorder %v836, %v1134
        %vm1176 = vcmp.eq.f32.partialorder %v838, %v1140
        %vm1177 = vcmp.eq.f32.partialorder %v840, %v1146
        %vm1178 = vcmp.eq.f32.partialorder %v842, %v1152
        %vm1179 = vcmp.eq.f32.partialorder %v844, %v1158
        %vm1180 = vcmp.eq.f32.partialorder %v846, %v1164
        %v1181 = vsel %vm1165, %v851, 4
        %v1182 = vsel %vm1166, %v851, 4
        %v1183 = vsel %vm1167, %v851, 4
        %v1184 = vsel %vm1168, %v851, 4
        %v1185 = vsel %vm1169, %v851, 4
        %v1186 = vsel %vm1170, %v851, 4
        %v1187 = vsel %vm1171, %v851, 4
        %v1188 = vsel %vm1172, %v851, 4
        %v1189 = vsel %vm1173, %v851, 4
        %v1190 = vsel %vm1174, %v851, 4
        %v1191 = vsel %vm1175, %v851, 4
        %v1192 = vsel %vm1176, %v851, 4
        %v1193 = vsel %vm1177, %v851, 4
        %v1194 = vsel %vm1178, %v851, 4
        %v1195 = vsel %vm1179, %v851, 4
        %v1196 = vsel %vm1180, %v851, 4
        %v1197 = vsel %vm852, %v1181, 2147483647
        %v1198 = vrot.slane %v1197, 4
        %vm1199 = vcmp.lt.s32.totalorder %v1197, %v1198
        %v1200 = vsel %vm1199, %v1197, %v1198
        %v1201 = vrot.slane %v1200, 2
        %vm1202 = vcmp.lt.s32.totalorder %v1200, %v1201
        %v1203 = vsel %vm1202, %v1200, %v1201
        %v1204 = vrot.slane %v1203, 1
        %vm1205 = vcmp.lt.s32.totalorder %v1203, %v1204
        %v1206 = vsel %vm1205, %v1203, %v1204
        %v1207 = vsel %vm852, %v1182, 2147483647
        %v1208 = vrot.slane %v1207, 4
        %vm1209 = vcmp.lt.s32.totalorder %v1207, %v1208
        %v1210 = vsel %vm1209, %v1207, %v1208
        %v1211 = vrot.slane %v1210, 2
        %vm1212 = vcmp.lt.s32.totalorder %v1210, %v1211
        %v1213 = vsel %vm1212, %v1210, %v1211
        %v1214 = vrot.slane %v1213, 1
        %vm1215 = vcmp.lt.s32.totalorder %v1213, %v1214
        %v1216 = vsel %vm1215, %v1213, %v1214
        %v1217 = vsel %vm852, %v1183, 2147483647
        %v1218 = vrot.slane %v1217, 4
        %vm1219 = vcmp.lt.s32.totalorder %v1217, %v1218
        %v1220 = vsel %vm1219, %v1217, %v1218
        %v1221 = vrot.slane %v1220, 2
        %vm1222 = vcmp.lt.s32.totalorder %v1220, %v1221
        %v1223 = vsel %vm1222, %v1220, %v1221
        %v1224 = vrot.slane %v1223, 1
        %vm1225 = vcmp.lt.s32.totalorder %v1223, %v1224
        %v1226 = vsel %vm1225, %v1223, %v1224
        %v1227 = vsel %vm852, %v1184, 2147483647
        %v1228 = vrot.slane %v1227, 4
        %vm1229 = vcmp.lt.s32.totalorder %v1227, %v1228
        %v1230 = vsel %vm1229, %v1227, %v1228
        %v1231 = vrot.slane %v1230, 2
        %vm1232 = vcmp.lt.s32.totalorder %v1230, %v1231
        %v1233 = vsel %vm1232, %v1230, %v1231
        %v1234 = vrot.slane %v1233, 1
        %vm1235 = vcmp.lt.s32.totalorder %v1233, %v1234
        %v1236 = vsel %vm1235, %v1233, %v1234
        %v1237 = vsel %vm852, %v1185, 2147483647
        %v1238 = vrot.slane %v1237, 4
        %vm1239 = vcmp.lt.s32.totalorder %v1237, %v1238
        %v1240 = vsel %vm1239, %v1237, %v1238
        %v1241 = vrot.slane %v1240, 2
        %vm1242 = vcmp.lt.s32.totalorder %v1240, %v1241
        %v1243 = vsel %vm1242, %v1240, %v1241
        %v1244 = vrot.slane %v1243, 1
        %vm1245 = vcmp.lt.s32.totalorder %v1243, %v1244
        %v1246 = vsel %vm1245, %v1243, %v1244
        %v1247 = vsel %vm852, %v1186, 2147483647
        %v1248 = vrot.slane %v1247, 4
        %vm1249 = vcmp.lt.s32.totalorder %v1247, %v1248
        %v1250 = vsel %vm1249, %v1247, %v1248
        %v1251 = vrot.slane %v1250, 2
        %vm1252 = vcmp.lt.s32.totalorder %v1250, %v1251
        %v1253 = vsel %vm1252, %v1250, %v1251
        %v1254 = vrot.slane %v1253, 1
        %vm1255 = vcmp.lt.s32.totalorder %v1253, %v1254
        %v1256 = vsel %vm1255, %v1253, %v1254
        %v1257 = vsel %vm852, %v1187, 2147483647
        %v1258 = vrot.slane %v1257, 4
        %vm1259 = vcmp.lt.s32.totalorder %v1257, %v1258
        %v1260 = vsel %vm1259, %v1257, %v1258
        %v1261 = vrot.slane %v1260, 2
        %vm1262 = vcmp.lt.s32.totalorder %v1260, %v1261
        %v1263 = vsel %vm1262, %v1260, %v1261
        %v1264 = vrot.slane %v1263, 1
        %vm1265 = vcmp.lt.s32.totalorder %v1263, %v1264
        %v1266 = vsel %vm1265, %v1263, %v1264
        %v1267 = vsel %vm852, %v1188, 2147483647
        %v1268 = vrot.slane %v1267, 4
        %vm1269 = vcmp.lt.s32.totalorder %v1267, %v1268
        %v1270 = vsel %vm1269, %v1267, %v1268
        %v1271 = vrot.slane %v1270, 2
        %vm1272 = vcmp.lt.s32.totalorder %v1270, %v1271
        %v1273 = vsel %vm1272, %v1270, %v1271
        %v1274 = vrot.slane %v1273, 1
        %vm1275 = vcmp.lt.s32.totalorder %v1273, %v1274
        %v1276 = vsel %vm1275, %v1273, %v1274
        %v1277 = vsel %vm852, %v1189, 2147483647
        %v1278 = vrot.slane %v1277, 4
        %vm1279 = vcmp.lt.s32.totalorder %v1277, %v1278
        %v1280 = vsel %vm1279, %v1277, %v1278
        %v1281 = vrot.slane %v1280, 2
        %vm1282 = vcmp.lt.s32.totalorder %v1280, %v1281
        %v1283 = vsel %vm1282, %v1280, %v1281
        %v1284 = vrot.slane %v1283, 1
        %vm1285 = vcmp.lt.s32.totalorder %v1283, %v1284
        %v1286 = vsel %vm1285, %v1283, %v1284
        %v1287 = vsel %vm852, %v1190, 2147483647
        %v1288 = vrot.slane %v1287, 4
        %vm1289 = vcmp.lt.s32.totalorder %v1287, %v1288
        %v1290 = vsel %vm1289, %v1287, %v1288
        %v1291 = vrot.slane %v1290, 2
        %vm1292 = vcmp.lt.s32.totalorder %v1290, %v1291
        %v1293 = vsel %vm1292, %v1290, %v1291
        %v1294 = vrot.slane %v1293, 1
        %vm1295 = vcmp.lt.s32.totalorder %v1293, %v1294
        %v1296 = vsel %vm1295, %v1293, %v1294
        %v1297 = vsel %vm852, %v1191, 2147483647
        %v1298 = vrot.slane %v1297, 4
        %vm1299 = vcmp.lt.s32.totalorder %v1297, %v1298
        %v1300 = vsel %vm1299, %v1297, %v1298
        %v1301 = vrot.slane %v1300, 2
        %vm1302 = vcmp.lt.s32.totalorder %v1300, %v1301
        %v1303 = vsel %vm1302, %v1300, %v1301
        %v1304 = vrot.slane %v1303, 1
        %vm1305 = vcmp.lt.s32.totalorder %v1303, %v1304
        %v1306 = vsel %vm1305, %v1303, %v1304
        %v1307 = vsel %vm852, %v1192, 2147483647
        %v1308 = vrot.slane %v1307, 4
        %vm1309 = vcmp.lt.s32.totalorder %v1307, %v1308
        %v1310 = vsel %vm1309, %v1307, %v1308
        %v1311 = vrot.slane %v1310, 2
        %vm1312 = vcmp.lt.s32.totalorder %v1310, %v1311
        %v1313 = vsel %vm1312, %v1310, %v1311
        %v1314 = vrot.slane %v1313, 1
        %vm1315 = vcmp.lt.s32.totalorder %v1313, %v1314
        %v1316 = vsel %vm1315, %v1313, %v1314
        %v1317 = vsel %vm852, %v1193, 2147483647
        %v1318 = vrot.slane %v1317, 4
        %vm1319 = vcmp.lt.s32.totalorder %v1317, %v1318
        %v1320 = vsel %vm1319, %v1317, %v1318
        %v1321 = vrot.slane %v1320, 2
        %vm1322 = vcmp.lt.s32.totalorder %v1320, %v1321
        %v1323 = vsel %vm1322, %v1320, %v1321
        %v1324 = vrot.slane %v1323, 1
        %vm1325 = vcmp.lt.s32.totalorder %v1323, %v1324
        %v1326 = vsel %vm1325, %v1323, %v1324
        %v1327 = vsel %vm852, %v1194, 2147483647
        %v1328 = vrot.slane %v1327, 4
        %vm1329 = vcmp.lt.s32.totalorder %v1327, %v1328
        %v1330 = vsel %vm1329, %v1327, %v1328
        %v1331 = vrot.slane %v1330, 2
        %vm1332 = vcmp.lt.s32.totalorder %v1330, %v1331
        %v1333 = vsel %vm1332, %v1330, %v1331
        %v1334 = vrot.slane %v1333, 1
        %vm1335 = vcmp.lt.s32.totalorder %v1333, %v1334
        %v1336 = vsel %vm1335, %v1333, %v1334
        %v1337 = vsel %vm852, %v1195, 2147483647
        %v1338 = vrot.slane %v1337, 4
        %vm1339 = vcmp.lt.s32.totalorder %v1337, %v1338
        %v1340 = vsel %vm1339, %v1337, %v1338
        %v1341 = vrot.slane %v1340, 2
        %vm1342 = vcmp.lt.s32.totalorder %v1340, %v1341
        %v1343 = vsel %vm1342, %v1340, %v1341
        %v1344 = vrot.slane %v1343, 1
        %vm1345 = vcmp.lt.s32.totalorder %v1343, %v1344
        %v1346 = vsel %vm1345, %v1343, %v1344
        %v1347 = vsel %vm852, %v1196, 2147483647
        %v1348 = vrot.slane %v1347, 4
        %vm1349 = vcmp.lt.s32.totalorder %v1347, %v1348
        %v1350 = vsel %vm1349, %v1347, %v1348
        %v1351 = vrot.slane %v1350, 2
        %vm1352 = vcmp.lt.s32.totalorder %v1350, %v1351
        %v1353 = vsel %vm1352, %v1350, %v1351
        %v1354 = vrot.slane %v1353, 1
        %vm1355 = vcmp.lt.s32.totalorder %v1353, %v1354
        %v1356 = vsel %vm1355, %v1353, %v1354
        %vm1357 = vcmp.eq.s32.totalorder %v848, %v942
        %vm1358 = vcmp.eq.s32.totalorder %v849, %v942
        %vm1359 = vcmp.eq.s32.totalorder %v848, %v960
        %vm1360 = vcmp.eq.s32.totalorder %v849, %v960
        %vm1361 = vcmp.eq.s32.totalorder %v848, %v978
        %vm1362 = vcmp.eq.s32.totalorder %v849, %v978
        %vm1363 = vcmp.eq.s32.totalorder %v848, %v996
        %vm1364 = vcmp.eq.s32.totalorder %v849, %v996
        %vm1365 = vcmp.eq.s32.totalorder %v848, %v1014
        %vm1366 = vcmp.eq.s32.totalorder %v849, %v1014
        %vm1367 = vcmp.eq.s32.totalorder %v848, %v1032
        %vm1368 = vcmp.eq.s32.totalorder %v849, %v1032
        %vm1369 = vcmp.eq.s32.totalorder %v848, %v1050
        %vm1370 = vcmp.eq.s32.totalorder %v849, %v1050
        %vm1371 = vcmp.eq.s32.totalorder %v848, %v1068
        %vm1372 = vcmp.eq.s32.totalorder %v849, %v1068
        %v1373 = vsel %vm1357, %v851, 4294967295
        %v1374 = vsel %vm1358, %v851, 4294967295
        %v1375 = vsel %vm1359, %v851, 4294967295
        %v1376 = vsel %vm1360, %v851, 4294967295
        %v1377 = vsel %vm1361, %v851, 4294967295
        %v1378 = vsel %vm1362, %v851, 4294967295
        %v1379 = vsel %vm1363, %v851, 4294967295
        %v1380 = vsel %vm1364, %v851, 4294967295
        %v1381 = vsel %vm1365, %v851, 4294967295
        %v1382 = vsel %vm1366, %v851, 4294967295
        %v1383 = vsel %vm1367, %v851, 4294967295
        %v1384 = vsel %vm1368, %v851, 4294967295
        %v1385 = vsel %vm1369, %v851, 4294967295
        %v1386 = vsel %vm1370, %v851, 4294967295
        %v1387 = vsel %vm1371, %v851, 4294967295
        %v1388 = vsel %vm1372, %v851, 4294967295
        %v1389 = vsel %vm852, %v1373, 2147483648
        %v1390 = vrot.slane %v1389, 4
        %vm1391 = vcmp.gt.s32.totalorder %v1389, %v1390
        %v1392 = vsel %vm1391, %v1389, %v1390
        %v1393 = vrot.slane %v1392, 2
        %vm1394 = vcmp.gt.s32.totalorder %v1392, %v1393
        %v1395 = vsel %vm1394, %v1392, %v1393
        %v1396 = vrot.slane %v1395, 1
        %vm1397 = vcmp.gt.s32.totalorder %v1395, %v1396
        %v1398 = vsel %vm1397, %v1395, %v1396
        %v1399 = vsel %vm852, %v1374, 2147483648
        %v1400 = vrot.slane %v1399, 4
        %vm1401 = vcmp.gt.s32.totalorder %v1399, %v1400
        %v1402 = vsel %vm1401, %v1399, %v1400
        %v1403 = vrot.slane %v1402, 2
        %vm1404 = vcmp.gt.s32.totalorder %v1402, %v1403
        %v1405 = vsel %vm1404, %v1402, %v1403
        %v1406 = vrot.slane %v1405, 1
        %vm1407 = vcmp.gt.s32.totalorder %v1405, %v1406
        %v1408 = vsel %vm1407, %v1405, %v1406
        %v1409 = vsel %vm852, %v1375, 2147483648
        %v1410 = vrot.slane %v1409, 4
        %vm1411 = vcmp.gt.s32.totalorder %v1409, %v1410
        %v1412 = vsel %vm1411, %v1409, %v1410
        %v1413 = vrot.slane %v1412, 2
        %vm1414 = vcmp.gt.s32.totalorder %v1412, %v1413
        %v1415 = vsel %vm1414, %v1412, %v1413
        %v1416 = vrot.slane %v1415, 1
        %vm1417 = vcmp.gt.s32.totalorder %v1415, %v1416
        %v1418 = vsel %vm1417, %v1415, %v1416
        %v1419 = vsel %vm852, %v1376, 2147483648
        %v1420 = vrot.slane %v1419, 4
        %vm1421 = vcmp.gt.s32.totalorder %v1419, %v1420
        %v1422 = vsel %vm1421, %v1419, %v1420
        %v1423 = vrot.slane %v1422, 2
        %vm1424 = vcmp.gt.s32.totalorder %v1422, %v1423
        %v1425 = vsel %vm1424, %v1422, %v1423
        %v1426 = vrot.slane %v1425, 1
        %vm1427 = vcmp.gt.s32.totalorder %v1425, %v1426
        %v1428 = vsel %vm1427, %v1425, %v1426
        %v1429 = vsel %vm852, %v1377, 2147483648
        %v1430 = vrot.slane %v1429, 4
        %vm1431 = vcmp.gt.s32.totalorder %v1429, %v1430
        %v1432 = vsel %vm1431, %v1429, %v1430
        %v1433 = vrot.slane %v1432, 2
        %vm1434 = vcmp.gt.s32.totalorder %v1432, %v1433
        %v1435 = vsel %vm1434, %v1432, %v1433
        %v1436 = vrot.slane %v1435, 1
        %vm1437 = vcmp.gt.s32.totalorder %v1435, %v1436
        %v1438 = vsel %vm1437, %v1435, %v1436
        %v1439 = vsel %vm852, %v1378, 2147483648
        %v1440 = vrot.slane %v1439, 4
        %vm1441 = vcmp.gt.s32.totalorder %v1439, %v1440
        %v1442 = vsel %vm1441, %v1439, %v1440
        %v1443 = vrot.slane %v1442, 2
        %vm1444 = vcmp.gt.s32.totalorder %v1442, %v1443
        %v1445 = vsel %vm1444, %v1442, %v1443
        %v1446 = vrot.slane %v1445, 1
        %vm1447 = vcmp.gt.s32.totalorder %v1445, %v1446
        %v1448 = vsel %vm1447, %v1445, %v1446
        %v1449 = vsel %vm852, %v1379, 2147483648
        %v1450 = vrot.slane %v1449, 4
        %vm1451 = vcmp.gt.s32.totalorder %v1449, %v1450
        %v1452 = vsel %vm1451, %v1449, %v1450
        %v1453 = vrot.slane %v1452, 2
        %vm1454 = vcmp.gt.s32.totalorder %v1452, %v1453
        %v1455 = vsel %vm1454, %v1452, %v1453
        %v1456 = vrot.slane %v1455, 1
        %vm1457 = vcmp.gt.s32.totalorder %v1455, %v1456
        %v1458 = vsel %vm1457, %v1455, %v1456
        %v1459 = vsel %vm852, %v1380, 2147483648
        %v1460 = vrot.slane %v1459, 4
        %vm1461 = vcmp.gt.s32.totalorder %v1459, %v1460
        %v1462 = vsel %vm1461, %v1459, %v1460
        %v1463 = vrot.slane %v1462, 2
        %vm1464 = vcmp.gt.s32.totalorder %v1462, %v1463
        %v1465 = vsel %vm1464, %v1462, %v1463
        %v1466 = vrot.slane %v1465, 1
        %vm1467 = vcmp.gt.s32.totalorder %v1465, %v1466
        %v1468 = vsel %vm1467, %v1465, %v1466
        %v1469 = vsel %vm852, %v1381, 2147483648
        %v1470 = vrot.slane %v1469, 4
        %vm1471 = vcmp.gt.s32.totalorder %v1469, %v1470
        %v1472 = vsel %vm1471, %v1469, %v1470
        %v1473 = vrot.slane %v1472, 2
        %vm1474 = vcmp.gt.s32.totalorder %v1472, %v1473
        %v1475 = vsel %vm1474, %v1472, %v1473
        %v1476 = vrot.slane %v1475, 1
        %vm1477 = vcmp.gt.s32.totalorder %v1475, %v1476
        %v1478 = vsel %vm1477, %v1475, %v1476
        %v1479 = vsel %vm852, %v1382, 2147483648
        %v1480 = vrot.slane %v1479, 4
        %vm1481 = vcmp.gt.s32.totalorder %v1479, %v1480
        %v1482 = vsel %vm1481, %v1479, %v1480
        %v1483 = vrot.slane %v1482, 2
        %vm1484 = vcmp.gt.s32.totalorder %v1482, %v1483
        %v1485 = vsel %vm1484, %v1482, %v1483
        %v1486 = vrot.slane %v1485, 1
        %vm1487 = vcmp.gt.s32.totalorder %v1485, %v1486
        %v1488 = vsel %vm1487, %v1485, %v1486
        %v1489 = vsel %vm852, %v1383, 2147483648
        %v1490 = vrot.slane %v1489, 4
        %vm1491 = vcmp.gt.s32.totalorder %v1489, %v1490
        %v1492 = vsel %vm1491, %v1489, %v1490
        %v1493 = vrot.slane %v1492, 2
        %vm1494 = vcmp.gt.s32.totalorder %v1492, %v1493
        %v1495 = vsel %vm1494, %v1492, %v1493
        %v1496 = vrot.slane %v1495, 1
        %vm1497 = vcmp.gt.s32.totalorder %v1495, %v1496
        %v1498 = vsel %vm1497, %v1495, %v1496
        %v1499 = vsel %vm852, %v1384, 2147483648
        %v1500 = vrot.slane %v1499, 4
        %vm1501 = vcmp.gt.s32.totalorder %v1499, %v1500
        %v1502 = vsel %vm1501, %v1499, %v1500
        %v1503 = vrot.slane %v1502, 2
        %vm1504 = vcmp.gt.s32.totalorder %v1502, %v1503
        %v1505 = vsel %vm1504, %v1502, %v1503
        %v1506 = vrot.slane %v1505, 1
        %vm1507 = vcmp.gt.s32.totalorder %v1505, %v1506
        %v1508 = vsel %vm1507, %v1505, %v1506
        %v1509 = vsel %vm852, %v1385, 2147483648
        %v1510 = vrot.slane %v1509, 4
        %vm1511 = vcmp.gt.s32.totalorder %v1509, %v1510
        %v1512 = vsel %vm1511, %v1509, %v1510
        %v1513 = vrot.slane %v1512, 2
        %vm1514 = vcmp.gt.s32.totalorder %v1512, %v1513
        %v1515 = vsel %vm1514, %v1512, %v1513
        %v1516 = vrot.slane %v1515, 1
        %vm1517 = vcmp.gt.s32.totalorder %v1515, %v1516
        %v1518 = vsel %vm1517, %v1515, %v1516
        %v1519 = vsel %vm852, %v1386, 2147483648
        %v1520 = vrot.slane %v1519, 4
        %vm1521 = vcmp.gt.s32.totalorder %v1519, %v1520
        %v1522 = vsel %vm1521, %v1519, %v1520
        %v1523 = vrot.slane %v1522, 2
        %vm1524 = vcmp.gt.s32.totalorder %v1522, %v1523
        %v1525 = vsel %vm1524, %v1522, %v1523
        %v1526 = vrot.slane %v1525, 1
        %vm1527 = vcmp.gt.s32.totalorder %v1525, %v1526
        %v1528 = vsel %vm1527, %v1525, %v1526
        %v1529 = vsel %vm852, %v1387, 2147483648
        %v1530 = vrot.slane %v1529, 4
        %vm1531 = vcmp.gt.s32.totalorder %v1529, %v1530
        %v1532 = vsel %vm1531, %v1529, %v1530
        %v1533 = vrot.slane %v1532, 2
        %vm1534 = vcmp.gt.s32.totalorder %v1532, %v1533
        %v1535 = vsel %vm1534, %v1532, %v1533
        %v1536 = vrot.slane %v1535, 1
        %vm1537 = vcmp.gt.s32.totalorder %v1535, %v1536
        %v1538 = vsel %vm1537, %v1535, %v1536
        %v1539 = vsel %vm852, %v1388, 2147483648
        %v1540 = vrot.slane %v1539, 4
        %vm1541 = vcmp.gt.s32.totalorder %v1539, %v1540
        %v1542 = vsel %vm1541, %v1539, %v1540
        %v1543 = vrot.slane %v1542, 2
        %vm1544 = vcmp.gt.s32.totalorder %v1542, %v1543
        %v1545 = vsel %vm1544, %v1542, %v1543
        %v1546 = vrot.slane %v1545, 1
        %vm1547 = vcmp.gt.s32.totalorder %v1545, %v1546
        %v1548 = vsel %vm1547, %v1545, %v1546
        %vm1549 = vcmp.ge.s32.totalorder %v1398, 0
        %vm1550 = vcmp.ge.s32.totalorder %v1408, 0
        %vm1551 = vcmp.ge.s32.totalorder %v1418, 0
        %vm1552 = vcmp.ge.s32.totalorder %v1428, 0
        %vm1553 = vcmp.ge.s32.totalorder %v1438, 0
        %vm1554 = vcmp.ge.s32.totalorder %v1448, 0
        %vm1555 = vcmp.ge.s32.totalorder %v1458, 0
        %vm1556 = vcmp.ge.s32.totalorder %v1468, 0
        %vm1557 = vcmp.ge.s32.totalorder %v1478, 0
        %vm1558 = vcmp.ge.s32.totalorder %v1488, 0
        %vm1559 = vcmp.ge.s32.totalorder %v1498, 0
        %vm1560 = vcmp.ge.s32.totalorder %v1508, 0
        %vm1561 = vcmp.ge.s32.totalorder %v1518, 0
        %vm1562 = vcmp.ge.s32.totalorder %v1528, 0
        %vm1563 = vcmp.ge.s32.totalorder %v1538, 0
        %vm1564 = vcmp.ge.s32.totalorder %v1548, 0
        %v1565 = vsel %vm1549, %v1398, %v1206
        %v1566 = vsel %vm1550, %v1408, %v1216
        %v1567 = vsel %vm1551, %v1418, %v1226
        %v1568 = vsel %vm1552, %v1428, %v1236
        %v1569 = vsel %vm1553, %v1438, %v1246
        %v1570 = vsel %vm1554, %v1448, %v1256
        %v1571 = vsel %vm1555, %v1458, %v1266
        %v1572 = vsel %vm1556, %v1468, %v1276
        %v1573 = vsel %vm1557, %v1478, %v1286
        %v1574 = vsel %vm1558, %v1488, %v1296
        %v1575 = vsel %vm1559, %v1498, %v1306
        %v1576 = vsel %vm1560, %v1508, %v1316
        %v1577 = vsel %vm1561, %v1518, %v1326
        %v1578 = vsel %vm1562, %v1528, %v1336
        %v1579 = vsel %vm1563, %v1538, %v1346
        %v1580 = vsel %vm1564, %v1548, %v1356
        %v1581 = vsel %vm1549, 2.0, %v1074
        %v1582 = vsel %vm1550, 2.0, %v1080
        %v1583 = vsel %vm1551, 2.0, %v1086
        %v1584 = vsel %vm1552, 2.0, %v1092
        %v1585 = vsel %vm1553, 2.0, %v1098
        %v1586 = vsel %vm1554, 2.0, %v1104
        %v1587 = vsel %vm1555, 2.0, %v1110
        %v1588 = vsel %vm1556, 2.0, %v1116
        %v1589 = vsel %vm1557, 2.0, %v1122
        %v1590 = vsel %vm1558, 2.0, %v1128
        %v1591 = vsel %vm1559, 2.0, %v1134
        %v1592 = vsel %vm1560, 2.0, %v1140
        %v1593 = vsel %vm1561, 2.0, %v1146
        %v1594 = vsel %vm1562, 2.0, %v1152
        %v1595 = vsel %vm1563, 2.0, %v1158
        %v1596 = vsel %vm1564, 2.0, %v1164
        %vm1597 = vcmp.eq.s32.totalorder %v851, %v1565
        %vm1598 = vcmp.eq.s32.totalorder %v851, %v1566
        %vm1599 = vcmp.eq.s32.totalorder %v851, %v1567
        %vm1600 = vcmp.eq.s32.totalorder %v851, %v1568
        %vm1601 = vcmp.eq.s32.totalorder %v851, %v1569
        %vm1602 = vcmp.eq.s32.totalorder %v851, %v1570
        %vm1603 = vcmp.eq.s32.totalorder %v851, %v1571
        %vm1604 = vcmp.eq.s32.totalorder %v851, %v1572
        %vm1605 = vcmp.eq.s32.totalorder %v851, %v1573
        %vm1606 = vcmp.eq.s32.totalorder %v851, %v1574
        %vm1607 = vcmp.eq.s32.totalorder %v851, %v1575
        %vm1608 = vcmp.eq.s32.totalorder %v851, %v1576
        %vm1609 = vcmp.eq.s32.totalorder %v851, %v1577
        %vm1610 = vcmp.eq.s32.totalorder %v851, %v1578
        %vm1611 = vcmp.eq.s32.totalorder %v851, %v1579
        %vm1612 = vcmp.eq.s32.totalorder %v851, %v1580
        %v1613 = vsel %vm1597, 1, 0
        %v1614 = vsel %vm1598, 1, 0
        %v1615 = vsel %vm1599, 1, 0
        %v1616 = vsel %vm1600, 1, 0
        %v1617 = vsel %vm1601, 1, 0
        %v1618 = vsel %vm1602, 1, 0
        %v1619 = vsel %vm1603, 1, 0
        %v1620 = vsel %vm1604, 1, 0
        %v1621 = vsel %vm1605, 1, 0
        %v1622 = vsel %vm1606, 1, 0
        %v1623 = vsel %vm1607, 1, 0
        %v1624 = vsel %vm1608, 1, 0
        %v1625 = vsel %vm1609, 1, 0
        %v1626 = vsel %vm1610, 1, 0
        %v1627 = vsel %vm1611, 1, 0
        %v1628 = vsel %vm1612, 1, 0
        %v1629 = vcvt.s32.f32 %v1613
        %v1630 = vcvt.s32.f32 %v1614
        %v1631 = vcvt.s32.f32 %v1615
        %v1632 = vcvt.s32.f32 %v1616
        %v1633 = vcvt.s32.f32 %v1617
        %v1634 = vcvt.s32.f32 %v1618
        %v1635 = vcvt.s32.f32 %v1619
        %v1636 = vcvt.s32.f32 %v1620
        %v1637 = vcvt.s32.f32 %v1621
        %v1638 = vcvt.s32.f32 %v1622
        %v1639 = vcvt.s32.f32 %v1623
        %v1640 = vcvt.s32.f32 %v1624
        %v1641 = vcvt.s32.f32 %v1625
        %v1642 = vcvt.s32.f32 %v1626
        %v1643 = vcvt.s32.f32 %v1627
        %v1644 = vcvt.s32.f32 %v1628
        %v1645 = vmul.f32 %v401, %v1629
        %v1646 = vmul.f32 %v401, %v1630
        %v1647 = vmul.f32 %v405, %v1631
        %v1648 = vmul.f32 %v405, %v1632
        %v1649 = vmul.f32 %v409, %v1633
        %v1650 = vmul.f32 %v409, %v1634
        %v1651 = vmul.f32 %v413, %v1635
        %v1652 = vmul.f32 %v413, %v1636
        %v1653 = vmul.f32 %v417, %v1637
        %v1654 = vmul.f32 %v417, %v1638
        %v1655 = vmul.f32 %v421, %v1639
        %v1656 = vmul.f32 %v421, %v1640
        %v1657 = vmul.f32 %v425, %v1641
        %v1658 = vmul.f32 %v425, %v1642
        %v1659 = vmul.f32 %v429, %v1643
        %v1660 = vmul.f32 %v429, %v1644
        %v1661 = vsel %vm852, %v1645, 0.0
        %v1662 = vrot.slane %v1661, 4
        %v1663 = vadd.f32 %v1661, %v1662
        %v1664 = vrot.slane %v1663, 2
        %v1665 = vadd.f32 %v1663, %v1664
        %v1666 = vrot.slane %v1665, 1
        %v1667 = vadd.f32 %v1665, %v1666
        %v1668 = vsel %vm852, %v1646, 0.0
        %v1669 = vrot.slane %v1668, 4
        %v1670 = vadd.f32 %v1668, %v1669
        %v1671 = vrot.slane %v1670, 2
        %v1672 = vadd.f32 %v1670, %v1671
        %v1673 = vrot.slane %v1672, 1
        %v1674 = vadd.f32 %v1672, %v1673
        %v1675 = vsel %vm852, %v1647, 0.0
        %v1676 = vrot.slane %v1675, 4
        %v1677 = vadd.f32 %v1675, %v1676
        %v1678 = vrot.slane %v1677, 2
        %v1679 = vadd.f32 %v1677, %v1678
        %v1680 = vrot.slane %v1679, 1
        %v1681 = vadd.f32 %v1679, %v1680
        %v1682 = vsel %vm852, %v1648, 0.0
        %v1683 = vrot.slane %v1682, 4
        %v1684 = vadd.f32 %v1682, %v1683
        %v1685 = vrot.slane %v1684, 2
        %v1686 = vadd.f32 %v1684, %v1685
        %v1687 = vrot.slane %v1686, 1
        %v1688 = vadd.f32 %v1686, %v1687
        %v1689 = vsel %vm852, %v1649, 0.0
        %v1690 = vrot.slane %v1689, 4
        %v1691 = vadd.f32 %v1689, %v1690
        %v1692 = vrot.slane %v1691, 2
        %v1693 = vadd.f32 %v1691, %v1692
        %v1694 = vrot.slane %v1693, 1
        %v1695 = vadd.f32 %v1693, %v1694
        %v1696 = vsel %vm852, %v1650, 0.0
        %v1697 = vrot.slane %v1696, 4
        %v1698 = vadd.f32 %v1696, %v1697
        %v1699 = vrot.slane %v1698, 2
        %v1700 = vadd.f32 %v1698, %v1699
        %v1701 = vrot.slane %v1700, 1
        %v1702 = vadd.f32 %v1700, %v1701
        %v1703 = vsel %vm852, %v1651, 0.0
        %v1704 = vrot.slane %v1703, 4
        %v1705 = vadd.f32 %v1703, %v1704
        %v1706 = vrot.slane %v1705, 2
        %v1707 = vadd.f32 %v1705, %v1706
        %v1708 = vrot.slane %v1707, 1
        %v1709 = vadd.f32 %v1707, %v1708
        %v1710 = vsel %vm852, %v1652, 0.0
        %v1711 = vrot.slane %v1710, 4
        %v1712 = vadd.f32 %v1710, %v1711
        %v1713 = vrot.slane %v1712, 2
        %v1714 = vadd.f32 %v1712, %v1713
        %v1715 = vrot.slane %v1714, 1
        %v1716 = vadd.f32 %v1714, %v1715
        %v1717 = vsel %vm852, %v1653, 0.0
        %v1718 = vrot.slane %v1717, 4
        %v1719 = vadd.f32 %v1717, %v1718
        %v1720 = vrot.slane %v1719, 2
        %v1721 = vadd.f32 %v1719, %v1720
        %v1722 = vrot.slane %v1721, 1
        %v1723 = vadd.f32 %v1721, %v1722
        %v1724 = vsel %vm852, %v1654, 0.0
        %v1725 = vrot.slane %v1724, 4
        %v1726 = vadd.f32 %v1724, %v1725
        %v1727 = vrot.slane %v1726, 2
        %v1728 = vadd.f32 %v1726, %v1727
        %v1729 = vrot.slane %v1728, 1
        %v1730 = vadd.f32 %v1728, %v1729
        %v1731 = vsel %vm852, %v1655, 0.0
        %v1732 = vrot.slane %v1731, 4
        %v1733 = vadd.f32 %v1731, %v1732
        %v1734 = vrot.slane %v1733, 2
        %v1735 = vadd.f32 %v1733, %v1734
        %v1736 = vrot.slane %v1735, 1
        %v1737 = vadd.f32 %v1735, %v1736
        %v1738 = vsel %vm852, %v1656, 0.0
        %v1739 = vrot.slane %v1738, 4
        %v1740 = vadd.f32 %v1738, %v1739
        %v1741 = vrot.slane %v1740, 2
        %v1742 = vadd.f32 %v1740, %v1741
        %v1743 = vrot.slane %v1742, 1
        %v1744 = vadd.f32 %v1742, %v1743
        %v1745 = vsel %vm852, %v1657, 0.0
        %v1746 = vrot.slane %v1745, 4
        %v1747 = vadd.f32 %v1745, %v1746
        %v1748 = vrot.slane %v1747, 2
        %v1749 = vadd.f32 %v1747, %v1748
        %v1750 = vrot.slane %v1749, 1
        %v1751 = vadd.f32 %v1749, %v1750
        %v1752 = vsel %vm852, %v1658, 0.0
        %v1753 = vrot.slane %v1752, 4
        %v1754 = vadd.f32 %v1752, %v1753
        %v1755 = vrot.slane %v1754, 2
        %v1756 = vadd.f32 %v1754, %v1755
        %v1757 = vrot.slane %v1756, 1
        %v1758 = vadd.f32 %v1756, %v1757
        %v1759 = vsel %vm852, %v1659, 0.0
        %v1760 = vrot.slane %v1759, 4
        %v1761 = vadd.f32 %v1759, %v1760
        %v1762 = vrot.slane %v1761, 2
        %v1763 = vadd.f32 %v1761, %v1762
        %v1764 = vrot.slane %v1763, 1
        %v1765 = vadd.f32 %v1763, %v1764
        %v1766 = vsel %vm852, %v1660, 0.0
        %v1767 = vrot.slane %v1766, 4
        %v1768 = vadd.f32 %v1766, %v1767
        %v1769 = vrot.slane %v1768, 2
        %v1770 = vadd.f32 %v1768, %v1769
        %v1771 = vrot.slane %v1770, 1
        %v1772 = vadd.f32 %v1770, %v1771
        %v1773 = vmul.f32 %v545, %v1629
        %v1774 = vmul.f32 %v545, %v1630
        %v1775 = vmul.f32 %v549, %v1631
        %v1776 = vmul.f32 %v549, %v1632
        %v1777 = vmul.f32 %v553, %v1633
        %v1778 = vmul.f32 %v553, %v1634
        %v1779 = vmul.f32 %v557, %v1635
        %v1780 = vmul.f32 %v557, %v1636
        %v1781 = vmul.f32 %v561, %v1637
        %v1782 = vmul.f32 %v561, %v1638
        %v1783 = vmul.f32 %v565, %v1639
        %v1784 = vmul.f32 %v565, %v1640
        %v1785 = vmul.f32 %v569, %v1641
        %v1786 = vmul.f32 %v569, %v1642
        %v1787 = vmul.f32 %v573, %v1643
        %v1788 = vmul.f32 %v573, %v1644
        %v1789 = vsel %vm852, %v1773, 0.0
        %v1790 = vrot.slane %v1789, 4
        %v1791 = vadd.f32 %v1789, %v1790
        %v1792 = vrot.slane %v1791, 2
        %v1793 = vadd.f32 %v1791, %v1792
        %v1794 = vrot.slane %v1793, 1
        %v1795 = vadd.f32 %v1793, %v1794
        %v1796 = vsel %vm852, %v1774, 0.0
        %v1797 = vrot.slane %v1796, 4
        %v1798 = vadd.f32 %v1796, %v1797
        %v1799 = vrot.slane %v1798, 2
        %v1800 = vadd.f32 %v1798, %v1799
        %v1801 = vrot.slane %v1800, 1
        %v1802 = vadd.f32 %v1800, %v1801
        %v1803 = vsel %vm852, %v1775, 0.0
        %v1804 = vrot.slane %v1803, 4
        %v1805 = vadd.f32 %v1803, %v1804
        %v1806 = vrot.slane %v1805, 2
        %v1807 = vadd.f32 %v1805, %v1806
        %v1808 = vrot.slane %v1807, 1
        %v1809 = vadd.f32 %v1807, %v1808
        %v1810 = vsel %vm852, %v1776, 0.0
        %v1811 = vrot.slane %v1810, 4
        %v1812 = vadd.f32 %v1810, %v1811
        %v1813 = vrot.slane %v1812, 2
        %v1814 = vadd.f32 %v1812, %v1813
        %v1815 = vrot.slane %v1814, 1
        %v1816 = vadd.f32 %v1814, %v1815
        %v1817 = vsel %vm852, %v1777, 0.0
        %v1818 = vrot.slane %v1817, 4
        %v1819 = vadd.f32 %v1817, %v1818
        %v1820 = vrot.slane %v1819, 2
        %v1821 = vadd.f32 %v1819, %v1820
        %v1822 = vrot.slane %v1821, 1
        %v1823 = vadd.f32 %v1821, %v1822
        %v1824 = vsel %vm852, %v1778, 0.0
        %v1825 = vrot.slane %v1824, 4
        %v1826 = vadd.f32 %v1824, %v1825
        %v1827 = vrot.slane %v1826, 2
        %v1828 = vadd.f32 %v1826, %v1827
        %v1829 = vrot.slane %v1828, 1
        %v1830 = vadd.f32 %v1828, %v1829
        %v1831 = vsel %vm852, %v1779, 0.0
        %v1832 = vrot.slane %v1831, 4
        %v1833 = vadd.f32 %v1831, %v1832
        %v1834 = vrot.slane %v1833, 2
        %v1835 = vadd.f32 %v1833, %v1834
        %v1836 = vrot.slane %v1835, 1
        %v1837 = vadd.f32 %v1835, %v1836
        %v1838 = vsel %vm852, %v1780, 0.0
        %v1839 = vrot.slane %v1838, 4
        %v1840 = vadd.f32 %v1838, %v1839
        %v1841 = vrot.slane %v1840, 2
        %v1842 = vadd.f32 %v1840, %v1841
        %v1843 = vrot.slane %v1842, 1
        %v1844 = vadd.f32 %v1842, %v1843
        %v1845 = vsel %vm852, %v1781, 0.0
        %v1846 = vrot.slane %v1845, 4
        %v1847 = vadd.f32 %v1845, %v1846
        %v1848 = vrot.slane %v1847, 2
        %v1849 = vadd.f32 %v1847, %v1848
        %v1850 = vrot.slane %v1849, 1
        %v1851 = vadd.f32 %v1849, %v1850
        %v1852 = vsel %vm852, %v1782, 0.0
        %v1853 = vrot.slane %v1852, 4
        %v1854 = vadd.f32 %v1852, %v1853
        %v1855 = vrot.slane %v1854, 2
        %v1856 = vadd.f32 %v1854, %v1855
        %v1857 = vrot.slane %v1856, 1
        %v1858 = vadd.f32 %v1856, %v1857
        %v1859 = vsel %vm852, %v1783, 0.0
        %v1860 = vrot.slane %v1859, 4
        %v1861 = vadd.f32 %v1859, %v1860
        %v1862 = vrot.slane %v1861, 2
        %v1863 = vadd.f32 %v1861, %v1862
        %v1864 = vrot.slane %v1863, 1
        %v1865 = vadd.f32 %v1863, %v1864
        %v1866 = vsel %vm852, %v1784, 0.0
        %v1867 = vrot.slane %v1866, 4
        %v1868 = vadd.f32 %v1866, %v1867
        %v1869 = vrot.slane %v1868, 2
        %v1870 = vadd.f32 %v1868, %v1869
        %v1871 = vrot.slane %v1870, 1
        %v1872 = vadd.f32 %v1870, %v1871
        %v1873 = vsel %vm852, %v1785, 0.0
        %v1874 = vrot.slane %v1873, 4
        %v1875 = vadd.f32 %v1873, %v1874
        %v1876 = vrot.slane %v1875, 2
        %v1877 = vadd.f32 %v1875, %v1876
        %v1878 = vrot.slane %v1877, 1
        %v1879 = vadd.f32 %v1877, %v1878
        %v1880 = vsel %vm852, %v1786, 0.0
        %v1881 = vrot.slane %v1880, 4
        %v1882 = vadd.f32 %v1880, %v1881
        %v1883 = vrot.slane %v1882, 2
        %v1884 = vadd.f32 %v1882, %v1883
        %v1885 = vrot.slane %v1884, 1
        %v1886 = vadd.f32 %v1884, %v1885
        %v1887 = vsel %vm852, %v1787, 0.0
        %v1888 = vrot.slane %v1887, 4
        %v1889 = vadd.f32 %v1887, %v1888
        %v1890 = vrot.slane %v1889, 2
        %v1891 = vadd.f32 %v1889, %v1890
        %v1892 = vrot.slane %v1891, 1
        %v1893 = vadd.f32 %v1891, %v1892
        %v1894 = vsel %vm852, %v1788, 0.0
        %v1895 = vrot.slane %v1894, 4
        %v1896 = vadd.f32 %v1894, %v1895
        %v1897 = vrot.slane %v1896, 2
        %v1898 = vadd.f32 %v1896, %v1897
        %v1899 = vrot.slane %v1898, 1
        %v1900 = vadd.f32 %v1898, %v1899
        %v1901 = vmul.f32 %v338, %v1629
        %v1902 = vmul.f32 %v338, %v1630
        %v1903 = vmul.f32 %v343, %v1631
        %v1904 = vmul.f32 %v343, %v1632
        %v1905 = vmul.f32 %v348, %v1633
        %v1906 = vmul.f32 %v348, %v1634
        %v1907 = vmul.f32 %v353, %v1635
        %v1908 = vmul.f32 %v353, %v1636
        %v1909 = vmul.f32 %v358, %v1637
        %v1910 = vmul.f32 %v358, %v1638
        %v1911 = vmul.f32 %v363, %v1639
        %v1912 = vmul.f32 %v363, %v1640
        %v1913 = vmul.f32 %v368, %v1641
        %v1914 = vmul.f32 %v368, %v1642
        %v1915 = vmul.f32 %v373, %v1643
        %v1916 = vmul.f32 %v373, %v1644
        %v1917 = vsel %vm852, %v1901, 0.0
        %v1918 = vrot.slane %v1917, 4
        %v1919 = vadd.f32 %v1917, %v1918
        %v1920 = vrot.slane %v1919, 2
        %v1921 = vadd.f32 %v1919, %v1920
        %v1922 = vrot.slane %v1921, 1
        %v1923 = vadd.f32 %v1921, %v1922
        %v1924 = vsel %vm852, %v1902, 0.0
        %v1925 = vrot.slane %v1924, 4
        %v1926 = vadd.f32 %v1924, %v1925
        %v1927 = vrot.slane %v1926, 2
        %v1928 = vadd.f32 %v1926, %v1927
        %v1929 = vrot.slane %v1928, 1
        %v1930 = vadd.f32 %v1928, %v1929
        %v1931 = vsel %vm852, %v1903, 0.0
        %v1932 = vrot.slane %v1931, 4
        %v1933 = vadd.f32 %v1931, %v1932
        %v1934 = vrot.slane %v1933, 2
        %v1935 = vadd.f32 %v1933, %v1934
        %v1936 = vrot.slane %v1935, 1
        %v1937 = vadd.f32 %v1935, %v1936
        %v1938 = vsel %vm852, %v1904, 0.0
        %v1939 = vrot.slane %v1938, 4
        %v1940 = vadd.f32 %v1938, %v1939
        %v1941 = vrot.slane %v1940, 2
        %v1942 = vadd.f32 %v1940, %v1941
        %v1943 = vrot.slane %v1942, 1
        %v1944 = vadd.f32 %v1942, %v1943
        %v1945 = vsel %vm852, %v1905, 0.0
        %v1946 = vrot.slane %v1945, 4
        %v1947 = vadd.f32 %v1945, %v1946
        %v1948 = vrot.slane %v1947, 2
        %v1949 = vadd.f32 %v1947, %v1948
        %v1950 = vrot.slane %v1949, 1
        %v1951 = vadd.f32 %v1949, %v1950
        %v1952 = vsel %vm852, %v1906, 0.0
        %v1953 = vrot.slane %v1952, 4
        %v1954 = vadd.f32 %v1952, %v1953
        %v1955 = vrot.slane %v1954, 2
        %v1956 = vadd.f32 %v1954, %v1955
        %v1957 = vrot.slane %v1956, 1
        %v1958 = vadd.f32 %v1956, %v1957
        %v1959 = vsel %vm852, %v1907, 0.0
        %v1960 = vrot.slane %v1959, 4
        %v1961 = vadd.f32 %v1959, %v1960
        %v1962 = vrot.slane %v1961, 2
        %v1963 = vadd.f32 %v1961, %v1962
        %v1964 = vrot.slane %v1963, 1
        %v1965 = vadd.f32 %v1963, %v1964
        %v1966 = vsel %vm852, %v1908, 0.0
        %v1967 = vrot.slane %v1966, 4
        %v1968 = vadd.f32 %v1966, %v1967
        %v1969 = vrot.slane %v1968, 2
        %v1970 = vadd.f32 %v1968, %v1969
        %v1971 = vrot.slane %v1970, 1
        %v1972 = vadd.f32 %v1970, %v1971
        %v1973 = vsel %vm852, %v1909, 0.0
        %v1974 = vrot.slane %v1973, 4
        %v1975 = vadd.f32 %v1973, %v1974
        %v1976 = vrot.slane %v1975, 2
        %v1977 = vadd.f32 %v1975, %v1976
        %v1978 = vrot.slane %v1977, 1
        %v1979 = vadd.f32 %v1977, %v1978
        %v1980 = vsel %vm852, %v1910, 0.0
        %v1981 = vrot.slane %v1980, 4
        %v1982 = vadd.f32 %v1980, %v1981
        %v1983 = vrot.slane %v1982, 2
        %v1984 = vadd.f32 %v1982, %v1983
        %v1985 = vrot.slane %v1984, 1
        %v1986 = vadd.f32 %v1984, %v1985
        %v1987 = vsel %vm852, %v1911, 0.0
        %v1988 = vrot.slane %v1987, 4
        %v1989 = vadd.f32 %v1987, %v1988
        %v1990 = vrot.slane %v1989, 2
        %v1991 = vadd.f32 %v1989, %v1990
        %v1992 = vrot.slane %v1991, 1
        %v1993 = vadd.f32 %v1991, %v1992
        %v1994 = vsel %vm852, %v1912, 0.0
        %v1995 = vrot.slane %v1994, 4
        %v1996 = vadd.f32 %v1994, %v1995
        %v1997 = vrot.slane %v1996, 2
        %v1998 = vadd.f32 %v1996, %v1997
        %v1999 = vrot.slane %v1998, 1
        %v2000 = vadd.f32 %v1998, %v1999
        %v2001 = vsel %vm852, %v1913, 0.0
        %v2002 = vrot.slane %v2001, 4
        %v2003 = vadd.f32 %v2001, %v2002
        %v2004 = vrot.slane %v2003, 2
        %v2005 = vadd.f32 %v2003, %v2004
        %v2006 = vrot.slane %v2005, 1
        %v2007 = vadd.f32 %v2005, %v2006
        %v2008 = vsel %vm852, %v1914, 0.0
        %v2009 = vrot.slane %v2008, 4
        %v2010 = vadd.f32 %v2008, %v2009
        %v2011 = vrot.slane %v2010, 2
        %v2012 = vadd.f32 %v2010, %v2011
        %v2013 = vrot.slane %v2012, 1
        %v2014 = vadd.f32 %v2012, %v2013
        %v2015 = vsel %vm852, %v1915, 0.0
        %v2016 = vrot.slane %v2015, 4
        %v2017 = vadd.f32 %v2015, %v2016
        %v2018 = vrot.slane %v2017, 2
        %v2019 = vadd.f32 %v2017, %v2018
        %v2020 = vrot.slane %v2019, 1
        %v2021 = vadd.f32 %v2019, %v2020
        %v2022 = vsel %vm852, %v1916, 0.0
        %v2023 = vrot.slane %v2022, 4
        %v2024 = vadd.f32 %v2022, %v2023
        %v2025 = vrot.slane %v2024, 2
        %v2026 = vadd.f32 %v2024, %v2025
        %v2027 = vrot.slane %v2026, 1
        %v2028 = vadd.f32 %v2026, %v2027
        %v2029 = vmul.f32 %v489, %v1629
        %v2030 = vmul.f32 %v489, %v1630
        %v2031 = vmul.f32 %v493, %v1631
        %v2032 = vmul.f32 %v493, %v1632
        %v2033 = vmul.f32 %v497, %v1633
        %v2034 = vmul.f32 %v497, %v1634
        %v2035 = vmul.f32 %v501, %v1635
        %v2036 = vmul.f32 %v501, %v1636
        %v2037 = vmul.f32 %v505, %v1637
        %v2038 = vmul.f32 %v505, %v1638
        %v2039 = vmul.f32 %v509, %v1639
        %v2040 = vmul.f32 %v509, %v1640
        %v2041 = vmul.f32 %v513, %v1641
        %v2042 = vmul.f32 %v513, %v1642
        %v2043 = vmul.f32 %v517, %v1643
        %v2044 = vmul.f32 %v517, %v1644
        %v2045 = vsel %vm852, %v2029, 0.0
        %v2046 = vrot.slane %v2045, 4
        %v2047 = vadd.f32 %v2045, %v2046
        %v2048 = vrot.slane %v2047, 2
        %v2049 = vadd.f32 %v2047, %v2048
        %v2050 = vrot.slane %v2049, 1
        %v2051 = vadd.f32 %v2049, %v2050
        %v2052 = vsel %vm852, %v2030, 0.0
        %v2053 = vrot.slane %v2052, 4
        %v2054 = vadd.f32 %v2052, %v2053
        %v2055 = vrot.slane %v2054, 2
        %v2056 = vadd.f32 %v2054, %v2055
        %v2057 = vrot.slane %v2056, 1
        %v2058 = vadd.f32 %v2056, %v2057
        %v2059 = vsel %vm852, %v2031, 0.0
        %v2060 = vrot.slane %v2059, 4
        %v2061 = vadd.f32 %v2059, %v2060
        %v2062 = vrot.slane %v2061, 2
        %v2063 = vadd.f32 %v2061, %v2062
        %v2064 = vrot.slane %v2063, 1
        %v2065 = vadd.f32 %v2063, %v2064
        %v2066 = vsel %vm852, %v2032, 0.0
        %v2067 = vrot.slane %v2066, 4
        %v2068 = vadd.f32 %v2066, %v2067
        %v2069 = vrot.slane %v2068, 2
        %v2070 = vadd.f32 %v2068, %v2069
        %v2071 = vrot.slane %v2070, 1
        %v2072 = vadd.f32 %v2070, %v2071
        %v2073 = vsel %vm852, %v2033, 0.0
        %v2074 = vrot.slane %v2073, 4
        %v2075 = vadd.f32 %v2073, %v2074
        %v2076 = vrot.slane %v2075, 2
        %v2077 = vadd.f32 %v2075, %v2076
        %v2078 = vrot.slane %v2077, 1
        %v2079 = vadd.f32 %v2077, %v2078
        %v2080 = vsel %vm852, %v2034, 0.0
        %v2081 = vrot.slane %v2080, 4
        %v2082 = vadd.f32 %v2080, %v2081
        %v2083 = vrot.slane %v2082, 2
        %v2084 = vadd.f32 %v2082, %v2083
        %v2085 = vrot.slane %v2084, 1
        %v2086 = vadd.f32 %v2084, %v2085
        %v2087 = vsel %vm852, %v2035, 0.0
        %v2088 = vrot.slane %v2087, 4
        %v2089 = vadd.f32 %v2087, %v2088
        %v2090 = vrot.slane %v2089, 2
        %v2091 = vadd.f32 %v2089, %v2090
        %v2092 = vrot.slane %v2091, 1
        %v2093 = vadd.f32 %v2091, %v2092
        %v2094 = vsel %vm852, %v2036, 0.0
        %v2095 = vrot.slane %v2094, 4
        %v2096 = vadd.f32 %v2094, %v2095
        %v2097 = vrot.slane %v2096, 2
        %v2098 = vadd.f32 %v2096, %v2097
        %v2099 = vrot.slane %v2098, 1
        %v2100 = vadd.f32 %v2098, %v2099
        %v2101 = vsel %vm852, %v2037, 0.0
        %v2102 = vrot.slane %v2101, 4
        %v2103 = vadd.f32 %v2101, %v2102
        %v2104 = vrot.slane %v2103, 2
        %v2105 = vadd.f32 %v2103, %v2104
        %v2106 = vrot.slane %v2105, 1
        %v2107 = vadd.f32 %v2105, %v2106
        %v2108 = vsel %vm852, %v2038, 0.0
        %v2109 = vrot.slane %v2108, 4
        %v2110 = vadd.f32 %v2108, %v2109
        %v2111 = vrot.slane %v2110, 2
        %v2112 = vadd.f32 %v2110, %v2111
        %v2113 = vrot.slane %v2112, 1
        %v2114 = vadd.f32 %v2112, %v2113
        %v2115 = vsel %vm852, %v2039, 0.0
        %v2116 = vrot.slane %v2115, 4
        %v2117 = vadd.f32 %v2115, %v2116
        %v2118 = vrot.slane %v2117, 2
        %v2119 = vadd.f32 %v2117, %v2118
        %v2120 = vrot.slane %v2119, 1
        %v2121 = vadd.f32 %v2119, %v2120
        %v2122 = vsel %vm852, %v2040, 0.0
        %v2123 = vrot.slane %v2122, 4
        %v2124 = vadd.f32 %v2122, %v2123
        %v2125 = vrot.slane %v2124, 2
        %v2126 = vadd.f32 %v2124, %v2125
        %v2127 = vrot.slane %v2126, 1
        %v2128 = vadd.f32 %v2126, %v2127
        %v2129 = vsel %vm852, %v2041, 0.0
        %v2130 = vrot.slane %v2129, 4
        %v2131 = vadd.f32 %v2129, %v2130
        %v2132 = vrot.slane %v2131, 2
        %v2133 = vadd.f32 %v2131, %v2132
        %v2134 = vrot.slane %v2133, 1
        %v2135 = vadd.f32 %v2133, %v2134
        %v2136 = vsel %vm852, %v2042, 0.0
        %v2137 = vrot.slane %v2136, 4
        %v2138 = vadd.f32 %v2136, %v2137
        %v2139 = vrot.slane %v2138, 2
        %v2140 = vadd.f32 %v2138, %v2139
        %v2141 = vrot.slane %v2140, 1
        %v2142 = vadd.f32 %v2140, %v2141
        %v2143 = vsel %vm852, %v2043, 0.0
        %v2144 = vrot.slane %v2143, 4
        %v2145 = vadd.f32 %v2143, %v2144
        %v2146 = vrot.slane %v2145, 2
        %v2147 = vadd.f32 %v2145, %v2146
        %v2148 = vrot.slane %v2147, 1
        %v2149 = vadd.f32 %v2147, %v2148
        %v2150 = vsel %vm852, %v2044, 0.0
        %v2151 = vrot.slane %v2150, 4
        %v2152 = vadd.f32 %v2150, %v2151
        %v2153 = vrot.slane %v2152, 2
        %v2154 = vadd.f32 %v2152, %v2153
        %v2155 = vrot.slane %v2154, 1
        %v2156 = vadd.f32 %v2154, %v2155
        %2157 = vset.pattern.permute.xlu0 4
        %2158 = vperm.xlu0 %2157, %v301
        %v2159 = vpop.permute.xlu0 %2158
        %2161 = vset.pattern.permute.xlu0 4
        %2162 = vperm.xlu0 %2161, %v302
        %v2163 = vpop.permute.xlu0 %2162
        %2165 = vset.pattern.permute.xlu0 4
        %2166 = vperm.xlu0 %2165, %v303
        %v2167 = vpop.permute.xlu0 %2166
        %2169 = vset.pattern.permute.xlu0 4
        %2170 = vperm.xlu0 %2169, %v304
        %v2171 = vpop.permute.xlu0 %2170
        %2173 = vset.pattern.permute.xlu0 4
        %2174 = vperm.xlu0 %2173, %v305
        %v2175 = vpop.permute.xlu0 %2174
        %2177 = vset.pattern.permute.xlu0 4
        %2178 = vperm.xlu0 %2177, %v306
        %v2179 = vpop.permute.xlu0 %2178
        %2181 = vset.pattern.permute.xlu0 4
        %2182 = vperm.xlu0 %2181, %v307
        %v2183 = vpop.permute.xlu0 %2182
        %2185 = vset.pattern.permute.xlu0 4
        %2186 = vperm.xlu0 %2185, %v308
        %v2187 = vpop.permute.xlu0 %2186
        %v2189 = vmul.f32 %v2159, %v1629
        %v2190 = vmul.f32 %v2159, %v1630
        %v2191 = vmul.f32 %v2163, %v1631
        %v2192 = vmul.f32 %v2163, %v1632
        %v2193 = vmul.f32 %v2167, %v1633
        %v2194 = vmul.f32 %v2167, %v1634
        %v2195 = vmul.f32 %v2171, %v1635
        %v2196 = vmul.f32 %v2171, %v1636
        %v2197 = vmul.f32 %v2175, %v1637
        %v2198 = vmul.f32 %v2175, %v1638
        %v2199 = vmul.f32 %v2179, %v1639
        %v2200 = vmul.f32 %v2179, %v1640
        %v2201 = vmul.f32 %v2183, %v1641
        %v2202 = vmul.f32 %v2183, %v1642
        %v2203 = vmul.f32 %v2187, %v1643
        %v2204 = vmul.f32 %v2187, %v1644
        %v2205 = vsel %vm852, %v2189, 0.0
        %v2206 = vrot.slane %v2205, 4
        %v2207 = vadd.f32 %v2205, %v2206
        %v2208 = vrot.slane %v2207, 2
        %v2209 = vadd.f32 %v2207, %v2208
        %v2210 = vrot.slane %v2209, 1
        %v2211 = vadd.f32 %v2209, %v2210
        %v2212 = vsel %vm852, %v2190, 0.0
        %v2213 = vrot.slane %v2212, 4
        %v2214 = vadd.f32 %v2212, %v2213
        %v2215 = vrot.slane %v2214, 2
        %v2216 = vadd.f32 %v2214, %v2215
        %v2217 = vrot.slane %v2216, 1
        %v2218 = vadd.f32 %v2216, %v2217
        %v2219 = vsel %vm852, %v2191, 0.0
        %v2220 = vrot.slane %v2219, 4
        %v2221 = vadd.f32 %v2219, %v2220
        %v2222 = vrot.slane %v2221, 2
        %v2223 = vadd.f32 %v2221, %v2222
        %v2224 = vrot.slane %v2223, 1
        %v2225 = vadd.f32 %v2223, %v2224
        %v2226 = vsel %vm852, %v2192, 0.0
        %v2227 = vrot.slane %v2226, 4
        %v2228 = vadd.f32 %v2226, %v2227
        %v2229 = vrot.slane %v2228, 2
        %v2230 = vadd.f32 %v2228, %v2229
        %v2231 = vrot.slane %v2230, 1
        %v2232 = vadd.f32 %v2230, %v2231
        %v2233 = vsel %vm852, %v2193, 0.0
        %v2234 = vrot.slane %v2233, 4
        %v2235 = vadd.f32 %v2233, %v2234
        %v2236 = vrot.slane %v2235, 2
        %v2237 = vadd.f32 %v2235, %v2236
        %v2238 = vrot.slane %v2237, 1
        %v2239 = vadd.f32 %v2237, %v2238
        %v2240 = vsel %vm852, %v2194, 0.0
        %v2241 = vrot.slane %v2240, 4
        %v2242 = vadd.f32 %v2240, %v2241
        %v2243 = vrot.slane %v2242, 2
        %v2244 = vadd.f32 %v2242, %v2243
        %v2245 = vrot.slane %v2244, 1
        %v2246 = vadd.f32 %v2244, %v2245
        %v2247 = vsel %vm852, %v2195, 0.0
        %v2248 = vrot.slane %v2247, 4
        %v2249 = vadd.f32 %v2247, %v2248
        %v2250 = vrot.slane %v2249, 2
        %v2251 = vadd.f32 %v2249, %v2250
        %v2252 = vrot.slane %v2251, 1
        %v2253 = vadd.f32 %v2251, %v2252
        %v2254 = vsel %vm852, %v2196, 0.0
        %v2255 = vrot.slane %v2254, 4
        %v2256 = vadd.f32 %v2254, %v2255
        %v2257 = vrot.slane %v2256, 2
        %v2258 = vadd.f32 %v2256, %v2257
        %v2259 = vrot.slane %v2258, 1
        %v2260 = vadd.f32 %v2258, %v2259
        %v2261 = vsel %vm852, %v2197, 0.0
        %v2262 = vrot.slane %v2261, 4
        %v2263 = vadd.f32 %v2261, %v2262
        %v2264 = vrot.slane %v2263, 2
        %v2265 = vadd.f32 %v2263, %v2264
        %v2266 = vrot.slane %v2265, 1
        %v2267 = vadd.f32 %v2265, %v2266
        %v2268 = vsel %vm852, %v2198, 0.0
        %v2269 = vrot.slane %v2268, 4
        %v2270 = vadd.f32 %v2268, %v2269
        %v2271 = vrot.slane %v2270, 2
        %v2272 = vadd.f32 %v2270, %v2271
        %v2273 = vrot.slane %v2272, 1
        %v2274 = vadd.f32 %v2272, %v2273
        %v2275 = vsel %vm852, %v2199, 0.0
        %v2276 = vrot.slane %v2275, 4
        %v2277 = vadd.f32 %v2275, %v2276
        %v2278 = vrot.slane %v2277, 2
        %v2279 = vadd.f32 %v2277, %v2278
        %v2280 = vrot.slane %v2279, 1
        %v2281 = vadd.f32 %v2279, %v2280
        %v2282 = vsel %vm852, %v2200, 0.0
        %v2283 = vrot.slane %v2282, 4
        %v2284 = vadd.f32 %v2282, %v2283
        %v2285 = vrot.slane %v2284, 2
        %v2286 = vadd.f32 %v2284, %v2285
        %v2287 = vrot.slane %v2286, 1
        %v2288 = vadd.f32 %v2286, %v2287
        %v2289 = vsel %vm852, %v2201, 0.0
        %v2290 = vrot.slane %v2289, 4
        %v2291 = vadd.f32 %v2289, %v2290
        %v2292 = vrot.slane %v2291, 2
        %v2293 = vadd.f32 %v2291, %v2292
        %v2294 = vrot.slane %v2293, 1
        %v2295 = vadd.f32 %v2293, %v2294
        %v2296 = vsel %vm852, %v2202, 0.0
        %v2297 = vrot.slane %v2296, 4
        %v2298 = vadd.f32 %v2296, %v2297
        %v2299 = vrot.slane %v2298, 2
        %v2300 = vadd.f32 %v2298, %v2299
        %v2301 = vrot.slane %v2300, 1
        %v2302 = vadd.f32 %v2300, %v2301
        %v2303 = vsel %vm852, %v2203, 0.0
        %v2304 = vrot.slane %v2303, 4
        %v2305 = vadd.f32 %v2303, %v2304
        %v2306 = vrot.slane %v2305, 2
        %v2307 = vadd.f32 %v2305, %v2306
        %v2308 = vrot.slane %v2307, 1
        %v2309 = vadd.f32 %v2307, %v2308
        %v2310 = vsel %vm852, %v2204, 0.0
        %v2311 = vrot.slane %v2310, 4
        %v2312 = vadd.f32 %v2310, %v2311
        %v2313 = vrot.slane %v2312, 2
        %v2314 = vadd.f32 %v2312, %v2313
        %v2315 = vrot.slane %v2314, 1
        %v2316 = vadd.f32 %v2314, %v2315
        %v2317 = vadd.f32 %v2211, 1.0
        %v2318 = vadd.f32 %v2218, 1.0
        %v2319 = vadd.f32 %v2225, 1.0
        %v2320 = vadd.f32 %v2232, 1.0
        %v2321 = vadd.f32 %v2239, 1.0
        %v2322 = vadd.f32 %v2246, 1.0
        %v2323 = vadd.f32 %v2253, 1.0
        %v2324 = vadd.f32 %v2260, 1.0
        %v2325 = vadd.f32 %v2267, 1.0
        %v2326 = vadd.f32 %v2274, 1.0
        %v2327 = vadd.f32 %v2281, 1.0
        %v2328 = vadd.f32 %v2288, 1.0
        %v2329 = vadd.f32 %v2295, 1.0
        %v2330 = vadd.f32 %v2302, 1.0
        %v2331 = vadd.f32 %v2309, 1.0
        %v2332 = vadd.f32 %v2316, 1.0
        %vm2333 = vcmp.lt.f32.partialorder %v1581, 0.5
        %vm2334 = vcmp.lt.f32.partialorder %v1582, 0.5
        %vm2335 = vcmp.lt.f32.partialorder %v1583, 0.5
        %vm2336 = vcmp.lt.f32.partialorder %v1584, 0.5
        %vm2337 = vcmp.lt.f32.partialorder %v1585, 0.5
        %vm2338 = vcmp.lt.f32.partialorder %v1586, 0.5
        %vm2339 = vcmp.lt.f32.partialorder %v1587, 0.5
        %vm2340 = vcmp.lt.f32.partialorder %v1588, 0.5
        %vm2341 = vcmp.lt.f32.partialorder %v1589, 0.5
        %vm2342 = vcmp.lt.f32.partialorder %v1590, 0.5
        %vm2343 = vcmp.lt.f32.partialorder %v1591, 0.5
        %vm2344 = vcmp.lt.f32.partialorder %v1592, 0.5
        %vm2345 = vcmp.lt.f32.partialorder %v1593, 0.5
        %vm2346 = vcmp.lt.f32.partialorder %v1594, 0.5
        %vm2347 = vcmp.lt.f32.partialorder %v1595, 0.5
        %vm2348 = vcmp.lt.f32.partialorder %v1596, 0.5
        %v2349 = vsel %vm2333, 0.0, %v2317
        %v2350 = vsel %vm2334, 0.0, %v2318
        %v2351 = vsel %vm2335, 0.0, %v2319
        %v2352 = vsel %vm2336, 0.0, %v2320
        %v2353 = vsel %vm2337, 0.0, %v2321
        %v2354 = vsel %vm2338, 0.0, %v2322
        %v2355 = vsel %vm2339, 0.0, %v2323
        %v2356 = vsel %vm2340, 0.0, %v2324
        %v2357 = vsel %vm2341, 0.0, %v2325
        %v2358 = vsel %vm2342, 0.0, %v2326
        %v2359 = vsel %vm2343, 0.0, %v2327
        %v2360 = vsel %vm2344, 0.0, %v2328
        %v2361 = vsel %vm2345, 0.0, %v2329
        %v2362 = vsel %vm2346, 0.0, %v2330
        %v2363 = vsel %vm2347, 0.0, %v2331
        %v2364 = vsel %vm2348, 0.0, %v2332
        %vm2365 = vcmp.gt.f32.partialorder %v2349, 0.0
        %vm2366 = vcmp.gt.f32.partialorder %v2350, 0.0
        %vm2367 = vcmp.gt.f32.partialorder %v2351, 0.0
        %vm2368 = vcmp.gt.f32.partialorder %v2352, 0.0
        %vm2369 = vcmp.gt.f32.partialorder %v2353, 0.0
        %vm2370 = vcmp.gt.f32.partialorder %v2354, 0.0
        %vm2371 = vcmp.gt.f32.partialorder %v2355, 0.0
        %vm2372 = vcmp.gt.f32.partialorder %v2356, 0.0
        %vm2373 = vcmp.gt.f32.partialorder %v2357, 0.0
        %vm2374 = vcmp.gt.f32.partialorder %v2358, 0.0
        %vm2375 = vcmp.gt.f32.partialorder %v2359, 0.0
        %vm2376 = vcmp.gt.f32.partialorder %v2360, 0.0
        %vm2377 = vcmp.gt.f32.partialorder %v2361, 0.0
        %vm2378 = vcmp.gt.f32.partialorder %v2362, 0.0
        %vm2379 = vcmp.gt.f32.partialorder %v2363, 0.0
        %vm2380 = vcmp.gt.f32.partialorder %v2364, 0.0
        %v2381 = vadd.f32 %v1667, %v1923
        %v2382 = vadd.f32 %v1674, %v1930
        %v2383 = vadd.f32 %v1681, %v1937
        %v2384 = vadd.f32 %v1688, %v1944
        %v2385 = vadd.f32 %v1695, %v1951
        %v2386 = vadd.f32 %v1702, %v1958
        %v2387 = vadd.f32 %v1709, %v1965
        %v2388 = vadd.f32 %v1716, %v1972
        %v2389 = vadd.f32 %v1723, %v1979
        %v2390 = vadd.f32 %v1730, %v1986
        %v2391 = vadd.f32 %v1737, %v1993
        %v2392 = vadd.f32 %v1744, %v2000
        %v2393 = vadd.f32 %v1751, %v2007
        %v2394 = vadd.f32 %v1758, %v2014
        %v2395 = vadd.f32 %v1765, %v2021
        %v2396 = vadd.f32 %v1772, %v2028
        %v2397 = vmul.f32 %v2381, 0.5
        %v2398 = vmul.f32 %v2382, 0.5
        %v2399 = vmul.f32 %v2383, 0.5
        %v2400 = vmul.f32 %v2384, 0.5
        %v2401 = vmul.f32 %v2385, 0.5
        %v2402 = vmul.f32 %v2386, 0.5
        %v2403 = vmul.f32 %v2387, 0.5
        %v2404 = vmul.f32 %v2388, 0.5
        %v2405 = vmul.f32 %v2389, 0.5
        %v2406 = vmul.f32 %v2390, 0.5
        %v2407 = vmul.f32 %v2391, 0.5
        %v2408 = vmul.f32 %v2392, 0.5
        %v2409 = vmul.f32 %v2393, 0.5
        %v2410 = vmul.f32 %v2394, 0.5
        %v2411 = vmul.f32 %v2395, 0.5
        %v2412 = vmul.f32 %v2396, 0.5
        %v2413 = vsub.f32 %v2397, %v309
        %v2414 = vsub.f32 %v2398, %v310
        %v2415 = vsub.f32 %v2399, %v309
        %v2416 = vsub.f32 %v2400, %v310
        %v2417 = vsub.f32 %v2401, %v309
        %v2418 = vsub.f32 %v2402, %v310
        %v2419 = vsub.f32 %v2403, %v309
        %v2420 = vsub.f32 %v2404, %v310
        %v2421 = vsub.f32 %v2405, %v309
        %v2422 = vsub.f32 %v2406, %v310
        %v2423 = vsub.f32 %v2407, %v309
        %v2424 = vsub.f32 %v2408, %v310
        %v2425 = vsub.f32 %v2409, %v309
        %v2426 = vsub.f32 %v2410, %v310
        %v2427 = vsub.f32 %v2411, %v309
        %v2428 = vsub.f32 %v2412, %v310
        %v2429 = vmul.f32 %v309, 0.1
        %v2430 = vmul.f32 %v310, 0.1
        %v2433 = vrot.slane %v2429, 2
        %v2434 = vrot.slane %v2430, 2
        %v2437 = vrcp.pop %v2433
        %v2438 = vmul.f32 %v2413, %v2437
        %v2439 = vrcp.pop %v2434
        %v2440 = vmul.f32 %v2414, %v2439
        %v2441 = vmul.f32 %v2415, %v2437
        %v2442 = vmul.f32 %v2416, %v2439
        %v2443 = vmul.f32 %v2417, %v2437
        %v2444 = vmul.f32 %v2418, %v2439
        %v2445 = vmul.f32 %v2419, %v2437
        %v2446 = vmul.f32 %v2420, %v2439
        %v2447 = vmul.f32 %v2421, %v2437
        %v2448 = vmul.f32 %v2422, %v2439
        %v2449 = vmul.f32 %v2423, %v2437
        %v2450 = vmul.f32 %v2424, %v2439
        %v2451 = vmul.f32 %v2425, %v2437
        %v2452 = vmul.f32 %v2426, %v2439
        %v2453 = vmul.f32 %v2427, %v2437
        %v2454 = vmul.f32 %v2428, %v2439
        %v2455 = vadd.f32 %v1795, %v2051
        %v2456 = vadd.f32 %v1802, %v2058
        %v2457 = vadd.f32 %v1809, %v2065
        %v2458 = vadd.f32 %v1816, %v2072
        %v2459 = vadd.f32 %v1823, %v2079
        %v2460 = vadd.f32 %v1830, %v2086
        %v2461 = vadd.f32 %v1837, %v2093
        %v2462 = vadd.f32 %v1844, %v2100
        %v2463 = vadd.f32 %v1851, %v2107
        %v2464 = vadd.f32 %v1858, %v2114
        %v2465 = vadd.f32 %v1865, %v2121
        %v2466 = vadd.f32 %v1872, %v2128
        %v2467 = vadd.f32 %v1879, %v2135
        %v2468 = vadd.f32 %v1886, %v2142
        %v2469 = vadd.f32 %v1893, %v2149
        %v2470 = vadd.f32 %v1900, %v2156
        %v2471 = vmul.f32 %v2455, 0.5
        %v2472 = vmul.f32 %v2456, 0.5
        %v2473 = vmul.f32 %v2457, 0.5
        %v2474 = vmul.f32 %v2458, 0.5
        %v2475 = vmul.f32 %v2459, 0.5
        %v2476 = vmul.f32 %v2460, 0.5
        %v2477 = vmul.f32 %v2461, 0.5
        %v2478 = vmul.f32 %v2462, 0.5
        %v2479 = vmul.f32 %v2463, 0.5
        %v2480 = vmul.f32 %v2464, 0.5
        %v2481 = vmul.f32 %v2465, 0.5
        %v2482 = vmul.f32 %v2466, 0.5
        %v2483 = vmul.f32 %v2467, 0.5
        %v2484 = vmul.f32 %v2468, 0.5
        %v2485 = vmul.f32 %v2469, 0.5
        %v2486 = vmul.f32 %v2470, 0.5
        %v2487 = vsub.f32 %v2471, %v309
        %v2488 = vsub.f32 %v2472, %v310
        %v2489 = vsub.f32 %v2473, %v309
        %v2490 = vsub.f32 %v2474, %v310
        %v2491 = vsub.f32 %v2475, %v309
        %v2492 = vsub.f32 %v2476, %v310
        %v2493 = vsub.f32 %v2477, %v309
        %v2494 = vsub.f32 %v2478, %v310
        %v2495 = vsub.f32 %v2479, %v309
        %v2496 = vsub.f32 %v2480, %v310
        %v2497 = vsub.f32 %v2481, %v309
        %v2498 = vsub.f32 %v2482, %v310
        %v2499 = vsub.f32 %v2483, %v309
        %v2500 = vsub.f32 %v2484, %v310
        %v2501 = vsub.f32 %v2485, %v309
        %v2502 = vsub.f32 %v2486, %v310
        %v2503 = vmul.f32 %v2487, %v2437
        %v2504 = vmul.f32 %v2488, %v2439
        %v2505 = vmul.f32 %v2489, %v2437
        %v2506 = vmul.f32 %v2490, %v2439
        %v2507 = vmul.f32 %v2491, %v2437
        %v2508 = vmul.f32 %v2492, %v2439
        %v2509 = vmul.f32 %v2493, %v2437
        %v2510 = vmul.f32 %v2494, %v2439
        %v2511 = vmul.f32 %v2495, %v2437
        %v2512 = vmul.f32 %v2496, %v2439
        %v2513 = vmul.f32 %v2497, %v2437
        %v2514 = vmul.f32 %v2498, %v2439
        %v2515 = vmul.f32 %v2499, %v2437
        %v2516 = vmul.f32 %v2500, %v2439
        %v2517 = vmul.f32 %v2501, %v2437
        %v2518 = vmul.f32 %v2502, %v2439
        %v2519 = vsub.f32 %v1923, %v1667
        %v2520 = vsub.f32 %v1930, %v1674
        %v2521 = vsub.f32 %v1937, %v1681
        %v2522 = vsub.f32 %v1944, %v1688
        %v2523 = vsub.f32 %v1951, %v1695
        %v2524 = vsub.f32 %v1958, %v1702
        %v2525 = vsub.f32 %v1965, %v1709
        %v2526 = vsub.f32 %v1972, %v1716
        %v2527 = vsub.f32 %v1979, %v1723
        %v2528 = vsub.f32 %v1986, %v1730
        %v2529 = vsub.f32 %v1993, %v1737
        %v2530 = vsub.f32 %v2000, %v1744
        %v2531 = vsub.f32 %v2007, %v1751
        %v2532 = vsub.f32 %v2014, %v1758
        %v2533 = vsub.f32 %v2021, %v1765
        %v2534 = vsub.f32 %v2028, %v1772
        %v2535 = vrcp.pop %v309
        %v2536 = vmul.f32 %v2519, %v2535
        %v2537 = vrcp.pop %v310
        %v2538 = vmul.f32 %v2520, %v2537
        %v2539 = vmul.f32 %v2521, %v2535
        %v2540 = vmul.f32 %v2522, %v2537
        %v2541 = vmul.f32 %v2523, %v2535
        %v2542 = vmul.f32 %v2524, %v2537
        %v2543 = vmul.f32 %v2525, %v2535
        %v2544 = vmul.f32 %v2526, %v2537
        %v2545 = vmul.f32 %v2527, %v2535
        %v2546 = vmul.f32 %v2528, %v2537
        %v2547 = vmul.f32 %v2529, %v2535
        %v2548 = vmul.f32 %v2530, %v2537
        %v2549 = vmul.f32 %v2531, %v2535
        %v2550 = vmul.f32 %v2532, %v2537
        %v2551 = vmul.f32 %v2533, %v2535
        %v2552 = vmul.f32 %v2534, %v2537
        %v2553 = vmax.f32 %v2536, 1e-12
        %v2554 = vmax.f32 %v2538, 1e-12
        %v2555 = vmax.f32 %v2539, 1e-12
        %v2556 = vmax.f32 %v2540, 1e-12
        %v2557 = vmax.f32 %v2541, 1e-12
        %v2558 = vmax.f32 %v2542, 1e-12
        %v2559 = vmax.f32 %v2543, 1e-12
        %v2560 = vmax.f32 %v2544, 1e-12
        %v2561 = vmax.f32 %v2545, 1e-12
        %v2562 = vmax.f32 %v2546, 1e-12
        %v2563 = vmax.f32 %v2547, 1e-12
        %v2564 = vmax.f32 %v2548, 1e-12
        %v2565 = vmax.f32 %v2549, 1e-12
        %v2566 = vmax.f32 %v2550, 1e-12
        %v2567 = vmax.f32 %v2551, 1e-12
        %v2568 = vmax.f32 %v2552, 1e-12
        %v2569 = vlog2.pop %v2553
        %v2570 = vmul.f32 %v2569, 0.6931472
        %v2571 = vlog2.pop %v2554
        %v2572 = vmul.f32 %v2571, 0.6931472
        %v2573 = vlog2.pop %v2555
        %v2574 = vmul.f32 %v2573, 0.6931472
        %v2575 = vlog2.pop %v2556
        %v2576 = vmul.f32 %v2575, 0.6931472
        %v2577 = vlog2.pop %v2557
        %v2578 = vmul.f32 %v2577, 0.6931472
        %v2579 = vlog2.pop %v2558
        %v2580 = vmul.f32 %v2579, 0.6931472
        %v2581 = vlog2.pop %v2559
        %v2582 = vmul.f32 %v2581, 0.6931472
        %v2583 = vlog2.pop %v2560
        %v2584 = vmul.f32 %v2583, 0.6931472
        %v2585 = vlog2.pop %v2561
        %v2586 = vmul.f32 %v2585, 0.6931472
        %v2587 = vlog2.pop %v2562
        %v2588 = vmul.f32 %v2587, 0.6931472
        %v2589 = vlog2.pop %v2563
        %v2590 = vmul.f32 %v2589, 0.6931472
        %v2591 = vlog2.pop %v2564
        %v2592 = vmul.f32 %v2591, 0.6931472
        %v2593 = vlog2.pop %v2565
        %v2594 = vmul.f32 %v2593, 0.6931472
        %v2595 = vlog2.pop %v2566
        %v2596 = vmul.f32 %v2595, 0.6931472
        %v2597 = vlog2.pop %v2567
        %v2598 = vmul.f32 %v2597, 0.6931472
        %v2599 = vlog2.pop %v2568
        %v2600 = vmul.f32 %v2599, 0.6931472
        %v2601 = vrcp.pop 0.2
        %v2602 = vmul.f32 %v2570, %v2601
        %v2603 = vmul.f32 %v2572, %v2601
        %v2604 = vmul.f32 %v2574, %v2601
        %v2605 = vmul.f32 %v2576, %v2601
        %v2606 = vmul.f32 %v2578, %v2601
        %v2607 = vmul.f32 %v2580, %v2601
        %v2608 = vmul.f32 %v2582, %v2601
        %v2609 = vmul.f32 %v2584, %v2601
        %v2610 = vmul.f32 %v2586, %v2601
        %v2611 = vmul.f32 %v2588, %v2601
        %v2612 = vmul.f32 %v2590, %v2601
        %v2613 = vmul.f32 %v2592, %v2601
        %v2614 = vmul.f32 %v2594, %v2601
        %v2615 = vmul.f32 %v2596, %v2601
        %v2616 = vmul.f32 %v2598, %v2601
        %v2617 = vmul.f32 %v2600, %v2601
        %v2618 = vsub.f32 %v2051, %v1795
        %v2619 = vsub.f32 %v2058, %v1802
        %v2620 = vsub.f32 %v2065, %v1809
        %v2621 = vsub.f32 %v2072, %v1816
        %v2622 = vsub.f32 %v2079, %v1823
        %v2623 = vsub.f32 %v2086, %v1830
        %v2624 = vsub.f32 %v2093, %v1837
        %v2625 = vsub.f32 %v2100, %v1844
        %v2626 = vsub.f32 %v2107, %v1851
        %v2627 = vsub.f32 %v2114, %v1858
        %v2628 = vsub.f32 %v2121, %v1865
        %v2629 = vsub.f32 %v2128, %v1872
        %v2630 = vsub.f32 %v2135, %v1879
        %v2631 = vsub.f32 %v2142, %v1886
        %v2632 = vsub.f32 %v2149, %v1893
        %v2633 = vsub.f32 %v2156, %v1900
        %v2634 = vmul.f32 %v2618, %v2535
        %v2635 = vmul.f32 %v2619, %v2537
        %v2636 = vmul.f32 %v2620, %v2535
        %v2637 = vmul.f32 %v2621, %v2537
        %v2638 = vmul.f32 %v2622, %v2535
        %v2639 = vmul.f32 %v2623, %v2537
        %v2640 = vmul.f32 %v2624, %v2535
        %v2641 = vmul.f32 %v2625, %v2537
        %v2642 = vmul.f32 %v2626, %v2535
        %v2643 = vmul.f32 %v2627, %v2537
        %v2644 = vmul.f32 %v2628, %v2535
        %v2645 = vmul.f32 %v2629, %v2537
        %v2646 = vmul.f32 %v2630, %v2535
        %v2647 = vmul.f32 %v2631, %v2537
        %v2648 = vmul.f32 %v2632, %v2535
        %v2649 = vmul.f32 %v2633, %v2537
        %v2650 = vmax.f32 %v2634, 1e-12
        %v2651 = vmax.f32 %v2635, 1e-12
        %v2652 = vmax.f32 %v2636, 1e-12
        %v2653 = vmax.f32 %v2637, 1e-12
        %v2654 = vmax.f32 %v2638, 1e-12
        %v2655 = vmax.f32 %v2639, 1e-12
        %v2656 = vmax.f32 %v2640, 1e-12
        %v2657 = vmax.f32 %v2641, 1e-12
        %v2658 = vmax.f32 %v2642, 1e-12
        %v2659 = vmax.f32 %v2643, 1e-12
        %v2660 = vmax.f32 %v2644, 1e-12
        %v2661 = vmax.f32 %v2645, 1e-12
        %v2662 = vmax.f32 %v2646, 1e-12
        %v2663 = vmax.f32 %v2647, 1e-12
        %v2664 = vmax.f32 %v2648, 1e-12
        %v2665 = vmax.f32 %v2649, 1e-12
        %v2666 = vlog2.pop %v2650
        %v2667 = vmul.f32 %v2666, 0.6931472
        %v2668 = vlog2.pop %v2651
        %v2669 = vmul.f32 %v2668, 0.6931472
        %v2670 = vlog2.pop %v2652
        %v2671 = vmul.f32 %v2670, 0.6931472
        %v2672 = vlog2.pop %v2653
        %v2673 = vmul.f32 %v2672, 0.6931472
        %v2674 = vlog2.pop %v2654
        %v2675 = vmul.f32 %v2674, 0.6931472
        %v2676 = vlog2.pop %v2655
        %v2677 = vmul.f32 %v2676, 0.6931472
        %v2678 = vlog2.pop %v2656
        %v2679 = vmul.f32 %v2678, 0.6931472
        %v2680 = vlog2.pop %v2657
        %v2681 = vmul.f32 %v2680, 0.6931472
        %v2682 = vlog2.pop %v2658
        %v2683 = vmul.f32 %v2682, 0.6931472
        %v2684 = vlog2.pop %v2659
        %v2685 = vmul.f32 %v2684, 0.6931472
        %v2686 = vlog2.pop %v2660
        %v2687 = vmul.f32 %v2686, 0.6931472
        %v2688 = vlog2.pop %v2661
        %v2689 = vmul.f32 %v2688, 0.6931472
        %v2690 = vlog2.pop %v2662
        %v2691 = vmul.f32 %v2690, 0.6931472
        %v2692 = vlog2.pop %v2663
        %v2693 = vmul.f32 %v2692, 0.6931472
        %v2694 = vlog2.pop %v2664
        %v2695 = vmul.f32 %v2694, 0.6931472
        %v2696 = vlog2.pop %v2665
        %v2697 = vmul.f32 %v2696, 0.6931472
        %v2698 = vmul.f32 %v2667, %v2601
        %v2699 = vmul.f32 %v2669, %v2601
        %v2700 = vmul.f32 %v2671, %v2601
        %v2701 = vmul.f32 %v2673, %v2601
        %v2702 = vmul.f32 %v2675, %v2601
        %v2703 = vmul.f32 %v2677, %v2601
        %v2704 = vmul.f32 %v2679, %v2601
        %v2705 = vmul.f32 %v2681, %v2601
        %v2706 = vmul.f32 %v2683, %v2601
        %v2707 = vmul.f32 %v2685, %v2601
        %v2708 = vmul.f32 %v2687, %v2601
        %v2709 = vmul.f32 %v2689, %v2601
        %v2710 = vmul.f32 %v2691, %v2601
        %v2711 = vmul.f32 %v2693, %v2601
        %v2712 = vmul.f32 %v2695, %v2601
        %v2713 = vmul.f32 %v2697, %v2601
        %v2730 = vcombine.high %v2438, %v2440
        %v2731 = vcombine.high %v2441, %v2442
        %v2732 = vcombine.high %v2443, %v2444
        %v2733 = vcombine.high %v2445, %v2446
        %v2734 = vcombine.high %v2447, %v2448
        %v2735 = vcombine.high %v2449, %v2450
        %v2736 = vcombine.high %v2451, %v2452
        %v2737 = vcombine.high %v2453, %v2454
        %v2746 = vsub.f32 %v311, %v2730
        %v2747 = vsub.f32 %v312, %v2731
        %v2748 = vsub.f32 %v313, %v2732
        %v2749 = vsub.f32 %v314, %v2733
        %v2750 = vsub.f32 %v315, %v2734
        %v2751 = vsub.f32 %v316, %v2735
        %v2752 = vsub.f32 %v317, %v2736
        %v2753 = vsub.f32 %v318, %v2737
        %v2754 = vand.u32 2147483647, %v2746
        %v2755 = vand.u32 2147483647, %v2747
        %v2756 = vand.u32 2147483647, %v2748
        %v2757 = vand.u32 2147483647, %v2749
        %v2758 = vand.u32 2147483647, %v2750
        %v2759 = vand.u32 2147483647, %v2751
        %v2760 = vand.u32 2147483647, %v2752
        %v2761 = vand.u32 2147483647, %v2753
        %vm2762 = vcmp.lt.f32.partialorder %v2754, 1.0
        %vm2763 = vcmp.lt.f32.partialorder %v2755, 1.0
        %vm2764 = vcmp.lt.f32.partialorder %v2756, 1.0
        %vm2765 = vcmp.lt.f32.partialorder %v2757, 1.0
        %vm2766 = vcmp.lt.f32.partialorder %v2758, 1.0
        %vm2767 = vcmp.lt.f32.partialorder %v2759, 1.0
        %vm2768 = vcmp.lt.f32.partialorder %v2760, 1.0
        %vm2769 = vcmp.lt.f32.partialorder %v2761, 1.0
        %v2770 = vmul.f32 %v2754, 0.5
        %v2771 = vmul.f32 %v2755, 0.5
        %v2772 = vmul.f32 %v2756, 0.5
        %v2773 = vmul.f32 %v2757, 0.5
        %v2774 = vmul.f32 %v2758, 0.5
        %v2775 = vmul.f32 %v2759, 0.5
        %v2776 = vmul.f32 %v2760, 0.5
        %v2777 = vmul.f32 %v2761, 0.5
        %v2778 = vmul.f32 %v2770, %v2754
        %v2779 = vmul.f32 %v2771, %v2755
        %v2780 = vmul.f32 %v2772, %v2756
        %v2781 = vmul.f32 %v2773, %v2757
        %v2782 = vmul.f32 %v2774, %v2758
        %v2783 = vmul.f32 %v2775, %v2759
        %v2784 = vmul.f32 %v2776, %v2760
        %v2785 = vmul.f32 %v2777, %v2761
        %v2786 = vsub.f32 %v2754, 0.5
        %v2787 = vsub.f32 %v2755, 0.5
        %v2788 = vsub.f32 %v2756, 0.5
        %v2789 = vsub.f32 %v2757, 0.5
        %v2790 = vsub.f32 %v2758, 0.5
        %v2791 = vsub.f32 %v2759, 0.5
        %v2792 = vsub.f32 %v2760, 0.5
        %v2793 = vsub.f32 %v2761, 0.5
        %v2794 = vsel %vm2762, %v2778, %v2786
        %v2795 = vsel %vm2763, %v2779, %v2787
        %v2796 = vsel %vm2764, %v2780, %v2788
        %v2797 = vsel %vm2765, %v2781, %v2789
        %v2798 = vsel %vm2766, %v2782, %v2790
        %v2799 = vsel %vm2767, %v2783, %v2791
        %v2800 = vsel %vm2768, %v2784, %v2792
        %v2801 = vsel %vm2769, %v2785, %v2793
        %v2818 = vcombine.high %v2503, %v2504
        %v2819 = vcombine.high %v2505, %v2506
        %v2820 = vcombine.high %v2507, %v2508
        %v2821 = vcombine.high %v2509, %v2510
        %v2822 = vcombine.high %v2511, %v2512
        %v2823 = vcombine.high %v2513, %v2514
        %v2824 = vcombine.high %v2515, %v2516
        %v2825 = vcombine.high %v2517, %v2518
        %v2834 = vsub.f32 %v311, %v2818
        %v2835 = vsub.f32 %v312, %v2819
        %v2836 = vsub.f32 %v313, %v2820
        %v2837 = vsub.f32 %v314, %v2821
        %v2838 = vsub.f32 %v315, %v2822
        %v2839 = vsub.f32 %v316, %v2823
        %v2840 = vsub.f32 %v317, %v2824
        %v2841 = vsub.f32 %v318, %v2825
        %v2842 = vand.u32 2147483647, %v2834
        %v2843 = vand.u32 2147483647, %v2835
        %v2844 = vand.u32 2147483647, %v2836
        %v2845 = vand.u32 2147483647, %v2837
        %v2846 = vand.u32 2147483647, %v2838
        %v2847 = vand.u32 2147483647, %v2839
        %v2848 = vand.u32 2147483647, %v2840
        %v2849 = vand.u32 2147483647, %v2841
        %vm2850 = vcmp.lt.f32.partialorder %v2842, 1.0
        %vm2851 = vcmp.lt.f32.partialorder %v2843, 1.0
        %vm2852 = vcmp.lt.f32.partialorder %v2844, 1.0
        %vm2853 = vcmp.lt.f32.partialorder %v2845, 1.0
        %vm2854 = vcmp.lt.f32.partialorder %v2846, 1.0
        %vm2855 = vcmp.lt.f32.partialorder %v2847, 1.0
        %vm2856 = vcmp.lt.f32.partialorder %v2848, 1.0
        %vm2857 = vcmp.lt.f32.partialorder %v2849, 1.0
        %v2858 = vmul.f32 %v2842, 0.5
        %v2859 = vmul.f32 %v2843, 0.5
        %v2860 = vmul.f32 %v2844, 0.5
        %v2861 = vmul.f32 %v2845, 0.5
        %v2862 = vmul.f32 %v2846, 0.5
        %v2863 = vmul.f32 %v2847, 0.5
        %v2864 = vmul.f32 %v2848, 0.5
        %v2865 = vmul.f32 %v2849, 0.5
        %v2866 = vmul.f32 %v2858, %v2842
        %v2867 = vmul.f32 %v2859, %v2843
        %v2868 = vmul.f32 %v2860, %v2844
        %v2869 = vmul.f32 %v2861, %v2845
        %v2870 = vmul.f32 %v2862, %v2846
        %v2871 = vmul.f32 %v2863, %v2847
        %v2872 = vmul.f32 %v2864, %v2848
        %v2873 = vmul.f32 %v2865, %v2849
        %v2874 = vsub.f32 %v2842, 0.5
        %v2875 = vsub.f32 %v2843, 0.5
        %v2876 = vsub.f32 %v2844, 0.5
        %v2877 = vsub.f32 %v2845, 0.5
        %v2878 = vsub.f32 %v2846, 0.5
        %v2879 = vsub.f32 %v2847, 0.5
        %v2880 = vsub.f32 %v2848, 0.5
        %v2881 = vsub.f32 %v2849, 0.5
        %v2882 = vsel %vm2850, %v2866, %v2874
        %v2883 = vsel %vm2851, %v2867, %v2875
        %v2884 = vsel %vm2852, %v2868, %v2876
        %v2885 = vsel %vm2853, %v2869, %v2877
        %v2886 = vsel %vm2854, %v2870, %v2878
        %v2887 = vsel %vm2855, %v2871, %v2879
        %v2888 = vsel %vm2856, %v2872, %v2880
        %v2889 = vsel %vm2857, %v2873, %v2881
        %v2898 = vrot.slane %v2882, 5
        %v2899 = vrot.slane %v2898, 4
        %v2900 = vrot.slane %v2883, 5
        %v2901 = vrot.slane %v2900, 4
        %v2902 = vrot.slane %v2884, 5
        %v2903 = vrot.slane %v2902, 4
        %v2904 = vrot.slane %v2885, 5
        %v2905 = vrot.slane %v2904, 4
        %v2906 = vrot.slane %v2886, 5
        %v2907 = vrot.slane %v2906, 4
        %v2908 = vrot.slane %v2887, 5
        %v2909 = vrot.slane %v2908, 4
        %v2910 = vrot.slane %v2888, 5
        %v2911 = vrot.slane %v2910, 4
        %v2912 = vrot.slane %v2889, 5
        %v2913 = vrot.slane %v2912, 4
        %v2922 = vadd.f32 %v2794, %v2899
        %v2923 = vadd.f32 %v2795, %v2901
        %v2924 = vadd.f32 %v2796, %v2903
        %v2925 = vadd.f32 %v2797, %v2905
        %v2926 = vadd.f32 %v2798, %v2907
        %v2927 = vadd.f32 %v2799, %v2909
        %v2928 = vadd.f32 %v2800, %v2911
        %v2929 = vadd.f32 %v2801, %v2913
        %v2946 = vcombine.high %v2602, %v2603
        %v2947 = vcombine.high %v2604, %v2605
        %v2948 = vcombine.high %v2606, %v2607
        %v2949 = vcombine.high %v2608, %v2609
        %v2950 = vcombine.high %v2610, %v2611
        %v2951 = vcombine.high %v2612, %v2613
        %v2952 = vcombine.high %v2614, %v2615
        %v2953 = vcombine.high %v2616, %v2617
        %v2962 = vsub.f32 %v311, %v2946
        %v2963 = vsub.f32 %v312, %v2947
        %v2964 = vsub.f32 %v313, %v2948
        %v2965 = vsub.f32 %v314, %v2949
        %v2966 = vsub.f32 %v315, %v2950
        %v2967 = vsub.f32 %v316, %v2951
        %v2968 = vsub.f32 %v317, %v2952
        %v2969 = vsub.f32 %v318, %v2953
        %v2970 = vand.u32 2147483647, %v2962
        %v2971 = vand.u32 2147483647, %v2963
        %v2972 = vand.u32 2147483647, %v2964
        %v2973 = vand.u32 2147483647, %v2965
        %v2974 = vand.u32 2147483647, %v2966
        %v2975 = vand.u32 2147483647, %v2967
        %v2976 = vand.u32 2147483647, %v2968
        %v2977 = vand.u32 2147483647, %v2969
        %vm2978 = vcmp.lt.f32.partialorder %v2970, 1.0
        %vm2979 = vcmp.lt.f32.partialorder %v2971, 1.0
        %vm2980 = vcmp.lt.f32.partialorder %v2972, 1.0
        %vm2981 = vcmp.lt.f32.partialorder %v2973, 1.0
        %vm2982 = vcmp.lt.f32.partialorder %v2974, 1.0
        %vm2983 = vcmp.lt.f32.partialorder %v2975, 1.0
        %vm2984 = vcmp.lt.f32.partialorder %v2976, 1.0
        %vm2985 = vcmp.lt.f32.partialorder %v2977, 1.0
        %v2986 = vmul.f32 %v2970, 0.5
        %v2987 = vmul.f32 %v2971, 0.5
        %v2988 = vmul.f32 %v2972, 0.5
        %v2989 = vmul.f32 %v2973, 0.5
        %v2990 = vmul.f32 %v2974, 0.5
        %v2991 = vmul.f32 %v2975, 0.5
        %v2992 = vmul.f32 %v2976, 0.5
        %v2993 = vmul.f32 %v2977, 0.5
        %v2994 = vmul.f32 %v2986, %v2970
        %v2995 = vmul.f32 %v2987, %v2971
        %v2996 = vmul.f32 %v2988, %v2972
        %v2997 = vmul.f32 %v2989, %v2973
        %v2998 = vmul.f32 %v2990, %v2974
        %v2999 = vmul.f32 %v2991, %v2975
        %v3000 = vmul.f32 %v2992, %v2976
        %v3001 = vmul.f32 %v2993, %v2977
        %v3002 = vsub.f32 %v2970, 0.5
        %v3003 = vsub.f32 %v2971, 0.5
        %v3004 = vsub.f32 %v2972, 0.5
        %v3005 = vsub.f32 %v2973, 0.5
        %v3006 = vsub.f32 %v2974, 0.5
        %v3007 = vsub.f32 %v2975, 0.5
        %v3008 = vsub.f32 %v2976, 0.5
        %v3009 = vsub.f32 %v2977, 0.5
        %v3010 = vsel %vm2978, %v2994, %v3002
        %v3011 = vsel %vm2979, %v2995, %v3003
        %v3012 = vsel %vm2980, %v2996, %v3004
        %v3013 = vsel %vm2981, %v2997, %v3005
        %v3014 = vsel %vm2982, %v2998, %v3006
        %v3015 = vsel %vm2983, %v2999, %v3007
        %v3016 = vsel %vm2984, %v3000, %v3008
        %v3017 = vsel %vm2985, %v3001, %v3009
        %v3026 = vrot.slane %v3010, 6
        %v3027 = vrot.slane %v3026, 4
        %v3028 = vrot.slane %v3011, 6
        %v3029 = vrot.slane %v3028, 4
        %v3030 = vrot.slane %v3012, 6
        %v3031 = vrot.slane %v3030, 4
        %v3032 = vrot.slane %v3013, 6
        %v3033 = vrot.slane %v3032, 4
        %v3034 = vrot.slane %v3014, 6
        %v3035 = vrot.slane %v3034, 4
        %v3036 = vrot.slane %v3015, 6
        %v3037 = vrot.slane %v3036, 4
        %v3038 = vrot.slane %v3016, 6
        %v3039 = vrot.slane %v3038, 4
        %v3040 = vrot.slane %v3017, 6
        %v3041 = vrot.slane %v3040, 4
        %v3050 = vadd.f32 %v2922, %v3027
        %v3051 = vadd.f32 %v2923, %v3029
        %v3052 = vadd.f32 %v2924, %v3031
        %v3053 = vadd.f32 %v2925, %v3033
        %v3054 = vadd.f32 %v2926, %v3035
        %v3055 = vadd.f32 %v2927, %v3037
        %v3056 = vadd.f32 %v2928, %v3039
        %v3057 = vadd.f32 %v2929, %v3041
        %v3074 = vcombine.high %v2698, %v2699
        %v3075 = vcombine.high %v2700, %v2701
        %v3076 = vcombine.high %v2702, %v2703
        %v3077 = vcombine.high %v2704, %v2705
        %v3078 = vcombine.high %v2706, %v2707
        %v3079 = vcombine.high %v2708, %v2709
        %v3080 = vcombine.high %v2710, %v2711
        %v3081 = vcombine.high %v2712, %v2713
        %v3090 = vsub.f32 %v311, %v3074
        %v3091 = vsub.f32 %v312, %v3075
        %v3092 = vsub.f32 %v313, %v3076
        %v3093 = vsub.f32 %v314, %v3077
        %v3094 = vsub.f32 %v315, %v3078
        %v3095 = vsub.f32 %v316, %v3079
        %v3096 = vsub.f32 %v317, %v3080
        %v3097 = vsub.f32 %v318, %v3081
        %v3098 = vand.u32 2147483647, %v3090
        %v3099 = vand.u32 2147483647, %v3091
        %v3100 = vand.u32 2147483647, %v3092
        %v3101 = vand.u32 2147483647, %v3093
        %v3102 = vand.u32 2147483647, %v3094
        %v3103 = vand.u32 2147483647, %v3095
        %v3104 = vand.u32 2147483647, %v3096
        %v3105 = vand.u32 2147483647, %v3097
        %vm3106 = vcmp.lt.f32.partialorder %v3098, 1.0
        %vm3107 = vcmp.lt.f32.partialorder %v3099, 1.0
        %vm3108 = vcmp.lt.f32.partialorder %v3100, 1.0
        %vm3109 = vcmp.lt.f32.partialorder %v3101, 1.0
        %vm3110 = vcmp.lt.f32.partialorder %v3102, 1.0
        %vm3111 = vcmp.lt.f32.partialorder %v3103, 1.0
        %vm3112 = vcmp.lt.f32.partialorder %v3104, 1.0
        %vm3113 = vcmp.lt.f32.partialorder %v3105, 1.0
        %v3114 = vmul.f32 %v3098, 0.5
        %v3115 = vmul.f32 %v3099, 0.5
        %v3116 = vmul.f32 %v3100, 0.5
        %v3117 = vmul.f32 %v3101, 0.5
        %v3118 = vmul.f32 %v3102, 0.5
        %v3119 = vmul.f32 %v3103, 0.5
        %v3120 = vmul.f32 %v3104, 0.5
        %v3121 = vmul.f32 %v3105, 0.5
        %v3122 = vmul.f32 %v3114, %v3098
        %v3123 = vmul.f32 %v3115, %v3099
        %v3124 = vmul.f32 %v3116, %v3100
        %v3125 = vmul.f32 %v3117, %v3101
        %v3126 = vmul.f32 %v3118, %v3102
        %v3127 = vmul.f32 %v3119, %v3103
        %v3128 = vmul.f32 %v3120, %v3104
        %v3129 = vmul.f32 %v3121, %v3105
        %v3130 = vsub.f32 %v3098, 0.5
        %v3131 = vsub.f32 %v3099, 0.5
        %v3132 = vsub.f32 %v3100, 0.5
        %v3133 = vsub.f32 %v3101, 0.5
        %v3134 = vsub.f32 %v3102, 0.5
        %v3135 = vsub.f32 %v3103, 0.5
        %v3136 = vsub.f32 %v3104, 0.5
        %v3137 = vsub.f32 %v3105, 0.5
        %v3138 = vsel %vm3106, %v3122, %v3130
        %v3139 = vsel %vm3107, %v3123, %v3131
        %v3140 = vsel %vm3108, %v3124, %v3132
        %v3141 = vsel %vm3109, %v3125, %v3133
        %v3142 = vsel %vm3110, %v3126, %v3134
        %v3143 = vsel %vm3111, %v3127, %v3135
        %v3144 = vsel %vm3112, %v3128, %v3136
        %v3145 = vsel %vm3113, %v3129, %v3137
        %v3154 = vrot.slane %v3138, 7
        %v3155 = vrot.slane %v3154, 4
        %v3156 = vrot.slane %v3139, 7
        %v3157 = vrot.slane %v3156, 4
        %v3158 = vrot.slane %v3140, 7
        %v3159 = vrot.slane %v3158, 4
        %v3160 = vrot.slane %v3141, 7
        %v3161 = vrot.slane %v3160, 4
        %v3162 = vrot.slane %v3142, 7
        %v3163 = vrot.slane %v3162, 4
        %v3164 = vrot.slane %v3143, 7
        %v3165 = vrot.slane %v3164, 4
        %v3166 = vrot.slane %v3144, 7
        %v3167 = vrot.slane %v3166, 4
        %v3168 = vrot.slane %v3145, 7
        %v3169 = vrot.slane %v3168, 4
        %v3178 = vadd.f32 %v3050, %v3155
        %v3179 = vadd.f32 %v3051, %v3157
        %v3180 = vadd.f32 %v3052, %v3159
        %v3181 = vadd.f32 %v3053, %v3161
        %v3182 = vadd.f32 %v3054, %v3163
        %v3183 = vadd.f32 %v3055, %v3165
        %v3184 = vadd.f32 %v3056, %v3167
        %v3185 = vadd.f32 %v3057, %v3169
        %v3194 = vlaneseq
        %v3195 = vshrl.u32 %v3194, 7
        %v3196 = vsub.s32 0, %v3195
        %v3197 = vrot.slane %v3178, %v3196
        %v3198 = vlaneseq
        %v3199 = vshrl.u32 %v3198, 7
        %v3200 = vsub.s32 4, %v3199
        %v3201 = vrot.slane %v3178, %v3200
        %v3202 = vlaneseq
        %v3203 = vshrl.u32 %v3202, 7
        %v3204 = vsub.s32 0, %v3203
        %v3205 = vrot.slane %v3179, %v3204
        %v3206 = vlaneseq
        %v3207 = vshrl.u32 %v3206, 7
        %v3208 = vsub.s32 4, %v3207
        %v3209 = vrot.slane %v3179, %v3208
        %v3210 = vlaneseq
        %v3211 = vshrl.u32 %v3210, 7
        %v3212 = vsub.s32 0, %v3211
        %v3213 = vrot.slane %v3180, %v3212
        %v3214 = vlaneseq
        %v3215 = vshrl.u32 %v3214, 7
        %v3216 = vsub.s32 4, %v3215
        %v3217 = vrot.slane %v3180, %v3216
        %v3218 = vlaneseq
        %v3219 = vshrl.u32 %v3218, 7
        %v3220 = vsub.s32 0, %v3219
        %v3221 = vrot.slane %v3181, %v3220
        %v3222 = vlaneseq
        %v3223 = vshrl.u32 %v3222, 7
        %v3224 = vsub.s32 4, %v3223
        %v3225 = vrot.slane %v3181, %v3224
        %v3226 = vlaneseq
        %v3227 = vshrl.u32 %v3226, 7
        %v3228 = vsub.s32 0, %v3227
        %v3229 = vrot.slane %v3182, %v3228
        %v3230 = vlaneseq
        %v3231 = vshrl.u32 %v3230, 7
        %v3232 = vsub.s32 4, %v3231
        %v3233 = vrot.slane %v3182, %v3232
        %v3234 = vlaneseq
        %v3235 = vshrl.u32 %v3234, 7
        %v3236 = vsub.s32 0, %v3235
        %v3237 = vrot.slane %v3183, %v3236
        %v3238 = vlaneseq
        %v3239 = vshrl.u32 %v3238, 7
        %v3240 = vsub.s32 4, %v3239
        %v3241 = vrot.slane %v3183, %v3240
        %v3242 = vlaneseq
        %v3243 = vshrl.u32 %v3242, 7
        %v3244 = vsub.s32 0, %v3243
        %v3245 = vrot.slane %v3184, %v3244
        %v3246 = vlaneseq
        %v3247 = vshrl.u32 %v3246, 7
        %v3248 = vsub.s32 4, %v3247
        %v3249 = vrot.slane %v3184, %v3248
        %v3250 = vlaneseq
        %v3251 = vshrl.u32 %v3250, 7
        %v3252 = vsub.s32 0, %v3251
        %v3253 = vrot.slane %v3185, %v3252
        %v3254 = vlaneseq
        %v3255 = vshrl.u32 %v3254, 7
        %v3256 = vsub.s32 4, %v3255
        %v3257 = vrot.slane %v3185, %v3256
        %v3274 = vsel %vm2365, %v3197, 0.0
        %v3275 = vsel %vm2366, %v3201, 0.0
        %v3276 = vsel %vm2367, %v3205, 0.0
        %v3277 = vsel %vm2368, %v3209, 0.0
        %v3278 = vsel %vm2369, %v3213, 0.0
        %v3279 = vsel %vm2370, %v3217, 0.0
        %v3280 = vsel %vm2371, %v3221, 0.0
        %v3281 = vsel %vm2372, %v3225, 0.0
        %v3282 = vsel %vm2373, %v3229, 0.0
        %v3283 = vsel %vm2374, %v3233, 0.0
        %v3284 = vsel %vm2375, %v3237, 0.0
        %v3285 = vsel %vm2376, %v3241, 0.0
        %v3286 = vsel %vm2377, %v3245, 0.0
        %v3287 = vsel %vm2378, %v3249, 0.0
        %v3288 = vsel %vm2379, %v3253, 0.0
        %v3289 = vsel %vm2380, %v3257, 0.0
        %vm3290 = vcmask 1040384
        %v3291 = vsel %vm3290, %v3274, 0.0
        %v3292 = vsel %vm3290, %v3275, 0.0
        %v3293 = vadd.f32 %v3291, %v3292
        %3294 = vadd.xlane.f32.xlu0 %v3293
        %v3295 = vpop.xlane.xlu0 %3294
        %v3296 = vsel %vm3290, %v3276, 0.0
        %v3297 = vsel %vm3290, %v3277, 0.0
        %v3298 = vadd.f32 %v3296, %v3297
        %3299 = vadd.xlane.f32.xlu0 %v3298
        %v3300 = vpop.xlane.xlu0 %3299
        %v3301 = vsel %vm3290, %v3278, 0.0
        %v3302 = vsel %vm3290, %v3279, 0.0
        %v3303 = vadd.f32 %v3301, %v3302
        %3304 = vadd.xlane.f32.xlu0 %v3303
        %v3305 = vpop.xlane.xlu0 %3304
        %v3306 = vsel %vm3290, %v3280, 0.0
        %v3307 = vsel %vm3290, %v3281, 0.0
        %v3308 = vadd.f32 %v3306, %v3307
        %3309 = vadd.xlane.f32.xlu0 %v3308
        %v3310 = vpop.xlane.xlu0 %3309
        %v3311 = vsel %vm3290, %v3282, 0.0
        %v3312 = vsel %vm3290, %v3283, 0.0
        %v3313 = vadd.f32 %v3311, %v3312
        %3314 = vadd.xlane.f32.xlu0 %v3313
        %v3315 = vpop.xlane.xlu0 %3314
        %v3316 = vsel %vm3290, %v3284, 0.0
        %v3317 = vsel %vm3290, %v3285, 0.0
        %v3318 = vadd.f32 %v3316, %v3317
        %3319 = vadd.xlane.f32.xlu0 %v3318
        %v3320 = vpop.xlane.xlu0 %3319
        %v3321 = vsel %vm3290, %v3286, 0.0
        %v3322 = vsel %vm3290, %v3287, 0.0
        %v3323 = vadd.f32 %v3321, %v3322
        %3324 = vadd.xlane.f32.xlu0 %v3323
        %v3325 = vpop.xlane.xlu0 %3324
        %v3326 = vsel %vm3290, %v3288, 0.0
        %v3327 = vsel %vm3290, %v3289, 0.0
        %v3328 = vadd.f32 %v3326, %v3327
        %3329 = vadd.xlane.f32.xlu0 %v3328
        %v3330 = vpop.xlane.xlu0 %3329
        %v3331 = vrot.slane %v319, 4
        %v3332 = vmax.f32 %v319, %v3331
        %v3333 = vrot.slane %v3332, 2
        %v3334 = vmax.f32 %v3332, %v3333
        %v3335 = vrot.slane %v3334, 1
        %v3336 = vmax.f32 %v3334, %v3335
        %v3337 = vrot.slane %v320, 4
        %v3338 = vmax.f32 %v320, %v3337
        %v3339 = vrot.slane %v3338, 2
        %v3340 = vmax.f32 %v3338, %v3339
        %v3341 = vrot.slane %v3340, 1
        %v3342 = vmax.f32 %v3340, %v3341
        %v3343 = vrot.slane %v321, 4
        %v3344 = vmax.f32 %v321, %v3343
        %v3345 = vrot.slane %v3344, 2
        %v3346 = vmax.f32 %v3344, %v3345
        %v3347 = vrot.slane %v3346, 1
        %v3348 = vmax.f32 %v3346, %v3347
        %v3349 = vrot.slane %v322, 4
        %v3350 = vmax.f32 %v322, %v3349
        %v3351 = vrot.slane %v3350, 2
        %v3352 = vmax.f32 %v3350, %v3351
        %v3353 = vrot.slane %v3352, 1
        %v3354 = vmax.f32 %v3352, %v3353
        %v3355 = vrot.slane %v323, 4
        %v3356 = vmax.f32 %v323, %v3355
        %v3357 = vrot.slane %v3356, 2
        %v3358 = vmax.f32 %v3356, %v3357
        %v3359 = vrot.slane %v3358, 1
        %v3360 = vmax.f32 %v3358, %v3359
        %v3361 = vrot.slane %v324, 4
        %v3362 = vmax.f32 %v324, %v3361
        %v3363 = vrot.slane %v3362, 2
        %v3364 = vmax.f32 %v3362, %v3363
        %v3365 = vrot.slane %v3364, 1
        %v3366 = vmax.f32 %v3364, %v3365
        %v3367 = vrot.slane %v325, 4
        %v3368 = vmax.f32 %v325, %v3367
        %v3369 = vrot.slane %v3368, 2
        %v3370 = vmax.f32 %v3368, %v3369
        %v3371 = vrot.slane %v3370, 1
        %v3372 = vmax.f32 %v3370, %v3371
        %v3373 = vrot.slane %v326, 4
        %v3374 = vmax.f32 %v326, %v3373
        %v3375 = vrot.slane %v3374, 2
        %v3376 = vmax.f32 %v3374, %v3375
        %v3377 = vrot.slane %v3376, 1
        %v3378 = vmax.f32 %v3376, %v3377
        %v3379 = vrot.slane %v327, 4
        %v3380 = vmax.f32 %v327, %v3379
        %v3381 = vrot.slane %v3380, 2
        %v3382 = vmax.f32 %v3380, %v3381
        %v3383 = vrot.slane %v3382, 1
        %v3384 = vmax.f32 %v3382, %v3383
        %v3385 = vrot.slane %v328, 4
        %v3386 = vmax.f32 %v328, %v3385
        %v3387 = vrot.slane %v3386, 2
        %v3388 = vmax.f32 %v3386, %v3387
        %v3389 = vrot.slane %v3388, 1
        %v3390 = vmax.f32 %v3388, %v3389
        %v3391 = vrot.slane %v329, 4
        %v3392 = vmax.f32 %v329, %v3391
        %v3393 = vrot.slane %v3392, 2
        %v3394 = vmax.f32 %v3392, %v3393
        %v3395 = vrot.slane %v3394, 1
        %v3396 = vmax.f32 %v3394, %v3395
        %v3397 = vrot.slane %v330, 4
        %v3398 = vmax.f32 %v330, %v3397
        %v3399 = vrot.slane %v3398, 2
        %v3400 = vmax.f32 %v3398, %v3399
        %v3401 = vrot.slane %v3400, 1
        %v3402 = vmax.f32 %v3400, %v3401
        %v3403 = vrot.slane %v331, 4
        %v3404 = vmax.f32 %v331, %v3403
        %v3405 = vrot.slane %v3404, 2
        %v3406 = vmax.f32 %v3404, %v3405
        %v3407 = vrot.slane %v3406, 1
        %v3408 = vmax.f32 %v3406, %v3407
        %v3409 = vrot.slane %v332, 4
        %v3410 = vmax.f32 %v332, %v3409
        %v3411 = vrot.slane %v3410, 2
        %v3412 = vmax.f32 %v3410, %v3411
        %v3413 = vrot.slane %v3412, 1
        %v3414 = vmax.f32 %v3412, %v3413
        %v3415 = vrot.slane %v333, 4
        %v3416 = vmax.f32 %v333, %v3415
        %v3417 = vrot.slane %v3416, 2
        %v3418 = vmax.f32 %v3416, %v3417
        %v3419 = vrot.slane %v3418, 1
        %v3420 = vmax.f32 %v3418, %v3419
        %v3421 = vrot.slane %v334, 4
        %v3422 = vmax.f32 %v334, %v3421
        %v3423 = vrot.slane %v3422, 2
        %v3424 = vmax.f32 %v3422, %v3423
        %v3425 = vrot.slane %v3424, 1
        %v3426 = vmax.f32 %v3424, %v3425
        %v3427 = vsub.f32 %v319, %v3336
        %v3428 = vsub.f32 %v320, %v3342
        %v3429 = vsub.f32 %v321, %v3348
        %v3430 = vsub.f32 %v322, %v3354
        %v3431 = vsub.f32 %v323, %v3360
        %v3432 = vsub.f32 %v324, %v3366
        %v3433 = vsub.f32 %v325, %v3372
        %v3434 = vsub.f32 %v326, %v3378
        %v3435 = vsub.f32 %v327, %v3384
        %v3436 = vsub.f32 %v328, %v3390
        %v3437 = vsub.f32 %v329, %v3396
        %v3438 = vsub.f32 %v330, %v3402
        %v3439 = vsub.f32 %v331, %v3408
        %v3440 = vsub.f32 %v332, %v3414
        %v3441 = vsub.f32 %v333, %v3420
        %v3442 = vsub.f32 %v334, %v3426
        %v3443 = vmul.f32 %v3427, 1.442695
        %v3444 = vpow.pop %v3443
        %v3445 = vmul.f32 %v3428, 1.442695
        %v3446 = vpow.pop %v3445
        %v3447 = vmul.f32 %v3429, 1.442695
        %v3448 = vpow.pop %v3447
        %v3449 = vmul.f32 %v3430, 1.442695
        %v3450 = vpow.pop %v3449
        %v3451 = vmul.f32 %v3431, 1.442695
        %v3452 = vpow.pop %v3451
        %v3453 = vmul.f32 %v3432, 1.442695
        %v3454 = vpow.pop %v3453
        %v3455 = vmul.f32 %v3433, 1.442695
        %v3456 = vpow.pop %v3455
        %v3457 = vmul.f32 %v3434, 1.442695
        %v3458 = vpow.pop %v3457
        %v3459 = vmul.f32 %v3435, 1.442695
        %v3460 = vpow.pop %v3459
        %v3461 = vmul.f32 %v3436, 1.442695
        %v3462 = vpow.pop %v3461
        %v3463 = vmul.f32 %v3437, 1.442695
        %v3464 = vpow.pop %v3463
        %v3465 = vmul.f32 %v3438, 1.442695
        %v3466 = vpow.pop %v3465
        %v3467 = vmul.f32 %v3439, 1.442695
        %v3468 = vpow.pop %v3467
        %v3469 = vmul.f32 %v3440, 1.442695
        %v3470 = vpow.pop %v3469
        %v3471 = vmul.f32 %v3441, 1.442695
        %v3472 = vpow.pop %v3471
        %v3473 = vmul.f32 %v3442, 1.442695
        %v3474 = vpow.pop %v3473
        %v3475 = vrot.slane %v3444, 4
        %v3476 = vadd.f32 %v3444, %v3475
        %v3477 = vrot.slane %v3476, 2
        %v3478 = vadd.f32 %v3476, %v3477
        %v3479 = vrot.slane %v3478, 1
        %v3480 = vadd.f32 %v3478, %v3479
        %v3481 = vrot.slane %v3446, 4
        %v3482 = vadd.f32 %v3446, %v3481
        %v3483 = vrot.slane %v3482, 2
        %v3484 = vadd.f32 %v3482, %v3483
        %v3485 = vrot.slane %v3484, 1
        %v3486 = vadd.f32 %v3484, %v3485
        %v3487 = vrot.slane %v3448, 4
        %v3488 = vadd.f32 %v3448, %v3487
        %v3489 = vrot.slane %v3488, 2
        %v3490 = vadd.f32 %v3488, %v3489
        %v3491 = vrot.slane %v3490, 1
        %v3492 = vadd.f32 %v3490, %v3491
        %v3493 = vrot.slane %v3450, 4
        %v3494 = vadd.f32 %v3450, %v3493
        %v3495 = vrot.slane %v3494, 2
        %v3496 = vadd.f32 %v3494, %v3495
        %v3497 = vrot.slane %v3496, 1
        %v3498 = vadd.f32 %v3496, %v3497
        %v3499 = vrot.slane %v3452, 4
        %v3500 = vadd.f32 %v3452, %v3499
        %v3501 = vrot.slane %v3500, 2
        %v3502 = vadd.f32 %v3500, %v3501
        %v3503 = vrot.slane %v3502, 1
        %v3504 = vadd.f32 %v3502, %v3503
        %v3505 = vrot.slane %v3454, 4
        %v3506 = vadd.f32 %v3454, %v3505
        %v3507 = vrot.slane %v3506, 2
        %v3508 = vadd.f32 %v3506, %v3507
        %v3509 = vrot.slane %v3508, 1
        %v3510 = vadd.f32 %v3508, %v3509
        %v3511 = vrot.slane %v3456, 4
        %v3512 = vadd.f32 %v3456, %v3511
        %v3513 = vrot.slane %v3512, 2
        %v3514 = vadd.f32 %v3512, %v3513
        %v3515 = vrot.slane %v3514, 1
        %v3516 = vadd.f32 %v3514, %v3515
        %v3517 = vrot.slane %v3458, 4
        %v3518 = vadd.f32 %v3458, %v3517
        %v3519 = vrot.slane %v3518, 2
        %v3520 = vadd.f32 %v3518, %v3519
        %v3521 = vrot.slane %v3520, 1
        %v3522 = vadd.f32 %v3520, %v3521
        %v3523 = vrot.slane %v3460, 4
        %v3524 = vadd.f32 %v3460, %v3523
        %v3525 = vrot.slane %v3524, 2
        %v3526 = vadd.f32 %v3524, %v3525
        %v3527 = vrot.slane %v3526, 1
        %v3528 = vadd.f32 %v3526, %v3527
        %v3529 = vrot.slane %v3462, 4
        %v3530 = vadd.f32 %v3462, %v3529
        %v3531 = vrot.slane %v3530, 2
        %v3532 = vadd.f32 %v3530, %v3531
        %v3533 = vrot.slane %v3532, 1
        %v3534 = vadd.f32 %v3532, %v3533
        %v3535 = vrot.slane %v3464, 4
        %v3536 = vadd.f32 %v3464, %v3535
        %v3537 = vrot.slane %v3536, 2
        %v3538 = vadd.f32 %v3536, %v3537
        %v3539 = vrot.slane %v3538, 1
        %v3540 = vadd.f32 %v3538, %v3539
        %v3541 = vrot.slane %v3466, 4
        %v3542 = vadd.f32 %v3466, %v3541
        %v3543 = vrot.slane %v3542, 2
        %v3544 = vadd.f32 %v3542, %v3543
        %v3545 = vrot.slane %v3544, 1
        %v3546 = vadd.f32 %v3544, %v3545
        %v3547 = vrot.slane %v3468, 4
        %v3548 = vadd.f32 %v3468, %v3547
        %v3549 = vrot.slane %v3548, 2
        %v3550 = vadd.f32 %v3548, %v3549
        %v3551 = vrot.slane %v3550, 1
        %v3552 = vadd.f32 %v3550, %v3551
        %v3553 = vrot.slane %v3470, 4
        %v3554 = vadd.f32 %v3470, %v3553
        %v3555 = vrot.slane %v3554, 2
        %v3556 = vadd.f32 %v3554, %v3555
        %v3557 = vrot.slane %v3556, 1
        %v3558 = vadd.f32 %v3556, %v3557
        %v3559 = vrot.slane %v3472, 4
        %v3560 = vadd.f32 %v3472, %v3559
        %v3561 = vrot.slane %v3560, 2
        %v3562 = vadd.f32 %v3560, %v3561
        %v3563 = vrot.slane %v3562, 1
        %v3564 = vadd.f32 %v3562, %v3563
        %v3565 = vrot.slane %v3474, 4
        %v3566 = vadd.f32 %v3474, %v3565
        %v3567 = vrot.slane %v3566, 2
        %v3568 = vadd.f32 %v3566, %v3567
        %v3569 = vrot.slane %v3568, 1
        %v3570 = vadd.f32 %v3568, %v3569
        %v3571 = vlog2.pop %v3480
        %v3572 = vmul.f32 %v3571, 0.6931472
        %v3573 = vlog2.pop %v3486
        %v3574 = vmul.f32 %v3573, 0.6931472
        %v3575 = vlog2.pop %v3492
        %v3576 = vmul.f32 %v3575, 0.6931472
        %v3577 = vlog2.pop %v3498
        %v3578 = vmul.f32 %v3577, 0.6931472
        %v3579 = vlog2.pop %v3504
        %v3580 = vmul.f32 %v3579, 0.6931472
        %v3581 = vlog2.pop %v3510
        %v3582 = vmul.f32 %v3581, 0.6931472
        %v3583 = vlog2.pop %v3516
        %v3584 = vmul.f32 %v3583, 0.6931472
        %v3585 = vlog2.pop %v3522
        %v3586 = vmul.f32 %v3585, 0.6931472
        %v3587 = vlog2.pop %v3528
        %v3588 = vmul.f32 %v3587, 0.6931472
        %v3589 = vlog2.pop %v3534
        %v3590 = vmul.f32 %v3589, 0.6931472
        %v3591 = vlog2.pop %v3540
        %v3592 = vmul.f32 %v3591, 0.6931472
        %v3593 = vlog2.pop %v3546
        %v3594 = vmul.f32 %v3593, 0.6931472
        %v3595 = vlog2.pop %v3552
        %v3596 = vmul.f32 %v3595, 0.6931472
        %v3597 = vlog2.pop %v3558
        %v3598 = vmul.f32 %v3597, 0.6931472
        %v3599 = vlog2.pop %v3564
        %v3600 = vmul.f32 %v3599, 0.6931472
        %v3601 = vlog2.pop %v3570
        %v3602 = vmul.f32 %v3601, 0.6931472
        %v3603 = vadd.f32 %v3572, %v3336
        %v3604 = vadd.f32 %v3574, %v3342
        %v3605 = vadd.f32 %v3576, %v3348
        %v3606 = vadd.f32 %v3578, %v3354
        %v3607 = vadd.f32 %v3580, %v3360
        %v3608 = vadd.f32 %v3582, %v3366
        %v3609 = vadd.f32 %v3584, %v3372
        %v3610 = vadd.f32 %v3586, %v3378
        %v3611 = vadd.f32 %v3588, %v3384
        %v3612 = vadd.f32 %v3590, %v3390
        %v3613 = vadd.f32 %v3592, %v3396
        %v3614 = vadd.f32 %v3594, %v3402
        %v3615 = vadd.f32 %v3596, %v3408
        %v3616 = vadd.f32 %v3598, %v3414
        %v3617 = vadd.f32 %v3600, %v3420
        %v3618 = vadd.f32 %v3602, %v3426
        %v3619 = vcvt.f32.s32.to.zero.pseudo %v2349
        %v3620 = vcvt.f32.s32.to.zero.pseudo %v2350
        %v3621 = vcvt.f32.s32.to.zero.pseudo %v2351
        %v3622 = vcvt.f32.s32.to.zero.pseudo %v2352
        %v3623 = vcvt.f32.s32.to.zero.pseudo %v2353
        %v3624 = vcvt.f32.s32.to.zero.pseudo %v2354
        %v3625 = vcvt.f32.s32.to.zero.pseudo %v2355
        %v3626 = vcvt.f32.s32.to.zero.pseudo %v2356
        %v3627 = vcvt.f32.s32.to.zero.pseudo %v2357
        %v3628 = vcvt.f32.s32.to.zero.pseudo %v2358
        %v3629 = vcvt.f32.s32.to.zero.pseudo %v2359
        %v3630 = vcvt.f32.s32.to.zero.pseudo %v2360
        %v3631 = vcvt.f32.s32.to.zero.pseudo %v2361
        %v3632 = vcvt.f32.s32.to.zero.pseudo %v2362
        %v3633 = vcvt.f32.s32.to.zero.pseudo %v2363
        %v3634 = vcvt.f32.s32.to.zero.pseudo %v2364
        %vm3635 = vcmp.eq.s32.totalorder %v851, %v3619
        %vm3636 = vcmp.eq.s32.totalorder %v851, %v3620
        %vm3637 = vcmp.eq.s32.totalorder %v851, %v3621
        %vm3638 = vcmp.eq.s32.totalorder %v851, %v3622
        %vm3639 = vcmp.eq.s32.totalorder %v851, %v3623
        %vm3640 = vcmp.eq.s32.totalorder %v851, %v3624
        %vm3641 = vcmp.eq.s32.totalorder %v851, %v3625
        %vm3642 = vcmp.eq.s32.totalorder %v851, %v3626
        %vm3643 = vcmp.eq.s32.totalorder %v851, %v3627
        %vm3644 = vcmp.eq.s32.totalorder %v851, %v3628
        %vm3645 = vcmp.eq.s32.totalorder %v851, %v3629
        %vm3646 = vcmp.eq.s32.totalorder %v851, %v3630
        %vm3647 = vcmp.eq.s32.totalorder %v851, %v3631
        %vm3648 = vcmp.eq.s32.totalorder %v851, %v3632
        %vm3649 = vcmp.eq.s32.totalorder %v851, %v3633
        %vm3650 = vcmp.eq.s32.totalorder %v851, %v3634
        %v3651 = vsel %vm3635, 1, 0
        %v3652 = vsel %vm3636, 1, 0
        %v3653 = vsel %vm3637, 1, 0
        %v3654 = vsel %vm3638, 1, 0
        %v3655 = vsel %vm3639, 1, 0
        %v3656 = vsel %vm3640, 1, 0
        %v3657 = vsel %vm3641, 1, 0
        %v3658 = vsel %vm3642, 1, 0
        %v3659 = vsel %vm3643, 1, 0
        %v3660 = vsel %vm3644, 1, 0
        %v3661 = vsel %vm3645, 1, 0
        %v3662 = vsel %vm3646, 1, 0
        %v3663 = vsel %vm3647, 1, 0
        %v3664 = vsel %vm3648, 1, 0
        %v3665 = vsel %vm3649, 1, 0
        %v3666 = vsel %vm3650, 1, 0
        %v3667 = vcvt.s32.f32 %v3651
        %v3668 = vcvt.s32.f32 %v3652
        %v3669 = vcvt.s32.f32 %v3653
        %v3670 = vcvt.s32.f32 %v3654
        %v3671 = vcvt.s32.f32 %v3655
        %v3672 = vcvt.s32.f32 %v3656
        %v3673 = vcvt.s32.f32 %v3657
        %v3674 = vcvt.s32.f32 %v3658
        %v3675 = vcvt.s32.f32 %v3659
        %v3676 = vcvt.s32.f32 %v3660
        %v3677 = vcvt.s32.f32 %v3661
        %v3678 = vcvt.s32.f32 %v3662
        %v3679 = vcvt.s32.f32 %v3663
        %v3680 = vcvt.s32.f32 %v3664
        %v3681 = vcvt.s32.f32 %v3665
        %v3682 = vcvt.s32.f32 %v3666
        %v3683 = vmul.f32 %v319, %v3667
        %v3684 = vmul.f32 %v320, %v3668
        %v3685 = vmul.f32 %v321, %v3669
        %v3686 = vmul.f32 %v322, %v3670
        %v3687 = vmul.f32 %v323, %v3671
        %v3688 = vmul.f32 %v324, %v3672
        %v3689 = vmul.f32 %v325, %v3673
        %v3690 = vmul.f32 %v326, %v3674
        %v3691 = vmul.f32 %v327, %v3675
        %v3692 = vmul.f32 %v328, %v3676
        %v3693 = vmul.f32 %v329, %v3677
        %v3694 = vmul.f32 %v330, %v3678
        %v3695 = vmul.f32 %v331, %v3679
        %v3696 = vmul.f32 %v332, %v3680
        %v3697 = vmul.f32 %v333, %v3681
        %v3698 = vmul.f32 %v334, %v3682
        %v3699 = vrot.slane %v3683, 4
        %v3700 = vadd.f32 %v3683, %v3699
        %v3701 = vrot.slane %v3700, 2
        %v3702 = vadd.f32 %v3700, %v3701
        %v3703 = vrot.slane %v3702, 1
        %v3704 = vadd.f32 %v3702, %v3703
        %v3705 = vrot.slane %v3684, 4
        %v3706 = vadd.f32 %v3684, %v3705
        %v3707 = vrot.slane %v3706, 2
        %v3708 = vadd.f32 %v3706, %v3707
        %v3709 = vrot.slane %v3708, 1
        %v3710 = vadd.f32 %v3708, %v3709
        %v3711 = vrot.slane %v3685, 4
        %v3712 = vadd.f32 %v3685, %v3711
        %v3713 = vrot.slane %v3712, 2
        %v3714 = vadd.f32 %v3712, %v3713
        %v3715 = vrot.slane %v3714, 1
        %v3716 = vadd.f32 %v3714, %v3715
        %v3717 = vrot.slane %v3686, 4
        %v3718 = vadd.f32 %v3686, %v3717
        %v3719 = vrot.slane %v3718, 2
        %v3720 = vadd.f32 %v3718, %v3719
        %v3721 = vrot.slane %v3720, 1
        %v3722 = vadd.f32 %v3720, %v3721
        %v3723 = vrot.slane %v3687, 4
        %v3724 = vadd.f32 %v3687, %v3723
        %v3725 = vrot.slane %v3724, 2
        %v3726 = vadd.f32 %v3724, %v3725
        %v3727 = vrot.slane %v3726, 1
        %v3728 = vadd.f32 %v3726, %v3727
        %v3729 = vrot.slane %v3688, 4
        %v3730 = vadd.f32 %v3688, %v3729
        %v3731 = vrot.slane %v3730, 2
        %v3732 = vadd.f32 %v3730, %v3731
        %v3733 = vrot.slane %v3732, 1
        %v3734 = vadd.f32 %v3732, %v3733
        %v3735 = vrot.slane %v3689, 4
        %v3736 = vadd.f32 %v3689, %v3735
        %v3737 = vrot.slane %v3736, 2
        %v3738 = vadd.f32 %v3736, %v3737
        %v3739 = vrot.slane %v3738, 1
        %v3740 = vadd.f32 %v3738, %v3739
        %v3741 = vrot.slane %v3690, 4
        %v3742 = vadd.f32 %v3690, %v3741
        %v3743 = vrot.slane %v3742, 2
        %v3744 = vadd.f32 %v3742, %v3743
        %v3745 = vrot.slane %v3744, 1
        %v3746 = vadd.f32 %v3744, %v3745
        %v3747 = vrot.slane %v3691, 4
        %v3748 = vadd.f32 %v3691, %v3747
        %v3749 = vrot.slane %v3748, 2
        %v3750 = vadd.f32 %v3748, %v3749
        %v3751 = vrot.slane %v3750, 1
        %v3752 = vadd.f32 %v3750, %v3751
        %v3753 = vrot.slane %v3692, 4
        %v3754 = vadd.f32 %v3692, %v3753
        %v3755 = vrot.slane %v3754, 2
        %v3756 = vadd.f32 %v3754, %v3755
        %v3757 = vrot.slane %v3756, 1
        %v3758 = vadd.f32 %v3756, %v3757
        %v3759 = vrot.slane %v3693, 4
        %v3760 = vadd.f32 %v3693, %v3759
        %v3761 = vrot.slane %v3760, 2
        %v3762 = vadd.f32 %v3760, %v3761
        %v3763 = vrot.slane %v3762, 1
        %v3764 = vadd.f32 %v3762, %v3763
        %v3765 = vrot.slane %v3694, 4
        %v3766 = vadd.f32 %v3694, %v3765
        %v3767 = vrot.slane %v3766, 2
        %v3768 = vadd.f32 %v3766, %v3767
        %v3769 = vrot.slane %v3768, 1
        %v3770 = vadd.f32 %v3768, %v3769
        %v3771 = vrot.slane %v3695, 4
        %v3772 = vadd.f32 %v3695, %v3771
        %v3773 = vrot.slane %v3772, 2
        %v3774 = vadd.f32 %v3772, %v3773
        %v3775 = vrot.slane %v3774, 1
        %v3776 = vadd.f32 %v3774, %v3775
        %v3777 = vrot.slane %v3696, 4
        %v3778 = vadd.f32 %v3696, %v3777
        %v3779 = vrot.slane %v3778, 2
        %v3780 = vadd.f32 %v3778, %v3779
        %v3781 = vrot.slane %v3780, 1
        %v3782 = vadd.f32 %v3780, %v3781
        %v3783 = vrot.slane %v3697, 4
        %v3784 = vadd.f32 %v3697, %v3783
        %v3785 = vrot.slane %v3784, 2
        %v3786 = vadd.f32 %v3784, %v3785
        %v3787 = vrot.slane %v3786, 1
        %v3788 = vadd.f32 %v3786, %v3787
        %v3789 = vrot.slane %v3698, 4
        %v3790 = vadd.f32 %v3698, %v3789
        %v3791 = vrot.slane %v3790, 2
        %v3792 = vadd.f32 %v3790, %v3791
        %v3793 = vrot.slane %v3792, 1
        %v3794 = vadd.f32 %v3792, %v3793
        %v3795 = vsub.f32 %v3603, %v3704
        %v3796 = vsub.f32 %v3604, %v3710
        %v3797 = vsub.f32 %v3605, %v3716
        %v3798 = vsub.f32 %v3606, %v3722
        %v3799 = vsub.f32 %v3607, %v3728
        %v3800 = vsub.f32 %v3608, %v3734
        %v3801 = vsub.f32 %v3609, %v3740
        %v3802 = vsub.f32 %v3610, %v3746
        %v3803 = vsub.f32 %v3611, %v3752
        %v3804 = vsub.f32 %v3612, %v3758
        %v3805 = vsub.f32 %v3613, %v3764
        %v3806 = vsub.f32 %v3614, %v3770
        %v3807 = vsub.f32 %v3615, %v3776
        %v3808 = vsub.f32 %v3616, %v3782
        %v3809 = vsub.f32 %v3617, %v3788
        %v3810 = vsub.f32 %v3618, %v3794
        %v3811 = vsel %vm2365, 0.0, %v3795
        %v3812 = vsel %vm2366, 0.0, %v3796
        %v3813 = vsel %vm2367, 0.0, %v3797
        %v3814 = vsel %vm2368, 0.0, %v3798
        %v3815 = vsel %vm2369, 0.0, %v3799
        %v3816 = vsel %vm2370, 0.0, %v3800
        %v3817 = vsel %vm2371, 0.0, %v3801
        %v3818 = vsel %vm2372, 0.0, %v3802
        %v3819 = vsel %vm2373, 0.0, %v3803
        %v3820 = vsel %vm2374, 0.0, %v3804
        %v3821 = vsel %vm2375, 0.0, %v3805
        %v3822 = vsel %vm2376, 0.0, %v3806
        %v3823 = vsel %vm2377, 0.0, %v3807
        %v3824 = vsel %vm2378, 0.0, %v3808
        %v3825 = vsel %vm2379, 0.0, %v3809
        %v3826 = vsel %vm2380, 0.0, %v3810
        %3827 = vxpose.xlu0.b32.start [1/16] %v3811, 128
        %3828 = vxpose.xlu0.b32.cont [2/16] 0.0, 128
        %3829 = vxpose.xlu0.b32.cont [3/16] 0.0, 128
        %3830 = vxpose.xlu0.b32.cont [4/16] 0.0, 128
        %3831 = vxpose.xlu0.b32.cont [5/16] 0.0, 128
        %3832 = vxpose.xlu0.b32.cont [6/16] 0.0, 128
        %3833 = vxpose.xlu0.b32.cont [7/16] 0.0, 128
        %3834 = vxpose.xlu0.b32.cont [8/16] 0.0, 128
        %3835 = vxpose.xlu0.b32.cont [9/16] 0.0, 128
        %3836 = vxpose.xlu0.b32.cont [10/16] 0.0, 128
        %3837 = vxpose.xlu0.b32.cont [11/16] 0.0, 128
        %3838 = vxpose.xlu0.b32.cont [12/16] 0.0, 128
        %3839 = vxpose.xlu0.b32.cont [13/16] 0.0, 128
        %3840 = vxpose.xlu0.b32.cont [14/16] 0.0, 128
        %3841 = vxpose.xlu0.b32.cont [15/16] 0.0, 128
        %3842 = vxpose.xlu0.b32.end [16/16] 0.0, 128
        %v3843 = vpop.trf.xlu0
        %v3844 = vpop.trf.xlu0
        %v3845 = vpop.trf.xlu0
        %v3846 = vpop.trf.xlu0
        %v3847 = vpop.trf.xlu0
        %v3848 = vpop.trf.xlu0
        %v3849 = vpop.trf.xlu0
        %v3850 = vpop.trf.xlu0
        %v3851 = vpop.trf.xlu0
        %v3852 = vpop.trf.xlu0
        %v3853 = vpop.trf.xlu0
        %v3854 = vpop.trf.xlu0
        %v3855 = vpop.trf.xlu0
        %v3856 = vpop.trf.xlu0
        %v3857 = vpop.trf.xlu0
        %v3858 = vpop.trf.xlu0
        %3859 = vxpose.xlu0.b32.start [1/16] %v3813, 128
        %3860 = vxpose.xlu0.b32.cont [2/16] 0.0, 128
        %3861 = vxpose.xlu0.b32.cont [3/16] 0.0, 128
        %3862 = vxpose.xlu0.b32.cont [4/16] 0.0, 128
        %3863 = vxpose.xlu0.b32.cont [5/16] 0.0, 128
        %3864 = vxpose.xlu0.b32.cont [6/16] 0.0, 128
        %3865 = vxpose.xlu0.b32.cont [7/16] 0.0, 128
        %3866 = vxpose.xlu0.b32.cont [8/16] 0.0, 128
        %3867 = vxpose.xlu0.b32.cont [9/16] 0.0, 128
        %3868 = vxpose.xlu0.b32.cont [10/16] 0.0, 128
        %3869 = vxpose.xlu0.b32.cont [11/16] 0.0, 128
        %3870 = vxpose.xlu0.b32.cont [12/16] 0.0, 128
        %3871 = vxpose.xlu0.b32.cont [13/16] 0.0, 128
        %3872 = vxpose.xlu0.b32.cont [14/16] 0.0, 128
        %3873 = vxpose.xlu0.b32.cont [15/16] 0.0, 128
        %3874 = vxpose.xlu0.b32.end [16/16] 0.0, 128
        %v3875 = vpop.trf.xlu0
        %v3876 = vpop.trf.xlu0
        %v3877 = vpop.trf.xlu0
        %v3878 = vpop.trf.xlu0
        %v3879 = vpop.trf.xlu0
        %v3880 = vpop.trf.xlu0
        %v3881 = vpop.trf.xlu0
        %v3882 = vpop.trf.xlu0
        %v3883 = vpop.trf.xlu0
        %v3884 = vpop.trf.xlu0
        %v3885 = vpop.trf.xlu0
        %v3886 = vpop.trf.xlu0
        %v3887 = vpop.trf.xlu0
        %v3888 = vpop.trf.xlu0
        %v3889 = vpop.trf.xlu0
        %v3890 = vpop.trf.xlu0
        %3891 = vxpose.xlu0.b32.start [1/16] %v3815, 128
        %3892 = vxpose.xlu0.b32.cont [2/16] 0.0, 128
        %3893 = vxpose.xlu0.b32.cont [3/16] 0.0, 128
        %3894 = vxpose.xlu0.b32.cont [4/16] 0.0, 128
        %3895 = vxpose.xlu0.b32.cont [5/16] 0.0, 128
        %3896 = vxpose.xlu0.b32.cont [6/16] 0.0, 128
        %3897 = vxpose.xlu0.b32.cont [7/16] 0.0, 128
        %3898 = vxpose.xlu0.b32.cont [8/16] 0.0, 128
        %3899 = vxpose.xlu0.b32.cont [9/16] 0.0, 128
        %3900 = vxpose.xlu0.b32.cont [10/16] 0.0, 128
        %3901 = vxpose.xlu0.b32.cont [11/16] 0.0, 128
        %3902 = vxpose.xlu0.b32.cont [12/16] 0.0, 128
        %3903 = vxpose.xlu0.b32.cont [13/16] 0.0, 128
        %3904 = vxpose.xlu0.b32.cont [14/16] 0.0, 128
        %3905 = vxpose.xlu0.b32.cont [15/16] 0.0, 128
        %3906 = vxpose.xlu0.b32.end [16/16] 0.0, 128
        %v3907 = vpop.trf.xlu0
        %v3908 = vpop.trf.xlu0
        %v3909 = vpop.trf.xlu0
        %v3910 = vpop.trf.xlu0
        %v3911 = vpop.trf.xlu0
        %v3912 = vpop.trf.xlu0
        %v3913 = vpop.trf.xlu0
        %v3914 = vpop.trf.xlu0
        %v3915 = vpop.trf.xlu0
        %v3916 = vpop.trf.xlu0
        %v3917 = vpop.trf.xlu0
        %v3918 = vpop.trf.xlu0
        %v3919 = vpop.trf.xlu0
        %v3920 = vpop.trf.xlu0
        %v3921 = vpop.trf.xlu0
        %v3922 = vpop.trf.xlu0
        %3923 = vxpose.xlu0.b32.start [1/16] %v3817, 128
        %3924 = vxpose.xlu0.b32.cont [2/16] 0.0, 128
        %3925 = vxpose.xlu0.b32.cont [3/16] 0.0, 128
        %3926 = vxpose.xlu0.b32.cont [4/16] 0.0, 128
        %3927 = vxpose.xlu0.b32.cont [5/16] 0.0, 128
        %3928 = vxpose.xlu0.b32.cont [6/16] 0.0, 128
        %3929 = vxpose.xlu0.b32.cont [7/16] 0.0, 128
        %3930 = vxpose.xlu0.b32.cont [8/16] 0.0, 128
        %3931 = vxpose.xlu0.b32.cont [9/16] 0.0, 128
        %3932 = vxpose.xlu0.b32.cont [10/16] 0.0, 128
        %3933 = vxpose.xlu0.b32.cont [11/16] 0.0, 128
        %3934 = vxpose.xlu0.b32.cont [12/16] 0.0, 128
        %3935 = vxpose.xlu0.b32.cont [13/16] 0.0, 128
        %3936 = vxpose.xlu0.b32.cont [14/16] 0.0, 128
        %3937 = vxpose.xlu0.b32.cont [15/16] 0.0, 128
        %3938 = vxpose.xlu0.b32.end [16/16] 0.0, 128
        %v3939 = vpop.trf.xlu0
        %v3940 = vpop.trf.xlu0
        %v3941 = vpop.trf.xlu0
        %v3942 = vpop.trf.xlu0
        %v3943 = vpop.trf.xlu0
        %v3944 = vpop.trf.xlu0
        %v3945 = vpop.trf.xlu0
        %v3946 = vpop.trf.xlu0
        %v3947 = vpop.trf.xlu0
        %v3948 = vpop.trf.xlu0
        %v3949 = vpop.trf.xlu0
        %v3950 = vpop.trf.xlu0
        %v3951 = vpop.trf.xlu0
        %v3952 = vpop.trf.xlu0
        %v3953 = vpop.trf.xlu0
        %v3954 = vpop.trf.xlu0
        %3955 = vxpose.xlu0.b32.start [1/16] %v3819, 128
        %3956 = vxpose.xlu0.b32.cont [2/16] 0.0, 128
        %3957 = vxpose.xlu0.b32.cont [3/16] 0.0, 128
        %3958 = vxpose.xlu0.b32.cont [4/16] 0.0, 128
        %3959 = vxpose.xlu0.b32.cont [5/16] 0.0, 128
        %3960 = vxpose.xlu0.b32.cont [6/16] 0.0, 128
        %3961 = vxpose.xlu0.b32.cont [7/16] 0.0, 128
        %3962 = vxpose.xlu0.b32.cont [8/16] 0.0, 128
        %3963 = vxpose.xlu0.b32.cont [9/16] 0.0, 128
        %3964 = vxpose.xlu0.b32.cont [10/16] 0.0, 128
        %3965 = vxpose.xlu0.b32.cont [11/16] 0.0, 128
        %3966 = vxpose.xlu0.b32.cont [12/16] 0.0, 128
        %3967 = vxpose.xlu0.b32.cont [13/16] 0.0, 128
        %3968 = vxpose.xlu0.b32.cont [14/16] 0.0, 128
        %3969 = vxpose.xlu0.b32.cont [15/16] 0.0, 128
        %3970 = vxpose.xlu0.b32.end [16/16] 0.0, 128
        %v3971 = vpop.trf.xlu0
        %v3972 = vpop.trf.xlu0
        %v3973 = vpop.trf.xlu0
        %v3974 = vpop.trf.xlu0
        %v3975 = vpop.trf.xlu0
        %v3976 = vpop.trf.xlu0
        %v3977 = vpop.trf.xlu0
        %v3978 = vpop.trf.xlu0
        %v3979 = vpop.trf.xlu0
        %v3980 = vpop.trf.xlu0
        %v3981 = vpop.trf.xlu0
        %v3982 = vpop.trf.xlu0
        %v3983 = vpop.trf.xlu0
        %v3984 = vpop.trf.xlu0
        %v3985 = vpop.trf.xlu0
        %v3986 = vpop.trf.xlu0
        %3987 = vxpose.xlu0.b32.start [1/16] %v3821, 128
        %3988 = vxpose.xlu0.b32.cont [2/16] 0.0, 128
        %3989 = vxpose.xlu0.b32.cont [3/16] 0.0, 128
        %3990 = vxpose.xlu0.b32.cont [4/16] 0.0, 128
        %3991 = vxpose.xlu0.b32.cont [5/16] 0.0, 128
        %3992 = vxpose.xlu0.b32.cont [6/16] 0.0, 128
        %3993 = vxpose.xlu0.b32.cont [7/16] 0.0, 128
        %3994 = vxpose.xlu0.b32.cont [8/16] 0.0, 128
        %3995 = vxpose.xlu0.b32.cont [9/16] 0.0, 128
        %3996 = vxpose.xlu0.b32.cont [10/16] 0.0, 128
        %3997 = vxpose.xlu0.b32.cont [11/16] 0.0, 128
        %3998 = vxpose.xlu0.b32.cont [12/16] 0.0, 128
        %3999 = vxpose.xlu0.b32.cont [13/16] 0.0, 128
        %4000 = vxpose.xlu0.b32.cont [14/16] 0.0, 128
        %4001 = vxpose.xlu0.b32.cont [15/16] 0.0, 128
        %4002 = vxpose.xlu0.b32.end [16/16] 0.0, 128
        %v4003 = vpop.trf.xlu0
        %v4004 = vpop.trf.xlu0
        %v4005 = vpop.trf.xlu0
        %v4006 = vpop.trf.xlu0
        %v4007 = vpop.trf.xlu0
        %v4008 = vpop.trf.xlu0
        %v4009 = vpop.trf.xlu0
        %v4010 = vpop.trf.xlu0
        %v4011 = vpop.trf.xlu0
        %v4012 = vpop.trf.xlu0
        %v4013 = vpop.trf.xlu0
        %v4014 = vpop.trf.xlu0
        %v4015 = vpop.trf.xlu0
        %v4016 = vpop.trf.xlu0
        %v4017 = vpop.trf.xlu0
        %v4018 = vpop.trf.xlu0
        %4019 = vxpose.xlu0.b32.start [1/16] %v3823, 128
        %4020 = vxpose.xlu0.b32.cont [2/16] 0.0, 128
        %4021 = vxpose.xlu0.b32.cont [3/16] 0.0, 128
        %4022 = vxpose.xlu0.b32.cont [4/16] 0.0, 128
        %4023 = vxpose.xlu0.b32.cont [5/16] 0.0, 128
        %4024 = vxpose.xlu0.b32.cont [6/16] 0.0, 128
        %4025 = vxpose.xlu0.b32.cont [7/16] 0.0, 128
        %4026 = vxpose.xlu0.b32.cont [8/16] 0.0, 128
        %4027 = vxpose.xlu0.b32.cont [9/16] 0.0, 128
        %4028 = vxpose.xlu0.b32.cont [10/16] 0.0, 128
        %4029 = vxpose.xlu0.b32.cont [11/16] 0.0, 128
        %4030 = vxpose.xlu0.b32.cont [12/16] 0.0, 128
        %4031 = vxpose.xlu0.b32.cont [13/16] 0.0, 128
        %4032 = vxpose.xlu0.b32.cont [14/16] 0.0, 128
        %4033 = vxpose.xlu0.b32.cont [15/16] 0.0, 128
        %4034 = vxpose.xlu0.b32.end [16/16] 0.0, 128
        %v4035 = vpop.trf.xlu0
        %v4036 = vpop.trf.xlu0
        %v4037 = vpop.trf.xlu0
        %v4038 = vpop.trf.xlu0
        %v4039 = vpop.trf.xlu0
        %v4040 = vpop.trf.xlu0
        %v4041 = vpop.trf.xlu0
        %v4042 = vpop.trf.xlu0
        %v4043 = vpop.trf.xlu0
        %v4044 = vpop.trf.xlu0
        %v4045 = vpop.trf.xlu0
        %v4046 = vpop.trf.xlu0
        %v4047 = vpop.trf.xlu0
        %v4048 = vpop.trf.xlu0
        %v4049 = vpop.trf.xlu0
        %v4050 = vpop.trf.xlu0
        %4051 = vxpose.xlu0.b32.start [1/16] %v3825, 128
        %4052 = vxpose.xlu0.b32.cont [2/16] 0.0, 128
        %4053 = vxpose.xlu0.b32.cont [3/16] 0.0, 128
        %4054 = vxpose.xlu0.b32.cont [4/16] 0.0, 128
        %4055 = vxpose.xlu0.b32.cont [5/16] 0.0, 128
        %4056 = vxpose.xlu0.b32.cont [6/16] 0.0, 128
        %4057 = vxpose.xlu0.b32.cont [7/16] 0.0, 128
        %4058 = vxpose.xlu0.b32.cont [8/16] 0.0, 128
        %4059 = vxpose.xlu0.b32.cont [9/16] 0.0, 128
        %4060 = vxpose.xlu0.b32.cont [10/16] 0.0, 128
        %4061 = vxpose.xlu0.b32.cont [11/16] 0.0, 128
        %4062 = vxpose.xlu0.b32.cont [12/16] 0.0, 128
        %4063 = vxpose.xlu0.b32.cont [13/16] 0.0, 128
        %4064 = vxpose.xlu0.b32.cont [14/16] 0.0, 128
        %4065 = vxpose.xlu0.b32.cont [15/16] 0.0, 128
        %4066 = vxpose.xlu0.b32.end [16/16] 0.0, 128
        %v4067 = vpop.trf.xlu0
        %v4068 = vpop.trf.xlu0
        %v4069 = vpop.trf.xlu0
        %v4070 = vpop.trf.xlu0
        %v4071 = vpop.trf.xlu0
        %v4072 = vpop.trf.xlu0
        %v4073 = vpop.trf.xlu0
        %v4074 = vpop.trf.xlu0
        %v4075 = vpop.trf.xlu0
        %v4076 = vpop.trf.xlu0
        %v4077 = vpop.trf.xlu0
        %v4078 = vpop.trf.xlu0
        %v4079 = vpop.trf.xlu0
        %v4080 = vpop.trf.xlu0
        %v4081 = vpop.trf.xlu0
        %v4082 = vpop.trf.xlu0
        %v4083 = vadd.s32 %v851, 8
        %v4084 = vadd.s32 %v851, 16
        %v4085 = vadd.s32 %v851, 24
        %v4086 = vadd.s32 %v851, 32
        %v4087 = vadd.s32 %v851, 40
        %v4088 = vadd.s32 %v851, 48
        %v4089 = vadd.s32 %v851, 56
        %v4090 = vadd.s32 %v851, 64
        %v4091 = vadd.s32 %v851, 72
        %v4092 = vadd.s32 %v851, 80
        %v4093 = vadd.s32 %v851, 88
        %v4094 = vadd.s32 %v851, 96
        %v4095 = vadd.s32 %v851, 104
        %v4096 = vadd.s32 %v851, 112
        %v4097 = vadd.s32 %v851, 120
        %4099 = vset.pattern.permute.xlu0 0
        %4100 = vperm.xlu0 %4099, %v3843
        %v4101 = vpop.permute.xlu0 %4100
        %4104 = vset.pattern.permute.xlu0 0
        %4105 = vperm.xlu0 %4104, %v3844
        %v4106 = vpop.permute.xlu0 %4105
        %4109 = vset.pattern.permute.xlu0 0
        %4110 = vperm.xlu0 %4109, %v3845
        %v4111 = vpop.permute.xlu0 %4110
        %4114 = vset.pattern.permute.xlu0 0
        %4115 = vperm.xlu0 %4114, %v3846
        %v4116 = vpop.permute.xlu0 %4115
        %4119 = vset.pattern.permute.xlu0 0
        %4120 = vperm.xlu0 %4119, %v3847
        %v4121 = vpop.permute.xlu0 %4120
        %4124 = vset.pattern.permute.xlu0 0
        %4125 = vperm.xlu0 %4124, %v3848
        %v4126 = vpop.permute.xlu0 %4125
        %4129 = vset.pattern.permute.xlu0 0
        %4130 = vperm.xlu0 %4129, %v3849
        %v4131 = vpop.permute.xlu0 %4130
        %4134 = vset.pattern.permute.xlu0 0
        %4135 = vperm.xlu0 %4134, %v3850
        %v4136 = vpop.permute.xlu0 %4135
        %4139 = vset.pattern.permute.xlu0 0
        %4140 = vperm.xlu0 %4139, %v3851
        %v4141 = vpop.permute.xlu0 %4140
        %4144 = vset.pattern.permute.xlu0 0
        %4145 = vperm.xlu0 %4144, %v3852
        %v4146 = vpop.permute.xlu0 %4145
        %4149 = vset.pattern.permute.xlu0 0
        %4150 = vperm.xlu0 %4149, %v3853
        %v4151 = vpop.permute.xlu0 %4150
        %4154 = vset.pattern.permute.xlu0 0
        %4155 = vperm.xlu0 %4154, %v3854
        %v4156 = vpop.permute.xlu0 %4155
        %4159 = vset.pattern.permute.xlu0 0
        %4160 = vperm.xlu0 %4159, %v3855
        %v4161 = vpop.permute.xlu0 %4160
        %4164 = vset.pattern.permute.xlu0 0
        %4165 = vperm.xlu0 %4164, %v3856
        %v4166 = vpop.permute.xlu0 %4165
        %4169 = vset.pattern.permute.xlu0 0
        %4170 = vperm.xlu0 %4169, %v3857
        %v4171 = vpop.permute.xlu0 %4170
        %4174 = vset.pattern.permute.xlu0 0
        %4175 = vperm.xlu0 %4174, %v3858
        %v4176 = vpop.permute.xlu0 %4175
        %4179 = vset.pattern.permute.xlu0 0
        %4180 = vperm.xlu0 %4179, %v3875
        %v4181 = vpop.permute.xlu0 %4180
        %4184 = vset.pattern.permute.xlu0 0
        %4185 = vperm.xlu0 %4184, %v3876
        %v4186 = vpop.permute.xlu0 %4185
        %4189 = vset.pattern.permute.xlu0 0
        %4190 = vperm.xlu0 %4189, %v3877
        %v4191 = vpop.permute.xlu0 %4190
        %4194 = vset.pattern.permute.xlu0 0
        %4195 = vperm.xlu0 %4194, %v3878
        %v4196 = vpop.permute.xlu0 %4195
        %4199 = vset.pattern.permute.xlu0 0
        %4200 = vperm.xlu0 %4199, %v3879
        %v4201 = vpop.permute.xlu0 %4200
        %4204 = vset.pattern.permute.xlu0 0
        %4205 = vperm.xlu0 %4204, %v3880
        %v4206 = vpop.permute.xlu0 %4205
        %4209 = vset.pattern.permute.xlu0 0
        %4210 = vperm.xlu0 %4209, %v3881
        %v4211 = vpop.permute.xlu0 %4210
        %4214 = vset.pattern.permute.xlu0 0
        %4215 = vperm.xlu0 %4214, %v3882
        %v4216 = vpop.permute.xlu0 %4215
        %4219 = vset.pattern.permute.xlu0 0
        %4220 = vperm.xlu0 %4219, %v3883
        %v4221 = vpop.permute.xlu0 %4220
        %4224 = vset.pattern.permute.xlu0 0
        %4225 = vperm.xlu0 %4224, %v3884
        %v4226 = vpop.permute.xlu0 %4225
        %4229 = vset.pattern.permute.xlu0 0
        %4230 = vperm.xlu0 %4229, %v3885
        %v4231 = vpop.permute.xlu0 %4230
        %4234 = vset.pattern.permute.xlu0 0
        %4235 = vperm.xlu0 %4234, %v3886
        %v4236 = vpop.permute.xlu0 %4235
        %4239 = vset.pattern.permute.xlu0 0
        %4240 = vperm.xlu0 %4239, %v3887
        %v4241 = vpop.permute.xlu0 %4240
        %4244 = vset.pattern.permute.xlu0 0
        %4245 = vperm.xlu0 %4244, %v3888
        %v4246 = vpop.permute.xlu0 %4245
        %4249 = vset.pattern.permute.xlu0 0
        %4250 = vperm.xlu0 %4249, %v3889
        %v4251 = vpop.permute.xlu0 %4250
        %4254 = vset.pattern.permute.xlu0 0
        %4255 = vperm.xlu0 %4254, %v3890
        %v4256 = vpop.permute.xlu0 %4255
        %4259 = vset.pattern.permute.xlu0 0
        %4260 = vperm.xlu0 %4259, %v3907
        %v4261 = vpop.permute.xlu0 %4260
        %4264 = vset.pattern.permute.xlu0 0
        %4265 = vperm.xlu0 %4264, %v3908
        %v4266 = vpop.permute.xlu0 %4265
        %4269 = vset.pattern.permute.xlu0 0
        %4270 = vperm.xlu0 %4269, %v3909
        %v4271 = vpop.permute.xlu0 %4270
        %4274 = vset.pattern.permute.xlu0 0
        %4275 = vperm.xlu0 %4274, %v3910
        %v4276 = vpop.permute.xlu0 %4275
        %4279 = vset.pattern.permute.xlu0 0
        %4280 = vperm.xlu0 %4279, %v3911
        %v4281 = vpop.permute.xlu0 %4280
        %4284 = vset.pattern.permute.xlu0 0
        %4285 = vperm.xlu0 %4284, %v3912
        %v4286 = vpop.permute.xlu0 %4285
        %4289 = vset.pattern.permute.xlu0 0
        %4290 = vperm.xlu0 %4289, %v3913
        %v4291 = vpop.permute.xlu0 %4290
        %4294 = vset.pattern.permute.xlu0 0
        %4295 = vperm.xlu0 %4294, %v3914
        %v4296 = vpop.permute.xlu0 %4295
        %4299 = vset.pattern.permute.xlu0 0
        %4300 = vperm.xlu0 %4299, %v3915
        %v4301 = vpop.permute.xlu0 %4300
        %4304 = vset.pattern.permute.xlu0 0
        %4305 = vperm.xlu0 %4304, %v3916
        %v4306 = vpop.permute.xlu0 %4305
        %4309 = vset.pattern.permute.xlu0 0
        %4310 = vperm.xlu0 %4309, %v3917
        %v4311 = vpop.permute.xlu0 %4310
        %4314 = vset.pattern.permute.xlu0 0
        %4315 = vperm.xlu0 %4314, %v3918
        %v4316 = vpop.permute.xlu0 %4315
        %4319 = vset.pattern.permute.xlu0 0
        %4320 = vperm.xlu0 %4319, %v3919
        %v4321 = vpop.permute.xlu0 %4320
        %4324 = vset.pattern.permute.xlu0 0
        %4325 = vperm.xlu0 %4324, %v3920
        %v4326 = vpop.permute.xlu0 %4325
        %4329 = vset.pattern.permute.xlu0 0
        %4330 = vperm.xlu0 %4329, %v3921
        %v4331 = vpop.permute.xlu0 %4330
        %4334 = vset.pattern.permute.xlu0 0
        %4335 = vperm.xlu0 %4334, %v3922
        %v4336 = vpop.permute.xlu0 %4335
        %4339 = vset.pattern.permute.xlu0 0
        %4340 = vperm.xlu0 %4339, %v3939
        %v4341 = vpop.permute.xlu0 %4340
        %4344 = vset.pattern.permute.xlu0 0
        %4345 = vperm.xlu0 %4344, %v3940
        %v4346 = vpop.permute.xlu0 %4345
        %4349 = vset.pattern.permute.xlu0 0
        %4350 = vperm.xlu0 %4349, %v3941
        %v4351 = vpop.permute.xlu0 %4350
        %4354 = vset.pattern.permute.xlu0 0
        %4355 = vperm.xlu0 %4354, %v3942
        %v4356 = vpop.permute.xlu0 %4355
        %4359 = vset.pattern.permute.xlu0 0
        %4360 = vperm.xlu0 %4359, %v3943
        %v4361 = vpop.permute.xlu0 %4360
        %4364 = vset.pattern.permute.xlu0 0
        %4365 = vperm.xlu0 %4364, %v3944
        %v4366 = vpop.permute.xlu0 %4365
        %4369 = vset.pattern.permute.xlu0 0
        %4370 = vperm.xlu0 %4369, %v3945
        %v4371 = vpop.permute.xlu0 %4370
        %4374 = vset.pattern.permute.xlu0 0
        %4375 = vperm.xlu0 %4374, %v3946
        %v4376 = vpop.permute.xlu0 %4375
        %4379 = vset.pattern.permute.xlu0 0
        %4380 = vperm.xlu0 %4379, %v3947
        %v4381 = vpop.permute.xlu0 %4380
        %4384 = vset.pattern.permute.xlu0 0
        %4385 = vperm.xlu0 %4384, %v3948
        %v4386 = vpop.permute.xlu0 %4385
        %4389 = vset.pattern.permute.xlu0 0
        %4390 = vperm.xlu0 %4389, %v3949
        %v4391 = vpop.permute.xlu0 %4390
        %4394 = vset.pattern.permute.xlu0 0
        %4395 = vperm.xlu0 %4394, %v3950
        %v4396 = vpop.permute.xlu0 %4395
        %4399 = vset.pattern.permute.xlu0 0
        %4400 = vperm.xlu0 %4399, %v3951
        %v4401 = vpop.permute.xlu0 %4400
        %4404 = vset.pattern.permute.xlu0 0
        %4405 = vperm.xlu0 %4404, %v3952
        %v4406 = vpop.permute.xlu0 %4405
        %4409 = vset.pattern.permute.xlu0 0
        %4410 = vperm.xlu0 %4409, %v3953
        %v4411 = vpop.permute.xlu0 %4410
        %4414 = vset.pattern.permute.xlu0 0
        %4415 = vperm.xlu0 %4414, %v3954
        %v4416 = vpop.permute.xlu0 %4415
        %4419 = vset.pattern.permute.xlu0 0
        %4420 = vperm.xlu0 %4419, %v3971
        %v4421 = vpop.permute.xlu0 %4420
        %4424 = vset.pattern.permute.xlu0 0
        %4425 = vperm.xlu0 %4424, %v3972
        %v4426 = vpop.permute.xlu0 %4425
        %4429 = vset.pattern.permute.xlu0 0
        %4430 = vperm.xlu0 %4429, %v3973
        %v4431 = vpop.permute.xlu0 %4430
        %4434 = vset.pattern.permute.xlu0 0
        %4435 = vperm.xlu0 %4434, %v3974
        %v4436 = vpop.permute.xlu0 %4435
        %4439 = vset.pattern.permute.xlu0 0
        %4440 = vperm.xlu0 %4439, %v3975
        %v4441 = vpop.permute.xlu0 %4440
        %4444 = vset.pattern.permute.xlu0 0
        %4445 = vperm.xlu0 %4444, %v3976
        %v4446 = vpop.permute.xlu0 %4445
        %4449 = vset.pattern.permute.xlu0 0
        %4450 = vperm.xlu0 %4449, %v3977
        %v4451 = vpop.permute.xlu0 %4450
        %4454 = vset.pattern.permute.xlu0 0
        %4455 = vperm.xlu0 %4454, %v3978
        %v4456 = vpop.permute.xlu0 %4455
        %4459 = vset.pattern.permute.xlu0 0
        %4460 = vperm.xlu0 %4459, %v3979
        %v4461 = vpop.permute.xlu0 %4460
        %4464 = vset.pattern.permute.xlu0 0
        %4465 = vperm.xlu0 %4464, %v3980
        %v4466 = vpop.permute.xlu0 %4465
        %4469 = vset.pattern.permute.xlu0 0
        %4470 = vperm.xlu0 %4469, %v3981
        %v4471 = vpop.permute.xlu0 %4470
        %4474 = vset.pattern.permute.xlu0 0
        %4475 = vperm.xlu0 %4474, %v3982
        %v4476 = vpop.permute.xlu0 %4475
        %4479 = vset.pattern.permute.xlu0 0
        %4480 = vperm.xlu0 %4479, %v3983
        %v4481 = vpop.permute.xlu0 %4480
        %4484 = vset.pattern.permute.xlu0 0
        %4485 = vperm.xlu0 %4484, %v3984
        %v4486 = vpop.permute.xlu0 %4485
        %4489 = vset.pattern.permute.xlu0 0
        %4490 = vperm.xlu0 %4489, %v3985
        %v4491 = vpop.permute.xlu0 %4490
        %4494 = vset.pattern.permute.xlu0 0
        %4495 = vperm.xlu0 %4494, %v3986
        %v4496 = vpop.permute.xlu0 %4495
        %4499 = vset.pattern.permute.xlu0 0
        %4500 = vperm.xlu0 %4499, %v4003
        %v4501 = vpop.permute.xlu0 %4500
        %4504 = vset.pattern.permute.xlu0 0
        %4505 = vperm.xlu0 %4504, %v4004
        %v4506 = vpop.permute.xlu0 %4505
        %4509 = vset.pattern.permute.xlu0 0
        %4510 = vperm.xlu0 %4509, %v4005
        %v4511 = vpop.permute.xlu0 %4510
        %4514 = vset.pattern.permute.xlu0 0
        %4515 = vperm.xlu0 %4514, %v4006
        %v4516 = vpop.permute.xlu0 %4515
        %4519 = vset.pattern.permute.xlu0 0
        %4520 = vperm.xlu0 %4519, %v4007
        %v4521 = vpop.permute.xlu0 %4520
        %4524 = vset.pattern.permute.xlu0 0
        %4525 = vperm.xlu0 %4524, %v4008
        %v4526 = vpop.permute.xlu0 %4525
        %4529 = vset.pattern.permute.xlu0 0
        %4530 = vperm.xlu0 %4529, %v4009
        %v4531 = vpop.permute.xlu0 %4530
        %4534 = vset.pattern.permute.xlu0 0
        %4535 = vperm.xlu0 %4534, %v4010
        %v4536 = vpop.permute.xlu0 %4535
        %4539 = vset.pattern.permute.xlu0 0
        %4540 = vperm.xlu0 %4539, %v4011
        %v4541 = vpop.permute.xlu0 %4540
        %4544 = vset.pattern.permute.xlu0 0
        %4545 = vperm.xlu0 %4544, %v4012
        %v4546 = vpop.permute.xlu0 %4545
        %4549 = vset.pattern.permute.xlu0 0
        %4550 = vperm.xlu0 %4549, %v4013
        %v4551 = vpop.permute.xlu0 %4550
        %4554 = vset.pattern.permute.xlu0 0
        %4555 = vperm.xlu0 %4554, %v4014
        %v4556 = vpop.permute.xlu0 %4555
        %4559 = vset.pattern.permute.xlu0 0
        %4560 = vperm.xlu0 %4559, %v4015
        %v4561 = vpop.permute.xlu0 %4560
        %4564 = vset.pattern.permute.xlu0 0
        %4565 = vperm.xlu0 %4564, %v4016
        %v4566 = vpop.permute.xlu0 %4565
        %4569 = vset.pattern.permute.xlu0 0
        %4570 = vperm.xlu0 %4569, %v4017
        %v4571 = vpop.permute.xlu0 %4570
        %4574 = vset.pattern.permute.xlu0 0
        %4575 = vperm.xlu0 %4574, %v4018
        %v4576 = vpop.permute.xlu0 %4575
        %4579 = vset.pattern.permute.xlu0 0
        %4580 = vperm.xlu0 %4579, %v4035
        %v4581 = vpop.permute.xlu0 %4580
        %4584 = vset.pattern.permute.xlu0 0
        %4585 = vperm.xlu0 %4584, %v4036
        %v4586 = vpop.permute.xlu0 %4585
        %4589 = vset.pattern.permute.xlu0 0
        %4590 = vperm.xlu0 %4589, %v4037
        %v4591 = vpop.permute.xlu0 %4590
        %4594 = vset.pattern.permute.xlu0 0
        %4595 = vperm.xlu0 %4594, %v4038
        %v4596 = vpop.permute.xlu0 %4595
        %4599 = vset.pattern.permute.xlu0 0
        %4600 = vperm.xlu0 %4599, %v4039
        %v4601 = vpop.permute.xlu0 %4600
        %4604 = vset.pattern.permute.xlu0 0
        %4605 = vperm.xlu0 %4604, %v4040
        %v4606 = vpop.permute.xlu0 %4605
        %4609 = vset.pattern.permute.xlu0 0
        %4610 = vperm.xlu0 %4609, %v4041
        %v4611 = vpop.permute.xlu0 %4610
        %4614 = vset.pattern.permute.xlu0 0
        %4615 = vperm.xlu0 %4614, %v4042
        %v4616 = vpop.permute.xlu0 %4615
        %4619 = vset.pattern.permute.xlu0 0
        %4620 = vperm.xlu0 %4619, %v4043
        %v4621 = vpop.permute.xlu0 %4620
        %4624 = vset.pattern.permute.xlu0 0
        %4625 = vperm.xlu0 %4624, %v4044
        %v4626 = vpop.permute.xlu0 %4625
        %4629 = vset.pattern.permute.xlu0 0
        %4630 = vperm.xlu0 %4629, %v4045
        %v4631 = vpop.permute.xlu0 %4630
        %4634 = vset.pattern.permute.xlu0 0
        %4635 = vperm.xlu0 %4634, %v4046
        %v4636 = vpop.permute.xlu0 %4635
        %4639 = vset.pattern.permute.xlu0 0
        %4640 = vperm.xlu0 %4639, %v4047
        %v4641 = vpop.permute.xlu0 %4640
        %4644 = vset.pattern.permute.xlu0 0
        %4645 = vperm.xlu0 %4644, %v4048
        %v4646 = vpop.permute.xlu0 %4645
        %4649 = vset.pattern.permute.xlu0 0
        %4650 = vperm.xlu0 %4649, %v4049
        %v4651 = vpop.permute.xlu0 %4650
        %4654 = vset.pattern.permute.xlu0 0
        %4655 = vperm.xlu0 %4654, %v4050
        %v4656 = vpop.permute.xlu0 %4655
        %4659 = vset.pattern.permute.xlu0 0
        %4660 = vperm.xlu0 %4659, %v4067
        %v4661 = vpop.permute.xlu0 %4660
        %4664 = vset.pattern.permute.xlu0 0
        %4665 = vperm.xlu0 %4664, %v4068
        %v4666 = vpop.permute.xlu0 %4665
        %4669 = vset.pattern.permute.xlu0 0
        %4670 = vperm.xlu0 %4669, %v4069
        %v4671 = vpop.permute.xlu0 %4670
        %4674 = vset.pattern.permute.xlu0 0
        %4675 = vperm.xlu0 %4674, %v4070
        %v4676 = vpop.permute.xlu0 %4675
        %4679 = vset.pattern.permute.xlu0 0
        %4680 = vperm.xlu0 %4679, %v4071
        %v4681 = vpop.permute.xlu0 %4680
        %4684 = vset.pattern.permute.xlu0 0
        %4685 = vperm.xlu0 %4684, %v4072
        %v4686 = vpop.permute.xlu0 %4685
        %4689 = vset.pattern.permute.xlu0 0
        %4690 = vperm.xlu0 %4689, %v4073
        %v4691 = vpop.permute.xlu0 %4690
        %4694 = vset.pattern.permute.xlu0 0
        %4695 = vperm.xlu0 %4694, %v4074
        %v4696 = vpop.permute.xlu0 %4695
        %4699 = vset.pattern.permute.xlu0 0
        %4700 = vperm.xlu0 %4699, %v4075
        %v4701 = vpop.permute.xlu0 %4700
        %4704 = vset.pattern.permute.xlu0 0
        %4705 = vperm.xlu0 %4704, %v4076
        %v4706 = vpop.permute.xlu0 %4705
        %4709 = vset.pattern.permute.xlu0 0
        %4710 = vperm.xlu0 %4709, %v4077
        %v4711 = vpop.permute.xlu0 %4710
        %4714 = vset.pattern.permute.xlu0 0
        %4715 = vperm.xlu0 %4714, %v4078
        %v4716 = vpop.permute.xlu0 %4715
        %4719 = vset.pattern.permute.xlu0 0
        %4720 = vperm.xlu0 %4719, %v4079
        %v4721 = vpop.permute.xlu0 %4720
        %4724 = vset.pattern.permute.xlu0 0
        %4725 = vperm.xlu0 %4724, %v4080
        %v4726 = vpop.permute.xlu0 %4725
        %4729 = vset.pattern.permute.xlu0 0
        %4730 = vperm.xlu0 %4729, %v4081
        %v4731 = vpop.permute.xlu0 %4730
        %4734 = vset.pattern.permute.xlu0 0
        %4735 = vperm.xlu0 %4734, %v4082
        %v4736 = vpop.permute.xlu0 %4735
        %vm4738 = vcmp.gt.f32.partialorder %v4101, %v3811
        %vm4739 = vcmp.gt.f32.partialorder %v4101, %v3812
        %vm4740 = vcmp.gt.f32.partialorder %v4106, %v3811
        %vm4741 = vcmp.gt.f32.partialorder %v4106, %v3812
        %vm4742 = vcmp.gt.f32.partialorder %v4111, %v3811
        %vm4743 = vcmp.gt.f32.partialorder %v4111, %v3812
        %vm4744 = vcmp.gt.f32.partialorder %v4116, %v3811
        %vm4745 = vcmp.gt.f32.partialorder %v4116, %v3812
        %vm4746 = vcmp.gt.f32.partialorder %v4121, %v3811
        %vm4747 = vcmp.gt.f32.partialorder %v4121, %v3812
        %vm4748 = vcmp.gt.f32.partialorder %v4126, %v3811
        %vm4749 = vcmp.gt.f32.partialorder %v4126, %v3812
        %vm4750 = vcmp.gt.f32.partialorder %v4131, %v3811
        %vm4751 = vcmp.gt.f32.partialorder %v4131, %v3812
        %vm4752 = vcmp.gt.f32.partialorder %v4136, %v3811
        %vm4753 = vcmp.gt.f32.partialorder %v4136, %v3812
        %vm4754 = vcmp.gt.f32.partialorder %v4141, %v3811
        %vm4755 = vcmp.gt.f32.partialorder %v4141, %v3812
        %vm4756 = vcmp.gt.f32.partialorder %v4146, %v3811
        %vm4757 = vcmp.gt.f32.partialorder %v4146, %v3812
        %vm4758 = vcmp.gt.f32.partialorder %v4151, %v3811
        %vm4759 = vcmp.gt.f32.partialorder %v4151, %v3812
        %vm4760 = vcmp.gt.f32.partialorder %v4156, %v3811
        %vm4761 = vcmp.gt.f32.partialorder %v4156, %v3812
        %vm4762 = vcmp.gt.f32.partialorder %v4161, %v3811
        %vm4763 = vcmp.gt.f32.partialorder %v4161, %v3812
        %vm4764 = vcmp.gt.f32.partialorder %v4166, %v3811
        %vm4765 = vcmp.gt.f32.partialorder %v4166, %v3812
        %vm4766 = vcmp.gt.f32.partialorder %v4171, %v3811
        %vm4767 = vcmp.gt.f32.partialorder %v4171, %v3812
        %vm4768 = vcmp.gt.f32.partialorder %v4176, %v3811
        %vm4769 = vcmp.gt.f32.partialorder %v4176, %v3812
        %vm4770 = vcmp.gt.f32.partialorder %v4181, %v3813
        %vm4771 = vcmp.gt.f32.partialorder %v4181, %v3814
        %vm4772 = vcmp.gt.f32.partialorder %v4186, %v3813
        %vm4773 = vcmp.gt.f32.partialorder %v4186, %v3814
        %vm4774 = vcmp.gt.f32.partialorder %v4191, %v3813
        %vm4775 = vcmp.gt.f32.partialorder %v4191, %v3814
        %vm4776 = vcmp.gt.f32.partialorder %v4196, %v3813
        %vm4777 = vcmp.gt.f32.partialorder %v4196, %v3814
        %vm4778 = vcmp.gt.f32.partialorder %v4201, %v3813
        %vm4779 = vcmp.gt.f32.partialorder %v4201, %v3814
        %vm4780 = vcmp.gt.f32.partialorder %v4206, %v3813
        %vm4781 = vcmp.gt.f32.partialorder %v4206, %v3814
        %vm4782 = vcmp.gt.f32.partialorder %v4211, %v3813
        %vm4783 = vcmp.gt.f32.partialorder %v4211, %v3814
        %vm4784 = vcmp.gt.f32.partialorder %v4216, %v3813
        %vm4785 = vcmp.gt.f32.partialorder %v4216, %v3814
        %vm4786 = vcmp.gt.f32.partialorder %v4221, %v3813
        %vm4787 = vcmp.gt.f32.partialorder %v4221, %v3814
        %vm4788 = vcmp.gt.f32.partialorder %v4226, %v3813
        %vm4789 = vcmp.gt.f32.partialorder %v4226, %v3814
        %vm4790 = vcmp.gt.f32.partialorder %v4231, %v3813
        %vm4791 = vcmp.gt.f32.partialorder %v4231, %v3814
        %vm4792 = vcmp.gt.f32.partialorder %v4236, %v3813
        %vm4793 = vcmp.gt.f32.partialorder %v4236, %v3814
        %vm4794 = vcmp.gt.f32.partialorder %v4241, %v3813
        %vm4795 = vcmp.gt.f32.partialorder %v4241, %v3814
        %vm4796 = vcmp.gt.f32.partialorder %v4246, %v3813
        %vm4797 = vcmp.gt.f32.partialorder %v4246, %v3814
        %vm4798 = vcmp.gt.f32.partialorder %v4251, %v3813
        %vm4799 = vcmp.gt.f32.partialorder %v4251, %v3814
        %vm4800 = vcmp.gt.f32.partialorder %v4256, %v3813
        %vm4801 = vcmp.gt.f32.partialorder %v4256, %v3814
        %vm4802 = vcmp.gt.f32.partialorder %v4261, %v3815
        %vm4803 = vcmp.gt.f32.partialorder %v4261, %v3816
        %vm4804 = vcmp.gt.f32.partialorder %v4266, %v3815
        %vm4805 = vcmp.gt.f32.partialorder %v4266, %v3816
        %vm4806 = vcmp.gt.f32.partialorder %v4271, %v3815
        %vm4807 = vcmp.gt.f32.partialorder %v4271, %v3816
        %vm4808 = vcmp.gt.f32.partialorder %v4276, %v3815
        %vm4809 = vcmp.gt.f32.partialorder %v4276, %v3816
        %vm4810 = vcmp.gt.f32.partialorder %v4281, %v3815
        %vm4811 = vcmp.gt.f32.partialorder %v4281, %v3816
        %vm4812 = vcmp.gt.f32.partialorder %v4286, %v3815
        %vm4813 = vcmp.gt.f32.partialorder %v4286, %v3816
        %vm4814 = vcmp.gt.f32.partialorder %v4291, %v3815
        %vm4815 = vcmp.gt.f32.partialorder %v4291, %v3816
        %vm4816 = vcmp.gt.f32.partialorder %v4296, %v3815
        %vm4817 = vcmp.gt.f32.partialorder %v4296, %v3816
        %vm4818 = vcmp.gt.f32.partialorder %v4301, %v3815
        %vm4819 = vcmp.gt.f32.partialorder %v4301, %v3816
        %vm4820 = vcmp.gt.f32.partialorder %v4306, %v3815
        %vm4821 = vcmp.gt.f32.partialorder %v4306, %v3816
        %vm4822 = vcmp.gt.f32.partialorder %v4311, %v3815
        %vm4823 = vcmp.gt.f32.partialorder %v4311, %v3816
        %vm4824 = vcmp.gt.f32.partialorder %v4316, %v3815
        %vm4825 = vcmp.gt.f32.partialorder %v4316, %v3816
        %vm4826 = vcmp.gt.f32.partialorder %v4321, %v3815
        %vm4827 = vcmp.gt.f32.partialorder %v4321, %v3816
        %vm4828 = vcmp.gt.f32.partialorder %v4326, %v3815
        %vm4829 = vcmp.gt.f32.partialorder %v4326, %v3816
        %vm4830 = vcmp.gt.f32.partialorder %v4331, %v3815
        %vm4831 = vcmp.gt.f32.partialorder %v4331, %v3816
        %vm4832 = vcmp.gt.f32.partialorder %v4336, %v3815
        %vm4833 = vcmp.gt.f32.partialorder %v4336, %v3816
        %vm4834 = vcmp.gt.f32.partialorder %v4341, %v3817
        %vm4835 = vcmp.gt.f32.partialorder %v4341, %v3818
        %vm4836 = vcmp.gt.f32.partialorder %v4346, %v3817
        %vm4837 = vcmp.gt.f32.partialorder %v4346, %v3818
        %vm4838 = vcmp.gt.f32.partialorder %v4351, %v3817
        %vm4839 = vcmp.gt.f32.partialorder %v4351, %v3818
        %vm4840 = vcmp.gt.f32.partialorder %v4356, %v3817
        %vm4841 = vcmp.gt.f32.partialorder %v4356, %v3818
        %vm4842 = vcmp.gt.f32.partialorder %v4361, %v3817
        %vm4843 = vcmp.gt.f32.partialorder %v4361, %v3818
        %vm4844 = vcmp.gt.f32.partialorder %v4366, %v3817
        %vm4845 = vcmp.gt.f32.partialorder %v4366, %v3818
        %vm4846 = vcmp.gt.f32.partialorder %v4371, %v3817
        %vm4847 = vcmp.gt.f32.partialorder %v4371, %v3818
        %vm4848 = vcmp.gt.f32.partialorder %v4376, %v3817
        %vm4849 = vcmp.gt.f32.partialorder %v4376, %v3818
        %vm4850 = vcmp.gt.f32.partialorder %v4381, %v3817
        %vm4851 = vcmp.gt.f32.partialorder %v4381, %v3818
        %vm4852 = vcmp.gt.f32.partialorder %v4386, %v3817
        %vm4853 = vcmp.gt.f32.partialorder %v4386, %v3818
        %vm4854 = vcmp.gt.f32.partialorder %v4391, %v3817
        %vm4855 = vcmp.gt.f32.partialorder %v4391, %v3818
        %vm4856 = vcmp.gt.f32.partialorder %v4396, %v3817
        %vm4857 = vcmp.gt.f32.partialorder %v4396, %v3818
        %vm4858 = vcmp.gt.f32.partialorder %v4401, %v3817
        %vm4859 = vcmp.gt.f32.partialorder %v4401, %v3818
        %vm4860 = vcmp.gt.f32.partialorder %v4406, %v3817
        %vm4861 = vcmp.gt.f32.partialorder %v4406, %v3818
        %vm4862 = vcmp.gt.f32.partialorder %v4411, %v3817
        %vm4863 = vcmp.gt.f32.partialorder %v4411, %v3818
        %vm4864 = vcmp.gt.f32.partialorder %v4416, %v3817
        %vm4865 = vcmp.gt.f32.partialorder %v4416, %v3818
        %vm4866 = vcmp.gt.f32.partialorder %v4421, %v3819
        %vm4867 = vcmp.gt.f32.partialorder %v4421, %v3820
        %vm4868 = vcmp.gt.f32.partialorder %v4426, %v3819
        %vm4869 = vcmp.gt.f32.partialorder %v4426, %v3820
        %vm4870 = vcmp.gt.f32.partialorder %v4431, %v3819
        %vm4871 = vcmp.gt.f32.partialorder %v4431, %v3820
        %vm4872 = vcmp.gt.f32.partialorder %v4436, %v3819
        %vm4873 = vcmp.gt.f32.partialorder %v4436, %v3820
        %vm4874 = vcmp.gt.f32.partialorder %v4441, %v3819
        %vm4875 = vcmp.gt.f32.partialorder %v4441, %v3820
        %vm4876 = vcmp.gt.f32.partialorder %v4446, %v3819
        %vm4877 = vcmp.gt.f32.partialorder %v4446, %v3820
        %vm4878 = vcmp.gt.f32.partialorder %v4451, %v3819
        %vm4879 = vcmp.gt.f32.partialorder %v4451, %v3820
        %vm4880 = vcmp.gt.f32.partialorder %v4456, %v3819
        %vm4881 = vcmp.gt.f32.partialorder %v4456, %v3820
        %vm4882 = vcmp.gt.f32.partialorder %v4461, %v3819
        %vm4883 = vcmp.gt.f32.partialorder %v4461, %v3820
        %vm4884 = vcmp.gt.f32.partialorder %v4466, %v3819
        %vm4885 = vcmp.gt.f32.partialorder %v4466, %v3820
        %vm4886 = vcmp.gt.f32.partialorder %v4471, %v3819
        %vm4887 = vcmp.gt.f32.partialorder %v4471, %v3820
        %vm4888 = vcmp.gt.f32.partialorder %v4476, %v3819
        %vm4889 = vcmp.gt.f32.partialorder %v4476, %v3820
        %vm4890 = vcmp.gt.f32.partialorder %v4481, %v3819
        %vm4891 = vcmp.gt.f32.partialorder %v4481, %v3820
        %vm4892 = vcmp.gt.f32.partialorder %v4486, %v3819
        %vm4893 = vcmp.gt.f32.partialorder %v4486, %v3820
        %vm4894 = vcmp.gt.f32.partialorder %v4491, %v3819
        %vm4895 = vcmp.gt.f32.partialorder %v4491, %v3820
        %vm4896 = vcmp.gt.f32.partialorder %v4496, %v3819
        %vm4897 = vcmp.gt.f32.partialorder %v4496, %v3820
        %vm4898 = vcmp.gt.f32.partialorder %v4501, %v3821
        %vm4899 = vcmp.gt.f32.partialorder %v4501, %v3822
        %vm4900 = vcmp.gt.f32.partialorder %v4506, %v3821
        %vm4901 = vcmp.gt.f32.partialorder %v4506, %v3822
        %vm4902 = vcmp.gt.f32.partialorder %v4511, %v3821
        %vm4903 = vcmp.gt.f32.partialorder %v4511, %v3822
        %vm4904 = vcmp.gt.f32.partialorder %v4516, %v3821
        %vm4905 = vcmp.gt.f32.partialorder %v4516, %v3822
        %vm4906 = vcmp.gt.f32.partialorder %v4521, %v3821
        %vm4907 = vcmp.gt.f32.partialorder %v4521, %v3822
        %vm4908 = vcmp.gt.f32.partialorder %v4526, %v3821
        %vm4909 = vcmp.gt.f32.partialorder %v4526, %v3822
        %vm4910 = vcmp.gt.f32.partialorder %v4531, %v3821
        %vm4911 = vcmp.gt.f32.partialorder %v4531, %v3822
        %vm4912 = vcmp.gt.f32.partialorder %v4536, %v3821
        %vm4913 = vcmp.gt.f32.partialorder %v4536, %v3822
        %vm4914 = vcmp.gt.f32.partialorder %v4541, %v3821
        %vm4915 = vcmp.gt.f32.partialorder %v4541, %v3822
        %vm4916 = vcmp.gt.f32.partialorder %v4546, %v3821
        %vm4917 = vcmp.gt.f32.partialorder %v4546, %v3822
        %vm4918 = vcmp.gt.f32.partialorder %v4551, %v3821
        %vm4919 = vcmp.gt.f32.partialorder %v4551, %v3822
        %vm4920 = vcmp.gt.f32.partialorder %v4556, %v3821
        %vm4921 = vcmp.gt.f32.partialorder %v4556, %v3822
        %vm4922 = vcmp.gt.f32.partialorder %v4561, %v3821
        %vm4923 = vcmp.gt.f32.partialorder %v4561, %v3822
        %vm4924 = vcmp.gt.f32.partialorder %v4566, %v3821
        %vm4925 = vcmp.gt.f32.partialorder %v4566, %v3822
        %vm4926 = vcmp.gt.f32.partialorder %v4571, %v3821
        %vm4927 = vcmp.gt.f32.partialorder %v4571, %v3822
        %vm4928 = vcmp.gt.f32.partialorder %v4576, %v3821
        %vm4929 = vcmp.gt.f32.partialorder %v4576, %v3822
        %vm4930 = vcmp.gt.f32.partialorder %v4581, %v3823
        %vm4931 = vcmp.gt.f32.partialorder %v4581, %v3824
        %vm4932 = vcmp.gt.f32.partialorder %v4586, %v3823
        %vm4933 = vcmp.gt.f32.partialorder %v4586, %v3824
        %vm4934 = vcmp.gt.f32.partialorder %v4591, %v3823
        %vm4935 = vcmp.gt.f32.partialorder %v4591, %v3824
        %vm4936 = vcmp.gt.f32.partialorder %v4596, %v3823
        %vm4937 = vcmp.gt.f32.partialorder %v4596, %v3824
        %vm4938 = vcmp.gt.f32.partialorder %v4601, %v3823
        %vm4939 = vcmp.gt.f32.partialorder %v4601, %v3824
        %vm4940 = vcmp.gt.f32.partialorder %v4606, %v3823
        %vm4941 = vcmp.gt.f32.partialorder %v4606, %v3824
        %vm4942 = vcmp.gt.f32.partialorder %v4611, %v3823
        %vm4943 = vcmp.gt.f32.partialorder %v4611, %v3824
        %vm4944 = vcmp.gt.f32.partialorder %v4616, %v3823
        %vm4945 = vcmp.gt.f32.partialorder %v4616, %v3824
        %vm4946 = vcmp.gt.f32.partialorder %v4621, %v3823
        %vm4947 = vcmp.gt.f32.partialorder %v4621, %v3824
        %vm4948 = vcmp.gt.f32.partialorder %v4626, %v3823
        %vm4949 = vcmp.gt.f32.partialorder %v4626, %v3824
        %vm4950 = vcmp.gt.f32.partialorder %v4631, %v3823
        %vm4951 = vcmp.gt.f32.partialorder %v4631, %v3824
        %vm4952 = vcmp.gt.f32.partialorder %v4636, %v3823
        %vm4953 = vcmp.gt.f32.partialorder %v4636, %v3824
        %vm4954 = vcmp.gt.f32.partialorder %v4641, %v3823
        %vm4955 = vcmp.gt.f32.partialorder %v4641, %v3824
        %vm4956 = vcmp.gt.f32.partialorder %v4646, %v3823
        %vm4957 = vcmp.gt.f32.partialorder %v4646, %v3824
        %vm4958 = vcmp.gt.f32.partialorder %v4651, %v3823
        %vm4959 = vcmp.gt.f32.partialorder %v4651, %v3824
        %vm4960 = vcmp.gt.f32.partialorder %v4656, %v3823
        %vm4961 = vcmp.gt.f32.partialorder %v4656, %v3824
        %vm4962 = vcmp.gt.f32.partialorder %v4661, %v3825
        %vm4963 = vcmp.gt.f32.partialorder %v4661, %v3826
        %vm4964 = vcmp.gt.f32.partialorder %v4666, %v3825
        %vm4965 = vcmp.gt.f32.partialorder %v4666, %v3826
        %vm4966 = vcmp.gt.f32.partialorder %v4671, %v3825
        %vm4967 = vcmp.gt.f32.partialorder %v4671, %v3826
        %vm4968 = vcmp.gt.f32.partialorder %v4676, %v3825
        %vm4969 = vcmp.gt.f32.partialorder %v4676, %v3826
        %vm4970 = vcmp.gt.f32.partialorder %v4681, %v3825
        %vm4971 = vcmp.gt.f32.partialorder %v4681, %v3826
        %vm4972 = vcmp.gt.f32.partialorder %v4686, %v3825
        %vm4973 = vcmp.gt.f32.partialorder %v4686, %v3826
        %vm4974 = vcmp.gt.f32.partialorder %v4691, %v3825
        %vm4975 = vcmp.gt.f32.partialorder %v4691, %v3826
        %vm4976 = vcmp.gt.f32.partialorder %v4696, %v3825
        %vm4977 = vcmp.gt.f32.partialorder %v4696, %v3826
        %vm4978 = vcmp.gt.f32.partialorder %v4701, %v3825
        %vm4979 = vcmp.gt.f32.partialorder %v4701, %v3826
        %vm4980 = vcmp.gt.f32.partialorder %v4706, %v3825
        %vm4981 = vcmp.gt.f32.partialorder %v4706, %v3826
        %vm4982 = vcmp.gt.f32.partialorder %v4711, %v3825
        %vm4983 = vcmp.gt.f32.partialorder %v4711, %v3826
        %vm4984 = vcmp.gt.f32.partialorder %v4716, %v3825
        %vm4985 = vcmp.gt.f32.partialorder %v4716, %v3826
        %vm4986 = vcmp.gt.f32.partialorder %v4721, %v3825
        %vm4987 = vcmp.gt.f32.partialorder %v4721, %v3826
        %vm4988 = vcmp.gt.f32.partialorder %v4726, %v3825
        %vm4989 = vcmp.gt.f32.partialorder %v4726, %v3826
        %vm4990 = vcmp.gt.f32.partialorder %v4731, %v3825
        %vm4991 = vcmp.gt.f32.partialorder %v4731, %v3826
        %vm4992 = vcmp.gt.f32.partialorder %v4736, %v3825
        %vm4993 = vcmp.gt.f32.partialorder %v4736, %v3826
        %vm4994 = vcmp.eq.f32.partialorder %v4101, %v3811
        %vm4995 = vcmp.eq.f32.partialorder %v4101, %v3812
        %vm4996 = vcmp.eq.f32.partialorder %v4106, %v3811
        %vm4997 = vcmp.eq.f32.partialorder %v4106, %v3812
        %vm4998 = vcmp.eq.f32.partialorder %v4111, %v3811
        %vm4999 = vcmp.eq.f32.partialorder %v4111, %v3812
        %vm5000 = vcmp.eq.f32.partialorder %v4116, %v3811
        %vm5001 = vcmp.eq.f32.partialorder %v4116, %v3812
        %vm5002 = vcmp.eq.f32.partialorder %v4121, %v3811
        %vm5003 = vcmp.eq.f32.partialorder %v4121, %v3812
        %vm5004 = vcmp.eq.f32.partialorder %v4126, %v3811
        %vm5005 = vcmp.eq.f32.partialorder %v4126, %v3812
        %vm5006 = vcmp.eq.f32.partialorder %v4131, %v3811
        %vm5007 = vcmp.eq.f32.partialorder %v4131, %v3812
        %vm5008 = vcmp.eq.f32.partialorder %v4136, %v3811
        %vm5009 = vcmp.eq.f32.partialorder %v4136, %v3812
        %vm5010 = vcmp.eq.f32.partialorder %v4141, %v3811
        %vm5011 = vcmp.eq.f32.partialorder %v4141, %v3812
        %vm5012 = vcmp.eq.f32.partialorder %v4146, %v3811
        %vm5013 = vcmp.eq.f32.partialorder %v4146, %v3812
        %vm5014 = vcmp.eq.f32.partialorder %v4151, %v3811
        %vm5015 = vcmp.eq.f32.partialorder %v4151, %v3812
        %vm5016 = vcmp.eq.f32.partialorder %v4156, %v3811
        %vm5017 = vcmp.eq.f32.partialorder %v4156, %v3812
        %vm5018 = vcmp.eq.f32.partialorder %v4161, %v3811
        %vm5019 = vcmp.eq.f32.partialorder %v4161, %v3812
        %vm5020 = vcmp.eq.f32.partialorder %v4166, %v3811
        %vm5021 = vcmp.eq.f32.partialorder %v4166, %v3812
        %vm5022 = vcmp.eq.f32.partialorder %v4171, %v3811
        %vm5023 = vcmp.eq.f32.partialorder %v4171, %v3812
        %vm5024 = vcmp.eq.f32.partialorder %v4176, %v3811
        %vm5025 = vcmp.eq.f32.partialorder %v4176, %v3812
        %vm5026 = vcmp.eq.f32.partialorder %v4181, %v3813
        %vm5027 = vcmp.eq.f32.partialorder %v4181, %v3814
        %vm5028 = vcmp.eq.f32.partialorder %v4186, %v3813
        %vm5029 = vcmp.eq.f32.partialorder %v4186, %v3814
        %vm5030 = vcmp.eq.f32.partialorder %v4191, %v3813
        %vm5031 = vcmp.eq.f32.partialorder %v4191, %v3814
        %vm5032 = vcmp.eq.f32.partialorder %v4196, %v3813
        %vm5033 = vcmp.eq.f32.partialorder %v4196, %v3814
        %vm5034 = vcmp.eq.f32.partialorder %v4201, %v3813
        %vm5035 = vcmp.eq.f32.partialorder %v4201, %v3814
        %vm5036 = vcmp.eq.f32.partialorder %v4206, %v3813
        %vm5037 = vcmp.eq.f32.partialorder %v4206, %v3814
        %vm5038 = vcmp.eq.f32.partialorder %v4211, %v3813
        %vm5039 = vcmp.eq.f32.partialorder %v4211, %v3814
        %vm5040 = vcmp.eq.f32.partialorder %v4216, %v3813
        %vm5041 = vcmp.eq.f32.partialorder %v4216, %v3814
        %vm5042 = vcmp.eq.f32.partialorder %v4221, %v3813
        %vm5043 = vcmp.eq.f32.partialorder %v4221, %v3814
        %vm5044 = vcmp.eq.f32.partialorder %v4226, %v3813
        %vm5045 = vcmp.eq.f32.partialorder %v4226, %v3814
        %vm5046 = vcmp.eq.f32.partialorder %v4231, %v3813
        %vm5047 = vcmp.eq.f32.partialorder %v4231, %v3814
        %vm5048 = vcmp.eq.f32.partialorder %v4236, %v3813
        %vm5049 = vcmp.eq.f32.partialorder %v4236, %v3814
        %vm5050 = vcmp.eq.f32.partialorder %v4241, %v3813
        %vm5051 = vcmp.eq.f32.partialorder %v4241, %v3814
        %vm5052 = vcmp.eq.f32.partialorder %v4246, %v3813
        %vm5053 = vcmp.eq.f32.partialorder %v4246, %v3814
        %vm5054 = vcmp.eq.f32.partialorder %v4251, %v3813
        %vm5055 = vcmp.eq.f32.partialorder %v4251, %v3814
        %vm5056 = vcmp.eq.f32.partialorder %v4256, %v3813
        %vm5057 = vcmp.eq.f32.partialorder %v4256, %v3814
        %vm5058 = vcmp.eq.f32.partialorder %v4261, %v3815
        %vm5059 = vcmp.eq.f32.partialorder %v4261, %v3816
        %vm5060 = vcmp.eq.f32.partialorder %v4266, %v3815
        %vm5061 = vcmp.eq.f32.partialorder %v4266, %v3816
        %vm5062 = vcmp.eq.f32.partialorder %v4271, %v3815
        %vm5063 = vcmp.eq.f32.partialorder %v4271, %v3816
        %vm5064 = vcmp.eq.f32.partialorder %v4276, %v3815
        %vm5065 = vcmp.eq.f32.partialorder %v4276, %v3816
        %vm5066 = vcmp.eq.f32.partialorder %v4281, %v3815
        %vm5067 = vcmp.eq.f32.partialorder %v4281, %v3816
        %vm5068 = vcmp.eq.f32.partialorder %v4286, %v3815
        %vm5069 = vcmp.eq.f32.partialorder %v4286, %v3816
        %vm5070 = vcmp.eq.f32.partialorder %v4291, %v3815
        %vm5071 = vcmp.eq.f32.partialorder %v4291, %v3816
        %vm5072 = vcmp.eq.f32.partialorder %v4296, %v3815
        %vm5073 = vcmp.eq.f32.partialorder %v4296, %v3816
        %vm5074 = vcmp.eq.f32.partialorder %v4301, %v3815
        %vm5075 = vcmp.eq.f32.partialorder %v4301, %v3816
        %vm5076 = vcmp.eq.f32.partialorder %v4306, %v3815
        %vm5077 = vcmp.eq.f32.partialorder %v4306, %v3816
        %vm5078 = vcmp.eq.f32.partialorder %v4311, %v3815
        %vm5079 = vcmp.eq.f32.partialorder %v4311, %v3816
        %vm5080 = vcmp.eq.f32.partialorder %v4316, %v3815
        %vm5081 = vcmp.eq.f32.partialorder %v4316, %v3816
        %vm5082 = vcmp.eq.f32.partialorder %v4321, %v3815
        %vm5083 = vcmp.eq.f32.partialorder %v4321, %v3816
        %vm5084 = vcmp.eq.f32.partialorder %v4326, %v3815
        %vm5085 = vcmp.eq.f32.partialorder %v4326, %v3816
        %vm5086 = vcmp.eq.f32.partialorder %v4331, %v3815
        %vm5087 = vcmp.eq.f32.partialorder %v4331, %v3816
        %vm5088 = vcmp.eq.f32.partialorder %v4336, %v3815
        %vm5089 = vcmp.eq.f32.partialorder %v4336, %v3816
        %vm5090 = vcmp.eq.f32.partialorder %v4341, %v3817
        %vm5091 = vcmp.eq.f32.partialorder %v4341, %v3818
        %vm5092 = vcmp.eq.f32.partialorder %v4346, %v3817
        %vm5093 = vcmp.eq.f32.partialorder %v4346, %v3818
        %vm5094 = vcmp.eq.f32.partialorder %v4351, %v3817
        %vm5095 = vcmp.eq.f32.partialorder %v4351, %v3818
        %vm5096 = vcmp.eq.f32.partialorder %v4356, %v3817
        %vm5097 = vcmp.eq.f32.partialorder %v4356, %v3818
        %vm5098 = vcmp.eq.f32.partialorder %v4361, %v3817
        %vm5099 = vcmp.eq.f32.partialorder %v4361, %v3818
        %vm5100 = vcmp.eq.f32.partialorder %v4366, %v3817
        %vm5101 = vcmp.eq.f32.partialorder %v4366, %v3818
        %vm5102 = vcmp.eq.f32.partialorder %v4371, %v3817
        %vm5103 = vcmp.eq.f32.partialorder %v4371, %v3818
        %vm5104 = vcmp.eq.f32.partialorder %v4376, %v3817
        %vm5105 = vcmp.eq.f32.partialorder %v4376, %v3818
        %vm5106 = vcmp.eq.f32.partialorder %v4381, %v3817
        %vm5107 = vcmp.eq.f32.partialorder %v4381, %v3818
        %vm5108 = vcmp.eq.f32.partialorder %v4386, %v3817
        %vm5109 = vcmp.eq.f32.partialorder %v4386, %v3818
        %vm5110 = vcmp.eq.f32.partialorder %v4391, %v3817
        %vm5111 = vcmp.eq.f32.partialorder %v4391, %v3818
        %vm5112 = vcmp.eq.f32.partialorder %v4396, %v3817
        %vm5113 = vcmp.eq.f32.partialorder %v4396, %v3818
        %vm5114 = vcmp.eq.f32.partialorder %v4401, %v3817
        %vm5115 = vcmp.eq.f32.partialorder %v4401, %v3818
        %vm5116 = vcmp.eq.f32.partialorder %v4406, %v3817
        %vm5117 = vcmp.eq.f32.partialorder %v4406, %v3818
        %vm5118 = vcmp.eq.f32.partialorder %v4411, %v3817
        %vm5119 = vcmp.eq.f32.partialorder %v4411, %v3818
        %vm5120 = vcmp.eq.f32.partialorder %v4416, %v3817
        %vm5121 = vcmp.eq.f32.partialorder %v4416, %v3818
        %vm5122 = vcmp.eq.f32.partialorder %v4421, %v3819
        %vm5123 = vcmp.eq.f32.partialorder %v4421, %v3820
        %vm5124 = vcmp.eq.f32.partialorder %v4426, %v3819
        %vm5125 = vcmp.eq.f32.partialorder %v4426, %v3820
        %vm5126 = vcmp.eq.f32.partialorder %v4431, %v3819
        %vm5127 = vcmp.eq.f32.partialorder %v4431, %v3820
        %vm5128 = vcmp.eq.f32.partialorder %v4436, %v3819
        %vm5129 = vcmp.eq.f32.partialorder %v4436, %v3820
        %vm5130 = vcmp.eq.f32.partialorder %v4441, %v3819
        %vm5131 = vcmp.eq.f32.partialorder %v4441, %v3820
        %vm5132 = vcmp.eq.f32.partialorder %v4446, %v3819
        %vm5133 = vcmp.eq.f32.partialorder %v4446, %v3820
        %vm5134 = vcmp.eq.f32.partialorder %v4451, %v3819
        %vm5135 = vcmp.eq.f32.partialorder %v4451, %v3820
        %vm5136 = vcmp.eq.f32.partialorder %v4456, %v3819
        %vm5137 = vcmp.eq.f32.partialorder %v4456, %v3820
        %vm5138 = vcmp.eq.f32.partialorder %v4461, %v3819
        %vm5139 = vcmp.eq.f32.partialorder %v4461, %v3820
        %vm5140 = vcmp.eq.f32.partialorder %v4466, %v3819
        %vm5141 = vcmp.eq.f32.partialorder %v4466, %v3820
        %vm5142 = vcmp.eq.f32.partialorder %v4471, %v3819
        %vm5143 = vcmp.eq.f32.partialorder %v4471, %v3820
        %vm5144 = vcmp.eq.f32.partialorder %v4476, %v3819
        %vm5145 = vcmp.eq.f32.partialorder %v4476, %v3820
        %vm5146 = vcmp.eq.f32.partialorder %v4481, %v3819
        %vm5147 = vcmp.eq.f32.partialorder %v4481, %v3820
        %vm5148 = vcmp.eq.f32.partialorder %v4486, %v3819
        %vm5149 = vcmp.eq.f32.partialorder %v4486, %v3820
        %vm5150 = vcmp.eq.f32.partialorder %v4491, %v3819
        %vm5151 = vcmp.eq.f32.partialorder %v4491, %v3820
        %vm5152 = vcmp.eq.f32.partialorder %v4496, %v3819
        %vm5153 = vcmp.eq.f32.partialorder %v4496, %v3820
        %vm5154 = vcmp.eq.f32.partialorder %v4501, %v3821
        %vm5155 = vcmp.eq.f32.partialorder %v4501, %v3822
        %vm5156 = vcmp.eq.f32.partialorder %v4506, %v3821
        %vm5157 = vcmp.eq.f32.partialorder %v4506, %v3822
        %vm5158 = vcmp.eq.f32.partialorder %v4511, %v3821
        %vm5159 = vcmp.eq.f32.partialorder %v4511, %v3822
        %vm5160 = vcmp.eq.f32.partialorder %v4516, %v3821
        %vm5161 = vcmp.eq.f32.partialorder %v4516, %v3822
        %vm5162 = vcmp.eq.f32.partialorder %v4521, %v3821
        %vm5163 = vcmp.eq.f32.partialorder %v4521, %v3822
        %vm5164 = vcmp.eq.f32.partialorder %v4526, %v3821
        %vm5165 = vcmp.eq.f32.partialorder %v4526, %v3822
        %vm5166 = vcmp.eq.f32.partialorder %v4531, %v3821
        %vm5167 = vcmp.eq.f32.partialorder %v4531, %v3822
        %vm5168 = vcmp.eq.f32.partialorder %v4536, %v3821
        %vm5169 = vcmp.eq.f32.partialorder %v4536, %v3822
        %vm5170 = vcmp.eq.f32.partialorder %v4541, %v3821
        %vm5171 = vcmp.eq.f32.partialorder %v4541, %v3822
        %vm5172 = vcmp.eq.f32.partialorder %v4546, %v3821
        %vm5173 = vcmp.eq.f32.partialorder %v4546, %v3822
        %vm5174 = vcmp.eq.f32.partialorder %v4551, %v3821
        %vm5175 = vcmp.eq.f32.partialorder %v4551, %v3822
        %vm5176 = vcmp.eq.f32.partialorder %v4556, %v3821
        %vm5177 = vcmp.eq.f32.partialorder %v4556, %v3822
        %vm5178 = vcmp.eq.f32.partialorder %v4561, %v3821
        %vm5179 = vcmp.eq.f32.partialorder %v4561, %v3822
        %vm5180 = vcmp.eq.f32.partialorder %v4566, %v3821
        %vm5181 = vcmp.eq.f32.partialorder %v4566, %v3822
        %vm5182 = vcmp.eq.f32.partialorder %v4571, %v3821
        %vm5183 = vcmp.eq.f32.partialorder %v4571, %v3822
        %vm5184 = vcmp.eq.f32.partialorder %v4576, %v3821
        %vm5185 = vcmp.eq.f32.partialorder %v4576, %v3822
        %vm5186 = vcmp.eq.f32.partialorder %v4581, %v3823
        %vm5187 = vcmp.eq.f32.partialorder %v4581, %v3824
        %vm5188 = vcmp.eq.f32.partialorder %v4586, %v3823
        %vm5189 = vcmp.eq.f32.partialorder %v4586, %v3824
        %vm5190 = vcmp.eq.f32.partialorder %v4591, %v3823
        %vm5191 = vcmp.eq.f32.partialorder %v4591, %v3824
        %vm5192 = vcmp.eq.f32.partialorder %v4596, %v3823
        %vm5193 = vcmp.eq.f32.partialorder %v4596, %v3824
        %vm5194 = vcmp.eq.f32.partialorder %v4601, %v3823
        %vm5195 = vcmp.eq.f32.partialorder %v4601, %v3824
        %vm5196 = vcmp.eq.f32.partialorder %v4606, %v3823
        %vm5197 = vcmp.eq.f32.partialorder %v4606, %v3824
        %vm5198 = vcmp.eq.f32.partialorder %v4611, %v3823
        %vm5199 = vcmp.eq.f32.partialorder %v4611, %v3824
        %vm5200 = vcmp.eq.f32.partialorder %v4616, %v3823
        %vm5201 = vcmp.eq.f32.partialorder %v4616, %v3824
        %vm5202 = vcmp.eq.f32.partialorder %v4621, %v3823
        %vm5203 = vcmp.eq.f32.partialorder %v4621, %v3824
        %vm5204 = vcmp.eq.f32.partialorder %v4626, %v3823
        %vm5205 = vcmp.eq.f32.partialorder %v4626, %v3824
        %vm5206 = vcmp.eq.f32.partialorder %v4631, %v3823
        %vm5207 = vcmp.eq.f32.partialorder %v4631, %v3824
        %vm5208 = vcmp.eq.f32.partialorder %v4636, %v3823
        %vm5209 = vcmp.eq.f32.partialorder %v4636, %v3824
        %vm5210 = vcmp.eq.f32.partialorder %v4641, %v3823
        %vm5211 = vcmp.eq.f32.partialorder %v4641, %v3824
        %vm5212 = vcmp.eq.f32.partialorder %v4646, %v3823
        %vm5213 = vcmp.eq.f32.partialorder %v4646, %v3824
        %vm5214 = vcmp.eq.f32.partialorder %v4651, %v3823
        %vm5215 = vcmp.eq.f32.partialorder %v4651, %v3824
        %vm5216 = vcmp.eq.f32.partialorder %v4656, %v3823
        %vm5217 = vcmp.eq.f32.partialorder %v4656, %v3824
        %vm5218 = vcmp.eq.f32.partialorder %v4661, %v3825
        %vm5219 = vcmp.eq.f32.partialorder %v4661, %v3826
        %vm5220 = vcmp.eq.f32.partialorder %v4666, %v3825
        %vm5221 = vcmp.eq.f32.partialorder %v4666, %v3826
        %vm5222 = vcmp.eq.f32.partialorder %v4671, %v3825
        %vm5223 = vcmp.eq.f32.partialorder %v4671, %v3826
        %vm5224 = vcmp.eq.f32.partialorder %v4676, %v3825
        %vm5225 = vcmp.eq.f32.partialorder %v4676, %v3826
        %vm5226 = vcmp.eq.f32.partialorder %v4681, %v3825
        %vm5227 = vcmp.eq.f32.partialorder %v4681, %v3826
        %vm5228 = vcmp.eq.f32.partialorder %v4686, %v3825
        %vm5229 = vcmp.eq.f32.partialorder %v4686, %v3826
        %vm5230 = vcmp.eq.f32.partialorder %v4691, %v3825
        %vm5231 = vcmp.eq.f32.partialorder %v4691, %v3826
        %vm5232 = vcmp.eq.f32.partialorder %v4696, %v3825
        %vm5233 = vcmp.eq.f32.partialorder %v4696, %v3826
        %vm5234 = vcmp.eq.f32.partialorder %v4701, %v3825
        %vm5235 = vcmp.eq.f32.partialorder %v4701, %v3826
        %vm5236 = vcmp.eq.f32.partialorder %v4706, %v3825
        %vm5237 = vcmp.eq.f32.partialorder %v4706, %v3826
        %vm5238 = vcmp.eq.f32.partialorder %v4711, %v3825
        %vm5239 = vcmp.eq.f32.partialorder %v4711, %v3826
        %vm5240 = vcmp.eq.f32.partialorder %v4716, %v3825
        %vm5241 = vcmp.eq.f32.partialorder %v4716, %v3826
        %vm5242 = vcmp.eq.f32.partialorder %v4721, %v3825
        %vm5243 = vcmp.eq.f32.partialorder %v4721, %v3826
        %vm5244 = vcmp.eq.f32.partialorder %v4726, %v3825
        %vm5245 = vcmp.eq.f32.partialorder %v4726, %v3826
        %vm5246 = vcmp.eq.f32.partialorder %v4731, %v3825
        %vm5247 = vcmp.eq.f32.partialorder %v4731, %v3826
        %vm5248 = vcmp.eq.f32.partialorder %v4736, %v3825
        %vm5249 = vcmp.eq.f32.partialorder %v4736, %v3826
        %vm5250 = vcmp.lt.s32.totalorder %v851, %v848
        %vm5251 = vcmp.lt.s32.totalorder %v851, %v849
        %vm5252 = vcmp.lt.s32.totalorder %v4083, %v848
        %vm5253 = vcmp.lt.s32.totalorder %v4083, %v849
        %vm5254 = vcmp.lt.s32.totalorder %v4084, %v848
        %vm5255 = vcmp.lt.s32.totalorder %v4084, %v849
        %vm5256 = vcmp.lt.s32.totalorder %v4085, %v848
        %vm5257 = vcmp.lt.s32.totalorder %v4085, %v849
        %vm5258 = vcmp.lt.s32.totalorder %v4086, %v848
        %vm5259 = vcmp.lt.s32.totalorder %v4086, %v849
        %vm5260 = vcmp.lt.s32.totalorder %v4087, %v848
        %vm5261 = vcmp.lt.s32.totalorder %v4087, %v849
        %vm5262 = vcmp.lt.s32.totalorder %v4088, %v848
        %vm5263 = vcmp.lt.s32.totalorder %v4088, %v849
        %vm5264 = vcmp.lt.s32.totalorder %v4089, %v848
        %vm5265 = vcmp.lt.s32.totalorder %v4089, %v849
        %vm5266 = vcmp.lt.s32.totalorder %v4090, %v848
        %vm5267 = vcmp.lt.s32.totalorder %v4090, %v849
        %vm5268 = vcmp.lt.s32.totalorder %v4091, %v848
        %vm5269 = vcmp.lt.s32.totalorder %v4091, %v849
        %vm5270 = vcmp.lt.s32.totalorder %v4092, %v848
        %vm5271 = vcmp.lt.s32.totalorder %v4092, %v849
        %vm5272 = vcmp.lt.s32.totalorder %v4093, %v848
        %vm5273 = vcmp.lt.s32.totalorder %v4093, %v849
        %vm5274 = vcmp.lt.s32.totalorder %v4094, %v848
        %vm5275 = vcmp.lt.s32.totalorder %v4094, %v849
        %vm5276 = vcmp.lt.s32.totalorder %v4095, %v848
        %vm5277 = vcmp.lt.s32.totalorder %v4095, %v849
        %vm5278 = vcmp.lt.s32.totalorder %v4096, %v848
        %vm5279 = vcmp.lt.s32.totalorder %v4096, %v849
        %vm5280 = vcmp.lt.s32.totalorder %v4097, %v848
        %vm5281 = vcmp.lt.s32.totalorder %v4097, %v849
        %vm5282 = vmand %vm4994, %vm5250
        %vm5283 = vmand %vm4995, %vm5251
        %vm5284 = vmand %vm4996, %vm5252
        %vm5285 = vmand %vm4997, %vm5253
        %vm5286 = vmand %vm4998, %vm5254
        %vm5287 = vmand %vm4999, %vm5255
        %vm5288 = vmand %vm5000, %vm5256
        %vm5289 = vmand %vm5001, %vm5257
        %vm5290 = vmand %vm5002, %vm5258
        %vm5291 = vmand %vm5003, %vm5259
        %vm5292 = vmand %vm5004, %vm5260
        %vm5293 = vmand %vm5005, %vm5261
        %vm5294 = vmand %vm5006, %vm5262
        %vm5295 = vmand %vm5007, %vm5263
        %vm5296 = vmand %vm5008, %vm5264
        %vm5297 = vmand %vm5009, %vm5265
        %vm5298 = vmand %vm5010, %vm5266
        %vm5299 = vmand %vm5011, %vm5267
        %vm5300 = vmand %vm5012, %vm5268
        %vm5301 = vmand %vm5013, %vm5269
        %vm5302 = vmand %vm5014, %vm5270
        %vm5303 = vmand %vm5015, %vm5271
        %vm5304 = vmand %vm5016, %vm5272
        %vm5305 = vmand %vm5017, %vm5273
        %vm5306 = vmand %vm5018, %vm5274
        %vm5307 = vmand %vm5019, %vm5275
        %vm5308 = vmand %vm5020, %vm5276
        %vm5309 = vmand %vm5021, %vm5277
        %vm5310 = vmand %vm5022, %vm5278
        %vm5311 = vmand %vm5023, %vm5279
        %vm5312 = vmand %vm5024, %vm5280
        %vm5313 = vmand %vm5025, %vm5281
        %vm5314 = vmand %vm5026, %vm5250
        %vm5315 = vmand %vm5027, %vm5251
        %vm5316 = vmand %vm5028, %vm5252
        %vm5317 = vmand %vm5029, %vm5253
        %vm5318 = vmand %vm5030, %vm5254
        %vm5319 = vmand %vm5031, %vm5255
        %vm5320 = vmand %vm5032, %vm5256
        %vm5321 = vmand %vm5033, %vm5257
        %vm5322 = vmand %vm5034, %vm5258
        %vm5323 = vmand %vm5035, %vm5259
        %vm5324 = vmand %vm5036, %vm5260
        %vm5325 = vmand %vm5037, %vm5261
        %vm5326 = vmand %vm5038, %vm5262
        %vm5327 = vmand %vm5039, %vm5263
        %vm5328 = vmand %vm5040, %vm5264
        %vm5329 = vmand %vm5041, %vm5265
        %vm5330 = vmand %vm5042, %vm5266
        %vm5331 = vmand %vm5043, %vm5267
        %vm5332 = vmand %vm5044, %vm5268
        %vm5333 = vmand %vm5045, %vm5269
        %vm5334 = vmand %vm5046, %vm5270
        %vm5335 = vmand %vm5047, %vm5271
        %vm5336 = vmand %vm5048, %vm5272
        %vm5337 = vmand %vm5049, %vm5273
        %vm5338 = vmand %vm5050, %vm5274
        %vm5339 = vmand %vm5051, %vm5275
        %vm5340 = vmand %vm5052, %vm5276
        %vm5341 = vmand %vm5053, %vm5277
        %vm5342 = vmand %vm5054, %vm5278
        %vm5343 = vmand %vm5055, %vm5279
        %vm5344 = vmand %vm5056, %vm5280
        %vm5345 = vmand %vm5057, %vm5281
        %vm5346 = vmand %vm5058, %vm5250
        %vm5347 = vmand %vm5059, %vm5251
        %vm5348 = vmand %vm5060, %vm5252
        %vm5349 = vmand %vm5061, %vm5253
        %vm5350 = vmand %vm5062, %vm5254
        %vm5351 = vmand %vm5063, %vm5255
        %vm5352 = vmand %vm5064, %vm5256
        %vm5353 = vmand %vm5065, %vm5257
        %vm5354 = vmand %vm5066, %vm5258
        %vm5355 = vmand %vm5067, %vm5259
        %vm5356 = vmand %vm5068, %vm5260
        %vm5357 = vmand %vm5069, %vm5261
        %vm5358 = vmand %vm5070, %vm5262
        %vm5359 = vmand %vm5071, %vm5263
        %vm5360 = vmand %vm5072, %vm5264
        %vm5361 = vmand %vm5073, %vm5265
        %vm5362 = vmand %vm5074, %vm5266
        %vm5363 = vmand %vm5075, %vm5267
        %vm5364 = vmand %vm5076, %vm5268
        %vm5365 = vmand %vm5077, %vm5269
        %vm5366 = vmand %vm5078, %vm5270
        %vm5367 = vmand %vm5079, %vm5271
        %vm5368 = vmand %vm5080, %vm5272
        %vm5369 = vmand %vm5081, %vm5273
        %vm5370 = vmand %vm5082, %vm5274
        %vm5371 = vmand %vm5083, %vm5275
        %vm5372 = vmand %vm5084, %vm5276
        %vm5373 = vmand %vm5085, %vm5277
        %vm5374 = vmand %vm5086, %vm5278
        %vm5375 = vmand %vm5087, %vm5279
        %vm5376 = vmand %vm5088, %vm5280
        %vm5377 = vmand %vm5089, %vm5281
        %vm5378 = vmand %vm5090, %vm5250
        %vm5379 = vmand %vm5091, %vm5251
        %vm5380 = vmand %vm5092, %vm5252
        %vm5381 = vmand %vm5093, %vm5253
        %vm5382 = vmand %vm5094, %vm5254
        %vm5383 = vmand %vm5095, %vm5255
        %vm5384 = vmand %vm5096, %vm5256
        %vm5385 = vmand %vm5097, %vm5257
        %vm5386 = vmand %vm5098, %vm5258
        %vm5387 = vmand %vm5099, %vm5259
        %vm5388 = vmand %vm5100, %vm5260
        %vm5389 = vmand %vm5101, %vm5261
        %vm5390 = vmand %vm5102, %vm5262
        %vm5391 = vmand %vm5103, %vm5263
        %vm5392 = vmand %vm5104, %vm5264
        %vm5393 = vmand %vm5105, %vm5265
        %vm5394 = vmand %vm5106, %vm5266
        %vm5395 = vmand %vm5107, %vm5267
        %vm5396 = vmand %vm5108, %vm5268
        %vm5397 = vmand %vm5109, %vm5269
        %vm5398 = vmand %vm5110, %vm5270
        %vm5399 = vmand %vm5111, %vm5271
        %vm5400 = vmand %vm5112, %vm5272
        %vm5401 = vmand %vm5113, %vm5273
        %vm5402 = vmand %vm5114, %vm5274
        %vm5403 = vmand %vm5115, %vm5275
        %vm5404 = vmand %vm5116, %vm5276
        %vm5405 = vmand %vm5117, %vm5277
        %vm5406 = vmand %vm5118, %vm5278
        %vm5407 = vmand %vm5119, %vm5279
        %vm5408 = vmand %vm5120, %vm5280
        %vm5409 = vmand %vm5121, %vm5281
        %vm5410 = vmand %vm5122, %vm5250
        %vm5411 = vmand %vm5123, %vm5251
        %vm5412 = vmand %vm5124, %vm5252
        %vm5413 = vmand %vm5125, %vm5253
        %vm5414 = vmand %vm5126, %vm5254
        %vm5415 = vmand %vm5127, %vm5255
        %vm5416 = vmand %vm5128, %vm5256
        %vm5417 = vmand %vm5129, %vm5257
        %vm5418 = vmand %vm5130, %vm5258
        %vm5419 = vmand %vm5131, %vm5259
        %vm5420 = vmand %vm5132, %vm5260
        %vm5421 = vmand %vm5133, %vm5261
        %vm5422 = vmand %vm5134, %vm5262
        %vm5423 = vmand %vm5135, %vm5263
        %vm5424 = vmand %vm5136, %vm5264
        %vm5425 = vmand %vm5137, %vm5265
        %vm5426 = vmand %vm5138, %vm5266
        %vm5427 = vmand %vm5139, %vm5267
        %vm5428 = vmand %vm5140, %vm5268
        %vm5429 = vmand %vm5141, %vm5269
        %vm5430 = vmand %vm5142, %vm5270
        %vm5431 = vmand %vm5143, %vm5271
        %vm5432 = vmand %vm5144, %vm5272
        %vm5433 = vmand %vm5145, %vm5273
        %vm5434 = vmand %vm5146, %vm5274
        %vm5435 = vmand %vm5147, %vm5275
        %vm5436 = vmand %vm5148, %vm5276
        %vm5437 = vmand %vm5149, %vm5277
        %vm5438 = vmand %vm5150, %vm5278
        %vm5439 = vmand %vm5151, %vm5279
        %vm5440 = vmand %vm5152, %vm5280
        %vm5441 = vmand %vm5153, %vm5281
        %vm5442 = vmand %vm5154, %vm5250
        %vm5443 = vmand %vm5155, %vm5251
        %vm5444 = vmand %vm5156, %vm5252
        %vm5445 = vmand %vm5157, %vm5253
        %vm5446 = vmand %vm5158, %vm5254
        %vm5447 = vmand %vm5159, %vm5255
        %vm5448 = vmand %vm5160, %vm5256
        %vm5449 = vmand %vm5161, %vm5257
        %vm5450 = vmand %vm5162, %vm5258
        %vm5451 = vmand %vm5163, %vm5259
        %vm5452 = vmand %vm5164, %vm5260
        %vm5453 = vmand %vm5165, %vm5261
        %vm5454 = vmand %vm5166, %vm5262
        %vm5455 = vmand %vm5167, %vm5263
        %vm5456 = vmand %vm5168, %vm5264
        %vm5457 = vmand %vm5169, %vm5265
        %vm5458 = vmand %vm5170, %vm5266
        %vm5459 = vmand %vm5171, %vm5267
        %vm5460 = vmand %vm5172, %vm5268
        %vm5461 = vmand %vm5173, %vm5269
        %vm5462 = vmand %vm5174, %vm5270
        %vm5463 = vmand %vm5175, %vm5271
        %vm5464 = vmand %vm5176, %vm5272
        %vm5465 = vmand %vm5177, %vm5273
        %vm5466 = vmand %vm5178, %vm5274
        %vm5467 = vmand %vm5179, %vm5275
        %vm5468 = vmand %vm5180, %vm5276
        %vm5469 = vmand %vm5181, %vm5277
        %vm5470 = vmand %vm5182, %vm5278
        %vm5471 = vmand %vm5183, %vm5279
        %vm5472 = vmand %vm5184, %vm5280
        %vm5473 = vmand %vm5185, %vm5281
        %vm5474 = vmand %vm5186, %vm5250
        %vm5475 = vmand %vm5187, %vm5251
        %vm5476 = vmand %vm5188, %vm5252
        %vm5477 = vmand %vm5189, %vm5253
        %vm5478 = vmand %vm5190, %vm5254
        %vm5479 = vmand %vm5191, %vm5255
        %vm5480 = vmand %vm5192, %vm5256
        %vm5481 = vmand %vm5193, %vm5257
        %vm5482 = vmand %vm5194, %vm5258
        %vm5483 = vmand %vm5195, %vm5259
        %vm5484 = vmand %vm5196, %vm5260
        %vm5485 = vmand %vm5197, %vm5261
        %vm5486 = vmand %vm5198, %vm5262
        %vm5487 = vmand %vm5199, %vm5263
        %vm5488 = vmand %vm5200, %vm5264
        %vm5489 = vmand %vm5201, %vm5265
        %vm5490 = vmand %vm5202, %vm5266
        %vm5491 = vmand %vm5203, %vm5267
        %vm5492 = vmand %vm5204, %vm5268
        %vm5493 = vmand %vm5205, %vm5269
        %vm5494 = vmand %vm5206, %vm5270
        %vm5495 = vmand %vm5207, %vm5271
        %vm5496 = vmand %vm5208, %vm5272
        %vm5497 = vmand %vm5209, %vm5273
        %vm5498 = vmand %vm5210, %vm5274
        %vm5499 = vmand %vm5211, %vm5275
        %vm5500 = vmand %vm5212, %vm5276
        %vm5501 = vmand %vm5213, %vm5277
        %vm5502 = vmand %vm5214, %vm5278
        %vm5503 = vmand %vm5215, %vm5279
        %vm5504 = vmand %vm5216, %vm5280
        %vm5505 = vmand %vm5217, %vm5281
        %vm5506 = vmand %vm5218, %vm5250
        %vm5507 = vmand %vm5219, %vm5251
        %vm5508 = vmand %vm5220, %vm5252
        %vm5509 = vmand %vm5221, %vm5253
        %vm5510 = vmand %vm5222, %vm5254
        %vm5511 = vmand %vm5223, %vm5255
        %vm5512 = vmand %vm5224, %vm5256
        %vm5513 = vmand %vm5225, %vm5257
        %vm5514 = vmand %vm5226, %vm5258
        %vm5515 = vmand %vm5227, %vm5259
        %vm5516 = vmand %vm5228, %vm5260
        %vm5517 = vmand %vm5229, %vm5261
        %vm5518 = vmand %vm5230, %vm5262
        %vm5519 = vmand %vm5231, %vm5263
        %vm5520 = vmand %vm5232, %vm5264
        %vm5521 = vmand %vm5233, %vm5265
        %vm5522 = vmand %vm5234, %vm5266
        %vm5523 = vmand %vm5235, %vm5267
        %vm5524 = vmand %vm5236, %vm5268
        %vm5525 = vmand %vm5237, %vm5269
        %vm5526 = vmand %vm5238, %vm5270
        %vm5527 = vmand %vm5239, %vm5271
        %vm5528 = vmand %vm5240, %vm5272
        %vm5529 = vmand %vm5241, %vm5273
        %vm5530 = vmand %vm5242, %vm5274
        %vm5531 = vmand %vm5243, %vm5275
        %vm5532 = vmand %vm5244, %vm5276
        %vm5533 = vmand %vm5245, %vm5277
        %vm5534 = vmand %vm5246, %vm5278
        %vm5535 = vmand %vm5247, %vm5279
        %vm5536 = vmand %vm5248, %vm5280
        %vm5537 = vmand %vm5249, %vm5281
        %vm5538 = vmor %vm4738, %vm5282
        %vm5539 = vmor %vm4739, %vm5283
        %vm5540 = vmor %vm4740, %vm5284
        %vm5541 = vmor %vm4741, %vm5285
        %vm5542 = vmor %vm4742, %vm5286
        %vm5543 = vmor %vm4743, %vm5287
        %vm5544 = vmor %vm4744, %vm5288
        %vm5545 = vmor %vm4745, %vm5289
        %vm5546 = vmor %vm4746, %vm5290
        %vm5547 = vmor %vm4747, %vm5291
        %vm5548 = vmor %vm4748, %vm5292
        %vm5549 = vmor %vm4749, %vm5293
        %vm5550 = vmor %vm4750, %vm5294
        %vm5551 = vmor %vm4751, %vm5295
        %vm5552 = vmor %vm4752, %vm5296
        %vm5553 = vmor %vm4753, %vm5297
        %vm5554 = vmor %vm4754, %vm5298
        %vm5555 = vmor %vm4755, %vm5299
        %vm5556 = vmor %vm4756, %vm5300
        %vm5557 = vmor %vm4757, %vm5301
        %vm5558 = vmor %vm4758, %vm5302
        %vm5559 = vmor %vm4759, %vm5303
        %vm5560 = vmor %vm4760, %vm5304
        %vm5561 = vmor %vm4761, %vm5305
        %vm5562 = vmor %vm4762, %vm5306
        %vm5563 = vmor %vm4763, %vm5307
        %vm5564 = vmor %vm4764, %vm5308
        %vm5565 = vmor %vm4765, %vm5309
        %vm5566 = vmor %vm4766, %vm5310
        %vm5567 = vmor %vm4767, %vm5311
        %vm5568 = vmor %vm4768, %vm5312
        %vm5569 = vmor %vm4769, %vm5313
        %vm5570 = vmor %vm4770, %vm5314
        %vm5571 = vmor %vm4771, %vm5315
        %vm5572 = vmor %vm4772, %vm5316
        %vm5573 = vmor %vm4773, %vm5317
        %vm5574 = vmor %vm4774, %vm5318
        %vm5575 = vmor %vm4775, %vm5319
        %vm5576 = vmor %vm4776, %vm5320
        %vm5577 = vmor %vm4777, %vm5321
        %vm5578 = vmor %vm4778, %vm5322
        %vm5579 = vmor %vm4779, %vm5323
        %vm5580 = vmor %vm4780, %vm5324
        %vm5581 = vmor %vm4781, %vm5325
        %vm5582 = vmor %vm4782, %vm5326
        %vm5583 = vmor %vm4783, %vm5327
        %vm5584 = vmor %vm4784, %vm5328
        %vm5585 = vmor %vm4785, %vm5329
        %vm5586 = vmor %vm4786, %vm5330
        %vm5587 = vmor %vm4787, %vm5331
        %vm5588 = vmor %vm4788, %vm5332
        %vm5589 = vmor %vm4789, %vm5333
        %vm5590 = vmor %vm4790, %vm5334
        %vm5591 = vmor %vm4791, %vm5335
        %vm5592 = vmor %vm4792, %vm5336
        %vm5593 = vmor %vm4793, %vm5337
        %vm5594 = vmor %vm4794, %vm5338
        %vm5595 = vmor %vm4795, %vm5339
        %vm5596 = vmor %vm4796, %vm5340
        %vm5597 = vmor %vm4797, %vm5341
        %vm5598 = vmor %vm4798, %vm5342
        %vm5599 = vmor %vm4799, %vm5343
        %vm5600 = vmor %vm4800, %vm5344
        %vm5601 = vmor %vm4801, %vm5345
        %vm5602 = vmor %vm4802, %vm5346
        %vm5603 = vmor %vm4803, %vm5347
        %vm5604 = vmor %vm4804, %vm5348
        %vm5605 = vmor %vm4805, %vm5349
        %vm5606 = vmor %vm4806, %vm5350
        %vm5607 = vmor %vm4807, %vm5351
        %vm5608 = vmor %vm4808, %vm5352
        %vm5609 = vmor %vm4809, %vm5353
        %vm5610 = vmor %vm4810, %vm5354
        %vm5611 = vmor %vm4811, %vm5355
        %vm5612 = vmor %vm4812, %vm5356
        %vm5613 = vmor %vm4813, %vm5357
        %vm5614 = vmor %vm4814, %vm5358
        %vm5615 = vmor %vm4815, %vm5359
        %vm5616 = vmor %vm4816, %vm5360
        %vm5617 = vmor %vm4817, %vm5361
        %vm5618 = vmor %vm4818, %vm5362
        %vm5619 = vmor %vm4819, %vm5363
        %vm5620 = vmor %vm4820, %vm5364
        %vm5621 = vmor %vm4821, %vm5365
        %vm5622 = vmor %vm4822, %vm5366
        %vm5623 = vmor %vm4823, %vm5367
        %vm5624 = vmor %vm4824, %vm5368
        %vm5625 = vmor %vm4825, %vm5369
        %vm5626 = vmor %vm4826, %vm5370
        %vm5627 = vmor %vm4827, %vm5371
        %vm5628 = vmor %vm4828, %vm5372
        %vm5629 = vmor %vm4829, %vm5373
        %vm5630 = vmor %vm4830, %vm5374
        %vm5631 = vmor %vm4831, %vm5375
        %vm5632 = vmor %vm4832, %vm5376
        %vm5633 = vmor %vm4833, %vm5377
        %vm5634 = vmor %vm4834, %vm5378
        %vm5635 = vmor %vm4835, %vm5379
        %vm5636 = vmor %vm4836, %vm5380
        %vm5637 = vmor %vm4837, %vm5381
        %vm5638 = vmor %vm4838, %vm5382
        %vm5639 = vmor %vm4839, %vm5383
        %vm5640 = vmor %vm4840, %vm5384
        %vm5641 = vmor %vm4841, %vm5385
        %vm5642 = vmor %vm4842, %vm5386
        %vm5643 = vmor %vm4843, %vm5387
        %vm5644 = vmor %vm4844, %vm5388
        %vm5645 = vmor %vm4845, %vm5389
        %vm5646 = vmor %vm4846, %vm5390
        %vm5647 = vmor %vm4847, %vm5391
        %vm5648 = vmor %vm4848, %vm5392
        %vm5649 = vmor %vm4849, %vm5393
        %vm5650 = vmor %vm4850, %vm5394
        %vm5651 = vmor %vm4851, %vm5395
        %vm5652 = vmor %vm4852, %vm5396
        %vm5653 = vmor %vm4853, %vm5397
        %vm5654 = vmor %vm4854, %vm5398
        %vm5655 = vmor %vm4855, %vm5399
        %vm5656 = vmor %vm4856, %vm5400
        %vm5657 = vmor %vm4857, %vm5401
        %vm5658 = vmor %vm4858, %vm5402
        %vm5659 = vmor %vm4859, %vm5403
        %vm5660 = vmor %vm4860, %vm5404
        %vm5661 = vmor %vm4861, %vm5405
        %vm5662 = vmor %vm4862, %vm5406
        %vm5663 = vmor %vm4863, %vm5407
        %vm5664 = vmor %vm4864, %vm5408
        %vm5665 = vmor %vm4865, %vm5409
        %vm5666 = vmor %vm4866, %vm5410
        %vm5667 = vmor %vm4867, %vm5411
        %vm5668 = vmor %vm4868, %vm5412
        %vm5669 = vmor %vm4869, %vm5413
        %vm5670 = vmor %vm4870, %vm5414
        %vm5671 = vmor %vm4871, %vm5415
        %vm5672 = vmor %vm4872, %vm5416
        %vm5673 = vmor %vm4873, %vm5417
        %vm5674 = vmor %vm4874, %vm5418
        %vm5675 = vmor %vm4875, %vm5419
        %vm5676 = vmor %vm4876, %vm5420
        %vm5677 = vmor %vm4877, %vm5421
        %vm5678 = vmor %vm4878, %vm5422
        %vm5679 = vmor %vm4879, %vm5423
        %vm5680 = vmor %vm4880, %vm5424
        %vm5681 = vmor %vm4881, %vm5425
        %vm5682 = vmor %vm4882, %vm5426
        %vm5683 = vmor %vm4883, %vm5427
        %vm5684 = vmor %vm4884, %vm5428
        %vm5685 = vmor %vm4885, %vm5429
        %vm5686 = vmor %vm4886, %vm5430
        %vm5687 = vmor %vm4887, %vm5431
        %vm5688 = vmor %vm4888, %vm5432
        %vm5689 = vmor %vm4889, %vm5433
        %vm5690 = vmor %vm4890, %vm5434
        %vm5691 = vmor %vm4891, %vm5435
        %vm5692 = vmor %vm4892, %vm5436
        %vm5693 = vmor %vm4893, %vm5437
        %vm5694 = vmor %vm4894, %vm5438
        %vm5695 = vmor %vm4895, %vm5439
        %vm5696 = vmor %vm4896, %vm5440
        %vm5697 = vmor %vm4897, %vm5441
        %vm5698 = vmor %vm4898, %vm5442
        %vm5699 = vmor %vm4899, %vm5443
        %vm5700 = vmor %vm4900, %vm5444
        %vm5701 = vmor %vm4901, %vm5445
        %vm5702 = vmor %vm4902, %vm5446
        %vm5703 = vmor %vm4903, %vm5447
        %vm5704 = vmor %vm4904, %vm5448
        %vm5705 = vmor %vm4905, %vm5449
        %vm5706 = vmor %vm4906, %vm5450
        %vm5707 = vmor %vm4907, %vm5451
        %vm5708 = vmor %vm4908, %vm5452
        %vm5709 = vmor %vm4909, %vm5453
        %vm5710 = vmor %vm4910, %vm5454
        %vm5711 = vmor %vm4911, %vm5455
        %vm5712 = vmor %vm4912, %vm5456
        %vm5713 = vmor %vm4913, %vm5457
        %vm5714 = vmor %vm4914, %vm5458
        %vm5715 = vmor %vm4915, %vm5459
        %vm5716 = vmor %vm4916, %vm5460
        %vm5717 = vmor %vm4917, %vm5461
        %vm5718 = vmor %vm4918, %vm5462
        %vm5719 = vmor %vm4919, %vm5463
        %vm5720 = vmor %vm4920, %vm5464
        %vm5721 = vmor %vm4921, %vm5465
        %vm5722 = vmor %vm4922, %vm5466
        %vm5723 = vmor %vm4923, %vm5467
        %vm5724 = vmor %vm4924, %vm5468
        %vm5725 = vmor %vm4925, %vm5469
        %vm5726 = vmor %vm4926, %vm5470
        %vm5727 = vmor %vm4927, %vm5471
        %vm5728 = vmor %vm4928, %vm5472
        %vm5729 = vmor %vm4929, %vm5473
        %vm5730 = vmor %vm4930, %vm5474
        %vm5731 = vmor %vm4931, %vm5475
        %vm5732 = vmor %vm4932, %vm5476
        %vm5733 = vmor %vm4933, %vm5477
        %vm5734 = vmor %vm4934, %vm5478
        %vm5735 = vmor %vm4935, %vm5479
        %vm5736 = vmor %vm4936, %vm5480
        %vm5737 = vmor %vm4937, %vm5481
        %vm5738 = vmor %vm4938, %vm5482
        %vm5739 = vmor %vm4939, %vm5483
        %vm5740 = vmor %vm4940, %vm5484
        %vm5741 = vmor %vm4941, %vm5485
        %vm5742 = vmor %vm4942, %vm5486
        %vm5743 = vmor %vm4943, %vm5487
        %vm5744 = vmor %vm4944, %vm5488
        %vm5745 = vmor %vm4945, %vm5489
        %vm5746 = vmor %vm4946, %vm5490
        %vm5747 = vmor %vm4947, %vm5491
        %vm5748 = vmor %vm4948, %vm5492
        %vm5749 = vmor %vm4949, %vm5493
        %vm5750 = vmor %vm4950, %vm5494
        %vm5751 = vmor %vm4951, %vm5495
        %vm5752 = vmor %vm4952, %vm5496
        %vm5753 = vmor %vm4953, %vm5497
        %vm5754 = vmor %vm4954, %vm5498
        %vm5755 = vmor %vm4955, %vm5499
        %vm5756 = vmor %vm4956, %vm5500
        %vm5757 = vmor %vm4957, %vm5501
        %vm5758 = vmor %vm4958, %vm5502
        %vm5759 = vmor %vm4959, %vm5503
        %vm5760 = vmor %vm4960, %vm5504
        %vm5761 = vmor %vm4961, %vm5505
        %vm5762 = vmor %vm4962, %vm5506
        %vm5763 = vmor %vm4963, %vm5507
        %vm5764 = vmor %vm4964, %vm5508
        %vm5765 = vmor %vm4965, %vm5509
        %vm5766 = vmor %vm4966, %vm5510
        %vm5767 = vmor %vm4967, %vm5511
        %vm5768 = vmor %vm4968, %vm5512
        %vm5769 = vmor %vm4969, %vm5513
        %vm5770 = vmor %vm4970, %vm5514
        %vm5771 = vmor %vm4971, %vm5515
        %vm5772 = vmor %vm4972, %vm5516
        %vm5773 = vmor %vm4973, %vm5517
        %vm5774 = vmor %vm4974, %vm5518
        %vm5775 = vmor %vm4975, %vm5519
        %vm5776 = vmor %vm4976, %vm5520
        %vm5777 = vmor %vm4977, %vm5521
        %vm5778 = vmor %vm4978, %vm5522
        %vm5779 = vmor %vm4979, %vm5523
        %vm5780 = vmor %vm4980, %vm5524
        %vm5781 = vmor %vm4981, %vm5525
        %vm5782 = vmor %vm4982, %vm5526
        %vm5783 = vmor %vm4983, %vm5527
        %vm5784 = vmor %vm4984, %vm5528
        %vm5785 = vmor %vm4985, %vm5529
        %vm5786 = vmor %vm4986, %vm5530
        %vm5787 = vmor %vm4987, %vm5531
        %vm5788 = vmor %vm4988, %vm5532
        %vm5789 = vmor %vm4989, %vm5533
        %vm5790 = vmor %vm4990, %vm5534
        %vm5791 = vmor %vm4991, %vm5535
        %vm5792 = vmor %vm4992, %vm5536
        %vm5793 = vmor %vm4993, %vm5537
        %v5794 = vsel %vm5538, 1, 0
        %v5795 = vsel %vm5539, 1, 0
        %v5796 = vsel %vm5540, 1, 0
        %v5797 = vsel %vm5541, 1, 0
        %v5798 = vsel %vm5542, 1, 0
        %v5799 = vsel %vm5543, 1, 0
        %v5800 = vsel %vm5544, 1, 0
        %v5801 = vsel %vm5545, 1, 0
        %v5802 = vsel %vm5546, 1, 0
        %v5803 = vsel %vm5547, 1, 0
        %v5804 = vsel %vm5548, 1, 0
        %v5805 = vsel %vm5549, 1, 0
        %v5806 = vsel %vm5550, 1, 0
        %v5807 = vsel %vm5551, 1, 0
        %v5808 = vsel %vm5552, 1, 0
        %v5809 = vsel %vm5553, 1, 0
        %v5810 = vsel %vm5554, 1, 0
        %v5811 = vsel %vm5555, 1, 0
        %v5812 = vsel %vm5556, 1, 0
        %v5813 = vsel %vm5557, 1, 0
        %v5814 = vsel %vm5558, 1, 0
        %v5815 = vsel %vm5559, 1, 0
        %v5816 = vsel %vm5560, 1, 0
        %v5817 = vsel %vm5561, 1, 0
        %v5818 = vsel %vm5562, 1, 0
        %v5819 = vsel %vm5563, 1, 0
        %v5820 = vsel %vm5564, 1, 0
        %v5821 = vsel %vm5565, 1, 0
        %v5822 = vsel %vm5566, 1, 0
        %v5823 = vsel %vm5567, 1, 0
        %v5824 = vsel %vm5568, 1, 0
        %v5825 = vsel %vm5569, 1, 0
        %v5826 = vsel %vm5570, 1, 0
        %v5827 = vsel %vm5571, 1, 0
        %v5828 = vsel %vm5572, 1, 0
        %v5829 = vsel %vm5573, 1, 0
        %v5830 = vsel %vm5574, 1, 0
        %v5831 = vsel %vm5575, 1, 0
        %v5832 = vsel %vm5576, 1, 0
        %v5833 = vsel %vm5577, 1, 0
        %v5834 = vsel %vm5578, 1, 0
        %v5835 = vsel %vm5579, 1, 0
        %v5836 = vsel %vm5580, 1, 0
        %v5837 = vsel %vm5581, 1, 0
        %v5838 = vsel %vm5582, 1, 0
        %v5839 = vsel %vm5583, 1, 0
        %v5840 = vsel %vm5584, 1, 0
        %v5841 = vsel %vm5585, 1, 0
        %v5842 = vsel %vm5586, 1, 0
        %v5843 = vsel %vm5587, 1, 0
        %v5844 = vsel %vm5588, 1, 0
        %v5845 = vsel %vm5589, 1, 0
        %v5846 = vsel %vm5590, 1, 0
        %v5847 = vsel %vm5591, 1, 0
        %v5848 = vsel %vm5592, 1, 0
        %v5849 = vsel %vm5593, 1, 0
        %v5850 = vsel %vm5594, 1, 0
        %v5851 = vsel %vm5595, 1, 0
        %v5852 = vsel %vm5596, 1, 0
        %v5853 = vsel %vm5597, 1, 0
        %v5854 = vsel %vm5598, 1, 0
        %v5855 = vsel %vm5599, 1, 0
        %v5856 = vsel %vm5600, 1, 0
        %v5857 = vsel %vm5601, 1, 0
        %v5858 = vsel %vm5602, 1, 0
        %v5859 = vsel %vm5603, 1, 0
        %v5860 = vsel %vm5604, 1, 0
        %v5861 = vsel %vm5605, 1, 0
        %v5862 = vsel %vm5606, 1, 0
        %v5863 = vsel %vm5607, 1, 0
        %v5864 = vsel %vm5608, 1, 0
        %v5865 = vsel %vm5609, 1, 0
        %v5866 = vsel %vm5610, 1, 0
        %v5867 = vsel %vm5611, 1, 0
        %v5868 = vsel %vm5612, 1, 0
        %v5869 = vsel %vm5613, 1, 0
        %v5870 = vsel %vm5614, 1, 0
        %v5871 = vsel %vm5615, 1, 0
        %v5872 = vsel %vm5616, 1, 0
        %v5873 = vsel %vm5617, 1, 0
        %v5874 = vsel %vm5618, 1, 0
        %v5875 = vsel %vm5619, 1, 0
        %v5876 = vsel %vm5620, 1, 0
        %v5877 = vsel %vm5621, 1, 0
        %v5878 = vsel %vm5622, 1, 0
        %v5879 = vsel %vm5623, 1, 0
        %v5880 = vsel %vm5624, 1, 0
        %v5881 = vsel %vm5625, 1, 0
        %v5882 = vsel %vm5626, 1, 0
        %v5883 = vsel %vm5627, 1, 0
        %v5884 = vsel %vm5628, 1, 0
        %v5885 = vsel %vm5629, 1, 0
        %v5886 = vsel %vm5630, 1, 0
        %v5887 = vsel %vm5631, 1, 0
        %v5888 = vsel %vm5632, 1, 0
        %v5889 = vsel %vm5633, 1, 0
        %v5890 = vsel %vm5634, 1, 0
        %v5891 = vsel %vm5635, 1, 0
        %v5892 = vsel %vm5636, 1, 0
        %v5893 = vsel %vm5637, 1, 0
        %v5894 = vsel %vm5638, 1, 0
        %v5895 = vsel %vm5639, 1, 0
        %v5896 = vsel %vm5640, 1, 0
        %v5897 = vsel %vm5641, 1, 0
        %v5898 = vsel %vm5642, 1, 0
        %v5899 = vsel %vm5643, 1, 0
        %v5900 = vsel %vm5644, 1, 0
        %v5901 = vsel %vm5645, 1, 0
        %v5902 = vsel %vm5646, 1, 0
        %v5903 = vsel %vm5647, 1, 0
        %v5904 = vsel %vm5648, 1, 0
        %v5905 = vsel %vm5649, 1, 0
        %v5906 = vsel %vm5650, 1, 0
        %v5907 = vsel %vm5651, 1, 0
        %v5908 = vsel %vm5652, 1, 0
        %v5909 = vsel %vm5653, 1, 0
        %v5910 = vsel %vm5654, 1, 0
        %v5911 = vsel %vm5655, 1, 0
        %v5912 = vsel %vm5656, 1, 0
        %v5913 = vsel %vm5657, 1, 0
        %v5914 = vsel %vm5658, 1, 0
        %v5915 = vsel %vm5659, 1, 0
        %v5916 = vsel %vm5660, 1, 0
        %v5917 = vsel %vm5661, 1, 0
        %v5918 = vsel %vm5662, 1, 0
        %v5919 = vsel %vm5663, 1, 0
        %v5920 = vsel %vm5664, 1, 0
        %v5921 = vsel %vm5665, 1, 0
        %v5922 = vsel %vm5666, 1, 0
        %v5923 = vsel %vm5667, 1, 0
        %v5924 = vsel %vm5668, 1, 0
        %v5925 = vsel %vm5669, 1, 0
        %v5926 = vsel %vm5670, 1, 0
        %v5927 = vsel %vm5671, 1, 0
        %v5928 = vsel %vm5672, 1, 0
        %v5929 = vsel %vm5673, 1, 0
        %v5930 = vsel %vm5674, 1, 0
        %v5931 = vsel %vm5675, 1, 0
        %v5932 = vsel %vm5676, 1, 0
        %v5933 = vsel %vm5677, 1, 0
        %v5934 = vsel %vm5678, 1, 0
        %v5935 = vsel %vm5679, 1, 0
        %v5936 = vsel %vm5680, 1, 0
        %v5937 = vsel %vm5681, 1, 0
        %v5938 = vsel %vm5682, 1, 0
        %v5939 = vsel %vm5683, 1, 0
        %v5940 = vsel %vm5684, 1, 0
        %v5941 = vsel %vm5685, 1, 0
        %v5942 = vsel %vm5686, 1, 0
        %v5943 = vsel %vm5687, 1, 0
        %v5944 = vsel %vm5688, 1, 0
        %v5945 = vsel %vm5689, 1, 0
        %v5946 = vsel %vm5690, 1, 0
        %v5947 = vsel %vm5691, 1, 0
        %v5948 = vsel %vm5692, 1, 0
        %v5949 = vsel %vm5693, 1, 0
        %v5950 = vsel %vm5694, 1, 0
        %v5951 = vsel %vm5695, 1, 0
        %v5952 = vsel %vm5696, 1, 0
        %v5953 = vsel %vm5697, 1, 0
        %v5954 = vsel %vm5698, 1, 0
        %v5955 = vsel %vm5699, 1, 0
        %v5956 = vsel %vm5700, 1, 0
        %v5957 = vsel %vm5701, 1, 0
        %v5958 = vsel %vm5702, 1, 0
        %v5959 = vsel %vm5703, 1, 0
        %v5960 = vsel %vm5704, 1, 0
        %v5961 = vsel %vm5705, 1, 0
        %v5962 = vsel %vm5706, 1, 0
        %v5963 = vsel %vm5707, 1, 0
        %v5964 = vsel %vm5708, 1, 0
        %v5965 = vsel %vm5709, 1, 0
        %v5966 = vsel %vm5710, 1, 0
        %v5967 = vsel %vm5711, 1, 0
        %v5968 = vsel %vm5712, 1, 0
        %v5969 = vsel %vm5713, 1, 0
        %v5970 = vsel %vm5714, 1, 0
        %v5971 = vsel %vm5715, 1, 0
        %v5972 = vsel %vm5716, 1, 0
        %v5973 = vsel %vm5717, 1, 0
        %v5974 = vsel %vm5718, 1, 0
        %v5975 = vsel %vm5719, 1, 0
        %v5976 = vsel %vm5720, 1, 0
        %v5977 = vsel %vm5721, 1, 0
        %v5978 = vsel %vm5722, 1, 0
        %v5979 = vsel %vm5723, 1, 0
        %v5980 = vsel %vm5724, 1, 0
        %v5981 = vsel %vm5725, 1, 0
        %v5982 = vsel %vm5726, 1, 0
        %v5983 = vsel %vm5727, 1, 0
        %v5984 = vsel %vm5728, 1, 0
        %v5985 = vsel %vm5729, 1, 0
        %v5986 = vsel %vm5730, 1, 0
        %v5987 = vsel %vm5731, 1, 0
        %v5988 = vsel %vm5732, 1, 0
        %v5989 = vsel %vm5733, 1, 0
        %v5990 = vsel %vm5734, 1, 0
        %v5991 = vsel %vm5735, 1, 0
        %v5992 = vsel %vm5736, 1, 0
        %v5993 = vsel %vm5737, 1, 0
        %v5994 = vsel %vm5738, 1, 0
        %v5995 = vsel %vm5739, 1, 0
        %v5996 = vsel %vm5740, 1, 0
        %v5997 = vsel %vm5741, 1, 0
        %v5998 = vsel %vm5742, 1, 0
        %v5999 = vsel %vm5743, 1, 0
        %v6000 = vsel %vm5744, 1, 0
        %v6001 = vsel %vm5745, 1, 0
        %v6002 = vsel %vm5746, 1, 0
        %v6003 = vsel %vm5747, 1, 0
        %v6004 = vsel %vm5748, 1, 0
        %v6005 = vsel %vm5749, 1, 0
        %v6006 = vsel %vm5750, 1, 0
        %v6007 = vsel %vm5751, 1, 0
        %v6008 = vsel %vm5752, 1, 0
        %v6009 = vsel %vm5753, 1, 0
        %v6010 = vsel %vm5754, 1, 0
        %v6011 = vsel %vm5755, 1, 0
        %v6012 = vsel %vm5756, 1, 0
        %v6013 = vsel %vm5757, 1, 0
        %v6014 = vsel %vm5758, 1, 0
        %v6015 = vsel %vm5759, 1, 0
        %v6016 = vsel %vm5760, 1, 0
        %v6017 = vsel %vm5761, 1, 0
        %v6018 = vsel %vm5762, 1, 0
        %v6019 = vsel %vm5763, 1, 0
        %v6020 = vsel %vm5764, 1, 0
        %v6021 = vsel %vm5765, 1, 0
        %v6022 = vsel %vm5766, 1, 0
        %v6023 = vsel %vm5767, 1, 0
        %v6024 = vsel %vm5768, 1, 0
        %v6025 = vsel %vm5769, 1, 0
        %v6026 = vsel %vm5770, 1, 0
        %v6027 = vsel %vm5771, 1, 0
        %v6028 = vsel %vm5772, 1, 0
        %v6029 = vsel %vm5773, 1, 0
        %v6030 = vsel %vm5774, 1, 0
        %v6031 = vsel %vm5775, 1, 0
        %v6032 = vsel %vm5776, 1, 0
        %v6033 = vsel %vm5777, 1, 0
        %v6034 = vsel %vm5778, 1, 0
        %v6035 = vsel %vm5779, 1, 0
        %v6036 = vsel %vm5780, 1, 0
        %v6037 = vsel %vm5781, 1, 0
        %v6038 = vsel %vm5782, 1, 0
        %v6039 = vsel %vm5783, 1, 0
        %v6040 = vsel %vm5784, 1, 0
        %v6041 = vsel %vm5785, 1, 0
        %v6042 = vsel %vm5786, 1, 0
        %v6043 = vsel %vm5787, 1, 0
        %v6044 = vsel %vm5788, 1, 0
        %v6045 = vsel %vm5789, 1, 0
        %v6046 = vsel %vm5790, 1, 0
        %v6047 = vsel %vm5791, 1, 0
        %v6048 = vsel %vm5792, 1, 0
        %v6049 = vsel %vm5793, 1, 0
        %v6050 = vcvt.s32.f32 %v5794
        %v6051 = vcvt.s32.f32 %v5795
        %v6052 = vcvt.s32.f32 %v5796
        %v6053 = vcvt.s32.f32 %v5797
        %v6054 = vcvt.s32.f32 %v5798
        %v6055 = vcvt.s32.f32 %v5799
        %v6056 = vcvt.s32.f32 %v5800
        %v6057 = vcvt.s32.f32 %v5801
        %v6058 = vcvt.s32.f32 %v5802
        %v6059 = vcvt.s32.f32 %v5803
        %v6060 = vcvt.s32.f32 %v5804
        %v6061 = vcvt.s32.f32 %v5805
        %v6062 = vcvt.s32.f32 %v5806
        %v6063 = vcvt.s32.f32 %v5807
        %v6064 = vcvt.s32.f32 %v5808
        %v6065 = vcvt.s32.f32 %v5809
        %v6066 = vcvt.s32.f32 %v5810
        %v6067 = vcvt.s32.f32 %v5811
        %v6068 = vcvt.s32.f32 %v5812
        %v6069 = vcvt.s32.f32 %v5813
        %v6070 = vcvt.s32.f32 %v5814
        %v6071 = vcvt.s32.f32 %v5815
        %v6072 = vcvt.s32.f32 %v5816
        %v6073 = vcvt.s32.f32 %v5817
        %v6074 = vcvt.s32.f32 %v5818
        %v6075 = vcvt.s32.f32 %v5819
        %v6076 = vcvt.s32.f32 %v5820
        %v6077 = vcvt.s32.f32 %v5821
        %v6078 = vcvt.s32.f32 %v5822
        %v6079 = vcvt.s32.f32 %v5823
        %v6080 = vcvt.s32.f32 %v5824
        %v6081 = vcvt.s32.f32 %v5825
        %v6082 = vcvt.s32.f32 %v5826
        %v6083 = vcvt.s32.f32 %v5827
        %v6084 = vcvt.s32.f32 %v5828
        %v6085 = vcvt.s32.f32 %v5829
        %v6086 = vcvt.s32.f32 %v5830
        %v6087 = vcvt.s32.f32 %v5831
        %v6088 = vcvt.s32.f32 %v5832
        %v6089 = vcvt.s32.f32 %v5833
        %v6090 = vcvt.s32.f32 %v5834
        %v6091 = vcvt.s32.f32 %v5835
        %v6092 = vcvt.s32.f32 %v5836
        %v6093 = vcvt.s32.f32 %v5837
        %v6094 = vcvt.s32.f32 %v5838
        %v6095 = vcvt.s32.f32 %v5839
        %v6096 = vcvt.s32.f32 %v5840
        %v6097 = vcvt.s32.f32 %v5841
        %v6098 = vcvt.s32.f32 %v5842
        %v6099 = vcvt.s32.f32 %v5843
        %v6100 = vcvt.s32.f32 %v5844
        %v6101 = vcvt.s32.f32 %v5845
        %v6102 = vcvt.s32.f32 %v5846
        %v6103 = vcvt.s32.f32 %v5847
        %v6104 = vcvt.s32.f32 %v5848
        %v6105 = vcvt.s32.f32 %v5849
        %v6106 = vcvt.s32.f32 %v5850
        %v6107 = vcvt.s32.f32 %v5851
        %v6108 = vcvt.s32.f32 %v5852
        %v6109 = vcvt.s32.f32 %v5853
        %v6110 = vcvt.s32.f32 %v5854
        %v6111 = vcvt.s32.f32 %v5855
        %v6112 = vcvt.s32.f32 %v5856
        %v6113 = vcvt.s32.f32 %v5857
        %v6114 = vcvt.s32.f32 %v5858
        %v6115 = vcvt.s32.f32 %v5859
        %v6116 = vcvt.s32.f32 %v5860
        %v6117 = vcvt.s32.f32 %v5861
        %v6118 = vcvt.s32.f32 %v5862
        %v6119 = vcvt.s32.f32 %v5863
        %v6120 = vcvt.s32.f32 %v5864
        %v6121 = vcvt.s32.f32 %v5865
        %v6122 = vcvt.s32.f32 %v5866
        %v6123 = vcvt.s32.f32 %v5867
        %v6124 = vcvt.s32.f32 %v5868
        %v6125 = vcvt.s32.f32 %v5869
        %v6126 = vcvt.s32.f32 %v5870
        %v6127 = vcvt.s32.f32 %v5871
        %v6128 = vcvt.s32.f32 %v5872
        %v6129 = vcvt.s32.f32 %v5873
        %v6130 = vcvt.s32.f32 %v5874
        %v6131 = vcvt.s32.f32 %v5875
        %v6132 = vcvt.s32.f32 %v5876
        %v6133 = vcvt.s32.f32 %v5877
        %v6134 = vcvt.s32.f32 %v5878
        %v6135 = vcvt.s32.f32 %v5879
        %v6136 = vcvt.s32.f32 %v5880
        %v6137 = vcvt.s32.f32 %v5881
        %v6138 = vcvt.s32.f32 %v5882
        %v6139 = vcvt.s32.f32 %v5883
        %v6140 = vcvt.s32.f32 %v5884
        %v6141 = vcvt.s32.f32 %v5885
        %v6142 = vcvt.s32.f32 %v5886
        %v6143 = vcvt.s32.f32 %v5887
        %v6144 = vcvt.s32.f32 %v5888
        %v6145 = vcvt.s32.f32 %v5889
        %v6146 = vcvt.s32.f32 %v5890
        %v6147 = vcvt.s32.f32 %v5891
        %v6148 = vcvt.s32.f32 %v5892
        %v6149 = vcvt.s32.f32 %v5893
        %v6150 = vcvt.s32.f32 %v5894
        %v6151 = vcvt.s32.f32 %v5895
        %v6152 = vcvt.s32.f32 %v5896
        %v6153 = vcvt.s32.f32 %v5897
        %v6154 = vcvt.s32.f32 %v5898
        %v6155 = vcvt.s32.f32 %v5899
        %v6156 = vcvt.s32.f32 %v5900
        %v6157 = vcvt.s32.f32 %v5901
        %v6158 = vcvt.s32.f32 %v5902
        %v6159 = vcvt.s32.f32 %v5903
        %v6160 = vcvt.s32.f32 %v5904
        %v6161 = vcvt.s32.f32 %v5905
        %v6162 = vcvt.s32.f32 %v5906
        %v6163 = vcvt.s32.f32 %v5907
        %v6164 = vcvt.s32.f32 %v5908
        %v6165 = vcvt.s32.f32 %v5909
        %v6166 = vcvt.s32.f32 %v5910
        %v6167 = vcvt.s32.f32 %v5911
        %v6168 = vcvt.s32.f32 %v5912
        %v6169 = vcvt.s32.f32 %v5913
        %v6170 = vcvt.s32.f32 %v5914
        %v6171 = vcvt.s32.f32 %v5915
        %v6172 = vcvt.s32.f32 %v5916
        %v6173 = vcvt.s32.f32 %v5917
        %v6174 = vcvt.s32.f32 %v5918
        %v6175 = vcvt.s32.f32 %v5919
        %v6176 = vcvt.s32.f32 %v5920
        %v6177 = vcvt.s32.f32 %v5921
        %v6178 = vcvt.s32.f32 %v5922
        %v6179 = vcvt.s32.f32 %v5923
        %v6180 = vcvt.s32.f32 %v5924
        %v6181 = vcvt.s32.f32 %v5925
        %v6182 = vcvt.s32.f32 %v5926
        %v6183 = vcvt.s32.f32 %v5927
        %v6184 = vcvt.s32.f32 %v5928
        %v6185 = vcvt.s32.f32 %v5929
        %v6186 = vcvt.s32.f32 %v5930
        %v6187 = vcvt.s32.f32 %v5931
        %v6188 = vcvt.s32.f32 %v5932
        %v6189 = vcvt.s32.f32 %v5933
        %v6190 = vcvt.s32.f32 %v5934
        %v6191 = vcvt.s32.f32 %v5935
        %v6192 = vcvt.s32.f32 %v5936
        %v6193 = vcvt.s32.f32 %v5937
        %v6194 = vcvt.s32.f32 %v5938
        %v6195 = vcvt.s32.f32 %v5939
        %v6196 = vcvt.s32.f32 %v5940
        %v6197 = vcvt.s32.f32 %v5941
        %v6198 = vcvt.s32.f32 %v5942
        %v6199 = vcvt.s32.f32 %v5943
        %v6200 = vcvt.s32.f32 %v5944
        %v6201 = vcvt.s32.f32 %v5945
        %v6202 = vcvt.s32.f32 %v5946
        %v6203 = vcvt.s32.f32 %v5947
        %v6204 = vcvt.s32.f32 %v5948
        %v6205 = vcvt.s32.f32 %v5949
        %v6206 = vcvt.s32.f32 %v5950
        %v6207 = vcvt.s32.f32 %v5951
        %v6208 = vcvt.s32.f32 %v5952
        %v6209 = vcvt.s32.f32 %v5953
        %v6210 = vcvt.s32.f32 %v5954
        %v6211 = vcvt.s32.f32 %v5955
        %v6212 = vcvt.s32.f32 %v5956
        %v6213 = vcvt.s32.f32 %v5957
        %v6214 = vcvt.s32.f32 %v5958
        %v6215 = vcvt.s32.f32 %v5959
        %v6216 = vcvt.s32.f32 %v5960
        %v6217 = vcvt.s32.f32 %v5961
        %v6218 = vcvt.s32.f32 %v5962
        %v6219 = vcvt.s32.f32 %v5963
        %v6220 = vcvt.s32.f32 %v5964
        %v6221 = vcvt.s32.f32 %v5965
        %v6222 = vcvt.s32.f32 %v5966
        %v6223 = vcvt.s32.f32 %v5967
        %v6224 = vcvt.s32.f32 %v5968
        %v6225 = vcvt.s32.f32 %v5969
        %v6226 = vcvt.s32.f32 %v5970
        %v6227 = vcvt.s32.f32 %v5971
        %v6228 = vcvt.s32.f32 %v5972
        %v6229 = vcvt.s32.f32 %v5973
        %v6230 = vcvt.s32.f32 %v5974
        %v6231 = vcvt.s32.f32 %v5975
        %v6232 = vcvt.s32.f32 %v5976
        %v6233 = vcvt.s32.f32 %v5977
        %v6234 = vcvt.s32.f32 %v5978
        %v6235 = vcvt.s32.f32 %v5979
        %v6236 = vcvt.s32.f32 %v5980
        %v6237 = vcvt.s32.f32 %v5981
        %v6238 = vcvt.s32.f32 %v5982
        %v6239 = vcvt.s32.f32 %v5983
        %v6240 = vcvt.s32.f32 %v5984
        %v6241 = vcvt.s32.f32 %v5985
        %v6242 = vcvt.s32.f32 %v5986
        %v6243 = vcvt.s32.f32 %v5987
        %v6244 = vcvt.s32.f32 %v5988
        %v6245 = vcvt.s32.f32 %v5989
        %v6246 = vcvt.s32.f32 %v5990
        %v6247 = vcvt.s32.f32 %v5991
        %v6248 = vcvt.s32.f32 %v5992
        %v6249 = vcvt.s32.f32 %v5993
        %v6250 = vcvt.s32.f32 %v5994
        %v6251 = vcvt.s32.f32 %v5995
        %v6252 = vcvt.s32.f32 %v5996
        %v6253 = vcvt.s32.f32 %v5997
        %v6254 = vcvt.s32.f32 %v5998
        %v6255 = vcvt.s32.f32 %v5999
        %v6256 = vcvt.s32.f32 %v6000
        %v6257 = vcvt.s32.f32 %v6001
        %v6258 = vcvt.s32.f32 %v6002
        %v6259 = vcvt.s32.f32 %v6003
        %v6260 = vcvt.s32.f32 %v6004
        %v6261 = vcvt.s32.f32 %v6005
        %v6262 = vcvt.s32.f32 %v6006
        %v6263 = vcvt.s32.f32 %v6007
        %v6264 = vcvt.s32.f32 %v6008
        %v6265 = vcvt.s32.f32 %v6009
        %v6266 = vcvt.s32.f32 %v6010
        %v6267 = vcvt.s32.f32 %v6011
        %v6268 = vcvt.s32.f32 %v6012
        %v6269 = vcvt.s32.f32 %v6013
        %v6270 = vcvt.s32.f32 %v6014
        %v6271 = vcvt.s32.f32 %v6015
        %v6272 = vcvt.s32.f32 %v6016
        %v6273 = vcvt.s32.f32 %v6017
        %v6274 = vcvt.s32.f32 %v6018
        %v6275 = vcvt.s32.f32 %v6019
        %v6276 = vcvt.s32.f32 %v6020
        %v6277 = vcvt.s32.f32 %v6021
        %v6278 = vcvt.s32.f32 %v6022
        %v6279 = vcvt.s32.f32 %v6023
        %v6280 = vcvt.s32.f32 %v6024
        %v6281 = vcvt.s32.f32 %v6025
        %v6282 = vcvt.s32.f32 %v6026
        %v6283 = vcvt.s32.f32 %v6027
        %v6284 = vcvt.s32.f32 %v6028
        %v6285 = vcvt.s32.f32 %v6029
        %v6286 = vcvt.s32.f32 %v6030
        %v6287 = vcvt.s32.f32 %v6031
        %v6288 = vcvt.s32.f32 %v6032
        %v6289 = vcvt.s32.f32 %v6033
        %v6290 = vcvt.s32.f32 %v6034
        %v6291 = vcvt.s32.f32 %v6035
        %v6292 = vcvt.s32.f32 %v6036
        %v6293 = vcvt.s32.f32 %v6037
        %v6294 = vcvt.s32.f32 %v6038
        %v6295 = vcvt.s32.f32 %v6039
        %v6296 = vcvt.s32.f32 %v6040
        %v6297 = vcvt.s32.f32 %v6041
        %v6298 = vcvt.s32.f32 %v6042
        %v6299 = vcvt.s32.f32 %v6043
        %v6300 = vcvt.s32.f32 %v6044
        %v6301 = vcvt.s32.f32 %v6045
        %v6302 = vcvt.s32.f32 %v6046
        %v6303 = vcvt.s32.f32 %v6047
        %v6304 = vcvt.s32.f32 %v6048
        %v6305 = vcvt.s32.f32 %v6049
        %v6306 = vadd.f32 %v6050, %v6052
        %v6307 = vadd.f32 %v6306, %v6054
        %v6308 = vadd.f32 %v6307, %v6056
        %v6309 = vadd.f32 %v6308, %v6058
        %v6310 = vadd.f32 %v6309, %v6060
        %v6311 = vadd.f32 %v6310, %v6062
        %v6312 = vadd.f32 %v6311, %v6064
        %v6313 = vadd.f32 %v6312, %v6066
        %v6314 = vadd.f32 %v6313, %v6068
        %v6315 = vadd.f32 %v6314, %v6070
        %v6316 = vadd.f32 %v6315, %v6072
        %v6317 = vadd.f32 %v6316, %v6074
        %v6318 = vadd.f32 %v6317, %v6076
        %v6319 = vadd.f32 %v6318, %v6078
        %v6320 = vadd.f32 %v6319, %v6080
        %v6321 = vrot.slane %v6320, 4
        %v6322 = vadd.f32 %v6320, %v6321
        %v6323 = vrot.slane %v6322, 2
        %v6324 = vadd.f32 %v6322, %v6323
        %v6325 = vrot.slane %v6324, 1
        %v6326 = vadd.f32 %v6324, %v6325
        %v6327 = vadd.f32 %v6051, %v6053
        %v6328 = vadd.f32 %v6327, %v6055
        %v6329 = vadd.f32 %v6328, %v6057
        %v6330 = vadd.f32 %v6329, %v6059
        %v6331 = vadd.f32 %v6330, %v6061
        %v6332 = vadd.f32 %v6331, %v6063
        %v6333 = vadd.f32 %v6332, %v6065
        %v6334 = vadd.f32 %v6333, %v6067
        %v6335 = vadd.f32 %v6334, %v6069
        %v6336 = vadd.f32 %v6335, %v6071
        %v6337 = vadd.f32 %v6336, %v6073
        %v6338 = vadd.f32 %v6337, %v6075
        %v6339 = vadd.f32 %v6338, %v6077
        %v6340 = vadd.f32 %v6339, %v6079
        %v6341 = vadd.f32 %v6340, %v6081
        %v6342 = vrot.slane %v6341, 4
        %v6343 = vadd.f32 %v6341, %v6342
        %v6344 = vrot.slane %v6343, 2
        %v6345 = vadd.f32 %v6343, %v6344
        %v6346 = vrot.slane %v6345, 1
        %v6347 = vadd.f32 %v6345, %v6346
        %v6348 = vadd.f32 %v6082, %v6084
        %v6349 = vadd.f32 %v6348, %v6086
        %v6350 = vadd.f32 %v6349, %v6088
        %v6351 = vadd.f32 %v6350, %v6090
        %v6352 = vadd.f32 %v6351, %v6092
        %v6353 = vadd.f32 %v6352, %v6094
        %v6354 = vadd.f32 %v6353, %v6096
        %v6355 = vadd.f32 %v6354, %v6098
        %v6356 = vadd.f32 %v6355, %v6100
        %v6357 = vadd.f32 %v6356, %v6102
        %v6358 = vadd.f32 %v6357, %v6104
        %v6359 = vadd.f32 %v6358, %v6106
        %v6360 = vadd.f32 %v6359, %v6108
        %v6361 = vadd.f32 %v6360, %v6110
        %v6362 = vadd.f32 %v6361, %v6112
        %v6363 = vrot.slane %v6362, 4
        %v6364 = vadd.f32 %v6362, %v6363
        %v6365 = vrot.slane %v6364, 2
        %v6366 = vadd.f32 %v6364, %v6365
        %v6367 = vrot.slane %v6366, 1
        %v6368 = vadd.f32 %v6366, %v6367
        %v6369 = vadd.f32 %v6083, %v6085
        %v6370 = vadd.f32 %v6369, %v6087
        %v6371 = vadd.f32 %v6370, %v6089
        %v6372 = vadd.f32 %v6371, %v6091
        %v6373 = vadd.f32 %v6372, %v6093
        %v6374 = vadd.f32 %v6373, %v6095
        %v6375 = vadd.f32 %v6374, %v6097
        %v6376 = vadd.f32 %v6375, %v6099
        %v6377 = vadd.f32 %v6376, %v6101
        %v6378 = vadd.f32 %v6377, %v6103
        %v6379 = vadd.f32 %v6378, %v6105
        %v6380 = vadd.f32 %v6379, %v6107
        %v6381 = vadd.f32 %v6380, %v6109
        %v6382 = vadd.f32 %v6381, %v6111
        %v6383 = vadd.f32 %v6382, %v6113
        %v6384 = vrot.slane %v6383, 4
        %v6385 = vadd.f32 %v6383, %v6384
        %v6386 = vrot.slane %v6385, 2
        %v6387 = vadd.f32 %v6385, %v6386
        %v6388 = vrot.slane %v6387, 1
        %v6389 = vadd.f32 %v6387, %v6388
        %v6390 = vadd.f32 %v6114, %v6116
        %v6391 = vadd.f32 %v6390, %v6118
        %v6392 = vadd.f32 %v6391, %v6120
        %v6393 = vadd.f32 %v6392, %v6122
        %v6394 = vadd.f32 %v6393, %v6124
        %v6395 = vadd.f32 %v6394, %v6126
        %v6396 = vadd.f32 %v6395, %v6128
        %v6397 = vadd.f32 %v6396, %v6130
        %v6398 = vadd.f32 %v6397, %v6132
        %v6399 = vadd.f32 %v6398, %v6134
        %v6400 = vadd.f32 %v6399, %v6136
        %v6401 = vadd.f32 %v6400, %v6138
        %v6402 = vadd.f32 %v6401, %v6140
        %v6403 = vadd.f32 %v6402, %v6142
        %v6404 = vadd.f32 %v6403, %v6144
        %v6405 = vrot.slane %v6404, 4
        %v6406 = vadd.f32 %v6404, %v6405
        %v6407 = vrot.slane %v6406, 2
        %v6408 = vadd.f32 %v6406, %v6407
        %v6409 = vrot.slane %v6408, 1
        %v6410 = vadd.f32 %v6408, %v6409
        %v6411 = vadd.f32 %v6115, %v6117
        %v6412 = vadd.f32 %v6411, %v6119
        %v6413 = vadd.f32 %v6412, %v6121
        %v6414 = vadd.f32 %v6413, %v6123
        %v6415 = vadd.f32 %v6414, %v6125
        %v6416 = vadd.f32 %v6415, %v6127
        %v6417 = vadd.f32 %v6416, %v6129
        %v6418 = vadd.f32 %v6417, %v6131
        %v6419 = vadd.f32 %v6418, %v6133
        %v6420 = vadd.f32 %v6419, %v6135
        %v6421 = vadd.f32 %v6420, %v6137
        %v6422 = vadd.f32 %v6421, %v6139
        %v6423 = vadd.f32 %v6422, %v6141
        %v6424 = vadd.f32 %v6423, %v6143
        %v6425 = vadd.f32 %v6424, %v6145
        %v6426 = vrot.slane %v6425, 4
        %v6427 = vadd.f32 %v6425, %v6426
        %v6428 = vrot.slane %v6427, 2
        %v6429 = vadd.f32 %v6427, %v6428
        %v6430 = vrot.slane %v6429, 1
        %v6431 = vadd.f32 %v6429, %v6430
        %v6432 = vadd.f32 %v6146, %v6148
        %v6433 = vadd.f32 %v6432, %v6150
        %v6434 = vadd.f32 %v6433, %v6152
        %v6435 = vadd.f32 %v6434, %v6154
        %v6436 = vadd.f32 %v6435, %v6156
        %v6437 = vadd.f32 %v6436, %v6158
        %v6438 = vadd.f32 %v6437, %v6160
        %v6439 = vadd.f32 %v6438, %v6162
        %v6440 = vadd.f32 %v6439, %v6164
        %v6441 = vadd.f32 %v6440, %v6166
        %v6442 = vadd.f32 %v6441, %v6168
        %v6443 = vadd.f32 %v6442, %v6170
        %v6444 = vadd.f32 %v6443, %v6172
        %v6445 = vadd.f32 %v6444, %v6174
        %v6446 = vadd.f32 %v6445, %v6176
        %v6447 = vrot.slane %v6446, 4
        %v6448 = vadd.f32 %v6446, %v6447
        %v6449 = vrot.slane %v6448, 2
        %v6450 = vadd.f32 %v6448, %v6449
        %v6451 = vrot.slane %v6450, 1
        %v6452 = vadd.f32 %v6450, %v6451
        %v6453 = vadd.f32 %v6147, %v6149
        %v6454 = vadd.f32 %v6453, %v6151
        %v6455 = vadd.f32 %v6454, %v6153
        %v6456 = vadd.f32 %v6455, %v6155
        %v6457 = vadd.f32 %v6456, %v6157
        %v6458 = vadd.f32 %v6457, %v6159
        %v6459 = vadd.f32 %v6458, %v6161
        %v6460 = vadd.f32 %v6459, %v6163
        %v6461 = vadd.f32 %v6460, %v6165
        %v6462 = vadd.f32 %v6461, %v6167
        %v6463 = vadd.f32 %v6462, %v6169
        %v6464 = vadd.f32 %v6463, %v6171
        %v6465 = vadd.f32 %v6464, %v6173
        %v6466 = vadd.f32 %v6465, %v6175
        %v6467 = vadd.f32 %v6466, %v6177
        %v6468 = vrot.slane %v6467, 4
        %v6469 = vadd.f32 %v6467, %v6468
        %v6470 = vrot.slane %v6469, 2
        %v6471 = vadd.f32 %v6469, %v6470
        %v6472 = vrot.slane %v6471, 1
        %v6473 = vadd.f32 %v6471, %v6472
        %v6474 = vadd.f32 %v6178, %v6180
        %v6475 = vadd.f32 %v6474, %v6182
        %v6476 = vadd.f32 %v6475, %v6184
        %v6477 = vadd.f32 %v6476, %v6186
        %v6478 = vadd.f32 %v6477, %v6188
        %v6479 = vadd.f32 %v6478, %v6190
        %v6480 = vadd.f32 %v6479, %v6192
        %v6481 = vadd.f32 %v6480, %v6194
        %v6482 = vadd.f32 %v6481, %v6196
        %v6483 = vadd.f32 %v6482, %v6198
        %v6484 = vadd.f32 %v6483, %v6200
        %v6485 = vadd.f32 %v6484, %v6202
        %v6486 = vadd.f32 %v6485, %v6204
        %v6487 = vadd.f32 %v6486, %v6206
        %v6488 = vadd.f32 %v6487, %v6208
        %v6489 = vrot.slane %v6488, 4
        %v6490 = vadd.f32 %v6488, %v6489
        %v6491 = vrot.slane %v6490, 2
        %v6492 = vadd.f32 %v6490, %v6491
        %v6493 = vrot.slane %v6492, 1
        %v6494 = vadd.f32 %v6492, %v6493
        %v6495 = vadd.f32 %v6179, %v6181
        %v6496 = vadd.f32 %v6495, %v6183
        %v6497 = vadd.f32 %v6496, %v6185
        %v6498 = vadd.f32 %v6497, %v6187
        %v6499 = vadd.f32 %v6498, %v6189
        %v6500 = vadd.f32 %v6499, %v6191
        %v6501 = vadd.f32 %v6500, %v6193
        %v6502 = vadd.f32 %v6501, %v6195
        %v6503 = vadd.f32 %v6502, %v6197
        %v6504 = vadd.f32 %v6503, %v6199
        %v6505 = vadd.f32 %v6504, %v6201
        %v6506 = vadd.f32 %v6505, %v6203
        %v6507 = vadd.f32 %v6506, %v6205
        %v6508 = vadd.f32 %v6507, %v6207
        %v6509 = vadd.f32 %v6508, %v6209
        %v6510 = vrot.slane %v6509, 4
        %v6511 = vadd.f32 %v6509, %v6510
        %v6512 = vrot.slane %v6511, 2
        %v6513 = vadd.f32 %v6511, %v6512
        %v6514 = vrot.slane %v6513, 1
        %v6515 = vadd.f32 %v6513, %v6514
        %v6516 = vadd.f32 %v6210, %v6212
        %v6517 = vadd.f32 %v6516, %v6214
        %v6518 = vadd.f32 %v6517, %v6216
        %v6519 = vadd.f32 %v6518, %v6218
        %v6520 = vadd.f32 %v6519, %v6220
        %v6521 = vadd.f32 %v6520, %v6222
        %v6522 = vadd.f32 %v6521, %v6224
        %v6523 = vadd.f32 %v6522, %v6226
        %v6524 = vadd.f32 %v6523, %v6228
        %v6525 = vadd.f32 %v6524, %v6230
        %v6526 = vadd.f32 %v6525, %v6232
        %v6527 = vadd.f32 %v6526, %v6234
        %v6528 = vadd.f32 %v6527, %v6236
        %v6529 = vadd.f32 %v6528, %v6238
        %v6530 = vadd.f32 %v6529, %v6240
        %v6531 = vrot.slane %v6530, 4
        %v6532 = vadd.f32 %v6530, %v6531
        %v6533 = vrot.slane %v6532, 2
        %v6534 = vadd.f32 %v6532, %v6533
        %v6535 = vrot.slane %v6534, 1
        %v6536 = vadd.f32 %v6534, %v6535
        %v6537 = vadd.f32 %v6211, %v6213
        %v6538 = vadd.f32 %v6537, %v6215
        %v6539 = vadd.f32 %v6538, %v6217
        %v6540 = vadd.f32 %v6539, %v6219
        %v6541 = vadd.f32 %v6540, %v6221
        %v6542 = vadd.f32 %v6541, %v6223
        %v6543 = vadd.f32 %v6542, %v6225
        %v6544 = vadd.f32 %v6543, %v6227
        %v6545 = vadd.f32 %v6544, %v6229
        %v6546 = vadd.f32 %v6545, %v6231
        %v6547 = vadd.f32 %v6546, %v6233
        %v6548 = vadd.f32 %v6547, %v6235
        %v6549 = vadd.f32 %v6548, %v6237
        %v6550 = vadd.f32 %v6549, %v6239
        %v6551 = vadd.f32 %v6550, %v6241
        %v6552 = vrot.slane %v6551, 4
        %v6553 = vadd.f32 %v6551, %v6552
        %v6554 = vrot.slane %v6553, 2
        %v6555 = vadd.f32 %v6553, %v6554
        %v6556 = vrot.slane %v6555, 1
        %v6557 = vadd.f32 %v6555, %v6556
        %v6558 = vadd.f32 %v6242, %v6244
        %v6559 = vadd.f32 %v6558, %v6246
        %v6560 = vadd.f32 %v6559, %v6248
        %v6561 = vadd.f32 %v6560, %v6250
        %v6562 = vadd.f32 %v6561, %v6252
        %v6563 = vadd.f32 %v6562, %v6254
        %v6564 = vadd.f32 %v6563, %v6256
        %v6565 = vadd.f32 %v6564, %v6258
        %v6566 = vadd.f32 %v6565, %v6260
        %v6567 = vadd.f32 %v6566, %v6262
        %v6568 = vadd.f32 %v6567, %v6264
        %v6569 = vadd.f32 %v6568, %v6266
        %v6570 = vadd.f32 %v6569, %v6268
        %v6571 = vadd.f32 %v6570, %v6270
        %v6572 = vadd.f32 %v6571, %v6272
        %v6573 = vrot.slane %v6572, 4
        %v6574 = vadd.f32 %v6572, %v6573
        %v6575 = vrot.slane %v6574, 2
        %v6576 = vadd.f32 %v6574, %v6575
        %v6577 = vrot.slane %v6576, 1
        %v6578 = vadd.f32 %v6576, %v6577
        %v6579 = vadd.f32 %v6243, %v6245
        %v6580 = vadd.f32 %v6579, %v6247
        %v6581 = vadd.f32 %v6580, %v6249
        %v6582 = vadd.f32 %v6581, %v6251
        %v6583 = vadd.f32 %v6582, %v6253
        %v6584 = vadd.f32 %v6583, %v6255
        %v6585 = vadd.f32 %v6584, %v6257
        %v6586 = vadd.f32 %v6585, %v6259
        %v6587 = vadd.f32 %v6586, %v6261
        %v6588 = vadd.f32 %v6587, %v6263
        %v6589 = vadd.f32 %v6588, %v6265
        %v6590 = vadd.f32 %v6589, %v6267
        %v6591 = vadd.f32 %v6590, %v6269
        %v6592 = vadd.f32 %v6591, %v6271
        %v6593 = vadd.f32 %v6592, %v6273
        %v6594 = vrot.slane %v6593, 4
        %v6595 = vadd.f32 %v6593, %v6594
        %v6596 = vrot.slane %v6595, 2
        %v6597 = vadd.f32 %v6595, %v6596
        %v6598 = vrot.slane %v6597, 1
        %v6599 = vadd.f32 %v6597, %v6598
        %v6600 = vadd.f32 %v6274, %v6276
        %v6601 = vadd.f32 %v6600, %v6278
        %v6602 = vadd.f32 %v6601, %v6280
        %v6603 = vadd.f32 %v6602, %v6282
        %v6604 = vadd.f32 %v6603, %v6284
        %v6605 = vadd.f32 %v6604, %v6286
        %v6606 = vadd.f32 %v6605, %v6288
        %v6607 = vadd.f32 %v6606, %v6290
        %v6608 = vadd.f32 %v6607, %v6292
        %v6609 = vadd.f32 %v6608, %v6294
        %v6610 = vadd.f32 %v6609, %v6296
        %v6611 = vadd.f32 %v6610, %v6298
        %v6612 = vadd.f32 %v6611, %v6300
        %v6613 = vadd.f32 %v6612, %v6302
        %v6614 = vadd.f32 %v6613, %v6304
        %v6615 = vrot.slane %v6614, 4
        %v6616 = vadd.f32 %v6614, %v6615
        %v6617 = vrot.slane %v6616, 2
        %v6618 = vadd.f32 %v6616, %v6617
        %v6619 = vrot.slane %v6618, 1
        %v6620 = vadd.f32 %v6618, %v6619
        %v6621 = vadd.f32 %v6275, %v6277
        %v6622 = vadd.f32 %v6621, %v6279
        %v6623 = vadd.f32 %v6622, %v6281
        %v6624 = vadd.f32 %v6623, %v6283
        %v6625 = vadd.f32 %v6624, %v6285
        %v6626 = vadd.f32 %v6625, %v6287
        %v6627 = vadd.f32 %v6626, %v6289
        %v6628 = vadd.f32 %v6627, %v6291
        %v6629 = vadd.f32 %v6628, %v6293
        %v6630 = vadd.f32 %v6629, %v6295
        %v6631 = vadd.f32 %v6630, %v6297
        %v6632 = vadd.f32 %v6631, %v6299
        %v6633 = vadd.f32 %v6632, %v6301
        %v6634 = vadd.f32 %v6633, %v6303
        %v6635 = vadd.f32 %v6634, %v6305
        %v6636 = vrot.slane %v6635, 4
        %v6637 = vadd.f32 %v6635, %v6636
        %v6638 = vrot.slane %v6637, 2
        %v6639 = vadd.f32 %v6637, %v6638
        %v6640 = vrot.slane %v6639, 1
        %v6641 = vadd.f32 %v6639, %v6640
        %v6642 = vadd.f32 %v6326, 0.0
        %v6643 = vadd.f32 %v6347, 0.0
        %v6644 = vadd.f32 %v6368, 0.0
        %v6645 = vadd.f32 %v6389, 0.0
        %v6646 = vadd.f32 %v6410, 0.0
        %v6647 = vadd.f32 %v6431, 0.0
        %v6648 = vadd.f32 %v6452, 0.0
        %v6649 = vadd.f32 %v6473, 0.0
        %v6650 = vadd.f32 %v6494, 0.0
        %v6651 = vadd.f32 %v6515, 0.0
        %v6652 = vadd.f32 %v6536, 0.0
        %v6653 = vadd.f32 %v6557, 0.0
        %v6654 = vadd.f32 %v6578, 0.0
        %v6655 = vadd.f32 %v6599, 0.0
        %v6656 = vadd.f32 %v6620, 0.0
        %v6657 = vadd.f32 %v6641, 0.0
        %6658 = vxpose.xlu0.b32.start [1/16] %v3812, 128
        %6659 = vxpose.xlu0.b32.cont [2/16] 0.0, 128
        %6660 = vxpose.xlu0.b32.cont [3/16] 0.0, 128
        %6661 = vxpose.xlu0.b32.cont [4/16] 0.0, 128
        %6662 = vxpose.xlu0.b32.cont [5/16] 0.0, 128
        %6663 = vxpose.xlu0.b32.cont [6/16] 0.0, 128
        %6664 = vxpose.xlu0.b32.cont [7/16] 0.0, 128
        %6665 = vxpose.xlu0.b32.cont [8/16] 0.0, 128
        %6666 = vxpose.xlu0.b32.cont [9/16] 0.0, 128
        %6667 = vxpose.xlu0.b32.cont [10/16] 0.0, 128
        %6668 = vxpose.xlu0.b32.cont [11/16] 0.0, 128
        %6669 = vxpose.xlu0.b32.cont [12/16] 0.0, 128
        %6670 = vxpose.xlu0.b32.cont [13/16] 0.0, 128
        %6671 = vxpose.xlu0.b32.cont [14/16] 0.0, 128
        %6672 = vxpose.xlu0.b32.cont [15/16] 0.0, 128
        %6673 = vxpose.xlu0.b32.end [16/16] 0.0, 128
        %v6674 = vpop.trf.xlu0
        %v6675 = vpop.trf.xlu0
        %v6676 = vpop.trf.xlu0
        %v6677 = vpop.trf.xlu0
        %v6678 = vpop.trf.xlu0
        %v6679 = vpop.trf.xlu0
        %v6680 = vpop.trf.xlu0
        %v6681 = vpop.trf.xlu0
        %v6682 = vpop.trf.xlu0
        %v6683 = vpop.trf.xlu0
        %v6684 = vpop.trf.xlu0
        %v6685 = vpop.trf.xlu0
        %v6686 = vpop.trf.xlu0
        %v6687 = vpop.trf.xlu0
        %v6688 = vpop.trf.xlu0
        %v6689 = vpop.trf.xlu0
        %6690 = vxpose.xlu0.b32.start [1/16] %v3814, 128
        %6691 = vxpose.xlu0.b32.cont [2/16] 0.0, 128
        %6692 = vxpose.xlu0.b32.cont [3/16] 0.0, 128
        %6693 = vxpose.xlu0.b32.cont [4/16] 0.0, 128
        %6694 = vxpose.xlu0.b32.cont [5/16] 0.0, 128
        %6695 = vxpose.xlu0.b32.cont [6/16] 0.0, 128
        %6696 = vxpose.xlu0.b32.cont [7/16] 0.0, 128
        %6697 = vxpose.xlu0.b32.cont [8/16] 0.0, 128
        %6698 = vxpose.xlu0.b32.cont [9/16] 0.0, 128
        %6699 = vxpose.xlu0.b32.cont [10/16] 0.0, 128
        %6700 = vxpose.xlu0.b32.cont [11/16] 0.0, 128
        %6701 = vxpose.xlu0.b32.cont [12/16] 0.0, 128
        %6702 = vxpose.xlu0.b32.cont [13/16] 0.0, 128
        %6703 = vxpose.xlu0.b32.cont [14/16] 0.0, 128
        %6704 = vxpose.xlu0.b32.cont [15/16] 0.0, 128
        %6705 = vxpose.xlu0.b32.end [16/16] 0.0, 128
        %v6706 = vpop.trf.xlu0
        %v6707 = vpop.trf.xlu0
        %v6708 = vpop.trf.xlu0
        %v6709 = vpop.trf.xlu0
        %v6710 = vpop.trf.xlu0
        %v6711 = vpop.trf.xlu0
        %v6712 = vpop.trf.xlu0
        %v6713 = vpop.trf.xlu0
        %v6714 = vpop.trf.xlu0
        %v6715 = vpop.trf.xlu0
        %v6716 = vpop.trf.xlu0
        %v6717 = vpop.trf.xlu0
        %v6718 = vpop.trf.xlu0
        %v6719 = vpop.trf.xlu0
        %v6720 = vpop.trf.xlu0
        %v6721 = vpop.trf.xlu0
        %6722 = vxpose.xlu0.b32.start [1/16] %v3816, 128
        %6723 = vxpose.xlu0.b32.cont [2/16] 0.0, 128
        %6724 = vxpose.xlu0.b32.cont [3/16] 0.0, 128
        %6725 = vxpose.xlu0.b32.cont [4/16] 0.0, 128
        %6726 = vxpose.xlu0.b32.cont [5/16] 0.0, 128
        %6727 = vxpose.xlu0.b32.cont [6/16] 0.0, 128
        %6728 = vxpose.xlu0.b32.cont [7/16] 0.0, 128
        %6729 = vxpose.xlu0.b32.cont [8/16] 0.0, 128
        %6730 = vxpose.xlu0.b32.cont [9/16] 0.0, 128
        %6731 = vxpose.xlu0.b32.cont [10/16] 0.0, 128
        %6732 = vxpose.xlu0.b32.cont [11/16] 0.0, 128
        %6733 = vxpose.xlu0.b32.cont [12/16] 0.0, 128
        %6734 = vxpose.xlu0.b32.cont [13/16] 0.0, 128
        %6735 = vxpose.xlu0.b32.cont [14/16] 0.0, 128
        %6736 = vxpose.xlu0.b32.cont [15/16] 0.0, 128
        %6737 = vxpose.xlu0.b32.end [16/16] 0.0, 128
        %v6738 = vpop.trf.xlu0
        %v6739 = vpop.trf.xlu0
        %v6740 = vpop.trf.xlu0
        %v6741 = vpop.trf.xlu0
        %v6742 = vpop.trf.xlu0
        %v6743 = vpop.trf.xlu0
        %v6744 = vpop.trf.xlu0
        %v6745 = vpop.trf.xlu0
        %v6746 = vpop.trf.xlu0
        %v6747 = vpop.trf.xlu0
        %v6748 = vpop.trf.xlu0
        %v6749 = vpop.trf.xlu0
        %v6750 = vpop.trf.xlu0
        %v6751 = vpop.trf.xlu0
        %v6752 = vpop.trf.xlu0
        %v6753 = vpop.trf.xlu0
        %6754 = vxpose.xlu0.b32.start [1/16] %v3818, 128
        %6755 = vxpose.xlu0.b32.cont [2/16] 0.0, 128
        %6756 = vxpose.xlu0.b32.cont [3/16] 0.0, 128
        %6757 = vxpose.xlu0.b32.cont [4/16] 0.0, 128
        %6758 = vxpose.xlu0.b32.cont [5/16] 0.0, 128
        %6759 = vxpose.xlu0.b32.cont [6/16] 0.0, 128
        %6760 = vxpose.xlu0.b32.cont [7/16] 0.0, 128
        %6761 = vxpose.xlu0.b32.cont [8/16] 0.0, 128
        %6762 = vxpose.xlu0.b32.cont [9/16] 0.0, 128
        %6763 = vxpose.xlu0.b32.cont [10/16] 0.0, 128
        %6764 = vxpose.xlu0.b32.cont [11/16] 0.0, 128
        %6765 = vxpose.xlu0.b32.cont [12/16] 0.0, 128
        %6766 = vxpose.xlu0.b32.cont [13/16] 0.0, 128
        %6767 = vxpose.xlu0.b32.cont [14/16] 0.0, 128
        %6768 = vxpose.xlu0.b32.cont [15/16] 0.0, 128
        %6769 = vxpose.xlu0.b32.end [16/16] 0.0, 128
        %v6770 = vpop.trf.xlu0
        %v6771 = vpop.trf.xlu0
        %v6772 = vpop.trf.xlu0
        %v6773 = vpop.trf.xlu0
        %v6774 = vpop.trf.xlu0
        %v6775 = vpop.trf.xlu0
        %v6776 = vpop.trf.xlu0
        %v6777 = vpop.trf.xlu0
        %v6778 = vpop.trf.xlu0
        %v6779 = vpop.trf.xlu0
        %v6780 = vpop.trf.xlu0
        %v6781 = vpop.trf.xlu0
        %v6782 = vpop.trf.xlu0
        %v6783 = vpop.trf.xlu0
        %v6784 = vpop.trf.xlu0
        %v6785 = vpop.trf.xlu0
        %6786 = vxpose.xlu0.b32.start [1/16] %v3820, 128
        %6787 = vxpose.xlu0.b32.cont [2/16] 0.0, 128
        %6788 = vxpose.xlu0.b32.cont [3/16] 0.0, 128
        %6789 = vxpose.xlu0.b32.cont [4/16] 0.0, 128
        %6790 = vxpose.xlu0.b32.cont [5/16] 0.0, 128
        %6791 = vxpose.xlu0.b32.cont [6/16] 0.0, 128
        %6792 = vxpose.xlu0.b32.cont [7/16] 0.0, 128
        %6793 = vxpose.xlu0.b32.cont [8/16] 0.0, 128
        %6794 = vxpose.xlu0.b32.cont [9/16] 0.0, 128
        %6795 = vxpose.xlu0.b32.cont [10/16] 0.0, 128
        %6796 = vxpose.xlu0.b32.cont [11/16] 0.0, 128
        %6797 = vxpose.xlu0.b32.cont [12/16] 0.0, 128
        %6798 = vxpose.xlu0.b32.cont [13/16] 0.0, 128
        %6799 = vxpose.xlu0.b32.cont [14/16] 0.0, 128
        %6800 = vxpose.xlu0.b32.cont [15/16] 0.0, 128
        %6801 = vxpose.xlu0.b32.end [16/16] 0.0, 128
        %v6802 = vpop.trf.xlu0
        %v6803 = vpop.trf.xlu0
        %v6804 = vpop.trf.xlu0
        %v6805 = vpop.trf.xlu0
        %v6806 = vpop.trf.xlu0
        %v6807 = vpop.trf.xlu0
        %v6808 = vpop.trf.xlu0
        %v6809 = vpop.trf.xlu0
        %v6810 = vpop.trf.xlu0
        %v6811 = vpop.trf.xlu0
        %v6812 = vpop.trf.xlu0
        %v6813 = vpop.trf.xlu0
        %v6814 = vpop.trf.xlu0
        %v6815 = vpop.trf.xlu0
        %v6816 = vpop.trf.xlu0
        %v6817 = vpop.trf.xlu0
        %6818 = vxpose.xlu0.b32.start [1/16] %v3822, 128
        %6819 = vxpose.xlu0.b32.cont [2/16] 0.0, 128
        %6820 = vxpose.xlu0.b32.cont [3/16] 0.0, 128
        %6821 = vxpose.xlu0.b32.cont [4/16] 0.0, 128
        %6822 = vxpose.xlu0.b32.cont [5/16] 0.0, 128
        %6823 = vxpose.xlu0.b32.cont [6/16] 0.0, 128
        %6824 = vxpose.xlu0.b32.cont [7/16] 0.0, 128
        %6825 = vxpose.xlu0.b32.cont [8/16] 0.0, 128
        %6826 = vxpose.xlu0.b32.cont [9/16] 0.0, 128
        %6827 = vxpose.xlu0.b32.cont [10/16] 0.0, 128
        %6828 = vxpose.xlu0.b32.cont [11/16] 0.0, 128
        %6829 = vxpose.xlu0.b32.cont [12/16] 0.0, 128
        %6830 = vxpose.xlu0.b32.cont [13/16] 0.0, 128
        %6831 = vxpose.xlu0.b32.cont [14/16] 0.0, 128
        %6832 = vxpose.xlu0.b32.cont [15/16] 0.0, 128
        %6833 = vxpose.xlu0.b32.end [16/16] 0.0, 128
        %v6834 = vpop.trf.xlu0
        %v6835 = vpop.trf.xlu0
        %v6836 = vpop.trf.xlu0
        %v6837 = vpop.trf.xlu0
        %v6838 = vpop.trf.xlu0
        %v6839 = vpop.trf.xlu0
        %v6840 = vpop.trf.xlu0
        %v6841 = vpop.trf.xlu0
        %v6842 = vpop.trf.xlu0
        %v6843 = vpop.trf.xlu0
        %v6844 = vpop.trf.xlu0
        %v6845 = vpop.trf.xlu0
        %v6846 = vpop.trf.xlu0
        %v6847 = vpop.trf.xlu0
        %v6848 = vpop.trf.xlu0
        %v6849 = vpop.trf.xlu0
        %6850 = vxpose.xlu0.b32.start [1/16] %v3824, 128
        %6851 = vxpose.xlu0.b32.cont [2/16] 0.0, 128
        %6852 = vxpose.xlu0.b32.cont [3/16] 0.0, 128
        %6853 = vxpose.xlu0.b32.cont [4/16] 0.0, 128
        %6854 = vxpose.xlu0.b32.cont [5/16] 0.0, 128
        %6855 = vxpose.xlu0.b32.cont [6/16] 0.0, 128
        %6856 = vxpose.xlu0.b32.cont [7/16] 0.0, 128
        %6857 = vxpose.xlu0.b32.cont [8/16] 0.0, 128
        %6858 = vxpose.xlu0.b32.cont [9/16] 0.0, 128
        %6859 = vxpose.xlu0.b32.cont [10/16] 0.0, 128
        %6860 = vxpose.xlu0.b32.cont [11/16] 0.0, 128
        %6861 = vxpose.xlu0.b32.cont [12/16] 0.0, 128
        %6862 = vxpose.xlu0.b32.cont [13/16] 0.0, 128
        %6863 = vxpose.xlu0.b32.cont [14/16] 0.0, 128
        %6864 = vxpose.xlu0.b32.cont [15/16] 0.0, 128
        %6865 = vxpose.xlu0.b32.end [16/16] 0.0, 128
        %v6866 = vpop.trf.xlu0
        %v6867 = vpop.trf.xlu0
        %v6868 = vpop.trf.xlu0
        %v6869 = vpop.trf.xlu0
        %v6870 = vpop.trf.xlu0
        %v6871 = vpop.trf.xlu0
        %v6872 = vpop.trf.xlu0
        %v6873 = vpop.trf.xlu0
        %v6874 = vpop.trf.xlu0
        %v6875 = vpop.trf.xlu0
        %v6876 = vpop.trf.xlu0
        %v6877 = vpop.trf.xlu0
        %v6878 = vpop.trf.xlu0
        %v6879 = vpop.trf.xlu0
        %v6880 = vpop.trf.xlu0
        %v6881 = vpop.trf.xlu0
        %6882 = vxpose.xlu0.b32.start [1/16] %v3826, 128
        %6883 = vxpose.xlu0.b32.cont [2/16] 0.0, 128
        %6884 = vxpose.xlu0.b32.cont [3/16] 0.0, 128
        %6885 = vxpose.xlu0.b32.cont [4/16] 0.0, 128
        %6886 = vxpose.xlu0.b32.cont [5/16] 0.0, 128
        %6887 = vxpose.xlu0.b32.cont [6/16] 0.0, 128
        %6888 = vxpose.xlu0.b32.cont [7/16] 0.0, 128
        %6889 = vxpose.xlu0.b32.cont [8/16] 0.0, 128
        %6890 = vxpose.xlu0.b32.cont [9/16] 0.0, 128
        %6891 = vxpose.xlu0.b32.cont [10/16] 0.0, 128
        %6892 = vxpose.xlu0.b32.cont [11/16] 0.0, 128
        %6893 = vxpose.xlu0.b32.cont [12/16] 0.0, 128
        %6894 = vxpose.xlu0.b32.cont [13/16] 0.0, 128
        %6895 = vxpose.xlu0.b32.cont [14/16] 0.0, 128
        %6896 = vxpose.xlu0.b32.cont [15/16] 0.0, 128
        %6897 = vxpose.xlu0.b32.end [16/16] 0.0, 128
        %v6898 = vpop.trf.xlu0
        %v6899 = vpop.trf.xlu0
        %v6900 = vpop.trf.xlu0
        %v6901 = vpop.trf.xlu0
        %v6902 = vpop.trf.xlu0
        %v6903 = vpop.trf.xlu0
        %v6904 = vpop.trf.xlu0
        %v6905 = vpop.trf.xlu0
        %v6906 = vpop.trf.xlu0
        %v6907 = vpop.trf.xlu0
        %v6908 = vpop.trf.xlu0
        %v6909 = vpop.trf.xlu0
        %v6910 = vpop.trf.xlu0
        %v6911 = vpop.trf.xlu0
        %v6912 = vpop.trf.xlu0
        %v6913 = vpop.trf.xlu0
        %v6914 = vadd.s32 %v851, 128
        %v6915 = vadd.s32 %v4083, 128
        %v6916 = vadd.s32 %v4084, 128
        %v6917 = vadd.s32 %v4085, 128
        %v6918 = vadd.s32 %v4086, 128
        %v6919 = vadd.s32 %v4087, 128
        %v6920 = vadd.s32 %v4088, 128
        %v6921 = vadd.s32 %v4089, 128
        %v6922 = vadd.s32 %v4090, 128
        %v6923 = vadd.s32 %v4091, 128
        %v6924 = vadd.s32 %v4092, 128
        %v6925 = vadd.s32 %v4093, 128
        %v6926 = vadd.s32 %v4094, 128
        %v6927 = vadd.s32 %v4095, 128
        %v6928 = vadd.s32 %v4096, 128
        %v6929 = vadd.s32 %v4097, 128
        %6931 = vset.pattern.permute.xlu0 0
        %6932 = vperm.xlu0 %6931, %v6674
        %v6933 = vpop.permute.xlu0 %6932
        %6936 = vset.pattern.permute.xlu0 0
        %6937 = vperm.xlu0 %6936, %v6675
        %v6938 = vpop.permute.xlu0 %6937
        %6941 = vset.pattern.permute.xlu0 0
        %6942 = vperm.xlu0 %6941, %v6676
        %v6943 = vpop.permute.xlu0 %6942
        %6946 = vset.pattern.permute.xlu0 0
        %6947 = vperm.xlu0 %6946, %v6677
        %v6948 = vpop.permute.xlu0 %6947
        %6951 = vset.pattern.permute.xlu0 0
        %6952 = vperm.xlu0 %6951, %v6678
        %v6953 = vpop.permute.xlu0 %6952
        %6956 = vset.pattern.permute.xlu0 0
        %6957 = vperm.xlu0 %6956, %v6679
        %v6958 = vpop.permute.xlu0 %6957
        %6961 = vset.pattern.permute.xlu0 0
        %6962 = vperm.xlu0 %6961, %v6680
        %v6963 = vpop.permute.xlu0 %6962
        %6966 = vset.pattern.permute.xlu0 0
        %6967 = vperm.xlu0 %6966, %v6681
        %v6968 = vpop.permute.xlu0 %6967
        %6971 = vset.pattern.permute.xlu0 0
        %6972 = vperm.xlu0 %6971, %v6682
        %v6973 = vpop.permute.xlu0 %6972
        %6976 = vset.pattern.permute.xlu0 0
        %6977 = vperm.xlu0 %6976, %v6683
        %v6978 = vpop.permute.xlu0 %6977
        %6981 = vset.pattern.permute.xlu0 0
        %6982 = vperm.xlu0 %6981, %v6684
        %v6983 = vpop.permute.xlu0 %6982
        %6986 = vset.pattern.permute.xlu0 0
        %6987 = vperm.xlu0 %6986, %v6685
        %v6988 = vpop.permute.xlu0 %6987
        %6991 = vset.pattern.permute.xlu0 0
        %6992 = vperm.xlu0 %6991, %v6686
        %v6993 = vpop.permute.xlu0 %6992
        %6996 = vset.pattern.permute.xlu0 0
        %6997 = vperm.xlu0 %6996, %v6687
        %v6998 = vpop.permute.xlu0 %6997
        %7001 = vset.pattern.permute.xlu0 0
        %7002 = vperm.xlu0 %7001, %v6688
        %v7003 = vpop.permute.xlu0 %7002
        %7006 = vset.pattern.permute.xlu0 0
        %7007 = vperm.xlu0 %7006, %v6689
        %v7008 = vpop.permute.xlu0 %7007
        %7011 = vset.pattern.permute.xlu0 0
        %7012 = vperm.xlu0 %7011, %v6706
        %v7013 = vpop.permute.xlu0 %7012
        %7016 = vset.pattern.permute.xlu0 0
        %7017 = vperm.xlu0 %7016, %v6707
        %v7018 = vpop.permute.xlu0 %7017
        %7021 = vset.pattern.permute.xlu0 0
        %7022 = vperm.xlu0 %7021, %v6708
        %v7023 = vpop.permute.xlu0 %7022
        %7026 = vset.pattern.permute.xlu0 0
        %7027 = vperm.xlu0 %7026, %v6709
        %v7028 = vpop.permute.xlu0 %7027
        %7031 = vset.pattern.permute.xlu0 0
        %7032 = vperm.xlu0 %7031, %v6710
        %v7033 = vpop.permute.xlu0 %7032
        %7036 = vset.pattern.permute.xlu0 0
        %7037 = vperm.xlu0 %7036, %v6711
        %v7038 = vpop.permute.xlu0 %7037
        %7041 = vset.pattern.permute.xlu0 0
        %7042 = vperm.xlu0 %7041, %v6712
        %v7043 = vpop.permute.xlu0 %7042
        %7046 = vset.pattern.permute.xlu0 0
        %7047 = vperm.xlu0 %7046, %v6713
        %v7048 = vpop.permute.xlu0 %7047
        %7051 = vset.pattern.permute.xlu0 0
        %7052 = vperm.xlu0 %7051, %v6714
        %v7053 = vpop.permute.xlu0 %7052
        %7056 = vset.pattern.permute.xlu0 0
        %7057 = vperm.xlu0 %7056, %v6715
        %v7058 = vpop.permute.xlu0 %7057
        %7061 = vset.pattern.permute.xlu0 0
        %7062 = vperm.xlu0 %7061, %v6716
        %v7063 = vpop.permute.xlu0 %7062
        %7066 = vset.pattern.permute.xlu0 0
        %7067 = vperm.xlu0 %7066, %v6717
        %v7068 = vpop.permute.xlu0 %7067
        %7071 = vset.pattern.permute.xlu0 0
        %7072 = vperm.xlu0 %7071, %v6718
        %v7073 = vpop.permute.xlu0 %7072
        %7076 = vset.pattern.permute.xlu0 0
        %7077 = vperm.xlu0 %7076, %v6719
        %v7078 = vpop.permute.xlu0 %7077
        %7081 = vset.pattern.permute.xlu0 0
        %7082 = vperm.xlu0 %7081, %v6720
        %v7083 = vpop.permute.xlu0 %7082
        %7086 = vset.pattern.permute.xlu0 0
        %7087 = vperm.xlu0 %7086, %v6721
        %v7088 = vpop.permute.xlu0 %7087
        %7091 = vset.pattern.permute.xlu0 0
        %7092 = vperm.xlu0 %7091, %v6738
        %v7093 = vpop.permute.xlu0 %7092
        %7096 = vset.pattern.permute.xlu0 0
        %7097 = vperm.xlu0 %7096, %v6739
        %v7098 = vpop.permute.xlu0 %7097
        %7101 = vset.pattern.permute.xlu0 0
        %7102 = vperm.xlu0 %7101, %v6740
        %v7103 = vpop.permute.xlu0 %7102
        %7106 = vset.pattern.permute.xlu0 0
        %7107 = vperm.xlu0 %7106, %v6741
        %v7108 = vpop.permute.xlu0 %7107
        %7111 = vset.pattern.permute.xlu0 0
        %7112 = vperm.xlu0 %7111, %v6742
        %v7113 = vpop.permute.xlu0 %7112
        %7116 = vset.pattern.permute.xlu0 0
        %7117 = vperm.xlu0 %7116, %v6743
        %v7118 = vpop.permute.xlu0 %7117
        %7121 = vset.pattern.permute.xlu0 0
        %7122 = vperm.xlu0 %7121, %v6744
        %v7123 = vpop.permute.xlu0 %7122
        %7126 = vset.pattern.permute.xlu0 0
        %7127 = vperm.xlu0 %7126, %v6745
        %v7128 = vpop.permute.xlu0 %7127
        %7131 = vset.pattern.permute.xlu0 0
        %7132 = vperm.xlu0 %7131, %v6746
        %v7133 = vpop.permute.xlu0 %7132
        %7136 = vset.pattern.permute.xlu0 0
        %7137 = vperm.xlu0 %7136, %v6747
        %v7138 = vpop.permute.xlu0 %7137
        %7141 = vset.pattern.permute.xlu0 0
        %7142 = vperm.xlu0 %7141, %v6748
        %v7143 = vpop.permute.xlu0 %7142
        %7146 = vset.pattern.permute.xlu0 0
        %7147 = vperm.xlu0 %7146, %v6749
        %v7148 = vpop.permute.xlu0 %7147
        %7151 = vset.pattern.permute.xlu0 0
        %7152 = vperm.xlu0 %7151, %v6750
        %v7153 = vpop.permute.xlu0 %7152
        %7156 = vset.pattern.permute.xlu0 0
        %7157 = vperm.xlu0 %7156, %v6751
        %v7158 = vpop.permute.xlu0 %7157
        %7161 = vset.pattern.permute.xlu0 0
        %7162 = vperm.xlu0 %7161, %v6752
        %v7163 = vpop.permute.xlu0 %7162
        %7166 = vset.pattern.permute.xlu0 0
        %7167 = vperm.xlu0 %7166, %v6753
        %v7168 = vpop.permute.xlu0 %7167
        %7171 = vset.pattern.permute.xlu0 0
        %7172 = vperm.xlu0 %7171, %v6770
        %v7173 = vpop.permute.xlu0 %7172
        %7176 = vset.pattern.permute.xlu0 0
        %7177 = vperm.xlu0 %7176, %v6771
        %v7178 = vpop.permute.xlu0 %7177
        %7181 = vset.pattern.permute.xlu0 0
        %7182 = vperm.xlu0 %7181, %v6772
        %v7183 = vpop.permute.xlu0 %7182
        %7186 = vset.pattern.permute.xlu0 0
        %7187 = vperm.xlu0 %7186, %v6773
        %v7188 = vpop.permute.xlu0 %7187
        %7191 = vset.pattern.permute.xlu0 0
        %7192 = vperm.xlu0 %7191, %v6774
        %v7193 = vpop.permute.xlu0 %7192
        %7196 = vset.pattern.permute.xlu0 0
        %7197 = vperm.xlu0 %7196, %v6775
        %v7198 = vpop.permute.xlu0 %7197
        %7201 = vset.pattern.permute.xlu0 0
        %7202 = vperm.xlu0 %7201, %v6776
        %v7203 = vpop.permute.xlu0 %7202
        %7206 = vset.pattern.permute.xlu0 0
        %7207 = vperm.xlu0 %7206, %v6777
        %v7208 = vpop.permute.xlu0 %7207
        %7211 = vset.pattern.permute.xlu0 0
        %7212 = vperm.xlu0 %7211, %v6778
        %v7213 = vpop.permute.xlu0 %7212
        %7216 = vset.pattern.permute.xlu0 0
        %7217 = vperm.xlu0 %7216, %v6779
        %v7218 = vpop.permute.xlu0 %7217
        %7221 = vset.pattern.permute.xlu0 0
        %7222 = vperm.xlu0 %7221, %v6780
        %v7223 = vpop.permute.xlu0 %7222
        %7226 = vset.pattern.permute.xlu0 0
        %7227 = vperm.xlu0 %7226, %v6781
        %v7228 = vpop.permute.xlu0 %7227
        %7231 = vset.pattern.permute.xlu0 0
        %7232 = vperm.xlu0 %7231, %v6782
        %v7233 = vpop.permute.xlu0 %7232
        %7236 = vset.pattern.permute.xlu0 0
        %7237 = vperm.xlu0 %7236, %v6783
        %v7238 = vpop.permute.xlu0 %7237
        %7241 = vset.pattern.permute.xlu0 0
        %7242 = vperm.xlu0 %7241, %v6784
        %v7243 = vpop.permute.xlu0 %7242
        %7246 = vset.pattern.permute.xlu0 0
        %7247 = vperm.xlu0 %7246, %v6785
        %v7248 = vpop.permute.xlu0 %7247
        %7251 = vset.pattern.permute.xlu0 0
        %7252 = vperm.xlu0 %7251, %v6802
        %v7253 = vpop.permute.xlu0 %7252
        %7256 = vset.pattern.permute.xlu0 0
        %7257 = vperm.xlu0 %7256, %v6803
        %v7258 = vpop.permute.xlu0 %7257
        %7261 = vset.pattern.permute.xlu0 0
        %7262 = vperm.xlu0 %7261, %v6804
        %v7263 = vpop.permute.xlu0 %7262
        %7266 = vset.pattern.permute.xlu0 0
        %7267 = vperm.xlu0 %7266, %v6805
        %v7268 = vpop.permute.xlu0 %7267
        %7271 = vset.pattern.permute.xlu0 0
        %7272 = vperm.xlu0 %7271, %v6806
        %v7273 = vpop.permute.xlu0 %7272
        %7276 = vset.pattern.permute.xlu0 0
        %7277 = vperm.xlu0 %7276, %v6807
        %v7278 = vpop.permute.xlu0 %7277
        %7281 = vset.pattern.permute.xlu0 0
        %7282 = vperm.xlu0 %7281, %v6808
        %v7283 = vpop.permute.xlu0 %7282
        %7286 = vset.pattern.permute.xlu0 0
        %7287 = vperm.xlu0 %7286, %v6809
        %v7288 = vpop.permute.xlu0 %7287
        %7291 = vset.pattern.permute.xlu0 0
        %7292 = vperm.xlu0 %7291, %v6810
        %v7293 = vpop.permute.xlu0 %7292
        %7296 = vset.pattern.permute.xlu0 0
        %7297 = vperm.xlu0 %7296, %v6811
        %v7298 = vpop.permute.xlu0 %7297
        %7301 = vset.pattern.permute.xlu0 0
        %7302 = vperm.xlu0 %7301, %v6812
        %v7303 = vpop.permute.xlu0 %7302
        %7306 = vset.pattern.permute.xlu0 0
        %7307 = vperm.xlu0 %7306, %v6813
        %v7308 = vpop.permute.xlu0 %7307
        %7311 = vset.pattern.permute.xlu0 0
        %7312 = vperm.xlu0 %7311, %v6814
        %v7313 = vpop.permute.xlu0 %7312
        %7316 = vset.pattern.permute.xlu0 0
        %7317 = vperm.xlu0 %7316, %v6815
        %v7318 = vpop.permute.xlu0 %7317
        %7321 = vset.pattern.permute.xlu0 0
        %7322 = vperm.xlu0 %7321, %v6816
        %v7323 = vpop.permute.xlu0 %7322
        %7326 = vset.pattern.permute.xlu0 0
        %7327 = vperm.xlu0 %7326, %v6817
        %v7328 = vpop.permute.xlu0 %7327
        %7331 = vset.pattern.permute.xlu0 0
        %7332 = vperm.xlu0 %7331, %v6834
        %v7333 = vpop.permute.xlu0 %7332
        %7336 = vset.pattern.permute.xlu0 0
        %7337 = vperm.xlu0 %7336, %v6835
        %v7338 = vpop.permute.xlu0 %7337
        %7341 = vset.pattern.permute.xlu0 0
        %7342 = vperm.xlu0 %7341, %v6836
        %v7343 = vpop.permute.xlu0 %7342
        %7346 = vset.pattern.permute.xlu0 0
        %7347 = vperm.xlu0 %7346, %v6837
        %v7348 = vpop.permute.xlu0 %7347
        %7351 = vset.pattern.permute.xlu0 0
        %7352 = vperm.xlu0 %7351, %v6838
        %v7353 = vpop.permute.xlu0 %7352
        %7356 = vset.pattern.permute.xlu0 0
        %7357 = vperm.xlu0 %7356, %v6839
        %v7358 = vpop.permute.xlu0 %7357
        %7361 = vset.pattern.permute.xlu0 0
        %7362 = vperm.xlu0 %7361, %v6840
        %v7363 = vpop.permute.xlu0 %7362
        %7366 = vset.pattern.permute.xlu0 0
        %7367 = vperm.xlu0 %7366, %v6841
        %v7368 = vpop.permute.xlu0 %7367
        %7371 = vset.pattern.permute.xlu0 0
        %7372 = vperm.xlu0 %7371, %v6842
        %v7373 = vpop.permute.xlu0 %7372
        %7376 = vset.pattern.permute.xlu0 0
        %7377 = vperm.xlu0 %7376, %v6843
        %v7378 = vpop.permute.xlu0 %7377
        %7381 = vset.pattern.permute.xlu0 0
        %7382 = vperm.xlu0 %7381, %v6844
        %v7383 = vpop.permute.xlu0 %7382
        %7386 = vset.pattern.permute.xlu0 0
        %7387 = vperm.xlu0 %7386, %v6845
        %v7388 = vpop.permute.xlu0 %7387
        %7391 = vset.pattern.permute.xlu0 0
        %7392 = vperm.xlu0 %7391, %v6846
        %v7393 = vpop.permute.xlu0 %7392
        %7396 = vset.pattern.permute.xlu0 0
        %7397 = vperm.xlu0 %7396, %v6847
        %v7398 = vpop.permute.xlu0 %7397
        %7401 = vset.pattern.permute.xlu0 0
        %7402 = vperm.xlu0 %7401, %v6848
        %v7403 = vpop.permute.xlu0 %7402
        %7406 = vset.pattern.permute.xlu0 0
        %7407 = vperm.xlu0 %7406, %v6849
        %v7408 = vpop.permute.xlu0 %7407
        %7411 = vset.pattern.permute.xlu0 0
        %7412 = vperm.xlu0 %7411, %v6866
        %v7413 = vpop.permute.xlu0 %7412
        %7416 = vset.pattern.permute.xlu0 0
        %7417 = vperm.xlu0 %7416, %v6867
        %v7418 = vpop.permute.xlu0 %7417
        %7421 = vset.pattern.permute.xlu0 0
        %7422 = vperm.xlu0 %7421, %v6868
        %v7423 = vpop.permute.xlu0 %7422
        %7426 = vset.pattern.permute.xlu0 0
        %7427 = vperm.xlu0 %7426, %v6869
        %v7428 = vpop.permute.xlu0 %7427
        %7431 = vset.pattern.permute.xlu0 0
        %7432 = vperm.xlu0 %7431, %v6870
        %v7433 = vpop.permute.xlu0 %7432
        %7436 = vset.pattern.permute.xlu0 0
        %7437 = vperm.xlu0 %7436, %v6871
        %v7438 = vpop.permute.xlu0 %7437
        %7441 = vset.pattern.permute.xlu0 0
        %7442 = vperm.xlu0 %7441, %v6872
        %v7443 = vpop.permute.xlu0 %7442
        %7446 = vset.pattern.permute.xlu0 0
        %7447 = vperm.xlu0 %7446, %v6873
        %v7448 = vpop.permute.xlu0 %7447
        %7451 = vset.pattern.permute.xlu0 0
        %7452 = vperm.xlu0 %7451, %v6874
        %v7453 = vpop.permute.xlu0 %7452
        %7456 = vset.pattern.permute.xlu0 0
        %7457 = vperm.xlu0 %7456, %v6875
        %v7458 = vpop.permute.xlu0 %7457
        %7461 = vset.pattern.permute.xlu0 0
        %7462 = vperm.xlu0 %7461, %v6876
        %v7463 = vpop.permute.xlu0 %7462
        %7466 = vset.pattern.permute.xlu0 0
        %7467 = vperm.xlu0 %7466, %v6877
        %v7468 = vpop.permute.xlu0 %7467
        %7471 = vset.pattern.permute.xlu0 0
        %7472 = vperm.xlu0 %7471, %v6878
        %v7473 = vpop.permute.xlu0 %7472
        %7476 = vset.pattern.permute.xlu0 0
        %7477 = vperm.xlu0 %7476, %v6879
        %v7478 = vpop.permute.xlu0 %7477
        %7481 = vset.pattern.permute.xlu0 0
        %7482 = vperm.xlu0 %7481, %v6880
        %v7483 = vpop.permute.xlu0 %7482
        %7486 = vset.pattern.permute.xlu0 0
        %7487 = vperm.xlu0 %7486, %v6881
        %v7488 = vpop.permute.xlu0 %7487
        %7491 = vset.pattern.permute.xlu0 0
        %7492 = vperm.xlu0 %7491, %v6898
        %v7493 = vpop.permute.xlu0 %7492
        %7496 = vset.pattern.permute.xlu0 0
        %7497 = vperm.xlu0 %7496, %v6899
        %v7498 = vpop.permute.xlu0 %7497
        %7501 = vset.pattern.permute.xlu0 0
        %7502 = vperm.xlu0 %7501, %v6900
        %v7503 = vpop.permute.xlu0 %7502
        %7506 = vset.pattern.permute.xlu0 0
        %7507 = vperm.xlu0 %7506, %v6901
        %v7508 = vpop.permute.xlu0 %7507
        %7511 = vset.pattern.permute.xlu0 0
        %7512 = vperm.xlu0 %7511, %v6902
        %v7513 = vpop.permute.xlu0 %7512
        %7516 = vset.pattern.permute.xlu0 0
        %7517 = vperm.xlu0 %7516, %v6903
        %v7518 = vpop.permute.xlu0 %7517
        %7521 = vset.pattern.permute.xlu0 0
        %7522 = vperm.xlu0 %7521, %v6904
        %v7523 = vpop.permute.xlu0 %7522
        %7526 = vset.pattern.permute.xlu0 0
        %7527 = vperm.xlu0 %7526, %v6905
        %v7528 = vpop.permute.xlu0 %7527
        %7531 = vset.pattern.permute.xlu0 0
        %7532 = vperm.xlu0 %7531, %v6906
        %v7533 = vpop.permute.xlu0 %7532
        %7536 = vset.pattern.permute.xlu0 0
        %7537 = vperm.xlu0 %7536, %v6907
        %v7538 = vpop.permute.xlu0 %7537
        %7541 = vset.pattern.permute.xlu0 0
        %7542 = vperm.xlu0 %7541, %v6908
        %v7543 = vpop.permute.xlu0 %7542
        %7546 = vset.pattern.permute.xlu0 0
        %7547 = vperm.xlu0 %7546, %v6909
        %v7548 = vpop.permute.xlu0 %7547
        %7551 = vset.pattern.permute.xlu0 0
        %7552 = vperm.xlu0 %7551, %v6910
        %v7553 = vpop.permute.xlu0 %7552
        %7556 = vset.pattern.permute.xlu0 0
        %7557 = vperm.xlu0 %7556, %v6911
        %v7558 = vpop.permute.xlu0 %7557
        %7561 = vset.pattern.permute.xlu0 0
        %7562 = vperm.xlu0 %7561, %v6912
        %v7563 = vpop.permute.xlu0 %7562
        %7566 = vset.pattern.permute.xlu0 0
        %7567 = vperm.xlu0 %7566, %v6913
        %v7568 = vpop.permute.xlu0 %7567
        %vm7570 = vcmp.gt.f32.partialorder %v6933, %v3811
        %vm7571 = vcmp.gt.f32.partialorder %v6933, %v3812
        %vm7572 = vcmp.gt.f32.partialorder %v6938, %v3811
        %vm7573 = vcmp.gt.f32.partialorder %v6938, %v3812
        %vm7574 = vcmp.gt.f32.partialorder %v6943, %v3811
        %vm7575 = vcmp.gt.f32.partialorder %v6943, %v3812
        %vm7576 = vcmp.gt.f32.partialorder %v6948, %v3811
        %vm7577 = vcmp.gt.f32.partialorder %v6948, %v3812
        %vm7578 = vcmp.gt.f32.partialorder %v6953, %v3811
        %vm7579 = vcmp.gt.f32.partialorder %v6953, %v3812
        %vm7580 = vcmp.gt.f32.partialorder %v6958, %v3811
        %vm7581 = vcmp.gt.f32.partialorder %v6958, %v3812
        %vm7582 = vcmp.gt.f32.partialorder %v6963, %v3811
        %vm7583 = vcmp.gt.f32.partialorder %v6963, %v3812
        %vm7584 = vcmp.gt.f32.partialorder %v6968, %v3811
        %vm7585 = vcmp.gt.f32.partialorder %v6968, %v3812
        %vm7586 = vcmp.gt.f32.partialorder %v6973, %v3811
        %vm7587 = vcmp.gt.f32.partialorder %v6973, %v3812
        %vm7588 = vcmp.gt.f32.partialorder %v6978, %v3811
        %vm7589 = vcmp.gt.f32.partialorder %v6978, %v3812
        %vm7590 = vcmp.gt.f32.partialorder %v6983, %v3811
        %vm7591 = vcmp.gt.f32.partialorder %v6983, %v3812
        %vm7592 = vcmp.gt.f32.partialorder %v6988, %v3811
        %vm7593 = vcmp.gt.f32.partialorder %v6988, %v3812
        %vm7594 = vcmp.gt.f32.partialorder %v6993, %v3811
        %vm7595 = vcmp.gt.f32.partialorder %v6993, %v3812
        %vm7596 = vcmp.gt.f32.partialorder %v6998, %v3811
        %vm7597 = vcmp.gt.f32.partialorder %v6998, %v3812
        %vm7598 = vcmp.gt.f32.partialorder %v7003, %v3811
        %vm7599 = vcmp.gt.f32.partialorder %v7003, %v3812
        %vm7600 = vcmp.gt.f32.partialorder %v7008, %v3811
        %vm7601 = vcmp.gt.f32.partialorder %v7008, %v3812
        %vm7602 = vcmp.gt.f32.partialorder %v7013, %v3813
        %vm7603 = vcmp.gt.f32.partialorder %v7013, %v3814
        %vm7604 = vcmp.gt.f32.partialorder %v7018, %v3813
        %vm7605 = vcmp.gt.f32.partialorder %v7018, %v3814
        %vm7606 = vcmp.gt.f32.partialorder %v7023, %v3813
        %vm7607 = vcmp.gt.f32.partialorder %v7023, %v3814
        %vm7608 = vcmp.gt.f32.partialorder %v7028, %v3813
        %vm7609 = vcmp.gt.f32.partialorder %v7028, %v3814
        %vm7610 = vcmp.gt.f32.partialorder %v7033, %v3813
        %vm7611 = vcmp.gt.f32.partialorder %v7033, %v3814
        %vm7612 = vcmp.gt.f32.partialorder %v7038, %v3813
        %vm7613 = vcmp.gt.f32.partialorder %v7038, %v3814
        %vm7614 = vcmp.gt.f32.partialorder %v7043, %v3813
        %vm7615 = vcmp.gt.f32.partialorder %v7043, %v3814
        %vm7616 = vcmp.gt.f32.partialorder %v7048, %v3813
        %vm7617 = vcmp.gt.f32.partialorder %v7048, %v3814
        %vm7618 = vcmp.gt.f32.partialorder %v7053, %v3813
        %vm7619 = vcmp.gt.f32.partialorder %v7053, %v3814
        %vm7620 = vcmp.gt.f32.partialorder %v7058, %v3813
        %vm7621 = vcmp.gt.f32.partialorder %v7058, %v3814
        %vm7622 = vcmp.gt.f32.partialorder %v7063, %v3813
        %vm7623 = vcmp.gt.f32.partialorder %v7063, %v3814
        %vm7624 = vcmp.gt.f32.partialorder %v7068, %v3813
        %vm7625 = vcmp.gt.f32.partialorder %v7068, %v3814
        %vm7626 = vcmp.gt.f32.partialorder %v7073, %v3813
        %vm7627 = vcmp.gt.f32.partialorder %v7073, %v3814
        %vm7628 = vcmp.gt.f32.partialorder %v7078, %v3813
        %vm7629 = vcmp.gt.f32.partialorder %v7078, %v3814
        %vm7630 = vcmp.gt.f32.partialorder %v7083, %v3813
        %vm7631 = vcmp.gt.f32.partialorder %v7083, %v3814
        %vm7632 = vcmp.gt.f32.partialorder %v7088, %v3813
        %vm7633 = vcmp.gt.f32.partialorder %v7088, %v3814
        %vm7634 = vcmp.gt.f32.partialorder %v7093, %v3815
        %vm7635 = vcmp.gt.f32.partialorder %v7093, %v3816
        %vm7636 = vcmp.gt.f32.partialorder %v7098, %v3815
        %vm7637 = vcmp.gt.f32.partialorder %v7098, %v3816
        %vm7638 = vcmp.gt.f32.partialorder %v7103, %v3815
        %vm7639 = vcmp.gt.f32.partialorder %v7103, %v3816
        %vm7640 = vcmp.gt.f32.partialorder %v7108, %v3815
        %vm7641 = vcmp.gt.f32.partialorder %v7108, %v3816
        %vm7642 = vcmp.gt.f32.partialorder %v7113, %v3815
        %vm7643 = vcmp.gt.f32.partialorder %v7113, %v3816
        %vm7644 = vcmp.gt.f32.partialorder %v7118, %v3815
        %vm7645 = vcmp.gt.f32.partialorder %v7118, %v3816
        %vm7646 = vcmp.gt.f32.partialorder %v7123, %v3815
        %vm7647 = vcmp.gt.f32.partialorder %v7123, %v3816
        %vm7648 = vcmp.gt.f32.partialorder %v7128, %v3815
        %vm7649 = vcmp.gt.f32.partialorder %v7128, %v3816
        %vm7650 = vcmp.gt.f32.partialorder %v7133, %v3815
        %vm7651 = vcmp.gt.f32.partialorder %v7133, %v3816
        %vm7652 = vcmp.gt.f32.partialorder %v7138, %v3815
        %vm7653 = vcmp.gt.f32.partialorder %v7138, %v3816
        %vm7654 = vcmp.gt.f32.partialorder %v7143, %v3815
        %vm7655 = vcmp.gt.f32.partialorder %v7143, %v3816
        %vm7656 = vcmp.gt.f32.partialorder %v7148, %v3815
        %vm7657 = vcmp.gt.f32.partialorder %v7148, %v3816
        %vm7658 = vcmp.gt.f32.partialorder %v7153, %v3815
        %vm7659 = vcmp.gt.f32.partialorder %v7153, %v3816
        %vm7660 = vcmp.gt.f32.partialorder %v7158, %v3815
        %vm7661 = vcmp.gt.f32.partialorder %v7158, %v3816
        %vm7662 = vcmp.gt.f32.partialorder %v7163, %v3815
        %vm7663 = vcmp.gt.f32.partialorder %v7163, %v3816
        %vm7664 = vcmp.gt.f32.partialorder %v7168, %v3815
        %vm7665 = vcmp.gt.f32.partialorder %v7168, %v3816
        %vm7666 = vcmp.gt.f32.partialorder %v7173, %v3817
        %vm7667 = vcmp.gt.f32.partialorder %v7173, %v3818
        %vm7668 = vcmp.gt.f32.partialorder %v7178, %v3817
        %vm7669 = vcmp.gt.f32.partialorder %v7178, %v3818
        %vm7670 = vcmp.gt.f32.partialorder %v7183, %v3817
        %vm7671 = vcmp.gt.f32.partialorder %v7183, %v3818
        %vm7672 = vcmp.gt.f32.partialorder %v7188, %v3817
        %vm7673 = vcmp.gt.f32.partialorder %v7188, %v3818
        %vm7674 = vcmp.gt.f32.partialorder %v7193, %v3817
        %vm7675 = vcmp.gt.f32.partialorder %v7193, %v3818
        %vm7676 = vcmp.gt.f32.partialorder %v7198, %v3817
        %vm7677 = vcmp.gt.f32.partialorder %v7198, %v3818
        %vm7678 = vcmp.gt.f32.partialorder %v7203, %v3817
        %vm7679 = vcmp.gt.f32.partialorder %v7203, %v3818
        %vm7680 = vcmp.gt.f32.partialorder %v7208, %v3817
        %vm7681 = vcmp.gt.f32.partialorder %v7208, %v3818
        %vm7682 = vcmp.gt.f32.partialorder %v7213, %v3817
        %vm7683 = vcmp.gt.f32.partialorder %v7213, %v3818
        %vm7684 = vcmp.gt.f32.partialorder %v7218, %v3817
        %vm7685 = vcmp.gt.f32.partialorder %v7218, %v3818
        %vm7686 = vcmp.gt.f32.partialorder %v7223, %v3817
        %vm7687 = vcmp.gt.f32.partialorder %v7223, %v3818
        %vm7688 = vcmp.gt.f32.partialorder %v7228, %v3817
        %vm7689 = vcmp.gt.f32.partialorder %v7228, %v3818
        %vm7690 = vcmp.gt.f32.partialorder %v7233, %v3817
        %vm7691 = vcmp.gt.f32.partialorder %v7233, %v3818
        %vm7692 = vcmp.gt.f32.partialorder %v7238, %v3817
        %vm7693 = vcmp.gt.f32.partialorder %v7238, %v3818
        %vm7694 = vcmp.gt.f32.partialorder %v7243, %v3817
        %vm7695 = vcmp.gt.f32.partialorder %v7243, %v3818
        %vm7696 = vcmp.gt.f32.partialorder %v7248, %v3817
        %vm7697 = vcmp.gt.f32.partialorder %v7248, %v3818
        %vm7698 = vcmp.gt.f32.partialorder %v7253, %v3819
        %vm7699 = vcmp.gt.f32.partialorder %v7253, %v3820
        %vm7700 = vcmp.gt.f32.partialorder %v7258, %v3819
        %vm7701 = vcmp.gt.f32.partialorder %v7258, %v3820
        %vm7702 = vcmp.gt.f32.partialorder %v7263, %v3819
        %vm7703 = vcmp.gt.f32.partialorder %v7263, %v3820
        %vm7704 = vcmp.gt.f32.partialorder %v7268, %v3819
        %vm7705 = vcmp.gt.f32.partialorder %v7268, %v3820
        %vm7706 = vcmp.gt.f32.partialorder %v7273, %v3819
        %vm7707 = vcmp.gt.f32.partialorder %v7273, %v3820
        %vm7708 = vcmp.gt.f32.partialorder %v7278, %v3819
        %vm7709 = vcmp.gt.f32.partialorder %v7278, %v3820
        %vm7710 = vcmp.gt.f32.partialorder %v7283, %v3819
        %vm7711 = vcmp.gt.f32.partialorder %v7283, %v3820
        %vm7712 = vcmp.gt.f32.partialorder %v7288, %v3819
        %vm7713 = vcmp.gt.f32.partialorder %v7288, %v3820
        %vm7714 = vcmp.gt.f32.partialorder %v7293, %v3819
        %vm7715 = vcmp.gt.f32.partialorder %v7293, %v3820
        %vm7716 = vcmp.gt.f32.partialorder %v7298, %v3819
        %vm7717 = vcmp.gt.f32.partialorder %v7298, %v3820
        %vm7718 = vcmp.gt.f32.partialorder %v7303, %v3819
        %vm7719 = vcmp.gt.f32.partialorder %v7303, %v3820
        %vm7720 = vcmp.gt.f32.partialorder %v7308, %v3819
        %vm7721 = vcmp.gt.f32.partialorder %v7308, %v3820
        %vm7722 = vcmp.gt.f32.partialorder %v7313, %v3819
        %vm7723 = vcmp.gt.f32.partialorder %v7313, %v3820
        %vm7724 = vcmp.gt.f32.partialorder %v7318, %v3819
        %vm7725 = vcmp.gt.f32.partialorder %v7318, %v3820
        %vm7726 = vcmp.gt.f32.partialorder %v7323, %v3819
        %vm7727 = vcmp.gt.f32.partialorder %v7323, %v3820
        %vm7728 = vcmp.gt.f32.partialorder %v7328, %v3819
        %vm7729 = vcmp.gt.f32.partialorder %v7328, %v3820
        %vm7730 = vcmp.gt.f32.partialorder %v7333, %v3821
        %vm7731 = vcmp.gt.f32.partialorder %v7333, %v3822
        %vm7732 = vcmp.gt.f32.partialorder %v7338, %v3821
        %vm7733 = vcmp.gt.f32.partialorder %v7338, %v3822
        %vm7734 = vcmp.gt.f32.partialorder %v7343, %v3821
        %vm7735 = vcmp.gt.f32.partialorder %v7343, %v3822
        %vm7736 = vcmp.gt.f32.partialorder %v7348, %v3821
        %vm7737 = vcmp.gt.f32.partialorder %v7348, %v3822
        %vm7738 = vcmp.gt.f32.partialorder %v7353, %v3821
        %vm7739 = vcmp.gt.f32.partialorder %v7353, %v3822
        %vm7740 = vcmp.gt.f32.partialorder %v7358, %v3821
        %vm7741 = vcmp.gt.f32.partialorder %v7358, %v3822
        %vm7742 = vcmp.gt.f32.partialorder %v7363, %v3821
        %vm7743 = vcmp.gt.f32.partialorder %v7363, %v3822
        %vm7744 = vcmp.gt.f32.partialorder %v7368, %v3821
        %vm7745 = vcmp.gt.f32.partialorder %v7368, %v3822
        %vm7746 = vcmp.gt.f32.partialorder %v7373, %v3821
        %vm7747 = vcmp.gt.f32.partialorder %v7373, %v3822
        %vm7748 = vcmp.gt.f32.partialorder %v7378, %v3821
        %vm7749 = vcmp.gt.f32.partialorder %v7378, %v3822
        %vm7750 = vcmp.gt.f32.partialorder %v7383, %v3821
        %vm7751 = vcmp.gt.f32.partialorder %v7383, %v3822
        %vm7752 = vcmp.gt.f32.partialorder %v7388, %v3821
        %vm7753 = vcmp.gt.f32.partialorder %v7388, %v3822
        %vm7754 = vcmp.gt.f32.partialorder %v7393, %v3821
        %vm7755 = vcmp.gt.f32.partialorder %v7393, %v3822
        %vm7756 = vcmp.gt.f32.partialorder %v7398, %v3821
        %vm7757 = vcmp.gt.f32.partialorder %v7398, %v3822
        %vm7758 = vcmp.gt.f32.partialorder %v7403, %v3821
        %vm7759 = vcmp.gt.f32.partialorder %v7403, %v3822
        %vm7760 = vcmp.gt.f32.partialorder %v7408, %v3821
        %vm7761 = vcmp.gt.f32.partialorder %v7408, %v3822
        %vm7762 = vcmp.gt.f32.partialorder %v7413, %v3823
        %vm7763 = vcmp.gt.f32.partialorder %v7413, %v3824
        %vm7764 = vcmp.gt.f32.partialorder %v7418, %v3823
        %vm7765 = vcmp.gt.f32.partialorder %v7418, %v3824
        %vm7766 = vcmp.gt.f32.partialorder %v7423, %v3823
        %vm7767 = vcmp.gt.f32.partialorder %v7423, %v3824
        %vm7768 = vcmp.gt.f32.partialorder %v7428, %v3823
        %vm7769 = vcmp.gt.f32.partialorder %v7428, %v3824
        %vm7770 = vcmp.gt.f32.partialorder %v7433, %v3823
        %vm7771 = vcmp.gt.f32.partialorder %v7433, %v3824
        %vm7772 = vcmp.gt.f32.partialorder %v7438, %v3823
        %vm7773 = vcmp.gt.f32.partialorder %v7438, %v3824
        %vm7774 = vcmp.gt.f32.partialorder %v7443, %v3823
        %vm7775 = vcmp.gt.f32.partialorder %v7443, %v3824
        %vm7776 = vcmp.gt.f32.partialorder %v7448, %v3823
        %vm7777 = vcmp.gt.f32.partialorder %v7448, %v3824
        %vm7778 = vcmp.gt.f32.partialorder %v7453, %v3823
        %vm7779 = vcmp.gt.f32.partialorder %v7453, %v3824
        %vm7780 = vcmp.gt.f32.partialorder %v7458, %v3823
        %vm7781 = vcmp.gt.f32.partialorder %v7458, %v3824
        %vm7782 = vcmp.gt.f32.partialorder %v7463, %v3823
        %vm7783 = vcmp.gt.f32.partialorder %v7463, %v3824
        %vm7784 = vcmp.gt.f32.partialorder %v7468, %v3823
        %vm7785 = vcmp.gt.f32.partialorder %v7468, %v3824
        %vm7786 = vcmp.gt.f32.partialorder %v7473, %v3823
        %vm7787 = vcmp.gt.f32.partialorder %v7473, %v3824
        %vm7788 = vcmp.gt.f32.partialorder %v7478, %v3823
        %vm7789 = vcmp.gt.f32.partialorder %v7478, %v3824
        %vm7790 = vcmp.gt.f32.partialorder %v7483, %v3823
        %vm7791 = vcmp.gt.f32.partialorder %v7483, %v3824
        %vm7792 = vcmp.gt.f32.partialorder %v7488, %v3823
        %vm7793 = vcmp.gt.f32.partialorder %v7488, %v3824
        %vm7794 = vcmp.gt.f32.partialorder %v7493, %v3825
        %vm7795 = vcmp.gt.f32.partialorder %v7493, %v3826
        %vm7796 = vcmp.gt.f32.partialorder %v7498, %v3825
        %vm7797 = vcmp.gt.f32.partialorder %v7498, %v3826
        %vm7798 = vcmp.gt.f32.partialorder %v7503, %v3825
        %vm7799 = vcmp.gt.f32.partialorder %v7503, %v3826
        %vm7800 = vcmp.gt.f32.partialorder %v7508, %v3825
        %vm7801 = vcmp.gt.f32.partialorder %v7508, %v3826
        %vm7802 = vcmp.gt.f32.partialorder %v7513, %v3825
        %vm7803 = vcmp.gt.f32.partialorder %v7513, %v3826
        %vm7804 = vcmp.gt.f32.partialorder %v7518, %v3825
        %vm7805 = vcmp.gt.f32.partialorder %v7518, %v3826
        %vm7806 = vcmp.gt.f32.partialorder %v7523, %v3825
        %vm7807 = vcmp.gt.f32.partialorder %v7523, %v3826
        %vm7808 = vcmp.gt.f32.partialorder %v7528, %v3825
        %vm7809 = vcmp.gt.f32.partialorder %v7528, %v3826
        %vm7810 = vcmp.gt.f32.partialorder %v7533, %v3825
        %vm7811 = vcmp.gt.f32.partialorder %v7533, %v3826
        %vm7812 = vcmp.gt.f32.partialorder %v7538, %v3825
        %vm7813 = vcmp.gt.f32.partialorder %v7538, %v3826
        %vm7814 = vcmp.gt.f32.partialorder %v7543, %v3825
        %vm7815 = vcmp.gt.f32.partialorder %v7543, %v3826
        %vm7816 = vcmp.gt.f32.partialorder %v7548, %v3825
        %vm7817 = vcmp.gt.f32.partialorder %v7548, %v3826
        %vm7818 = vcmp.gt.f32.partialorder %v7553, %v3825
        %vm7819 = vcmp.gt.f32.partialorder %v7553, %v3826
        %vm7820 = vcmp.gt.f32.partialorder %v7558, %v3825
        %vm7821 = vcmp.gt.f32.partialorder %v7558, %v3826
        %vm7822 = vcmp.gt.f32.partialorder %v7563, %v3825
        %vm7823 = vcmp.gt.f32.partialorder %v7563, %v3826
        %vm7824 = vcmp.gt.f32.partialorder %v7568, %v3825
        %vm7825 = vcmp.gt.f32.partialorder %v7568, %v3826
        %vm7826 = vcmp.eq.f32.partialorder %v6933, %v3811
        %vm7827 = vcmp.eq.f32.partialorder %v6933, %v3812
        %vm7828 = vcmp.eq.f32.partialorder %v6938, %v3811
        %vm7829 = vcmp.eq.f32.partialorder %v6938, %v3812
        %vm7830 = vcmp.eq.f32.partialorder %v6943, %v3811
        %vm7831 = vcmp.eq.f32.partialorder %v6943, %v3812
        %vm7832 = vcmp.eq.f32.partialorder %v6948, %v3811
        %vm7833 = vcmp.eq.f32.partialorder %v6948, %v3812
        %vm7834 = vcmp.eq.f32.partialorder %v6953, %v3811
        %vm7835 = vcmp.eq.f32.partialorder %v6953, %v3812
        %vm7836 = vcmp.eq.f32.partialorder %v6958, %v3811
        %vm7837 = vcmp.eq.f32.partialorder %v6958, %v3812
        %vm7838 = vcmp.eq.f32.partialorder %v6963, %v3811
        %vm7839 = vcmp.eq.f32.partialorder %v6963, %v3812
        %vm7840 = vcmp.eq.f32.partialorder %v6968, %v3811
        %vm7841 = vcmp.eq.f32.partialorder %v6968, %v3812
        %vm7842 = vcmp.eq.f32.partialorder %v6973, %v3811
        %vm7843 = vcmp.eq.f32.partialorder %v6973, %v3812
        %vm7844 = vcmp.eq.f32.partialorder %v6978, %v3811
        %vm7845 = vcmp.eq.f32.partialorder %v6978, %v3812
        %vm7846 = vcmp.eq.f32.partialorder %v6983, %v3811
        %vm7847 = vcmp.eq.f32.partialorder %v6983, %v3812
        %vm7848 = vcmp.eq.f32.partialorder %v6988, %v3811
        %vm7849 = vcmp.eq.f32.partialorder %v6988, %v3812
        %vm7850 = vcmp.eq.f32.partialorder %v6993, %v3811
        %vm7851 = vcmp.eq.f32.partialorder %v6993, %v3812
        %vm7852 = vcmp.eq.f32.partialorder %v6998, %v3811
        %vm7853 = vcmp.eq.f32.partialorder %v6998, %v3812
        %vm7854 = vcmp.eq.f32.partialorder %v7003, %v3811
        %vm7855 = vcmp.eq.f32.partialorder %v7003, %v3812
        %vm7856 = vcmp.eq.f32.partialorder %v7008, %v3811
        %vm7857 = vcmp.eq.f32.partialorder %v7008, %v3812
        %vm7858 = vcmp.eq.f32.partialorder %v7013, %v3813
        %vm7859 = vcmp.eq.f32.partialorder %v7013, %v3814
        %vm7860 = vcmp.eq.f32.partialorder %v7018, %v3813
        %vm7861 = vcmp.eq.f32.partialorder %v7018, %v3814
        %vm7862 = vcmp.eq.f32.partialorder %v7023, %v3813
        %vm7863 = vcmp.eq.f32.partialorder %v7023, %v3814
        %vm7864 = vcmp.eq.f32.partialorder %v7028, %v3813
        %vm7865 = vcmp.eq.f32.partialorder %v7028, %v3814
        %vm7866 = vcmp.eq.f32.partialorder %v7033, %v3813
        %vm7867 = vcmp.eq.f32.partialorder %v7033, %v3814
        %vm7868 = vcmp.eq.f32.partialorder %v7038, %v3813
        %vm7869 = vcmp.eq.f32.partialorder %v7038, %v3814
        %vm7870 = vcmp.eq.f32.partialorder %v7043, %v3813
        %vm7871 = vcmp.eq.f32.partialorder %v7043, %v3814
        %vm7872 = vcmp.eq.f32.partialorder %v7048, %v3813
        %vm7873 = vcmp.eq.f32.partialorder %v7048, %v3814
        %vm7874 = vcmp.eq.f32.partialorder %v7053, %v3813
        %vm7875 = vcmp.eq.f32.partialorder %v7053, %v3814
        %vm7876 = vcmp.eq.f32.partialorder %v7058, %v3813
        %vm7877 = vcmp.eq.f32.partialorder %v7058, %v3814
        %vm7878 = vcmp.eq.f32.partialorder %v7063, %v3813
        %vm7879 = vcmp.eq.f32.partialorder %v7063, %v3814
        %vm7880 = vcmp.eq.f32.partialorder %v7068, %v3813
        %vm7881 = vcmp.eq.f32.partialorder %v7068, %v3814
        %vm7882 = vcmp.eq.f32.partialorder %v7073, %v3813
        %vm7883 = vcmp.eq.f32.partialorder %v7073, %v3814
        %vm7884 = vcmp.eq.f32.partialorder %v7078, %v3813
        %vm7885 = vcmp.eq.f32.partialorder %v7078, %v3814
        %vm7886 = vcmp.eq.f32.partialorder %v7083, %v3813
        %vm7887 = vcmp.eq.f32.partialorder %v7083, %v3814
        %vm7888 = vcmp.eq.f32.partialorder %v7088, %v3813
        %vm7889 = vcmp.eq.f32.partialorder %v7088, %v3814
        %vm7890 = vcmp.eq.f32.partialorder %v7093, %v3815
        %vm7891 = vcmp.eq.f32.partialorder %v7093, %v3816
        %vm7892 = vcmp.eq.f32.partialorder %v7098, %v3815
        %vm7893 = vcmp.eq.f32.partialorder %v7098, %v3816
        %vm7894 = vcmp.eq.f32.partialorder %v7103, %v3815
        %vm7895 = vcmp.eq.f32.partialorder %v7103, %v3816
        %vm7896 = vcmp.eq.f32.partialorder %v7108, %v3815
        %vm7897 = vcmp.eq.f32.partialorder %v7108, %v3816
        %vm7898 = vcmp.eq.f32.partialorder %v7113, %v3815
        %vm7899 = vcmp.eq.f32.partialorder %v7113, %v3816
        %vm7900 = vcmp.eq.f32.partialorder %v7118, %v3815
        %vm7901 = vcmp.eq.f32.partialorder %v7118, %v3816
        %vm7902 = vcmp.eq.f32.partialorder %v7123, %v3815
        %vm7903 = vcmp.eq.f32.partialorder %v7123, %v3816
        %vm7904 = vcmp.eq.f32.partialorder %v7128, %v3815
        %vm7905 = vcmp.eq.f32.partialorder %v7128, %v3816
        %vm7906 = vcmp.eq.f32.partialorder %v7133, %v3815
        %vm7907 = vcmp.eq.f32.partialorder %v7133, %v3816
        %vm7908 = vcmp.eq.f32.partialorder %v7138, %v3815
        %vm7909 = vcmp.eq.f32.partialorder %v7138, %v3816
        %vm7910 = vcmp.eq.f32.partialorder %v7143, %v3815
        %vm7911 = vcmp.eq.f32.partialorder %v7143, %v3816
        %vm7912 = vcmp.eq.f32.partialorder %v7148, %v3815
        %vm7913 = vcmp.eq.f32.partialorder %v7148, %v3816
        %vm7914 = vcmp.eq.f32.partialorder %v7153, %v3815
        %vm7915 = vcmp.eq.f32.partialorder %v7153, %v3816
        %vm7916 = vcmp.eq.f32.partialorder %v7158, %v3815
        %vm7917 = vcmp.eq.f32.partialorder %v7158, %v3816
        %vm7918 = vcmp.eq.f32.partialorder %v7163, %v3815
        %vm7919 = vcmp.eq.f32.partialorder %v7163, %v3816
        %vm7920 = vcmp.eq.f32.partialorder %v7168, %v3815
        %vm7921 = vcmp.eq.f32.partialorder %v7168, %v3816
        %vm7922 = vcmp.eq.f32.partialorder %v7173, %v3817
        %vm7923 = vcmp.eq.f32.partialorder %v7173, %v3818
        %vm7924 = vcmp.eq.f32.partialorder %v7178, %v3817
        %vm7925 = vcmp.eq.f32.partialorder %v7178, %v3818
        %vm7926 = vcmp.eq.f32.partialorder %v7183, %v3817
        %vm7927 = vcmp.eq.f32.partialorder %v7183, %v3818
        %vm7928 = vcmp.eq.f32.partialorder %v7188, %v3817
        %vm7929 = vcmp.eq.f32.partialorder %v7188, %v3818
        %vm7930 = vcmp.eq.f32.partialorder %v7193, %v3817
        %vm7931 = vcmp.eq.f32.partialorder %v7193, %v3818
        %vm7932 = vcmp.eq.f32.partialorder %v7198, %v3817
        %vm7933 = vcmp.eq.f32.partialorder %v7198, %v3818
        %vm7934 = vcmp.eq.f32.partialorder %v7203, %v3817
        %vm7935 = vcmp.eq.f32.partialorder %v7203, %v3818
        %vm7936 = vcmp.eq.f32.partialorder %v7208, %v3817
        %vm7937 = vcmp.eq.f32.partialorder %v7208, %v3818
        %vm7938 = vcmp.eq.f32.partialorder %v7213, %v3817
        %vm7939 = vcmp.eq.f32.partialorder %v7213, %v3818
        %vm7940 = vcmp.eq.f32.partialorder %v7218, %v3817
        %vm7941 = vcmp.eq.f32.partialorder %v7218, %v3818
        %vm7942 = vcmp.eq.f32.partialorder %v7223, %v3817
        %vm7943 = vcmp.eq.f32.partialorder %v7223, %v3818
        %vm7944 = vcmp.eq.f32.partialorder %v7228, %v3817
        %vm7945 = vcmp.eq.f32.partialorder %v7228, %v3818
        %vm7946 = vcmp.eq.f32.partialorder %v7233, %v3817
        %vm7947 = vcmp.eq.f32.partialorder %v7233, %v3818
        %vm7948 = vcmp.eq.f32.partialorder %v7238, %v3817
        %vm7949 = vcmp.eq.f32.partialorder %v7238, %v3818
        %vm7950 = vcmp.eq.f32.partialorder %v7243, %v3817
        %vm7951 = vcmp.eq.f32.partialorder %v7243, %v3818
        %vm7952 = vcmp.eq.f32.partialorder %v7248, %v3817
        %vm7953 = vcmp.eq.f32.partialorder %v7248, %v3818
        %vm7954 = vcmp.eq.f32.partialorder %v7253, %v3819
        %vm7955 = vcmp.eq.f32.partialorder %v7253, %v3820
        %vm7956 = vcmp.eq.f32.partialorder %v7258, %v3819
        %vm7957 = vcmp.eq.f32.partialorder %v7258, %v3820
        %vm7958 = vcmp.eq.f32.partialorder %v7263, %v3819
        %vm7959 = vcmp.eq.f32.partialorder %v7263, %v3820
        %vm7960 = vcmp.eq.f32.partialorder %v7268, %v3819
        %vm7961 = vcmp.eq.f32.partialorder %v7268, %v3820
        %vm7962 = vcmp.eq.f32.partialorder %v7273, %v3819
        %vm7963 = vcmp.eq.f32.partialorder %v7273, %v3820
        %vm7964 = vcmp.eq.f32.partialorder %v7278, %v3819
        %vm7965 = vcmp.eq.f32.partialorder %v7278, %v3820
        %vm7966 = vcmp.eq.f32.partialorder %v7283, %v3819
        %vm7967 = vcmp.eq.f32.partialorder %v7283, %v3820
        %vm7968 = vcmp.eq.f32.partialorder %v7288, %v3819
        %vm7969 = vcmp.eq.f32.partialorder %v7288, %v3820
        %vm7970 = vcmp.eq.f32.partialorder %v7293, %v3819
        %vm7971 = vcmp.eq.f32.partialorder %v7293, %v3820
        %vm7972 = vcmp.eq.f32.partialorder %v7298, %v3819
        %vm7973 = vcmp.eq.f32.partialorder %v7298, %v3820
        %vm7974 = vcmp.eq.f32.partialorder %v7303, %v3819
        %vm7975 = vcmp.eq.f32.partialorder %v7303, %v3820
        %vm7976 = vcmp.eq.f32.partialorder %v7308, %v3819
        %vm7977 = vcmp.eq.f32.partialorder %v7308, %v3820
        %vm7978 = vcmp.eq.f32.partialorder %v7313, %v3819
        %vm7979 = vcmp.eq.f32.partialorder %v7313, %v3820
        %vm7980 = vcmp.eq.f32.partialorder %v7318, %v3819
        %vm7981 = vcmp.eq.f32.partialorder %v7318, %v3820
        %vm7982 = vcmp.eq.f32.partialorder %v7323, %v3819
        %vm7983 = vcmp.eq.f32.partialorder %v7323, %v3820
        %vm7984 = vcmp.eq.f32.partialorder %v7328, %v3819
        %vm7985 = vcmp.eq.f32.partialorder %v7328, %v3820
        %vm7986 = vcmp.eq.f32.partialorder %v7333, %v3821
        %vm7987 = vcmp.eq.f32.partialorder %v7333, %v3822
        %vm7988 = vcmp.eq.f32.partialorder %v7338, %v3821
        %vm7989 = vcmp.eq.f32.partialorder %v7338, %v3822
        %vm7990 = vcmp.eq.f32.partialorder %v7343, %v3821
        %vm7991 = vcmp.eq.f32.partialorder %v7343, %v3822
        %vm7992 = vcmp.eq.f32.partialorder %v7348, %v3821
        %vm7993 = vcmp.eq.f32.partialorder %v7348, %v3822
        %vm7994 = vcmp.eq.f32.partialorder %v7353, %v3821
        %vm7995 = vcmp.eq.f32.partialorder %v7353, %v3822
        %vm7996 = vcmp.eq.f32.partialorder %v7358, %v3821
        %vm7997 = vcmp.eq.f32.partialorder %v7358, %v3822
        %vm7998 = vcmp.eq.f32.partialorder %v7363, %v3821
        %vm7999 = vcmp.eq.f32.partialorder %v7363, %v3822
        %vm8000 = vcmp.eq.f32.partialorder %v7368, %v3821
        %vm8001 = vcmp.eq.f32.partialorder %v7368, %v3822
        %vm8002 = vcmp.eq.f32.partialorder %v7373, %v3821
        %vm8003 = vcmp.eq.f32.partialorder %v7373, %v3822
        %vm8004 = vcmp.eq.f32.partialorder %v7378, %v3821
        %vm8005 = vcmp.eq.f32.partialorder %v7378, %v3822
        %vm8006 = vcmp.eq.f32.partialorder %v7383, %v3821
        %vm8007 = vcmp.eq.f32.partialorder %v7383, %v3822
        %vm8008 = vcmp.eq.f32.partialorder %v7388, %v3821
        %vm8009 = vcmp.eq.f32.partialorder %v7388, %v3822
        %vm8010 = vcmp.eq.f32.partialorder %v7393, %v3821
        %vm8011 = vcmp.eq.f32.partialorder %v7393, %v3822
        %vm8012 = vcmp.eq.f32.partialorder %v7398, %v3821
        %vm8013 = vcmp.eq.f32.partialorder %v7398, %v3822
        %vm8014 = vcmp.eq.f32.partialorder %v7403, %v3821
        %vm8015 = vcmp.eq.f32.partialorder %v7403, %v3822
        %vm8016 = vcmp.eq.f32.partialorder %v7408, %v3821
        %vm8017 = vcmp.eq.f32.partialorder %v7408, %v3822
        %vm8018 = vcmp.eq.f32.partialorder %v7413, %v3823
        %vm8019 = vcmp.eq.f32.partialorder %v7413, %v3824
        %vm8020 = vcmp.eq.f32.partialorder %v7418, %v3823
        %vm8021 = vcmp.eq.f32.partialorder %v7418, %v3824
        %vm8022 = vcmp.eq.f32.partialorder %v7423, %v3823
        %vm8023 = vcmp.eq.f32.partialorder %v7423, %v3824
        %vm8024 = vcmp.eq.f32.partialorder %v7428, %v3823
        %vm8025 = vcmp.eq.f32.partialorder %v7428, %v3824
        %vm8026 = vcmp.eq.f32.partialorder %v7433, %v3823
        %vm8027 = vcmp.eq.f32.partialorder %v7433, %v3824
        %vm8028 = vcmp.eq.f32.partialorder %v7438, %v3823
        %vm8029 = vcmp.eq.f32.partialorder %v7438, %v3824
        %vm8030 = vcmp.eq.f32.partialorder %v7443, %v3823
        %vm8031 = vcmp.eq.f32.partialorder %v7443, %v3824
        %vm8032 = vcmp.eq.f32.partialorder %v7448, %v3823
        %vm8033 = vcmp.eq.f32.partialorder %v7448, %v3824
        %vm8034 = vcmp.eq.f32.partialorder %v7453, %v3823
        %vm8035 = vcmp.eq.f32.partialorder %v7453, %v3824
        %vm8036 = vcmp.eq.f32.partialorder %v7458, %v3823
        %vm8037 = vcmp.eq.f32.partialorder %v7458, %v3824
        %vm8038 = vcmp.eq.f32.partialorder %v7463, %v3823
        %vm8039 = vcmp.eq.f32.partialorder %v7463, %v3824
        %vm8040 = vcmp.eq.f32.partialorder %v7468, %v3823
        %vm8041 = vcmp.eq.f32.partialorder %v7468, %v3824
        %vm8042 = vcmp.eq.f32.partialorder %v7473, %v3823
        %vm8043 = vcmp.eq.f32.partialorder %v7473, %v3824
        %vm8044 = vcmp.eq.f32.partialorder %v7478, %v3823
        %vm8045 = vcmp.eq.f32.partialorder %v7478, %v3824
        %vm8046 = vcmp.eq.f32.partialorder %v7483, %v3823
        %vm8047 = vcmp.eq.f32.partialorder %v7483, %v3824
        %vm8048 = vcmp.eq.f32.partialorder %v7488, %v3823
        %vm8049 = vcmp.eq.f32.partialorder %v7488, %v3824
        %vm8050 = vcmp.eq.f32.partialorder %v7493, %v3825
        %vm8051 = vcmp.eq.f32.partialorder %v7493, %v3826
        %vm8052 = vcmp.eq.f32.partialorder %v7498, %v3825
        %vm8053 = vcmp.eq.f32.partialorder %v7498, %v3826
        %vm8054 = vcmp.eq.f32.partialorder %v7503, %v3825
        %vm8055 = vcmp.eq.f32.partialorder %v7503, %v3826
        %vm8056 = vcmp.eq.f32.partialorder %v7508, %v3825
        %vm8057 = vcmp.eq.f32.partialorder %v7508, %v3826
        %vm8058 = vcmp.eq.f32.partialorder %v7513, %v3825
        %vm8059 = vcmp.eq.f32.partialorder %v7513, %v3826
        %vm8060 = vcmp.eq.f32.partialorder %v7518, %v3825
        %vm8061 = vcmp.eq.f32.partialorder %v7518, %v3826
        %vm8062 = vcmp.eq.f32.partialorder %v7523, %v3825
        %vm8063 = vcmp.eq.f32.partialorder %v7523, %v3826
        %vm8064 = vcmp.eq.f32.partialorder %v7528, %v3825
        %vm8065 = vcmp.eq.f32.partialorder %v7528, %v3826
        %vm8066 = vcmp.eq.f32.partialorder %v7533, %v3825
        %vm8067 = vcmp.eq.f32.partialorder %v7533, %v3826
        %vm8068 = vcmp.eq.f32.partialorder %v7538, %v3825
        %vm8069 = vcmp.eq.f32.partialorder %v7538, %v3826
        %vm8070 = vcmp.eq.f32.partialorder %v7543, %v3825
        %vm8071 = vcmp.eq.f32.partialorder %v7543, %v3826
        %vm8072 = vcmp.eq.f32.partialorder %v7548, %v3825
        %vm8073 = vcmp.eq.f32.partialorder %v7548, %v3826
        %vm8074 = vcmp.eq.f32.partialorder %v7553, %v3825
        %vm8075 = vcmp.eq.f32.partialorder %v7553, %v3826
        %vm8076 = vcmp.eq.f32.partialorder %v7558, %v3825
        %vm8077 = vcmp.eq.f32.partialorder %v7558, %v3826
        %vm8078 = vcmp.eq.f32.partialorder %v7563, %v3825
        %vm8079 = vcmp.eq.f32.partialorder %v7563, %v3826
        %vm8080 = vcmp.eq.f32.partialorder %v7568, %v3825
        %vm8081 = vcmp.eq.f32.partialorder %v7568, %v3826
        %vm8082 = vcmp.lt.s32.totalorder %v6914, %v848
        %vm8083 = vcmp.lt.s32.totalorder %v6914, %v849
        %vm8084 = vcmp.lt.s32.totalorder %v6915, %v848
        %vm8085 = vcmp.lt.s32.totalorder %v6915, %v849
        %vm8086 = vcmp.lt.s32.totalorder %v6916, %v848
        %vm8087 = vcmp.lt.s32.totalorder %v6916, %v849
        %vm8088 = vcmp.lt.s32.totalorder %v6917, %v848
        %vm8089 = vcmp.lt.s32.totalorder %v6917, %v849
        %vm8090 = vcmp.lt.s32.totalorder %v6918, %v848
        %vm8091 = vcmp.lt.s32.totalorder %v6918, %v849
        %vm8092 = vcmp.lt.s32.totalorder %v6919, %v848
        %vm8093 = vcmp.lt.s32.totalorder %v6919, %v849
        %vm8094 = vcmp.lt.s32.totalorder %v6920, %v848
        %vm8095 = vcmp.lt.s32.totalorder %v6920, %v849
        %vm8096 = vcmp.lt.s32.totalorder %v6921, %v848
        %vm8097 = vcmp.lt.s32.totalorder %v6921, %v849
        %vm8098 = vcmp.lt.s32.totalorder %v6922, %v848
        %vm8099 = vcmp.lt.s32.totalorder %v6922, %v849
        %vm8100 = vcmp.lt.s32.totalorder %v6923, %v848
        %vm8101 = vcmp.lt.s32.totalorder %v6923, %v849
        %vm8102 = vcmp.lt.s32.totalorder %v6924, %v848
        %vm8103 = vcmp.lt.s32.totalorder %v6924, %v849
        %vm8104 = vcmp.lt.s32.totalorder %v6925, %v848
        %vm8105 = vcmp.lt.s32.totalorder %v6925, %v849
        %vm8106 = vcmp.lt.s32.totalorder %v6926, %v848
        %vm8107 = vcmp.lt.s32.totalorder %v6926, %v849
        %vm8108 = vcmp.lt.s32.totalorder %v6927, %v848
        %vm8109 = vcmp.lt.s32.totalorder %v6927, %v849
        %vm8110 = vcmp.lt.s32.totalorder %v6928, %v848
        %vm8111 = vcmp.lt.s32.totalorder %v6928, %v849
        %vm8112 = vcmp.lt.s32.totalorder %v6929, %v848
        %vm8113 = vcmp.lt.s32.totalorder %v6929, %v849
        %vm8114 = vmand %vm7826, %vm8082
        %vm8115 = vmand %vm7827, %vm8083
        %vm8116 = vmand %vm7828, %vm8084
        %vm8117 = vmand %vm7829, %vm8085
        %vm8118 = vmand %vm7830, %vm8086
        %vm8119 = vmand %vm7831, %vm8087
        %vm8120 = vmand %vm7832, %vm8088
        %vm8121 = vmand %vm7833, %vm8089
        %vm8122 = vmand %vm7834, %vm8090
        %vm8123 = vmand %vm7835, %vm8091
        %vm8124 = vmand %vm7836, %vm8092
        %vm8125 = vmand %vm7837, %vm8093
        %vm8126 = vmand %vm7838, %vm8094
        %vm8127 = vmand %vm7839, %vm8095
        %vm8128 = vmand %vm7840, %vm8096
        %vm8129 = vmand %vm7841, %vm8097
        %vm8130 = vmand %vm7842, %vm8098
        %vm8131 = vmand %vm7843, %vm8099
        %vm8132 = vmand %vm7844, %vm8100
        %vm8133 = vmand %vm7845, %vm8101
        %vm8134 = vmand %vm7846, %vm8102
        %vm8135 = vmand %vm7847, %vm8103
        %vm8136 = vmand %vm7848, %vm8104
        %vm8137 = vmand %vm7849, %vm8105
        %vm8138 = vmand %vm7850, %vm8106
        %vm8139 = vmand %vm7851, %vm8107
        %vm8140 = vmand %vm7852, %vm8108
        %vm8141 = vmand %vm7853, %vm8109
        %vm8142 = vmand %vm7854, %vm8110
        %vm8143 = vmand %vm7855, %vm8111
        %vm8144 = vmand %vm7856, %vm8112
        %vm8145 = vmand %vm7857, %vm8113
        %vm8146 = vmand %vm7858, %vm8082
        %vm8147 = vmand %vm7859, %vm8083
        %vm8148 = vmand %vm7860, %vm8084
        %vm8149 = vmand %vm7861, %vm8085
        %vm8150 = vmand %vm7862, %vm8086
        %vm8151 = vmand %vm7863, %vm8087
        %vm8152 = vmand %vm7864, %vm8088
        %vm8153 = vmand %vm7865, %vm8089
        %vm8154 = vmand %vm7866, %vm8090
        %vm8155 = vmand %vm7867, %vm8091
        %vm8156 = vmand %vm7868, %vm8092
        %vm8157 = vmand %vm7869, %vm8093
        %vm8158 = vmand %vm7870, %vm8094
        %vm8159 = vmand %vm7871, %vm8095
        %vm8160 = vmand %vm7872, %vm8096
        %vm8161 = vmand %vm7873, %vm8097
        %vm8162 = vmand %vm7874, %vm8098
        %vm8163 = vmand %vm7875, %vm8099
        %vm8164 = vmand %vm7876, %vm8100
        %vm8165 = vmand %vm7877, %vm8101
        %vm8166 = vmand %vm7878, %vm8102
        %vm8167 = vmand %vm7879, %vm8103
        %vm8168 = vmand %vm7880, %vm8104
        %vm8169 = vmand %vm7881, %vm8105
        %vm8170 = vmand %vm7882, %vm8106
        %vm8171 = vmand %vm7883, %vm8107
        %vm8172 = vmand %vm7884, %vm8108
        %vm8173 = vmand %vm7885, %vm8109
        %vm8174 = vmand %vm7886, %vm8110
        %vm8175 = vmand %vm7887, %vm8111
        %vm8176 = vmand %vm7888, %vm8112
        %vm8177 = vmand %vm7889, %vm8113
        %vm8178 = vmand %vm7890, %vm8082
        %vm8179 = vmand %vm7891, %vm8083
        %vm8180 = vmand %vm7892, %vm8084
        %vm8181 = vmand %vm7893, %vm8085
        %vm8182 = vmand %vm7894, %vm8086
        %vm8183 = vmand %vm7895, %vm8087
        %vm8184 = vmand %vm7896, %vm8088
        %vm8185 = vmand %vm7897, %vm8089
        %vm8186 = vmand %vm7898, %vm8090
        %vm8187 = vmand %vm7899, %vm8091
        %vm8188 = vmand %vm7900, %vm8092
        %vm8189 = vmand %vm7901, %vm8093
        %vm8190 = vmand %vm7902, %vm8094
        %vm8191 = vmand %vm7903, %vm8095
        %vm8192 = vmand %vm7904, %vm8096
        %vm8193 = vmand %vm7905, %vm8097
        %vm8194 = vmand %vm7906, %vm8098
        %vm8195 = vmand %vm7907, %vm8099
        %vm8196 = vmand %vm7908, %vm8100
        %vm8197 = vmand %vm7909, %vm8101
        %vm8198 = vmand %vm7910, %vm8102
        %vm8199 = vmand %vm7911, %vm8103
        %vm8200 = vmand %vm7912, %vm8104
        %vm8201 = vmand %vm7913, %vm8105
        %vm8202 = vmand %vm7914, %vm8106
        %vm8203 = vmand %vm7915, %vm8107
        %vm8204 = vmand %vm7916, %vm8108
        %vm8205 = vmand %vm7917, %vm8109
        %vm8206 = vmand %vm7918, %vm8110
        %vm8207 = vmand %vm7919, %vm8111
        %vm8208 = vmand %vm7920, %vm8112
        %vm8209 = vmand %vm7921, %vm8113
        %vm8210 = vmand %vm7922, %vm8082
        %vm8211 = vmand %vm7923, %vm8083
        %vm8212 = vmand %vm7924, %vm8084
        %vm8213 = vmand %vm7925, %vm8085
        %vm8214 = vmand %vm7926, %vm8086
        %vm8215 = vmand %vm7927, %vm8087
        %vm8216 = vmand %vm7928, %vm8088
        %vm8217 = vmand %vm7929, %vm8089
        %vm8218 = vmand %vm7930, %vm8090
        %vm8219 = vmand %vm7931, %vm8091
        %vm8220 = vmand %vm7932, %vm8092
        %vm8221 = vmand %vm7933, %vm8093
        %vm8222 = vmand %vm7934, %vm8094
        %vm8223 = vmand %vm7935, %vm8095
        %vm8224 = vmand %vm7936, %vm8096
        %vm8225 = vmand %vm7937, %vm8097
        %vm8226 = vmand %vm7938, %vm8098
        %vm8227 = vmand %vm7939, %vm8099
        %vm8228 = vmand %vm7940, %vm8100
        %vm8229 = vmand %vm7941, %vm8101
        %vm8230 = vmand %vm7942, %vm8102
        %vm8231 = vmand %vm7943, %vm8103
        %vm8232 = vmand %vm7944, %vm8104
        %vm8233 = vmand %vm7945, %vm8105
        %vm8234 = vmand %vm7946, %vm8106
        %vm8235 = vmand %vm7947, %vm8107
        %vm8236 = vmand %vm7948, %vm8108
        %vm8237 = vmand %vm7949, %vm8109
        %vm8238 = vmand %vm7950, %vm8110
        %vm8239 = vmand %vm7951, %vm8111
        %vm8240 = vmand %vm7952, %vm8112
        %vm8241 = vmand %vm7953, %vm8113
        %vm8242 = vmand %vm7954, %vm8082
        %vm8243 = vmand %vm7955, %vm8083
        %vm8244 = vmand %vm7956, %vm8084
        %vm8245 = vmand %vm7957, %vm8085
        %vm8246 = vmand %vm7958, %vm8086
        %vm8247 = vmand %vm7959, %vm8087
        %vm8248 = vmand %vm7960, %vm8088
        %vm8249 = vmand %vm7961, %vm8089
        %vm8250 = vmand %vm7962, %vm8090
        %vm8251 = vmand %vm7963, %vm8091
        %vm8252 = vmand %vm7964, %vm8092
        %vm8253 = vmand %vm7965, %vm8093
        %vm8254 = vmand %vm7966, %vm8094
        %vm8255 = vmand %vm7967, %vm8095
        %vm8256 = vmand %vm7968, %vm8096
        %vm8257 = vmand %vm7969, %vm8097
        %vm8258 = vmand %vm7970, %vm8098
        %vm8259 = vmand %vm7971, %vm8099
        %vm8260 = vmand %vm7972, %vm8100
        %vm8261 = vmand %vm7973, %vm8101
        %vm8262 = vmand %vm7974, %vm8102
        %vm8263 = vmand %vm7975, %vm8103
        %vm8264 = vmand %vm7976, %vm8104
        %vm8265 = vmand %vm7977, %vm8105
        %vm8266 = vmand %vm7978, %vm8106
        %vm8267 = vmand %vm7979, %vm8107
        %vm8268 = vmand %vm7980, %vm8108
        %vm8269 = vmand %vm7981, %vm8109
        %vm8270 = vmand %vm7982, %vm8110
        %vm8271 = vmand %vm7983, %vm8111
        %vm8272 = vmand %vm7984, %vm8112
        %vm8273 = vmand %vm7985, %vm8113
        %vm8274 = vmand %vm7986, %vm8082
        %vm8275 = vmand %vm7987, %vm8083
        %vm8276 = vmand %vm7988, %vm8084
        %vm8277 = vmand %vm7989, %vm8085
        %vm8278 = vmand %vm7990, %vm8086
        %vm8279 = vmand %vm7991, %vm8087
        %vm8280 = vmand %vm7992, %vm8088
        %vm8281 = vmand %vm7993, %vm8089
        %vm8282 = vmand %vm7994, %vm8090
        %vm8283 = vmand %vm7995, %vm8091
        %vm8284 = vmand %vm7996, %vm8092
        %vm8285 = vmand %vm7997, %vm8093
        %vm8286 = vmand %vm7998, %vm8094
        %vm8287 = vmand %vm7999, %vm8095
        %vm8288 = vmand %vm8000, %vm8096
        %vm8289 = vmand %vm8001, %vm8097
        %vm8290 = vmand %vm8002, %vm8098
        %vm8291 = vmand %vm8003, %vm8099
        %vm8292 = vmand %vm8004, %vm8100
        %vm8293 = vmand %vm8005, %vm8101
        %vm8294 = vmand %vm8006, %vm8102
        %vm8295 = vmand %vm8007, %vm8103
        %vm8296 = vmand %vm8008, %vm8104
        %vm8297 = vmand %vm8009, %vm8105
        %vm8298 = vmand %vm8010, %vm8106
        %vm8299 = vmand %vm8011, %vm8107
        %vm8300 = vmand %vm8012, %vm8108
        %vm8301 = vmand %vm8013, %vm8109
        %vm8302 = vmand %vm8014, %vm8110
        %vm8303 = vmand %vm8015, %vm8111
        %vm8304 = vmand %vm8016, %vm8112
        %vm8305 = vmand %vm8017, %vm8113
        %vm8306 = vmand %vm8018, %vm8082
        %vm8307 = vmand %vm8019, %vm8083
        %vm8308 = vmand %vm8020, %vm8084
        %vm8309 = vmand %vm8021, %vm8085
        %vm8310 = vmand %vm8022, %vm8086
        %vm8311 = vmand %vm8023, %vm8087
        %vm8312 = vmand %vm8024, %vm8088
        %vm8313 = vmand %vm8025, %vm8089
        %vm8314 = vmand %vm8026, %vm8090
        %vm8315 = vmand %vm8027, %vm8091
        %vm8316 = vmand %vm8028, %vm8092
        %vm8317 = vmand %vm8029, %vm8093
        %vm8318 = vmand %vm8030, %vm8094
        %vm8319 = vmand %vm8031, %vm8095
        %vm8320 = vmand %vm8032, %vm8096
        %vm8321 = vmand %vm8033, %vm8097
        %vm8322 = vmand %vm8034, %vm8098
        %vm8323 = vmand %vm8035, %vm8099
        %vm8324 = vmand %vm8036, %vm8100
        %vm8325 = vmand %vm8037, %vm8101
        %vm8326 = vmand %vm8038, %vm8102
        %vm8327 = vmand %vm8039, %vm8103
        %vm8328 = vmand %vm8040, %vm8104
        %vm8329 = vmand %vm8041, %vm8105
        %vm8330 = vmand %vm8042, %vm8106
        %vm8331 = vmand %vm8043, %vm8107
        %vm8332 = vmand %vm8044, %vm8108
        %vm8333 = vmand %vm8045, %vm8109
        %vm8334 = vmand %vm8046, %vm8110
        %vm8335 = vmand %vm8047, %vm8111
        %vm8336 = vmand %vm8048, %vm8112
        %vm8337 = vmand %vm8049, %vm8113
        %vm8338 = vmand %vm8050, %vm8082
        %vm8339 = vmand %vm8051, %vm8083
        %vm8340 = vmand %vm8052, %vm8084
        %vm8341 = vmand %vm8053, %vm8085
        %vm8342 = vmand %vm8054, %vm8086
        %vm8343 = vmand %vm8055, %vm8087
        %vm8344 = vmand %vm8056, %vm8088
        %vm8345 = vmand %vm8057, %vm8089
        %vm8346 = vmand %vm8058, %vm8090
        %vm8347 = vmand %vm8059, %vm8091
        %vm8348 = vmand %vm8060, %vm8092
        %vm8349 = vmand %vm8061, %vm8093
        %vm8350 = vmand %vm8062, %vm8094
        %vm8351 = vmand %vm8063, %vm8095
        %vm8352 = vmand %vm8064, %vm8096
        %vm8353 = vmand %vm8065, %vm8097
        %vm8354 = vmand %vm8066, %vm8098
        %vm8355 = vmand %vm8067, %vm8099
        %vm8356 = vmand %vm8068, %vm8100
        %vm8357 = vmand %vm8069, %vm8101
        %vm8358 = vmand %vm8070, %vm8102
        %vm8359 = vmand %vm8071, %vm8103
        %vm8360 = vmand %vm8072, %vm8104
        %vm8361 = vmand %vm8073, %vm8105
        %vm8362 = vmand %vm8074, %vm8106
        %vm8363 = vmand %vm8075, %vm8107
        %vm8364 = vmand %vm8076, %vm8108
        %vm8365 = vmand %vm8077, %vm8109
        %vm8366 = vmand %vm8078, %vm8110
        %vm8367 = vmand %vm8079, %vm8111
        %vm8368 = vmand %vm8080, %vm8112
        %vm8369 = vmand %vm8081, %vm8113
        %vm8370 = vmor %vm7570, %vm8114
        %vm8371 = vmor %vm7571, %vm8115
        %vm8372 = vmor %vm7572, %vm8116
        %vm8373 = vmor %vm7573, %vm8117
        %vm8374 = vmor %vm7574, %vm8118
        %vm8375 = vmor %vm7575, %vm8119
        %vm8376 = vmor %vm7576, %vm8120
        %vm8377 = vmor %vm7577, %vm8121
        %vm8378 = vmor %vm7578, %vm8122
        %vm8379 = vmor %vm7579, %vm8123
        %vm8380 = vmor %vm7580, %vm8124
        %vm8381 = vmor %vm7581, %vm8125
        %vm8382 = vmor %vm7582, %vm8126
        %vm8383 = vmor %vm7583, %vm8127
        %vm8384 = vmor %vm7584, %vm8128
        %vm8385 = vmor %vm7585, %vm8129
        %vm8386 = vmor %vm7586, %vm8130
        %vm8387 = vmor %vm7587, %vm8131
        %vm8388 = vmor %vm7588, %vm8132
        %vm8389 = vmor %vm7589, %vm8133
        %vm8390 = vmor %vm7590, %vm8134
        %vm8391 = vmor %vm7591, %vm8135
        %vm8392 = vmor %vm7592, %vm8136
        %vm8393 = vmor %vm7593, %vm8137
        %vm8394 = vmor %vm7594, %vm8138
        %vm8395 = vmor %vm7595, %vm8139
        %vm8396 = vmor %vm7596, %vm8140
        %vm8397 = vmor %vm7597, %vm8141
        %vm8398 = vmor %vm7598, %vm8142
        %vm8399 = vmor %vm7599, %vm8143
        %vm8400 = vmor %vm7600, %vm8144
        %vm8401 = vmor %vm7601, %vm8145
        %vm8402 = vmor %vm7602, %vm8146
        %vm8403 = vmor %vm7603, %vm8147
        %vm8404 = vmor %vm7604, %vm8148
        %vm8405 = vmor %vm7605, %vm8149
        %vm8406 = vmor %vm7606, %vm8150
        %vm8407 = vmor %vm7607, %vm8151
        %vm8408 = vmor %vm7608, %vm8152
        %vm8409 = vmor %vm7609, %vm8153
        %vm8410 = vmor %vm7610, %vm8154
        %vm8411 = vmor %vm7611, %vm8155
        %vm8412 = vmor %vm7612, %vm8156
        %vm8413 = vmor %vm7613, %vm8157
        %vm8414 = vmor %vm7614, %vm8158
        %vm8415 = vmor %vm7615, %vm8159
        %vm8416 = vmor %vm7616, %vm8160
        %vm8417 = vmor %vm7617, %vm8161
        %vm8418 = vmor %vm7618, %vm8162
        %vm8419 = vmor %vm7619, %vm8163
        %vm8420 = vmor %vm7620, %vm8164
        %vm8421 = vmor %vm7621, %vm8165
        %vm8422 = vmor %vm7622, %vm8166
        %vm8423 = vmor %vm7623, %vm8167
        %vm8424 = vmor %vm7624, %vm8168
        %vm8425 = vmor %vm7625, %vm8169
        %vm8426 = vmor %vm7626, %vm8170
        %vm8427 = vmor %vm7627, %vm8171
        %vm8428 = vmor %vm7628, %vm8172
        %vm8429 = vmor %vm7629, %vm8173
        %vm8430 = vmor %vm7630, %vm8174
        %vm8431 = vmor %vm7631, %vm8175
        %vm8432 = vmor %vm7632, %vm8176
        %vm8433 = vmor %vm7633, %vm8177
        %vm8434 = vmor %vm7634, %vm8178
        %vm8435 = vmor %vm7635, %vm8179
        %vm8436 = vmor %vm7636, %vm8180
        %vm8437 = vmor %vm7637, %vm8181
        %vm8438 = vmor %vm7638, %vm8182
        %vm8439 = vmor %vm7639, %vm8183
        %vm8440 = vmor %vm7640, %vm8184
        %vm8441 = vmor %vm7641, %vm8185
        %vm8442 = vmor %vm7642, %vm8186
        %vm8443 = vmor %vm7643, %vm8187
        %vm8444 = vmor %vm7644, %vm8188
        %vm8445 = vmor %vm7645, %vm8189
        %vm8446 = vmor %vm7646, %vm8190
        %vm8447 = vmor %vm7647, %vm8191
        %vm8448 = vmor %vm7648, %vm8192
        %vm8449 = vmor %vm7649, %vm8193
        %vm8450 = vmor %vm7650, %vm8194
        %vm8451 = vmor %vm7651, %vm8195
        %vm8452 = vmor %vm7652, %vm8196
        %vm8453 = vmor %vm7653, %vm8197
        %vm8454 = vmor %vm7654, %vm8198
        %vm8455 = vmor %vm7655, %vm8199
        %vm8456 = vmor %vm7656, %vm8200
        %vm8457 = vmor %vm7657, %vm8201
        %vm8458 = vmor %vm7658, %vm8202
        %vm8459 = vmor %vm7659, %vm8203
        %vm8460 = vmor %vm7660, %vm8204
        %vm8461 = vmor %vm7661, %vm8205
        %vm8462 = vmor %vm7662, %vm8206
        %vm8463 = vmor %vm7663, %vm8207
        %vm8464 = vmor %vm7664, %vm8208
        %vm8465 = vmor %vm7665, %vm8209
        %vm8466 = vmor %vm7666, %vm8210
        %vm8467 = vmor %vm7667, %vm8211
        %vm8468 = vmor %vm7668, %vm8212
        %vm8469 = vmor %vm7669, %vm8213
        %vm8470 = vmor %vm7670, %vm8214
        %vm8471 = vmor %vm7671, %vm8215
        %vm8472 = vmor %vm7672, %vm8216
        %vm8473 = vmor %vm7673, %vm8217
        %vm8474 = vmor %vm7674, %vm8218
        %vm8475 = vmor %vm7675, %vm8219
        %vm8476 = vmor %vm7676, %vm8220
        %vm8477 = vmor %vm7677, %vm8221
        %vm8478 = vmor %vm7678, %vm8222
        %vm8479 = vmor %vm7679, %vm8223
        %vm8480 = vmor %vm7680, %vm8224
        %vm8481 = vmor %vm7681, %vm8225
        %vm8482 = vmor %vm7682, %vm8226
        %vm8483 = vmor %vm7683, %vm8227
        %vm8484 = vmor %vm7684, %vm8228
        %vm8485 = vmor %vm7685, %vm8229
        %vm8486 = vmor %vm7686, %vm8230
        %vm8487 = vmor %vm7687, %vm8231
        %vm8488 = vmor %vm7688, %vm8232
        %vm8489 = vmor %vm7689, %vm8233
        %vm8490 = vmor %vm7690, %vm8234
        %vm8491 = vmor %vm7691, %vm8235
        %vm8492 = vmor %vm7692, %vm8236
        %vm8493 = vmor %vm7693, %vm8237
        %vm8494 = vmor %vm7694, %vm8238
        %vm8495 = vmor %vm7695, %vm8239
        %vm8496 = vmor %vm7696, %vm8240
        %vm8497 = vmor %vm7697, %vm8241
        %vm8498 = vmor %vm7698, %vm8242
        %vm8499 = vmor %vm7699, %vm8243
        %vm8500 = vmor %vm7700, %vm8244
        %vm8501 = vmor %vm7701, %vm8245
        %vm8502 = vmor %vm7702, %vm8246
        %vm8503 = vmor %vm7703, %vm8247
        %vm8504 = vmor %vm7704, %vm8248
        %vm8505 = vmor %vm7705, %vm8249
        %vm8506 = vmor %vm7706, %vm8250
        %vm8507 = vmor %vm7707, %vm8251
        %vm8508 = vmor %vm7708, %vm8252
        %vm8509 = vmor %vm7709, %vm8253
        %vm8510 = vmor %vm7710, %vm8254
        %vm8511 = vmor %vm7711, %vm8255
        %vm8512 = vmor %vm7712, %vm8256
        %vm8513 = vmor %vm7713, %vm8257
        %vm8514 = vmor %vm7714, %vm8258
        %vm8515 = vmor %vm7715, %vm8259
        %vm8516 = vmor %vm7716, %vm8260
        %vm8517 = vmor %vm7717, %vm8261
        %vm8518 = vmor %vm7718, %vm8262
        %vm8519 = vmor %vm7719, %vm8263
        %vm8520 = vmor %vm7720, %vm8264
        %vm8521 = vmor %vm7721, %vm8265
        %vm8522 = vmor %vm7722, %vm8266
        %vm8523 = vmor %vm7723, %vm8267
        %vm8524 = vmor %vm7724, %vm8268
        %vm8525 = vmor %vm7725, %vm8269
        %vm8526 = vmor %vm7726, %vm8270
        %vm8527 = vmor %vm7727, %vm8271
        %vm8528 = vmor %vm7728, %vm8272
        %vm8529 = vmor %vm7729, %vm8273
        %vm8530 = vmor %vm7730, %vm8274
        %vm8531 = vmor %vm7731, %vm8275
        %vm8532 = vmor %vm7732, %vm8276
        %vm8533 = vmor %vm7733, %vm8277
        %vm8534 = vmor %vm7734, %vm8278
        %vm8535 = vmor %vm7735, %vm8279
        %vm8536 = vmor %vm7736, %vm8280
        %vm8537 = vmor %vm7737, %vm8281
        %vm8538 = vmor %vm7738, %vm8282
        %vm8539 = vmor %vm7739, %vm8283
        %vm8540 = vmor %vm7740, %vm8284
        %vm8541 = vmor %vm7741, %vm8285
        %vm8542 = vmor %vm7742, %vm8286
        %vm8543 = vmor %vm7743, %vm8287
        %vm8544 = vmor %vm7744, %vm8288
        %vm8545 = vmor %vm7745, %vm8289
        %vm8546 = vmor %vm7746, %vm8290
        %vm8547 = vmor %vm7747, %vm8291
        %vm8548 = vmor %vm7748, %vm8292
        %vm8549 = vmor %vm7749, %vm8293
        %vm8550 = vmor %vm7750, %vm8294
        %vm8551 = vmor %vm7751, %vm8295
        %vm8552 = vmor %vm7752, %vm8296
        %vm8553 = vmor %vm7753, %vm8297
        %vm8554 = vmor %vm7754, %vm8298
        %vm8555 = vmor %vm7755, %vm8299
        %vm8556 = vmor %vm7756, %vm8300
        %vm8557 = vmor %vm7757, %vm8301
        %vm8558 = vmor %vm7758, %vm8302
        %vm8559 = vmor %vm7759, %vm8303
        %vm8560 = vmor %vm7760, %vm8304
        %vm8561 = vmor %vm7761, %vm8305
        %vm8562 = vmor %vm7762, %vm8306
        %vm8563 = vmor %vm7763, %vm8307
        %vm8564 = vmor %vm7764, %vm8308
        %vm8565 = vmor %vm7765, %vm8309
        %vm8566 = vmor %vm7766, %vm8310
        %vm8567 = vmor %vm7767, %vm8311
        %vm8568 = vmor %vm7768, %vm8312
        %vm8569 = vmor %vm7769, %vm8313
        %vm8570 = vmor %vm7770, %vm8314
        %vm8571 = vmor %vm7771, %vm8315
        %vm8572 = vmor %vm7772, %vm8316
        %vm8573 = vmor %vm7773, %vm8317
        %vm8574 = vmor %vm7774, %vm8318
        %vm8575 = vmor %vm7775, %vm8319
        %vm8576 = vmor %vm7776, %vm8320
        %vm8577 = vmor %vm7777, %vm8321
        %vm8578 = vmor %vm7778, %vm8322
        %vm8579 = vmor %vm7779, %vm8323
        %vm8580 = vmor %vm7780, %vm8324
        %vm8581 = vmor %vm7781, %vm8325
        %vm8582 = vmor %vm7782, %vm8326
        %vm8583 = vmor %vm7783, %vm8327
        %vm8584 = vmor %vm7784, %vm8328
        %vm8585 = vmor %vm7785, %vm8329
        %vm8586 = vmor %vm7786, %vm8330
        %vm8587 = vmor %vm7787, %vm8331
        %vm8588 = vmor %vm7788, %vm8332
        %vm8589 = vmor %vm7789, %vm8333
        %vm8590 = vmor %vm7790, %vm8334
        %vm8591 = vmor %vm7791, %vm8335
        %vm8592 = vmor %vm7792, %vm8336
        %vm8593 = vmor %vm7793, %vm8337
        %vm8594 = vmor %vm7794, %vm8338
        %vm8595 = vmor %vm7795, %vm8339
        %vm8596 = vmor %vm7796, %vm8340
        %vm8597 = vmor %vm7797, %vm8341
        %vm8598 = vmor %vm7798, %vm8342
        %vm8599 = vmor %vm7799, %vm8343
        %vm8600 = vmor %vm7800, %vm8344
        %vm8601 = vmor %vm7801, %vm8345
        %vm8602 = vmor %vm7802, %vm8346
        %vm8603 = vmor %vm7803, %vm8347
        %vm8604 = vmor %vm7804, %vm8348
        %vm8605 = vmor %vm7805, %vm8349
        %vm8606 = vmor %vm7806, %vm8350
        %vm8607 = vmor %vm7807, %vm8351
        %vm8608 = vmor %vm7808, %vm8352
        %vm8609 = vmor %vm7809, %vm8353
        %vm8610 = vmor %vm7810, %vm8354
        %vm8611 = vmor %vm7811, %vm8355
        %vm8612 = vmor %vm7812, %vm8356
        %vm8613 = vmor %vm7813, %vm8357
        %vm8614 = vmor %vm7814, %vm8358
        %vm8615 = vmor %vm7815, %vm8359
        %vm8616 = vmor %vm7816, %vm8360
        %vm8617 = vmor %vm7817, %vm8361
        %vm8618 = vmor %vm7818, %vm8362
        %vm8619 = vmor %vm7819, %vm8363
        %vm8620 = vmor %vm7820, %vm8364
        %vm8621 = vmor %vm7821, %vm8365
        %vm8622 = vmor %vm7822, %vm8366
        %vm8623 = vmor %vm7823, %vm8367
        %vm8624 = vmor %vm7824, %vm8368
        %vm8625 = vmor %vm7825, %vm8369
        %v8626 = vsel %vm8370, 1, 0
        %v8627 = vsel %vm8371, 1, 0
        %v8628 = vsel %vm8372, 1, 0
        %v8629 = vsel %vm8373, 1, 0
        %v8630 = vsel %vm8374, 1, 0
        %v8631 = vsel %vm8375, 1, 0
        %v8632 = vsel %vm8376, 1, 0
        %v8633 = vsel %vm8377, 1, 0
        %v8634 = vsel %vm8378, 1, 0
        %v8635 = vsel %vm8379, 1, 0
        %v8636 = vsel %vm8380, 1, 0
        %v8637 = vsel %vm8381, 1, 0
        %v8638 = vsel %vm8382, 1, 0
        %v8639 = vsel %vm8383, 1, 0
        %v8640 = vsel %vm8384, 1, 0
        %v8641 = vsel %vm8385, 1, 0
        %v8642 = vsel %vm8386, 1, 0
        %v8643 = vsel %vm8387, 1, 0
        %v8644 = vsel %vm8388, 1, 0
        %v8645 = vsel %vm8389, 1, 0
        %v8646 = vsel %vm8390, 1, 0
        %v8647 = vsel %vm8391, 1, 0
        %v8648 = vsel %vm8392, 1, 0
        %v8649 = vsel %vm8393, 1, 0
        %v8650 = vsel %vm8394, 1, 0
        %v8651 = vsel %vm8395, 1, 0
        %v8652 = vsel %vm8396, 1, 0
        %v8653 = vsel %vm8397, 1, 0
        %v8654 = vsel %vm8398, 1, 0
        %v8655 = vsel %vm8399, 1, 0
        %v8656 = vsel %vm8400, 1, 0
        %v8657 = vsel %vm8401, 1, 0
        %v8658 = vsel %vm8402, 1, 0
        %v8659 = vsel %vm8403, 1, 0
        %v8660 = vsel %vm8404, 1, 0
        %v8661 = vsel %vm8405, 1, 0
        %v8662 = vsel %vm8406, 1, 0
        %v8663 = vsel %vm8407, 1, 0
        %v8664 = vsel %vm8408, 1, 0
        %v8665 = vsel %vm8409, 1, 0
        %v8666 = vsel %vm8410, 1, 0
        %v8667 = vsel %vm8411, 1, 0
        %v8668 = vsel %vm8412, 1, 0
        %v8669 = vsel %vm8413, 1, 0
        %v8670 = vsel %vm8414, 1, 0
        %v8671 = vsel %vm8415, 1, 0
        %v8672 = vsel %vm8416, 1, 0
        %v8673 = vsel %vm8417, 1, 0
        %v8674 = vsel %vm8418, 1, 0
        %v8675 = vsel %vm8419, 1, 0
        %v8676 = vsel %vm8420, 1, 0
        %v8677 = vsel %vm8421, 1, 0
        %v8678 = vsel %vm8422, 1, 0
        %v8679 = vsel %vm8423, 1, 0
        %v8680 = vsel %vm8424, 1, 0
        %v8681 = vsel %vm8425, 1, 0
        %v8682 = vsel %vm8426, 1, 0
        %v8683 = vsel %vm8427, 1, 0
        %v8684 = vsel %vm8428, 1, 0
        %v8685 = vsel %vm8429, 1, 0
        %v8686 = vsel %vm8430, 1, 0
        %v8687 = vsel %vm8431, 1, 0
        %v8688 = vsel %vm8432, 1, 0
        %v8689 = vsel %vm8433, 1, 0
        %v8690 = vsel %vm8434, 1, 0
        %v8691 = vsel %vm8435, 1, 0
        %v8692 = vsel %vm8436, 1, 0
        %v8693 = vsel %vm8437, 1, 0
        %v8694 = vsel %vm8438, 1, 0
        %v8695 = vsel %vm8439, 1, 0
        %v8696 = vsel %vm8440, 1, 0
        %v8697 = vsel %vm8441, 1, 0
        %v8698 = vsel %vm8442, 1, 0
        %v8699 = vsel %vm8443, 1, 0
        %v8700 = vsel %vm8444, 1, 0
        %v8701 = vsel %vm8445, 1, 0
        %v8702 = vsel %vm8446, 1, 0
        %v8703 = vsel %vm8447, 1, 0
        %v8704 = vsel %vm8448, 1, 0
        %v8705 = vsel %vm8449, 1, 0
        %v8706 = vsel %vm8450, 1, 0
        %v8707 = vsel %vm8451, 1, 0
        %v8708 = vsel %vm8452, 1, 0
        %v8709 = vsel %vm8453, 1, 0
        %v8710 = vsel %vm8454, 1, 0
        %v8711 = vsel %vm8455, 1, 0
        %v8712 = vsel %vm8456, 1, 0
        %v8713 = vsel %vm8457, 1, 0
        %v8714 = vsel %vm8458, 1, 0
        %v8715 = vsel %vm8459, 1, 0
        %v8716 = vsel %vm8460, 1, 0
        %v8717 = vsel %vm8461, 1, 0
        %v8718 = vsel %vm8462, 1, 0
        %v8719 = vsel %vm8463, 1, 0
        %v8720 = vsel %vm8464, 1, 0
        %v8721 = vsel %vm8465, 1, 0
        %v8722 = vsel %vm8466, 1, 0
        %v8723 = vsel %vm8467, 1, 0
        %v8724 = vsel %vm8468, 1, 0
        %v8725 = vsel %vm8469, 1, 0
        %v8726 = vsel %vm8470, 1, 0
        %v8727 = vsel %vm8471, 1, 0
        %v8728 = vsel %vm8472, 1, 0
        %v8729 = vsel %vm8473, 1, 0
        %v8730 = vsel %vm8474, 1, 0
        %v8731 = vsel %vm8475, 1, 0
        %v8732 = vsel %vm8476, 1, 0
        %v8733 = vsel %vm8477, 1, 0
        %v8734 = vsel %vm8478, 1, 0
        %v8735 = vsel %vm8479, 1, 0
        %v8736 = vsel %vm8480, 1, 0
        %v8737 = vsel %vm8481, 1, 0
        %v8738 = vsel %vm8482, 1, 0
        %v8739 = vsel %vm8483, 1, 0
        %v8740 = vsel %vm8484, 1, 0
        %v8741 = vsel %vm8485, 1, 0
        %v8742 = vsel %vm8486, 1, 0
        %v8743 = vsel %vm8487, 1, 0
        %v8744 = vsel %vm8488, 1, 0
        %v8745 = vsel %vm8489, 1, 0
        %v8746 = vsel %vm8490, 1, 0
        %v8747 = vsel %vm8491, 1, 0
        %v8748 = vsel %vm8492, 1, 0
        %v8749 = vsel %vm8493, 1, 0
        %v8750 = vsel %vm8494, 1, 0
        %v8751 = vsel %vm8495, 1, 0
        %v8752 = vsel %vm8496, 1, 0
        %v8753 = vsel %vm8497, 1, 0
        %v8754 = vsel %vm8498, 1, 0
        %v8755 = vsel %vm8499, 1, 0
        %v8756 = vsel %vm8500, 1, 0
        %v8757 = vsel %vm8501, 1, 0
        %v8758 = vsel %vm8502, 1, 0
        %v8759 = vsel %vm8503, 1, 0
        %v8760 = vsel %vm8504, 1, 0
        %v8761 = vsel %vm8505, 1, 0
        %v8762 = vsel %vm8506, 1, 0
        %v8763 = vsel %vm8507, 1, 0
        %v8764 = vsel %vm8508, 1, 0
        %v8765 = vsel %vm8509, 1, 0
        %v8766 = vsel %vm8510, 1, 0
        %v8767 = vsel %vm8511, 1, 0
        %v8768 = vsel %vm8512, 1, 0
        %v8769 = vsel %vm8513, 1, 0
        %v8770 = vsel %vm8514, 1, 0
        %v8771 = vsel %vm8515, 1, 0
        %v8772 = vsel %vm8516, 1, 0
        %v8773 = vsel %vm8517, 1, 0
        %v8774 = vsel %vm8518, 1, 0
        %v8775 = vsel %vm8519, 1, 0
        %v8776 = vsel %vm8520, 1, 0
        %v8777 = vsel %vm8521, 1, 0
        %v8778 = vsel %vm8522, 1, 0
        %v8779 = vsel %vm8523, 1, 0
        %v8780 = vsel %vm8524, 1, 0
        %v8781 = vsel %vm8525, 1, 0
        %v8782 = vsel %vm8526, 1, 0
        %v8783 = vsel %vm8527, 1, 0
        %v8784 = vsel %vm8528, 1, 0
        %v8785 = vsel %vm8529, 1, 0
        %v8786 = vsel %vm8530, 1, 0
        %v8787 = vsel %vm8531, 1, 0
        %v8788 = vsel %vm8532, 1, 0
        %v8789 = vsel %vm8533, 1, 0
        %v8790 = vsel %vm8534, 1, 0
        %v8791 = vsel %vm8535, 1, 0
        %v8792 = vsel %vm8536, 1, 0
        %v8793 = vsel %vm8537, 1, 0
        %v8794 = vsel %vm8538, 1, 0
        %v8795 = vsel %vm8539, 1, 0
        %v8796 = vsel %vm8540, 1, 0
        %v8797 = vsel %vm8541, 1, 0
        %v8798 = vsel %vm8542, 1, 0
        %v8799 = vsel %vm8543, 1, 0
        %v8800 = vsel %vm8544, 1, 0
        %v8801 = vsel %vm8545, 1, 0
        %v8802 = vsel %vm8546, 1, 0
        %v8803 = vsel %vm8547, 1, 0
        %v8804 = vsel %vm8548, 1, 0
        %v8805 = vsel %vm8549, 1, 0
        %v8806 = vsel %vm8550, 1, 0
        %v8807 = vsel %vm8551, 1, 0
        %v8808 = vsel %vm8552, 1, 0
        %v8809 = vsel %vm8553, 1, 0
        %v8810 = vsel %vm8554, 1, 0
        %v8811 = vsel %vm8555, 1, 0
        %v8812 = vsel %vm8556, 1, 0
        %v8813 = vsel %vm8557, 1, 0
        %v8814 = vsel %vm8558, 1, 0
        %v8815 = vsel %vm8559, 1, 0
        %v8816 = vsel %vm8560, 1, 0
        %v8817 = vsel %vm8561, 1, 0
        %v8818 = vsel %vm8562, 1, 0
        %v8819 = vsel %vm8563, 1, 0
        %v8820 = vsel %vm8564, 1, 0
        %v8821 = vsel %vm8565, 1, 0
        %v8822 = vsel %vm8566, 1, 0
        %v8823 = vsel %vm8567, 1, 0
        %v8824 = vsel %vm8568, 1, 0
        %v8825 = vsel %vm8569, 1, 0
        %v8826 = vsel %vm8570, 1, 0
        %v8827 = vsel %vm8571, 1, 0
        %v8828 = vsel %vm8572, 1, 0
        %v8829 = vsel %vm8573, 1, 0
        %v8830 = vsel %vm8574, 1, 0
        %v8831 = vsel %vm8575, 1, 0
        %v8832 = vsel %vm8576, 1, 0
        %v8833 = vsel %vm8577, 1, 0
        %v8834 = vsel %vm8578, 1, 0
        %v8835 = vsel %vm8579, 1, 0
        %v8836 = vsel %vm8580, 1, 0
        %v8837 = vsel %vm8581, 1, 0
        %v8838 = vsel %vm8582, 1, 0
        %v8839 = vsel %vm8583, 1, 0
        %v8840 = vsel %vm8584, 1, 0
        %v8841 = vsel %vm8585, 1, 0
        %v8842 = vsel %vm8586, 1, 0
        %v8843 = vsel %vm8587, 1, 0
        %v8844 = vsel %vm8588, 1, 0
        %v8845 = vsel %vm8589, 1, 0
        %v8846 = vsel %vm8590, 1, 0
        %v8847 = vsel %vm8591, 1, 0
        %v8848 = vsel %vm8592, 1, 0
        %v8849 = vsel %vm8593, 1, 0
        %v8850 = vsel %vm8594, 1, 0
        %v8851 = vsel %vm8595, 1, 0
        %v8852 = vsel %vm8596, 1, 0
        %v8853 = vsel %vm8597, 1, 0
        %v8854 = vsel %vm8598, 1, 0
        %v8855 = vsel %vm8599, 1, 0
        %v8856 = vsel %vm8600, 1, 0
        %v8857 = vsel %vm8601, 1, 0
        %v8858 = vsel %vm8602, 1, 0
        %v8859 = vsel %vm8603, 1, 0
        %v8860 = vsel %vm8604, 1, 0
        %v8861 = vsel %vm8605, 1, 0
        %v8862 = vsel %vm8606, 1, 0
        %v8863 = vsel %vm8607, 1, 0
        %v8864 = vsel %vm8608, 1, 0
        %v8865 = vsel %vm8609, 1, 0
        %v8866 = vsel %vm8610, 1, 0
        %v8867 = vsel %vm8611, 1, 0
        %v8868 = vsel %vm8612, 1, 0
        %v8869 = vsel %vm8613, 1, 0
        %v8870 = vsel %vm8614, 1, 0
        %v8871 = vsel %vm8615, 1, 0
        %v8872 = vsel %vm8616, 1, 0
        %v8873 = vsel %vm8617, 1, 0
        %v8874 = vsel %vm8618, 1, 0
        %v8875 = vsel %vm8619, 1, 0
        %v8876 = vsel %vm8620, 1, 0
        %v8877 = vsel %vm8621, 1, 0
        %v8878 = vsel %vm8622, 1, 0
        %v8879 = vsel %vm8623, 1, 0
        %v8880 = vsel %vm8624, 1, 0
        %v8881 = vsel %vm8625, 1, 0
        %v8882 = vcvt.s32.f32 %v8626
        %v8883 = vcvt.s32.f32 %v8627
        %v8884 = vcvt.s32.f32 %v8628
        %v8885 = vcvt.s32.f32 %v8629
        %v8886 = vcvt.s32.f32 %v8630
        %v8887 = vcvt.s32.f32 %v8631
        %v8888 = vcvt.s32.f32 %v8632
        %v8889 = vcvt.s32.f32 %v8633
        %v8890 = vcvt.s32.f32 %v8634
        %v8891 = vcvt.s32.f32 %v8635
        %v8892 = vcvt.s32.f32 %v8636
        %v8893 = vcvt.s32.f32 %v8637
        %v8894 = vcvt.s32.f32 %v8638
        %v8895 = vcvt.s32.f32 %v8639
        %v8896 = vcvt.s32.f32 %v8640
        %v8897 = vcvt.s32.f32 %v8641
        %v8898 = vcvt.s32.f32 %v8642
        %v8899 = vcvt.s32.f32 %v8643
        %v8900 = vcvt.s32.f32 %v8644
        %v8901 = vcvt.s32.f32 %v8645
        %v8902 = vcvt.s32.f32 %v8646
        %v8903 = vcvt.s32.f32 %v8647
        %v8904 = vcvt.s32.f32 %v8648
        %v8905 = vcvt.s32.f32 %v8649
        %v8906 = vcvt.s32.f32 %v8650
        %v8907 = vcvt.s32.f32 %v8651
        %v8908 = vcvt.s32.f32 %v8652
        %v8909 = vcvt.s32.f32 %v8653
        %v8910 = vcvt.s32.f32 %v8654
        %v8911 = vcvt.s32.f32 %v8655
        %v8912 = vcvt.s32.f32 %v8656
        %v8913 = vcvt.s32.f32 %v8657
        %v8914 = vcvt.s32.f32 %v8658
        %v8915 = vcvt.s32.f32 %v8659
        %v8916 = vcvt.s32.f32 %v8660
        %v8917 = vcvt.s32.f32 %v8661
        %v8918 = vcvt.s32.f32 %v8662
        %v8919 = vcvt.s32.f32 %v8663
        %v8920 = vcvt.s32.f32 %v8664
        %v8921 = vcvt.s32.f32 %v8665
        %v8922 = vcvt.s32.f32 %v8666
        %v8923 = vcvt.s32.f32 %v8667
        %v8924 = vcvt.s32.f32 %v8668
        %v8925 = vcvt.s32.f32 %v8669
        %v8926 = vcvt.s32.f32 %v8670
        %v8927 = vcvt.s32.f32 %v8671
        %v8928 = vcvt.s32.f32 %v8672
        %v8929 = vcvt.s32.f32 %v8673
        %v8930 = vcvt.s32.f32 %v8674
        %v8931 = vcvt.s32.f32 %v8675
        %v8932 = vcvt.s32.f32 %v8676
        %v8933 = vcvt.s32.f32 %v8677
        %v8934 = vcvt.s32.f32 %v8678
        %v8935 = vcvt.s32.f32 %v8679
        %v8936 = vcvt.s32.f32 %v8680
        %v8937 = vcvt.s32.f32 %v8681
        %v8938 = vcvt.s32.f32 %v8682
        %v8939 = vcvt.s32.f32 %v8683
        %v8940 = vcvt.s32.f32 %v8684
        %v8941 = vcvt.s32.f32 %v8685
        %v8942 = vcvt.s32.f32 %v8686
        %v8943 = vcvt.s32.f32 %v8687
        %v8944 = vcvt.s32.f32 %v8688
        %v8945 = vcvt.s32.f32 %v8689
        %v8946 = vcvt.s32.f32 %v8690
        %v8947 = vcvt.s32.f32 %v8691
        %v8948 = vcvt.s32.f32 %v8692
        %v8949 = vcvt.s32.f32 %v8693
        %v8950 = vcvt.s32.f32 %v8694
        %v8951 = vcvt.s32.f32 %v8695
        %v8952 = vcvt.s32.f32 %v8696
        %v8953 = vcvt.s32.f32 %v8697
        %v8954 = vcvt.s32.f32 %v8698
        %v8955 = vcvt.s32.f32 %v8699
        %v8956 = vcvt.s32.f32 %v8700
        %v8957 = vcvt.s32.f32 %v8701
        %v8958 = vcvt.s32.f32 %v8702
        %v8959 = vcvt.s32.f32 %v8703
        %v8960 = vcvt.s32.f32 %v8704
        %v8961 = vcvt.s32.f32 %v8705
        %v8962 = vcvt.s32.f32 %v8706
        %v8963 = vcvt.s32.f32 %v8707
        %v8964 = vcvt.s32.f32 %v8708
        %v8965 = vcvt.s32.f32 %v8709
        %v8966 = vcvt.s32.f32 %v8710
        %v8967 = vcvt.s32.f32 %v8711
        %v8968 = vcvt.s32.f32 %v8712
        %v8969 = vcvt.s32.f32 %v8713
        %v8970 = vcvt.s32.f32 %v8714
        %v8971 = vcvt.s32.f32 %v8715
        %v8972 = vcvt.s32.f32 %v8716
        %v8973 = vcvt.s32.f32 %v8717
        %v8974 = vcvt.s32.f32 %v8718
        %v8975 = vcvt.s32.f32 %v8719
        %v8976 = vcvt.s32.f32 %v8720
        %v8977 = vcvt.s32.f32 %v8721
        %v8978 = vcvt.s32.f32 %v8722
        %v8979 = vcvt.s32.f32 %v8723
        %v8980 = vcvt.s32.f32 %v8724
        %v8981 = vcvt.s32.f32 %v8725
        %v8982 = vcvt.s32.f32 %v8726
        %v8983 = vcvt.s32.f32 %v8727
        %v8984 = vcvt.s32.f32 %v8728
        %v8985 = vcvt.s32.f32 %v8729
        %v8986 = vcvt.s32.f32 %v8730
        %v8987 = vcvt.s32.f32 %v8731
        %v8988 = vcvt.s32.f32 %v8732
        %v8989 = vcvt.s32.f32 %v8733
        %v8990 = vcvt.s32.f32 %v8734
        %v8991 = vcvt.s32.f32 %v8735
        %v8992 = vcvt.s32.f32 %v8736
        %v8993 = vcvt.s32.f32 %v8737
        %v8994 = vcvt.s32.f32 %v8738
        %v8995 = vcvt.s32.f32 %v8739
        %v8996 = vcvt.s32.f32 %v8740
        %v8997 = vcvt.s32.f32 %v8741
        %v8998 = vcvt.s32.f32 %v8742
        %v8999 = vcvt.s32.f32 %v8743
        %v9000 = vcvt.s32.f32 %v8744
        %v9001 = vcvt.s32.f32 %v8745
        %v9002 = vcvt.s32.f32 %v8746
        %v9003 = vcvt.s32.f32 %v8747
        %v9004 = vcvt.s32.f32 %v8748
        %v9005 = vcvt.s32.f32 %v8749
        %v9006 = vcvt.s32.f32 %v8750
        %v9007 = vcvt.s32.f32 %v8751
        %v9008 = vcvt.s32.f32 %v8752
        %v9009 = vcvt.s32.f32 %v8753
        %v9010 = vcvt.s32.f32 %v8754
        %v9011 = vcvt.s32.f32 %v8755
        %v9012 = vcvt.s32.f32 %v8756
        %v9013 = vcvt.s32.f32 %v8757
        %v9014 = vcvt.s32.f32 %v8758
        %v9015 = vcvt.s32.f32 %v8759
        %v9016 = vcvt.s32.f32 %v8760
        %v9017 = vcvt.s32.f32 %v8761
        %v9018 = vcvt.s32.f32 %v8762
        %v9019 = vcvt.s32.f32 %v8763
        %v9020 = vcvt.s32.f32 %v8764
        %v9021 = vcvt.s32.f32 %v8765
        %v9022 = vcvt.s32.f32 %v8766
        %v9023 = vcvt.s32.f32 %v8767
        %v9024 = vcvt.s32.f32 %v8768
        %v9025 = vcvt.s32.f32 %v8769
        %v9026 = vcvt.s32.f32 %v8770
        %v9027 = vcvt.s32.f32 %v8771
        %v9028 = vcvt.s32.f32 %v8772
        %v9029 = vcvt.s32.f32 %v8773
        %v9030 = vcvt.s32.f32 %v8774
        %v9031 = vcvt.s32.f32 %v8775
        %v9032 = vcvt.s32.f32 %v8776
        %v9033 = vcvt.s32.f32 %v8777
        %v9034 = vcvt.s32.f32 %v8778
        %v9035 = vcvt.s32.f32 %v8779
        %v9036 = vcvt.s32.f32 %v8780
        %v9037 = vcvt.s32.f32 %v8781
        %v9038 = vcvt.s32.f32 %v8782
        %v9039 = vcvt.s32.f32 %v8783
        %v9040 = vcvt.s32.f32 %v8784
        %v9041 = vcvt.s32.f32 %v8785
        %v9042 = vcvt.s32.f32 %v8786
        %v9043 = vcvt.s32.f32 %v8787
        %v9044 = vcvt.s32.f32 %v8788
        %v9045 = vcvt.s32.f32 %v8789
        %v9046 = vcvt.s32.f32 %v8790
        %v9047 = vcvt.s32.f32 %v8791
        %v9048 = vcvt.s32.f32 %v8792
        %v9049 = vcvt.s32.f32 %v8793
        %v9050 = vcvt.s32.f32 %v8794
        %v9051 = vcvt.s32.f32 %v8795
        %v9052 = vcvt.s32.f32 %v8796
        %v9053 = vcvt.s32.f32 %v8797
        %v9054 = vcvt.s32.f32 %v8798
        %v9055 = vcvt.s32.f32 %v8799
        %v9056 = vcvt.s32.f32 %v8800
        %v9057 = vcvt.s32.f32 %v8801
        %v9058 = vcvt.s32.f32 %v8802
        %v9059 = vcvt.s32.f32 %v8803
        %v9060 = vcvt.s32.f32 %v8804
        %v9061 = vcvt.s32.f32 %v8805
        %v9062 = vcvt.s32.f32 %v8806
        %v9063 = vcvt.s32.f32 %v8807
        %v9064 = vcvt.s32.f32 %v8808
        %v9065 = vcvt.s32.f32 %v8809
        %v9066 = vcvt.s32.f32 %v8810
        %v9067 = vcvt.s32.f32 %v8811
        %v9068 = vcvt.s32.f32 %v8812
        %v9069 = vcvt.s32.f32 %v8813
        %v9070 = vcvt.s32.f32 %v8814
        %v9071 = vcvt.s32.f32 %v8815
        %v9072 = vcvt.s32.f32 %v8816
        %v9073 = vcvt.s32.f32 %v8817
        %v9074 = vcvt.s32.f32 %v8818
        %v9075 = vcvt.s32.f32 %v8819
        %v9076 = vcvt.s32.f32 %v8820
        %v9077 = vcvt.s32.f32 %v8821
        %v9078 = vcvt.s32.f32 %v8822
        %v9079 = vcvt.s32.f32 %v8823
        %v9080 = vcvt.s32.f32 %v8824
        %v9081 = vcvt.s32.f32 %v8825
        %v9082 = vcvt.s32.f32 %v8826
        %v9083 = vcvt.s32.f32 %v8827
        %v9084 = vcvt.s32.f32 %v8828
        %v9085 = vcvt.s32.f32 %v8829
        %v9086 = vcvt.s32.f32 %v8830
        %v9087 = vcvt.s32.f32 %v8831
        %v9088 = vcvt.s32.f32 %v8832
        %v9089 = vcvt.s32.f32 %v8833
        %v9090 = vcvt.s32.f32 %v8834
        %v9091 = vcvt.s32.f32 %v8835
        %v9092 = vcvt.s32.f32 %v8836
        %v9093 = vcvt.s32.f32 %v8837
        %v9094 = vcvt.s32.f32 %v8838
        %v9095 = vcvt.s32.f32 %v8839
        %v9096 = vcvt.s32.f32 %v8840
        %v9097 = vcvt.s32.f32 %v8841
        %v9098 = vcvt.s32.f32 %v8842
        %v9099 = vcvt.s32.f32 %v8843
        %v9100 = vcvt.s32.f32 %v8844
        %v9101 = vcvt.s32.f32 %v8845
        %v9102 = vcvt.s32.f32 %v8846
        %v9103 = vcvt.s32.f32 %v8847
        %v9104 = vcvt.s32.f32 %v8848
        %v9105 = vcvt.s32.f32 %v8849
        %v9106 = vcvt.s32.f32 %v8850
        %v9107 = vcvt.s32.f32 %v8851
        %v9108 = vcvt.s32.f32 %v8852
        %v9109 = vcvt.s32.f32 %v8853
        %v9110 = vcvt.s32.f32 %v8854
        %v9111 = vcvt.s32.f32 %v8855
        %v9112 = vcvt.s32.f32 %v8856
        %v9113 = vcvt.s32.f32 %v8857
        %v9114 = vcvt.s32.f32 %v8858
        %v9115 = vcvt.s32.f32 %v8859
        %v9116 = vcvt.s32.f32 %v8860
        %v9117 = vcvt.s32.f32 %v8861
        %v9118 = vcvt.s32.f32 %v8862
        %v9119 = vcvt.s32.f32 %v8863
        %v9120 = vcvt.s32.f32 %v8864
        %v9121 = vcvt.s32.f32 %v8865
        %v9122 = vcvt.s32.f32 %v8866
        %v9123 = vcvt.s32.f32 %v8867
        %v9124 = vcvt.s32.f32 %v8868
        %v9125 = vcvt.s32.f32 %v8869
        %v9126 = vcvt.s32.f32 %v8870
        %v9127 = vcvt.s32.f32 %v8871
        %v9128 = vcvt.s32.f32 %v8872
        %v9129 = vcvt.s32.f32 %v8873
        %v9130 = vcvt.s32.f32 %v8874
        %v9131 = vcvt.s32.f32 %v8875
        %v9132 = vcvt.s32.f32 %v8876
        %v9133 = vcvt.s32.f32 %v8877
        %v9134 = vcvt.s32.f32 %v8878
        %v9135 = vcvt.s32.f32 %v8879
        %v9136 = vcvt.s32.f32 %v8880
        %v9137 = vcvt.s32.f32 %v8881
        %v9138 = vadd.f32 %v8882, %v8884
        %v9139 = vadd.f32 %v9138, %v8886
        %v9140 = vadd.f32 %v9139, %v8888
        %v9141 = vadd.f32 %v9140, %v8890
        %v9142 = vadd.f32 %v9141, %v8892
        %v9143 = vadd.f32 %v9142, %v8894
        %v9144 = vadd.f32 %v9143, %v8896
        %v9145 = vadd.f32 %v9144, %v8898
        %v9146 = vadd.f32 %v9145, %v8900
        %v9147 = vadd.f32 %v9146, %v8902
        %v9148 = vadd.f32 %v9147, %v8904
        %v9149 = vadd.f32 %v9148, %v8906
        %v9150 = vadd.f32 %v9149, %v8908
        %v9151 = vadd.f32 %v9150, %v8910
        %v9152 = vadd.f32 %v9151, %v8912
        %v9153 = vrot.slane %v9152, 4
        %v9154 = vadd.f32 %v9152, %v9153
        %v9155 = vrot.slane %v9154, 2
        %v9156 = vadd.f32 %v9154, %v9155
        %v9157 = vrot.slane %v9156, 1
        %v9158 = vadd.f32 %v9156, %v9157
        %v9159 = vadd.f32 %v8883, %v8885
        %v9160 = vadd.f32 %v9159, %v8887
        %v9161 = vadd.f32 %v9160, %v8889
        %v9162 = vadd.f32 %v9161, %v8891
        %v9163 = vadd.f32 %v9162, %v8893
        %v9164 = vadd.f32 %v9163, %v8895
        %v9165 = vadd.f32 %v9164, %v8897
        %v9166 = vadd.f32 %v9165, %v8899
        %v9167 = vadd.f32 %v9166, %v8901
        %v9168 = vadd.f32 %v9167, %v8903
        %v9169 = vadd.f32 %v9168, %v8905
        %v9170 = vadd.f32 %v9169, %v8907
        %v9171 = vadd.f32 %v9170, %v8909
        %v9172 = vadd.f32 %v9171, %v8911
        %v9173 = vadd.f32 %v9172, %v8913
        %v9174 = vrot.slane %v9173, 4
        %v9175 = vadd.f32 %v9173, %v9174
        %v9176 = vrot.slane %v9175, 2
        %v9177 = vadd.f32 %v9175, %v9176
        %v9178 = vrot.slane %v9177, 1
        %v9179 = vadd.f32 %v9177, %v9178
        %v9180 = vadd.f32 %v8914, %v8916
        %v9181 = vadd.f32 %v9180, %v8918
        %v9182 = vadd.f32 %v9181, %v8920
        %v9183 = vadd.f32 %v9182, %v8922
        %v9184 = vadd.f32 %v9183, %v8924
        %v9185 = vadd.f32 %v9184, %v8926
        %v9186 = vadd.f32 %v9185, %v8928
        %v9187 = vadd.f32 %v9186, %v8930
        %v9188 = vadd.f32 %v9187, %v8932
        %v9189 = vadd.f32 %v9188, %v8934
        %v9190 = vadd.f32 %v9189, %v8936
        %v9191 = vadd.f32 %v9190, %v8938
        %v9192 = vadd.f32 %v9191, %v8940
        %v9193 = vadd.f32 %v9192, %v8942
        %v9194 = vadd.f32 %v9193, %v8944
        %v9195 = vrot.slane %v9194, 4
        %v9196 = vadd.f32 %v9194, %v9195
        %v9197 = vrot.slane %v9196, 2
        %v9198 = vadd.f32 %v9196, %v9197
        %v9199 = vrot.slane %v9198, 1
        %v9200 = vadd.f32 %v9198, %v9199
        %v9201 = vadd.f32 %v8915, %v8917
        %v9202 = vadd.f32 %v9201, %v8919
        %v9203 = vadd.f32 %v9202, %v8921
        %v9204 = vadd.f32 %v9203, %v8923
        %v9205 = vadd.f32 %v9204, %v8925
        %v9206 = vadd.f32 %v9205, %v8927
        %v9207 = vadd.f32 %v9206, %v8929
        %v9208 = vadd.f32 %v9207, %v8931
        %v9209 = vadd.f32 %v9208, %v8933
        %v9210 = vadd.f32 %v9209, %v8935
        %v9211 = vadd.f32 %v9210, %v8937
        %v9212 = vadd.f32 %v9211, %v8939
        %v9213 = vadd.f32 %v9212, %v8941
        %v9214 = vadd.f32 %v9213, %v8943
        %v9215 = vadd.f32 %v9214, %v8945
        %v9216 = vrot.slane %v9215, 4
        %v9217 = vadd.f32 %v9215, %v9216
        %v9218 = vrot.slane %v9217, 2
        %v9219 = vadd.f32 %v9217, %v9218
        %v9220 = vrot.slane %v9219, 1
        %v9221 = vadd.f32 %v9219, %v9220
        %v9222 = vadd.f32 %v8946, %v8948
        %v9223 = vadd.f32 %v9222, %v8950
        %v9224 = vadd.f32 %v9223, %v8952
        %v9225 = vadd.f32 %v9224, %v8954
        %v9226 = vadd.f32 %v9225, %v8956
        %v9227 = vadd.f32 %v9226, %v8958
        %v9228 = vadd.f32 %v9227, %v8960
        %v9229 = vadd.f32 %v9228, %v8962
        %v9230 = vadd.f32 %v9229, %v8964
        %v9231 = vadd.f32 %v9230, %v8966
        %v9232 = vadd.f32 %v9231, %v8968
        %v9233 = vadd.f32 %v9232, %v8970
        %v9234 = vadd.f32 %v9233, %v8972
        %v9235 = vadd.f32 %v9234, %v8974
        %v9236 = vadd.f32 %v9235, %v8976
        %v9237 = vrot.slane %v9236, 4
        %v9238 = vadd.f32 %v9236, %v9237
        %v9239 = vrot.slane %v9238, 2
        %v9240 = vadd.f32 %v9238, %v9239
        %v9241 = vrot.slane %v9240, 1
        %v9242 = vadd.f32 %v9240, %v9241
        %v9243 = vadd.f32 %v8947, %v8949
        %v9244 = vadd.f32 %v9243, %v8951
        %v9245 = vadd.f32 %v9244, %v8953
        %v9246 = vadd.f32 %v9245, %v8955
        %v9247 = vadd.f32 %v9246, %v8957
        %v9248 = vadd.f32 %v9247, %v8959
        %v9249 = vadd.f32 %v9248, %v8961
        %v9250 = vadd.f32 %v9249, %v8963
        %v9251 = vadd.f32 %v9250, %v8965
        %v9252 = vadd.f32 %v9251, %v8967
        %v9253 = vadd.f32 %v9252, %v8969
        %v9254 = vadd.f32 %v9253, %v8971
        %v9255 = vadd.f32 %v9254, %v8973
        %v9256 = vadd.f32 %v9255, %v8975
        %v9257 = vadd.f32 %v9256, %v8977
        %v9258 = vrot.slane %v9257, 4
        %v9259 = vadd.f32 %v9257, %v9258
        %v9260 = vrot.slane %v9259, 2
        %v9261 = vadd.f32 %v9259, %v9260
        %v9262 = vrot.slane %v9261, 1
        %v9263 = vadd.f32 %v9261, %v9262
        %v9264 = vadd.f32 %v8978, %v8980
        %v9265 = vadd.f32 %v9264, %v8982
        %v9266 = vadd.f32 %v9265, %v8984
        %v9267 = vadd.f32 %v9266, %v8986
        %v9268 = vadd.f32 %v9267, %v8988
        %v9269 = vadd.f32 %v9268, %v8990
        %v9270 = vadd.f32 %v9269, %v8992
        %v9271 = vadd.f32 %v9270, %v8994
        %v9272 = vadd.f32 %v9271, %v8996
        %v9273 = vadd.f32 %v9272, %v8998
        %v9274 = vadd.f32 %v9273, %v9000
        %v9275 = vadd.f32 %v9274, %v9002
        %v9276 = vadd.f32 %v9275, %v9004
        %v9277 = vadd.f32 %v9276, %v9006
        %v9278 = vadd.f32 %v9277, %v9008
        %v9279 = vrot.slane %v9278, 4
        %v9280 = vadd.f32 %v9278, %v9279
        %v9281 = vrot.slane %v9280, 2
        %v9282 = vadd.f32 %v9280, %v9281
        %v9283 = vrot.slane %v9282, 1
        %v9284 = vadd.f32 %v9282, %v9283
        %v9285 = vadd.f32 %v8979, %v8981
        %v9286 = vadd.f32 %v9285, %v8983
        %v9287 = vadd.f32 %v9286, %v8985
        %v9288 = vadd.f32 %v9287, %v8987
        %v9289 = vadd.f32 %v9288, %v8989
        %v9290 = vadd.f32 %v9289, %v8991
        %v9291 = vadd.f32 %v9290, %v8993
        %v9292 = vadd.f32 %v9291, %v8995
        %v9293 = vadd.f32 %v9292, %v8997
        %v9294 = vadd.f32 %v9293, %v8999
        %v9295 = vadd.f32 %v9294, %v9001
        %v9296 = vadd.f32 %v9295, %v9003
        %v9297 = vadd.f32 %v9296, %v9005
        %v9298 = vadd.f32 %v9297, %v9007
        %v9299 = vadd.f32 %v9298, %v9009
        %v9300 = vrot.slane %v9299, 4
        %v9301 = vadd.f32 %v9299, %v9300
        %v9302 = vrot.slane %v9301, 2
        %v9303 = vadd.f32 %v9301, %v9302
        %v9304 = vrot.slane %v9303, 1
        %v9305 = vadd.f32 %v9303, %v9304
        %v9306 = vadd.f32 %v9010, %v9012
        %v9307 = vadd.f32 %v9306, %v9014
        %v9308 = vadd.f32 %v9307, %v9016
        %v9309 = vadd.f32 %v9308, %v9018
        %v9310 = vadd.f32 %v9309, %v9020
        %v9311 = vadd.f32 %v9310, %v9022
        %v9312 = vadd.f32 %v9311, %v9024
        %v9313 = vadd.f32 %v9312, %v9026
        %v9314 = vadd.f32 %v9313, %v9028
        %v9315 = vadd.f32 %v9314, %v9030
        %v9316 = vadd.f32 %v9315, %v9032
        %v9317 = vadd.f32 %v9316, %v9034
        %v9318 = vadd.f32 %v9317, %v9036
        %v9319 = vadd.f32 %v9318, %v9038
        %v9320 = vadd.f32 %v9319, %v9040
        %v9321 = vrot.slane %v9320, 4
        %v9322 = vadd.f32 %v9320, %v9321
        %v9323 = vrot.slane %v9322, 2
        %v9324 = vadd.f32 %v9322, %v9323
        %v9325 = vrot.slane %v9324, 1
        %v9326 = vadd.f32 %v9324, %v9325
        %v9327 = vadd.f32 %v9011, %v9013
        %v9328 = vadd.f32 %v9327, %v9015
        %v9329 = vadd.f32 %v9328, %v9017
        %v9330 = vadd.f32 %v9329, %v9019
        %v9331 = vadd.f32 %v9330, %v9021
        %v9332 = vadd.f32 %v9331, %v9023
        %v9333 = vadd.f32 %v9332, %v9025
        %v9334 = vadd.f32 %v9333, %v9027
        %v9335 = vadd.f32 %v9334, %v9029
        %v9336 = vadd.f32 %v9335, %v9031
        %v9337 = vadd.f32 %v9336, %v9033
        %v9338 = vadd.f32 %v9337, %v9035
        %v9339 = vadd.f32 %v9338, %v9037
        %v9340 = vadd.f32 %v9339, %v9039
        %v9341 = vadd.f32 %v9340, %v9041
        %v9342 = vrot.slane %v9341, 4
        %v9343 = vadd.f32 %v9341, %v9342
        %v9344 = vrot.slane %v9343, 2
        %v9345 = vadd.f32 %v9343, %v9344
        %v9346 = vrot.slane %v9345, 1
        %v9347 = vadd.f32 %v9345, %v9346
        %v9348 = vadd.f32 %v9042, %v9044
        %v9349 = vadd.f32 %v9348, %v9046
        %v9350 = vadd.f32 %v9349, %v9048
        %v9351 = vadd.f32 %v9350, %v9050
        %v9352 = vadd.f32 %v9351, %v9052
        %v9353 = vadd.f32 %v9352, %v9054
        %v9354 = vadd.f32 %v9353, %v9056
        %v9355 = vadd.f32 %v9354, %v9058
        %v9356 = vadd.f32 %v9355, %v9060
        %v9357 = vadd.f32 %v9356, %v9062
        %v9358 = vadd.f32 %v9357, %v9064
        %v9359 = vadd.f32 %v9358, %v9066
        %v9360 = vadd.f32 %v9359, %v9068
        %v9361 = vadd.f32 %v9360, %v9070
        %v9362 = vadd.f32 %v9361, %v9072
        %v9363 = vrot.slane %v9362, 4
        %v9364 = vadd.f32 %v9362, %v9363
        %v9365 = vrot.slane %v9364, 2
        %v9366 = vadd.f32 %v9364, %v9365
        %v9367 = vrot.slane %v9366, 1
        %v9368 = vadd.f32 %v9366, %v9367
        %v9369 = vadd.f32 %v9043, %v9045
        %v9370 = vadd.f32 %v9369, %v9047
        %v9371 = vadd.f32 %v9370, %v9049
        %v9372 = vadd.f32 %v9371, %v9051
        %v9373 = vadd.f32 %v9372, %v9053
        %v9374 = vadd.f32 %v9373, %v9055
        %v9375 = vadd.f32 %v9374, %v9057
        %v9376 = vadd.f32 %v9375, %v9059
        %v9377 = vadd.f32 %v9376, %v9061
        %v9378 = vadd.f32 %v9377, %v9063
        %v9379 = vadd.f32 %v9378, %v9065
        %v9380 = vadd.f32 %v9379, %v9067
        %v9381 = vadd.f32 %v9380, %v9069
        %v9382 = vadd.f32 %v9381, %v9071
        %v9383 = vadd.f32 %v9382, %v9073
        %v9384 = vrot.slane %v9383, 4
        %v9385 = vadd.f32 %v9383, %v9384
        %v9386 = vrot.slane %v9385, 2
        %v9387 = vadd.f32 %v9385, %v9386
        %v9388 = vrot.slane %v9387, 1
        %v9389 = vadd.f32 %v9387, %v9388
        %v9390 = vadd.f32 %v9074, %v9076
        %v9391 = vadd.f32 %v9390, %v9078
        %v9392 = vadd.f32 %v9391, %v9080
        %v9393 = vadd.f32 %v9392, %v9082
        %v9394 = vadd.f32 %v9393, %v9084
        %v9395 = vadd.f32 %v9394, %v9086
        %v9396 = vadd.f32 %v9395, %v9088
        %v9397 = vadd.f32 %v9396, %v9090
        %v9398 = vadd.f32 %v9397, %v9092
        %v9399 = vadd.f32 %v9398, %v9094
        %v9400 = vadd.f32 %v9399, %v9096
        %v9401 = vadd.f32 %v9400, %v9098
        %v9402 = vadd.f32 %v9401, %v9100
        %v9403 = vadd.f32 %v9402, %v9102
        %v9404 = vadd.f32 %v9403, %v9104
        %v9405 = vrot.slane %v9404, 4
        %v9406 = vadd.f32 %v9404, %v9405
        %v9407 = vrot.slane %v9406, 2
        %v9408 = vadd.f32 %v9406, %v9407
        %v9409 = vrot.slane %v9408, 1
        %v9410 = vadd.f32 %v9408, %v9409
        %v9411 = vadd.f32 %v9075, %v9077
        %v9412 = vadd.f32 %v9411, %v9079
        %v9413 = vadd.f32 %v9412, %v9081
        %v9414 = vadd.f32 %v9413, %v9083
        %v9415 = vadd.f32 %v9414, %v9085
        %v9416 = vadd.f32 %v9415, %v9087
        %v9417 = vadd.f32 %v9416, %v9089
        %v9418 = vadd.f32 %v9417, %v9091
        %v9419 = vadd.f32 %v9418, %v9093
        %v9420 = vadd.f32 %v9419, %v9095
        %v9421 = vadd.f32 %v9420, %v9097
        %v9422 = vadd.f32 %v9421, %v9099
        %v9423 = vadd.f32 %v9422, %v9101
        %v9424 = vadd.f32 %v9423, %v9103
        %v9425 = vadd.f32 %v9424, %v9105
        %v9426 = vrot.slane %v9425, 4
        %v9427 = vadd.f32 %v9425, %v9426
        %v9428 = vrot.slane %v9427, 2
        %v9429 = vadd.f32 %v9427, %v9428
        %v9430 = vrot.slane %v9429, 1
        %v9431 = vadd.f32 %v9429, %v9430
        %v9432 = vadd.f32 %v9106, %v9108
        %v9433 = vadd.f32 %v9432, %v9110
        %v9434 = vadd.f32 %v9433, %v9112
        %v9435 = vadd.f32 %v9434, %v9114
        %v9436 = vadd.f32 %v9435, %v9116
        %v9437 = vadd.f32 %v9436, %v9118
        %v9438 = vadd.f32 %v9437, %v9120
        %v9439 = vadd.f32 %v9438, %v9122
        %v9440 = vadd.f32 %v9439, %v9124
        %v9441 = vadd.f32 %v9440, %v9126
        %v9442 = vadd.f32 %v9441, %v9128
        %v9443 = vadd.f32 %v9442, %v9130
        %v9444 = vadd.f32 %v9443, %v9132
        %v9445 = vadd.f32 %v9444, %v9134
        %v9446 = vadd.f32 %v9445, %v9136
        %v9447 = vrot.slane %v9446, 4
        %v9448 = vadd.f32 %v9446, %v9447
        %v9449 = vrot.slane %v9448, 2
        %v9450 = vadd.f32 %v9448, %v9449
        %v9451 = vrot.slane %v9450, 1
        %v9452 = vadd.f32 %v9450, %v9451
        %v9453 = vadd.f32 %v9107, %v9109
        %v9454 = vadd.f32 %v9453, %v9111
        %v9455 = vadd.f32 %v9454, %v9113
        %v9456 = vadd.f32 %v9455, %v9115
        %v9457 = vadd.f32 %v9456, %v9117
        %v9458 = vadd.f32 %v9457, %v9119
        %v9459 = vadd.f32 %v9458, %v9121
        %v9460 = vadd.f32 %v9459, %v9123
        %v9461 = vadd.f32 %v9460, %v9125
        %v9462 = vadd.f32 %v9461, %v9127
        %v9463 = vadd.f32 %v9462, %v9129
        %v9464 = vadd.f32 %v9463, %v9131
        %v9465 = vadd.f32 %v9464, %v9133
        %v9466 = vadd.f32 %v9465, %v9135
        %v9467 = vadd.f32 %v9466, %v9137
        %v9468 = vrot.slane %v9467, 4
        %v9469 = vadd.f32 %v9467, %v9468
        %v9470 = vrot.slane %v9469, 2
        %v9471 = vadd.f32 %v9469, %v9470
        %v9472 = vrot.slane %v9471, 1
        %v9473 = vadd.f32 %v9471, %v9472
        %v9474 = vadd.f32 %v6642, %v9158
        %v9475 = vadd.f32 %v6643, %v9179
        %v9476 = vadd.f32 %v6644, %v9200
        %v9477 = vadd.f32 %v6645, %v9221
        %v9478 = vadd.f32 %v6646, %v9242
        %v9479 = vadd.f32 %v6647, %v9263
        %v9480 = vadd.f32 %v6648, %v9284
        %v9481 = vadd.f32 %v6649, %v9305
        %v9482 = vadd.f32 %v6650, %v9326
        %v9483 = vadd.f32 %v6651, %v9347
        %v9484 = vadd.f32 %v6652, %v9368
        %v9485 = vadd.f32 %v6653, %v9389
        %v9486 = vadd.f32 %v6654, %v9410
        %v9487 = vadd.f32 %v6655, %v9431
        %v9488 = vadd.f32 %v6656, %v9452
        %v9489 = vadd.f32 %v6657, %v9473
        %v9490 = vsel %vm2365, 1, 0
        %v9491 = vsel %vm2366, 1, 0
        %v9492 = vsel %vm2367, 1, 0
        %v9493 = vsel %vm2368, 1, 0
        %v9494 = vsel %vm2369, 1, 0
        %v9495 = vsel %vm2370, 1, 0
        %v9496 = vsel %vm2371, 1, 0
        %v9497 = vsel %vm2372, 1, 0
        %v9498 = vsel %vm2373, 1, 0
        %v9499 = vsel %vm2374, 1, 0
        %v9500 = vsel %vm2375, 1, 0
        %v9501 = vsel %vm2376, 1, 0
        %v9502 = vsel %vm2377, 1, 0
        %v9503 = vsel %vm2378, 1, 0
        %v9504 = vsel %vm2379, 1, 0
        %v9505 = vsel %vm2380, 1, 0
        %v9506 = vcvt.s32.f32 %v9490
        %v9507 = vcvt.s32.f32 %v9491
        %v9508 = vcvt.s32.f32 %v9492
        %v9509 = vcvt.s32.f32 %v9493
        %v9510 = vcvt.s32.f32 %v9494
        %v9511 = vcvt.s32.f32 %v9495
        %v9512 = vcvt.s32.f32 %v9496
        %v9513 = vcvt.s32.f32 %v9497
        %v9514 = vcvt.s32.f32 %v9498
        %v9515 = vcvt.s32.f32 %v9499
        %v9516 = vcvt.s32.f32 %v9500
        %v9517 = vcvt.s32.f32 %v9501
        %v9518 = vcvt.s32.f32 %v9502
        %v9519 = vcvt.s32.f32 %v9503
        %v9520 = vcvt.s32.f32 %v9504
        %v9521 = vcvt.s32.f32 %v9505
        %v9522 = vadd.f32 %v9506, %v9507
        %9523 = vadd.xlane.f32.xlu0 %v9522
        %v9524 = vpop.xlane.xlu0 %9523
        %v9525 = vadd.f32 %v9508, %v9509
        %9526 = vadd.xlane.f32.xlu0 %v9525
        %v9527 = vpop.xlane.xlu0 %9526
        %v9528 = vadd.f32 %v9510, %v9511
        %9529 = vadd.xlane.f32.xlu0 %v9528
        %v9530 = vpop.xlane.xlu0 %9529
        %v9531 = vadd.f32 %v9512, %v9513
        %9532 = vadd.xlane.f32.xlu0 %v9531
        %v9533 = vpop.xlane.xlu0 %9532
        %v9534 = vadd.f32 %v9514, %v9515
        %9535 = vadd.xlane.f32.xlu0 %v9534
        %v9536 = vpop.xlane.xlu0 %9535
        %v9537 = vadd.f32 %v9516, %v9517
        %9538 = vadd.xlane.f32.xlu0 %v9537
        %v9539 = vpop.xlane.xlu0 %9538
        %v9540 = vadd.f32 %v9518, %v9519
        %9541 = vadd.xlane.f32.xlu0 %v9540
        %v9542 = vpop.xlane.xlu0 %9541
        %v9543 = vadd.f32 %v9520, %v9521
        %9544 = vadd.xlane.f32.xlu0 %v9543
        %v9545 = vpop.xlane.xlu0 %9544
        %v9546 = vmul.f32 %v9524, 3.0
        %v9547 = vmul.f32 %v9527, 3.0
        %v9548 = vmul.f32 %v9530, 3.0
        %v9549 = vmul.f32 %v9533, 3.0
        %v9550 = vmul.f32 %v9536, 3.0
        %v9551 = vmul.f32 %v9539, 3.0
        %v9552 = vmul.f32 %v9542, 3.0
        %v9553 = vmul.f32 %v9545, 3.0
        %v9554 = vmin.f32 %v9546, 255.0
        %v9555 = vmin.f32 %v9547, 255.0
        %v9556 = vmin.f32 %v9548, 255.0
        %v9557 = vmin.f32 %v9549, 255.0
        %v9558 = vmin.f32 %v9550, 255.0
        %v9559 = vmin.f32 %v9551, 255.0
        %v9560 = vmin.f32 %v9552, 255.0
        %v9561 = vmin.f32 %v9553, 255.0
        %vm9562 = vcmp.lt.f32.partialorder %v9474, %v9554
        %vm9563 = vcmp.lt.f32.partialorder %v9475, %v9554
        %vm9564 = vcmp.lt.f32.partialorder %v9476, %v9555
        %vm9565 = vcmp.lt.f32.partialorder %v9477, %v9555
        %vm9566 = vcmp.lt.f32.partialorder %v9478, %v9556
        %vm9567 = vcmp.lt.f32.partialorder %v9479, %v9556
        %vm9568 = vcmp.lt.f32.partialorder %v9480, %v9557
        %vm9569 = vcmp.lt.f32.partialorder %v9481, %v9557
        %vm9570 = vcmp.lt.f32.partialorder %v9482, %v9558
        %vm9571 = vcmp.lt.f32.partialorder %v9483, %v9558
        %vm9572 = vcmp.lt.f32.partialorder %v9484, %v9559
        %vm9573 = vcmp.lt.f32.partialorder %v9485, %v9559
        %vm9574 = vcmp.lt.f32.partialorder %v9486, %v9560
        %vm9575 = vcmp.lt.f32.partialorder %v9487, %v9560
        %vm9576 = vcmp.lt.f32.partialorder %v9488, %v9561
        %vm9577 = vcmp.lt.f32.partialorder %v9489, %v9561
        %vm9578 = vmor %vm2365, %vm9562
        %vm9579 = vmor %vm2366, %vm9563
        %vm9580 = vmor %vm2367, %vm9564
        %vm9581 = vmor %vm2368, %vm9565
        %vm9582 = vmor %vm2369, %vm9566
        %vm9583 = vmor %vm2370, %vm9567
        %vm9584 = vmor %vm2371, %vm9568
        %vm9585 = vmor %vm2372, %vm9569
        %vm9586 = vmor %vm2373, %vm9570
        %vm9587 = vmor %vm2374, %vm9571
        %vm9588 = vmor %vm2375, %vm9572
        %vm9589 = vmor %vm2376, %vm9573
        %vm9590 = vmor %vm2377, %vm9574
        %vm9591 = vmor %vm2378, %vm9575
        %vm9592 = vmor %vm2379, %vm9576
        %vm9593 = vmor %vm2380, %vm9577
        %v9594 = vsel %vm9578, %v3795, 0.0
        %v9595 = vsel %vm9579, %v3796, 0.0
        %v9596 = vsel %vm9580, %v3797, 0.0
        %v9597 = vsel %vm9581, %v3798, 0.0
        %v9598 = vsel %vm9582, %v3799, 0.0
        %v9599 = vsel %vm9583, %v3800, 0.0
        %v9600 = vsel %vm9584, %v3801, 0.0
        %v9601 = vsel %vm9585, %v3802, 0.0
        %v9602 = vsel %vm9586, %v3803, 0.0
        %v9603 = vsel %vm9587, %v3804, 0.0
        %v9604 = vsel %vm9588, %v3805, 0.0
        %v9605 = vsel %vm9589, %v3806, 0.0
        %v9606 = vsel %vm9590, %v3807, 0.0
        %v9607 = vsel %vm9591, %v3808, 0.0
        %v9608 = vsel %vm9592, %v3809, 0.0
        %v9609 = vsel %vm9593, %v3810, 0.0
        %v9610 = vadd.f32 %v9594, %v9595
        %9611 = vadd.xlane.f32.xlu0 %v9610
        %v9612 = vpop.xlane.xlu0 %9611
        %v9613 = vadd.f32 %v9596, %v9597
        %9614 = vadd.xlane.f32.xlu0 %v9613
        %v9615 = vpop.xlane.xlu0 %9614
        %v9616 = vadd.f32 %v9598, %v9599
        %9617 = vadd.xlane.f32.xlu0 %v9616
        %v9618 = vpop.xlane.xlu0 %9617
        %v9619 = vadd.f32 %v9600, %v9601
        %9620 = vadd.xlane.f32.xlu0 %v9619
        %v9621 = vpop.xlane.xlu0 %9620
        %v9622 = vadd.f32 %v9602, %v9603
        %9623 = vadd.xlane.f32.xlu0 %v9622
        %v9624 = vpop.xlane.xlu0 %9623
        %v9625 = vadd.f32 %v9604, %v9605
        %9626 = vadd.xlane.f32.xlu0 %v9625
        %v9627 = vpop.xlane.xlu0 %9626
        %v9628 = vadd.f32 %v9606, %v9607
        %9629 = vadd.xlane.f32.xlu0 %v9628
        %v9630 = vpop.xlane.xlu0 %9629
        %v9631 = vadd.f32 %v9608, %v9609
        %9632 = vadd.xlane.f32.xlu0 %v9631
        %v9633 = vpop.xlane.xlu0 %9632
        %v9634 = vstv %s298
        %v9635 = vadd.s32 %v9634, %v851
        %vm9636 = vcmp.lt.s32.totalorder %v9635, 10
        %vm9637 = vcmp.eq.s32.totalorder %v848, 0
        %v9638 = vsel %vm9637, 1, 0
        %v9639 = vcvt.s32.f32 %v9638
        %v9648 = vrot.slane %v3300, 7
        %vm9649 = vcmask 1041409
        %v9650 = vsel %vm9649, %v9648, %v3295
        %v9651 = vrot.slane %v3305, 6
        %vm9652 = vcmask 1042434
        %v9653 = vsel %vm9652, %v9651, %v9650
        %v9654 = vrot.slane %v3310, 5
        %vm9655 = vcmask 1043459
        %v9656 = vsel %vm9655, %v9654, %v9653
        %v9657 = vrot.slane %v3315, 4
        %vm9658 = vcmask 1044484
        %v9659 = vsel %vm9658, %v9657, %v9656
        %v9660 = vrot.slane %v3320, 3
        %vm9661 = vcmask 1045509
        %v9662 = vsel %vm9661, %v9660, %v9659
        %v9663 = vrot.slane %v3325, 2
        %vm9664 = vcmask 1046534
        %v9665 = vsel %vm9664, %v9663, %v9662
        %v9666 = vrot.slane %v3330, 1
        %vm9667 = vcmask 1047559
        %v9668 = vsel %vm9667, %v9666, %v9665
        %v9670 = vsel %vm9636, %v9668, 0.0
        %9672 = vset.pattern.permute.xlu0 0
        %9673 = vperm.xlu0 %9672, %v9670
        %v9674 = vpop.permute.xlu0 %9673
        %v9676 = vmul.f32 %v9674, %v9639
        %9677 = vst [vmem:[%s288] sm:$0xff] %v9676
        %v9686 = vsel %vm9649, %v9615, %v9612
        %v9687 = vsel %vm9652, %v9618, %v9686
        %v9688 = vsel %vm9655, %v9621, %v9687
        %v9689 = vsel %vm9658, %v9624, %v9688
        %v9690 = vsel %vm9661, %v9627, %v9689
        %v9691 = vsel %vm9664, %v9630, %v9690
        %v9692 = vsel %vm9667, %v9633, %v9691
        %v9694 = vsel %vm9636, %v9692, 0.0
        %9696 = vset.pattern.permute.xlu0 0
        %9697 = vperm.xlu0 %9696, %v9694
        %v9698 = vpop.permute.xlu0 %9697
        %v9700 = vmul.f32 %v9698, %v9639
        %9701 = vst [vmem:[%s295] sm:$0xff] %v9700
        %s9702 = sand.u32 %s131, 1
        %s9703 = scalar_lea.sflag [#allocation4], %s9702
        %s9704 = sand.u32 %s131, 1
        %s9705 = smul.addr %s9704, 8
        %s9706 = scalar_lea.vmem [#allocation7], %s9705
        %s9707 = sand.u32 %s157, 1
        %s9708 = scalar_lea.sflag [#allocation9], %s9707
        %s9709 = sand.u32 %s157, 1
        %s9710 = smul.addr %s9709, 8
        %s9711 = scalar_lea.vmem [#allocation8], %s9710
        // Predicated region
        $region45: #{tpu_custom_call.1} parent=35 // pred_check
          %p9712 = pneg %p141
        $region46: #{tpu_custom_call.1} parent=35 // pred_check_branch
          %9714 = sbr.rel (%p9712) target = $region48
        $region47: #{tpu_custom_call.1} parent=35 // pred_region
          %s9716 = ssub.s32 128, 128
          %9717 = vsyncadd %s9703, %s9716
          %s9718 = smul.addr %s29, 128
          %s9719 = scalar_lea.hbm %s4, %s9718
          %s9721 = sshll.u32 %s9706, 4
          %s9722 = int_to_ptr.vmem [resolvable:$true] %s9721
          %9724 = dma.vmem_to_hbm [thread:$0]  %s9722, 128, %s9719, %s9703
        $region48: #{tpu_custom_call.1} parent=35 // pred_fallthru
          _
        // Predicated region
        $region49: #{tpu_custom_call.1} parent=35 // pred_check
          %p9725 = pneg %p167
        $region50: #{tpu_custom_call.1} parent=35 // pred_check_branch
          %9727 = sbr.rel (%p9725) target = $region52
        $region51: #{tpu_custom_call.1} parent=35 // pred_region
          %s9729 = ssub.s32 128, 128
          %9730 = vsyncadd %s9708, %s9729
          %s9731 = smul.addr %s29, 128
          %s9732 = scalar_lea.hbm %s5, %s9731
          %s9734 = sshll.u32 %s9711, 4
          %s9735 = int_to_ptr.vmem [resolvable:$true] %s9734
          %9737 = dma.vmem_to_hbm [thread:$0]  %s9735, 128, %s9732, %s9708
        $region52: #{tpu_custom_call.1} parent=35 // pred_fallthru
          _
      $region36: #{tpu_custom_call.1} parent=5 // pred_fallthru
        _
      %p9738 = scmp.le.s32.totalorder 2, %s24
      // Predicated region
      $region53: #{tpu_custom_call.1} parent=5 // pred_check
        %p9739 = pneg %p9738
      $region54: #{tpu_custom_call.1} parent=5 // pred_check_branch
        %9741 = sbr.rel (%p9739) target = $region56
      $region55: #{tpu_custom_call.1} parent=5 // pred_region
        %s9742 = ssub.s32 %s24, 2
        // Predicated region
        $region57: #{tpu_custom_call.1} parent=55 // pred_check
          %p9743 = pneg %p147
        $region58: #{tpu_custom_call.1} parent=55 // pred_check_branch
          %9745 = sbr.rel (%p9743) target = $region60
        $region59: #{tpu_custom_call.1} parent=55 // pred_region
          %s9746 = sand.u32 %s132, 1
          %s9747 = scalar_lea.sflag [#allocation4], %s9746
          %s9748 = sand.u32 %s132, 1
          %s9749 = smul.addr %s9748, 8
          %s9750 = scalar_lea.vmem [#allocation7], %s9749
          %9751 = dma.done %s9747, 128
        $region60: #{tpu_custom_call.1} parent=55 // pred_fallthru
          _
        // Predicated region
        $region61: #{tpu_custom_call.1} parent=55 // pred_check
          %p9752 = pneg %p173
        $region62: #{tpu_custom_call.1} parent=55 // pred_check_branch
          %9754 = sbr.rel (%p9752) target = $region64
        $region63: #{tpu_custom_call.1} parent=55 // pred_region
          %s9755 = sand.u32 %s158, 1
          %s9756 = scalar_lea.sflag [#allocation9], %s9755
          %s9757 = sand.u32 %s158, 1
          %s9758 = smul.addr %s9757, 8
          %s9759 = scalar_lea.vmem [#allocation8], %s9758
          %9760 = dma.done %s9756, 128
        $region64: #{tpu_custom_call.1} parent=55 // pred_fallthru
          _
      $region56: #{tpu_custom_call.1} parent=5 // pred_fallthru
        _
    $region6: #{tpu_custom_call.1} parent=1 // loop_footer
      %s28 = sadd.s32 1, %s24
    $region7: #{tpu_custom_call.1} parent=1 // loop_footer_branch
      %23 = sbr.rel target = $region3
    $region8: #{tpu_custom_call.1} parent=1 // loop_exit
      _
    %9761 = vsyncpa [#allocation3], 1
    %s9762 = scalar_lea.sflag [#allocation3], 1
    %9763 = vsyncpa %s9762, 1
    %9764 = vsyncpa [#allocation6], 1
    %s9765 = scalar_lea.sflag [#allocation6], 1
    %9766 = vsyncpa %s9765, 1
    %9767 = vsyncpa [#allocation4], 1
    %s9768 = scalar_lea.sflag [#allocation4], 1
    %9769 = vsyncpa %s9768, 1
    %9770 = vsyncpa [#allocation9], 1
    %s9771 = scalar_lea.sflag [#allocation9], 1
    %9772 = vsyncpa %s9771, 1

</llo_original>
